<compile_context>
chip_gen: v7x
topology: tpu7x:2x2x1
jax: 0.10.0
libtpu: 0.0.40
codegen_flags: <defaults>
</compile_context>

<pallas_src>
import functools

import jax
import jax.numpy as jnp
from jax.experimental import pallas as pl
from jax.experimental.pallas import tpu as pltpu

NUM_CLASSES = 6
IN_PAD = 8      # input channels padded 3 -> 8
OUT_PAD = 128   # output classes padded num_classes -> 128 (lane-dense stores)
CHUNK = 256     # slice of the 1024 global-feature channels processed at once


def _relu(x):
    return jnp.maximum(x, 0.0)


def _mm(a, w):
    # bf16 x bf16 on the MXU, f32 accumulation.
    return jnp.dot(a.astype(jnp.bfloat16), w, preferred_element_type=jnp.float32)


def _mm16(a16, w):
    # Operand already bf16 (cast hoisted by the caller).
    return jnp.dot(a16, w, preferred_element_type=jnp.float32)


def pointnet_seg_kernel(
    x_ref,
    w1a_ref, b1a_ref, w1b_ref, b1b_ref,
    w2a_ref, b2a_ref, w2b_ref, b2b_ref, w2c_ref, b2c_ref,
    ws1a_l_ref, ws1a_g_ref, bs1a_ref, ws1b_ref, bs1b_ref,
    ws2a_ref, bs2a_ref, ws2b_ref, bs2b_ref,
    out_ref,
    *, bt, n,
):
    # One grid step == `bt` batch elements; per-point matmuls run on the
    # flattened (Bt*N, C) view so each MXU pass sees >= 256 rows.
    m = bt * n
    x = x_ref[...].reshape(m, IN_PAD)                                  # (M, 8)

    # mlp1: Conv1d(3,64,1)+BN+ReLU, Conv1d(64,64,1)+BN+ReLU
    h = _relu(_mm(x, w1a_ref[...]) + b1a_ref[...])                     # (M, 64)
    local = _relu(_mm(h, w1b_ref[...]) + b1b_ref[...])                 # (M, 64)
    local16 = local.astype(jnp.bfloat16)                               # reused twice

    # mlp2: 64->64, 64->128 (each BN+ReLU)
    h = _relu(_mm16(local16, w2a_ref[...]) + b2a_ref[...])             # (M, 64)
    h = _relu(_mm(h, w2b_ref[...]) + b2b_ref[...])                     # (M, 128)
    h16 = h.astype(jnp.bfloat16)                                       # reused per chunk

    # mlp2 last layer (128->1024, BN+ReLU) fused with the per-cloud max-pool,
    # processed CHUNK output channels at a time so the (M, 1024) activation is
    # never materialized. Only the tiny (Bt, 1024) max survives each chunk.
    n_chunks = w2c_ref.shape[1] // CHUNK
    g_parts = []
    for c in range(n_chunks):
        c0 = c * CHUNK
        h_c = _relu(_mm16(h16, w2c_ref[:, c0:c0 + CHUNK])
                    + b2c_ref[:, c0:c0 + CHUNK])                       # (M, CHUNK)
        g_parts.append(jnp.max(h_c.reshape(bt, n, CHUNK), axis=1))     # (Bt, CHUNK)
    g = jnp.concatenate(g_parts, axis=-1)                              # (Bt, 1024)

    # Global part of seg_mlp1's first layer: one small matmul.
    gproj = _mm(g, ws1a_g_ref[...])                                    # (Bt, 512)

    # seg_mlp1 layer 1 on concat([local, g_expanded], channel):
    #   concat(l, g) @ W == l @ W[:64] + g @ W[64:]  (gproj broadcasts over N)
    s = _mm16(local16, ws1a_l_ref[...]) + bs1a_ref[...]                # (M, 512)
    s = _relu(s.reshape(bt, n, -1) + gproj[:, None, :]).reshape(m, -1)
    s = _relu(_mm(s, ws1b_ref[...]) + bs1b_ref[...])                   # (M, 256)

    # seg_mlp2: 256->128 (BN+ReLU), 128->128-padded classes (no BN / no ReLU)
    s = _relu(_mm(s, ws2a_ref[...]) + bs2a_ref[...])                   # (M, 128)
    out = _mm(s, ws2b_ref[...]) + bs2b_ref[...]                        # (M, 128)

    out_ref[...] = out.reshape(bt, n, OUT_PAD).astype(out_ref.dtype)


def _fold_bn(w, b, gamma, beta, mean, var, eps=1e-5):
    """Fold eval-mode BN into the preceding 1x1 conv.

    w: (Cout, Cin) PyTorch conv weight (kernel dim squeezed), b: (Cout,).
    Returns kernel-layout (Cin, Cout) bf16 weight and (1, Cout) f32 bias.
    """
    scale = gamma / jnp.sqrt(var + eps)
    w_f = w * scale[:, None]
    b_f = (b - mean) * scale + beta
    return w_f.T.astype(jnp.bfloat16), b_f[None, :].astype(jnp.float32)


def init_params(key, num_classes=NUM_CLASSES):
    """Deterministic synthetic parameters matching the PyTorch module's shapes."""
    dims = [
        ("1a", 3, 64, True), ("1b", 64, 64, True),
        ("2a", 64, 64, True), ("2b", 64, 128, True), ("2c", 128, 1024, True),
        ("s1a", 1088, 512, True), ("s1b", 512, 256, True),
        ("s2a", 256, 128, True), ("s2b", 128, num_classes, False),
    ]
    params = {}
    for name, cin, cout, has_bn in dims:
        key, kw, kb, kg, kbe, km, kv = jax.random.split(key, 7)
        w = jax.random.normal(kw, (cout, cin), jnp.float32) * (1.0 / jnp.sqrt(cin))
        b = jax.random.normal(kb, (cout,), jnp.float32) * 0.02
        if has_bn:
            gamma = 1.0 + 0.1 * jax.random.normal(kg, (cout,), jnp.float32)
            beta = 0.1 * jax.random.normal(kbe, (cout,), jnp.float32)
            mean = 0.1 * jax.random.normal(km, (cout,), jnp.float32)
            var = jnp.abs(jax.random.normal(kv, (cout,), jnp.float32)) + 0.5
            wk, bk = _fold_bn(w, b, gamma, beta, mean, var)
        else:
            wk, bk = w.T.astype(jnp.bfloat16), b[None, :].astype(jnp.float32)
        params["w" + name] = wk
        params["b" + name] = bk

    # Split the 1088-channel seg_mlp1 first-layer weight into local / global.
    ws1a = params.pop("ws1a")                          # (1088, 512)
    params["ws1a_l"] = ws1a[:64]                       # (64, 512)   local features
    params["ws1a_g"] = ws1a[64:]                       # (1024, 512) global feature

    # Pad the 3-channel input layer to 8 input channels (zero rows contribute 0).
    params["w1a"] = jnp.pad(params["w1a"], ((0, IN_PAD - 3), (0, 0)))

    # Pad the final layer to 128 output columns for lane-dense stores.
    params["ws2b"] = jnp.pad(params["ws2b"], ((0, 0), (0, OUT_PAD - num_classes)))
    params["bs2b"] = jnp.pad(params["bs2b"], ((0, 0), (0, OUT_PAD - num_classes)))
    return params


def _pick_batch_tile(batch, n_points, max_rows=2048):
    """Largest divisor of `batch` whose stacked row count stays <= max_rows."""
    for cand in range(batch, 0, -1):
        if batch % cand == 0 and cand * n_points <= max_rows:
            return cand
    return 1


@functools.partial(jax.jit, static_argnames=("num_classes",))
def pointnet_seg_forward(x, params, num_classes=NUM_CLASSES):
    B, N, C = x.shape
    # Pad input channels 3 -> 8 for an aligned first-layer tile.
    x_pad = jnp.pad(x, ((0, 0), (0, 0), (0, IN_PAD - C)))

    bt = _pick_batch_tile(B, N)
    grid = (B // bt,)

    # Parameter order must match the kernel signature.
    weight_args = [
        params["w1a"], params["b1a"], params["w1b"], params["b1b"],
        params["w2a"], params["b2a"], params["w2b"], params["b2b"],
        params["w2c"], params["b2c"],
        params["ws1a_l"], params["ws1a_g"], params["bs1a"],
        params["ws1b"], params["bs1b"],
        params["ws2a"], params["bs2a"], params["ws2b"], params["bs2b"],
    ]

    in_specs = [pl.BlockSpec((bt, N, IN_PAD), lambda b: (b, 0, 0))]
    for p in weight_args:
        # Whole-array blocks with a constant index map: DMA'd once, reused
        # across all grid steps.
        in_specs.append(pl.BlockSpec(p.shape, lambda b, _nd=p.ndim: (0,) * _nd))

    out_specs = pl.BlockSpec((bt, N, OUT_PAD), lambda b: (b, 0, 0))

    grid_spec = pltpu.PrefetchScalarGridSpec(
        num_scalar_prefetch=0,
        grid=grid,
        in_specs=in_specs,
        out_specs=out_specs,
    )

    kernel = functools.partial(pointnet_seg_kernel, bt=bt, n=N)

    # TODO(synk): for very large N (>~4k points) add an N-tiled two-phase grid
    # (max/global accumulation pass + per-point head pass); the current
    # single-pass design keeps all N points of a batch tile resident in VMEM.
    out = pl.pallas_call(
        kernel,
        out_shape=jax.ShapeDtypeStruct((B, N, OUT_PAD), jnp.float32),
        grid_spec=grid_spec,
        compiler_params=pltpu.CompilerParams(
            dimension_semantics=("parallel",),
            vmem_limit_bytes=32 * 1024 * 1024,
        ),
    )(x_pad, *weight_args)

    # Drop the lane padding back down to the real class count.
    return out[..., :num_classes]


if __name__ == "__main__":
    key = jax.random.PRNGKey(0)
    k_param, k_x = jax.random.split(key)

    B, N = 2, 128  # batch of 2 point clouds with 128 points of (x, y, z)
    params = init_params(k_param)
    x = jax.random.normal(k_x, (B, N, 3), jnp.float32)

    out = pointnet_seg_forward(x, params)
    out = jax.block_until_ready(out)

    assert out.shape == (B, N, NUM_CLASSES), out.shape
    assert bool(jnp.all(jnp.isfinite(out)))
    print("KERNEL_OK")
</pallas_src>

<mosaic_0001>
module attributes {stable_mosaic.version = 11 : i64} {
  func.func @pointnet_seg_kernel(%arg0: i32, %arg1: memref<2x128x8xf32, #tpu.memory_space<vmem>>, %arg2: memref<8x64xbf16, #tpu.memory_space<vmem>>, %arg3: memref<1x64xf32, #tpu.memory_space<vmem>>, %arg4: memref<64x64xbf16, #tpu.memory_space<vmem>>, %arg5: memref<1x64xf32, #tpu.memory_space<vmem>>, %arg6: memref<64x64xbf16, #tpu.memory_space<vmem>>, %arg7: memref<1x64xf32, #tpu.memory_space<vmem>>, %arg8: memref<64x128xbf16, #tpu.memory_space<vmem>>, %arg9: memref<1x128xf32, #tpu.memory_space<vmem>>, %arg10: memref<128x1024xbf16, #tpu.memory_space<vmem>>, %arg11: memref<1x1024xf32, #tpu.memory_space<vmem>>, %arg12: memref<64x512xbf16, #tpu.memory_space<vmem>>, %arg13: memref<1024x512xbf16, #tpu.memory_space<vmem>>, %arg14: memref<1x512xf32, #tpu.memory_space<vmem>>, %arg15: memref<512x256xbf16, #tpu.memory_space<vmem>>, %arg16: memref<1x256xf32, #tpu.memory_space<vmem>>, %arg17: memref<256x128xbf16, #tpu.memory_space<vmem>>, %arg18: memref<1x128xf32, #tpu.memory_space<vmem>>, %arg19: memref<128x128xbf16, #tpu.memory_space<vmem>>, %arg20: memref<1x128xf32, #tpu.memory_space<vmem>>, %arg21: memref<2x128x128xf32, #tpu.memory_space<vmem>>) attributes {dimension_semantics = [#tpu.dimension_semantics<parallel>], iteration_bounds = array<i64: 1>, scalar_prefetch = 0 : i64, scratch_operands = 0 : i64, tpu.core_type = #tpu.core_type<tc>, window_params = [{transform_indices = @transform_0, window_bounds = array<i64: 2, 128, 8>}, {pipeline_mode = #tpu.pipeline_mode<synchronous>, transform_indices = @transform_1, window_bounds = array<i64: 8, 64>}, {pipeline_mode = #tpu.pipeline_mode<synchronous>, transform_indices = @transform_2, window_bounds = array<i64: 1, 64>}, {pipeline_mode = #tpu.pipeline_mode<synchronous>, transform_indices = @transform_3, window_bounds = array<i64: 64, 64>}, {pipeline_mode = #tpu.pipeline_mode<synchronous>, transform_indices = @transform_4, window_bounds = array<i64: 1, 64>}, {pipeline_mode = #tpu.pipeline_mode<synchronous>, transform_indices = @transform_5, window_bounds = array<i64: 64, 64>}, {pipeline_mode = #tpu.pipeline_mode<synchronous>, transform_indices = @transform_6, window_bounds = array<i64: 1, 64>}, {pipeline_mode = #tpu.pipeline_mode<synchronous>, transform_indices = @transform_7, window_bounds = array<i64: 64, 128>}, {pipeline_mode = #tpu.pipeline_mode<synchronous>, transform_indices = @transform_8, window_bounds = array<i64: 1, 128>}, {pipeline_mode = #tpu.pipeline_mode<synchronous>, transform_indices = @transform_9, window_bounds = array<i64: 128, 1024>}, {pipeline_mode = #tpu.pipeline_mode<synchronous>, transform_indices = @transform_10, window_bounds = array<i64: 1, 1024>}, {pipeline_mode = #tpu.pipeline_mode<synchronous>, transform_indices = @transform_11, window_bounds = array<i64: 64, 512>}, {pipeline_mode = #tpu.pipeline_mode<synchronous>, transform_indices = @transform_12, window_bounds = array<i64: 1024, 512>}, {pipeline_mode = #tpu.pipeline_mode<synchronous>, transform_indices = @transform_13, window_bounds = array<i64: 1, 512>}, {pipeline_mode = #tpu.pipeline_mode<synchronous>, transform_indices = @transform_14, window_bounds = array<i64: 512, 256>}, {pipeline_mode = #tpu.pipeline_mode<synchronous>, transform_indices = @transform_15, window_bounds = array<i64: 1, 256>}, {pipeline_mode = #tpu.pipeline_mode<synchronous>, transform_indices = @transform_16, window_bounds = array<i64: 256, 128>}, {pipeline_mode = #tpu.pipeline_mode<synchronous>, transform_indices = @transform_17, window_bounds = array<i64: 1, 128>}, {pipeline_mode = #tpu.pipeline_mode<synchronous>, transform_indices = @transform_18, window_bounds = array<i64: 128, 128>}, {pipeline_mode = #tpu.pipeline_mode<synchronous>, transform_indices = @transform_19, window_bounds = array<i64: 1, 128>}, {transform_indices = @transform_20, window_bounds = array<i64: 2, 128, 128>}]} {
    %c0 = arith.constant 0 : index
    %c0_0 = arith.constant 0 : index
    %c0_1 = arith.constant 0 : index
    %0 = vector.load %arg1[%c0, %c0_0, %c0_1] : memref<2x128x8xf32, #tpu.memory_space<vmem>>, vector<2x128x8xf32>
    %1 = vector.shape_cast %0 : vector<2x128x8xf32> to vector<256x8xf32>
    %c0_2 = arith.constant 0 : index
    %c0_3 = arith.constant 0 : index
    %2 = vector.load %arg2[%c0_2, %c0_3] : memref<8x64xbf16, #tpu.memory_space<vmem>>, vector<8x64xbf16>
    %3 = arith.truncf %1 : vector<256x8xf32> to vector<256x8xbf16>
    %cst = arith.constant dense<0.000000e+00> : vector<256x64xf32>
    %4 = tpu.matmul %3, %2, %cst {dimension_numbers = #tpu.dot_dimension_numbers<[1], [0], [0], [1], [0, 0, 1, 1], [], []>} : vector<256x8xbf16>, vector<8x64xbf16>, vector<256x64xf32> -> vector<256x64xf32>
    %c0_4 = arith.constant 0 : index
    %c0_5 = arith.constant 0 : index
    %5 = vector.load %arg3[%c0_4, %c0_5] : memref<1x64xf32, #tpu.memory_space<vmem>>, vector<1x64xf32>
    %6 = vector.broadcast %5 : vector<1x64xf32> to vector<256x64xf32>
    %7 = arith.addf %4, %6 : vector<256x64xf32>
    %cst_6 = arith.constant 0.000000e+00 : f32
    %8 = vector.broadcast %cst_6 : f32 to vector<256x64xf32>
    %9 = arith.maximumf %7, %8 : vector<256x64xf32>
    %c0_7 = arith.constant 0 : index
    %c0_8 = arith.constant 0 : index
    %10 = vector.load %arg4[%c0_7, %c0_8] : memref<64x64xbf16, #tpu.memory_space<vmem>>, vector<64x64xbf16>
    %11 = arith.truncf %9 : vector<256x64xf32> to vector<256x64xbf16>
    %cst_9 = arith.constant dense<0.000000e+00> : vector<256x64xf32>
    %12 = tpu.matmul %11, %10, %cst_9 {dimension_numbers = #tpu.dot_dimension_numbers<[1], [0], [0], [1], [0, 0, 1, 1], [], []>} : vector<256x64xbf16>, vector<64x64xbf16>, vector<256x64xf32> -> vector<256x64xf32>
    %c0_10 = arith.constant 0 : index
    %c0_11 = arith.constant 0 : index
    %13 = vector.load %arg5[%c0_10, %c0_11] : memref<1x64xf32, #tpu.memory_space<vmem>>, vector<1x64xf32>
    %14 = vector.broadcast %13 : vector<1x64xf32> to vector<256x64xf32>
    %15 = arith.addf %12, %14 : vector<256x64xf32>
    %cst_12 = arith.constant 0.000000e+00 : f32
    %16 = vector.broadcast %cst_12 : f32 to vector<256x64xf32>
    %17 = arith.maximumf %15, %16 : vector<256x64xf32>
    %18 = arith.truncf %17 : vector<256x64xf32> to vector<256x64xbf16>
    %c0_13 = arith.constant 0 : index
    %c0_14 = arith.constant 0 : index
    %19 = vector.load %arg6[%c0_13, %c0_14] : memref<64x64xbf16, #tpu.memory_space<vmem>>, vector<64x64xbf16>
    %cst_15 = arith.constant dense<0.000000e+00> : vector<256x64xf32>
    %20 = tpu.matmul %18, %19, %cst_15 {dimension_numbers = #tpu.dot_dimension_numbers<[1], [0], [0], [1], [0, 0, 1, 1], [], []>} : vector<256x64xbf16>, vector<64x64xbf16>, vector<256x64xf32> -> vector<256x64xf32>
    %c0_16 = arith.constant 0 : index
    %c0_17 = arith.constant 0 : index
    %21 = vector.load %arg7[%c0_16, %c0_17] : memref<1x64xf32, #tpu.memory_space<vmem>>, vector<1x64xf32>
    %22 = vector.broadcast %21 : vector<1x64xf32> to vector<256x64xf32>
    %23 = arith.addf %20, %22 : vector<256x64xf32>
    %cst_18 = arith.constant 0.000000e+00 : f32
    %24 = vector.broadcast %cst_18 : f32 to vector<256x64xf32>
    %25 = arith.maximumf %23, %24 : vector<256x64xf32>
    %c0_19 = arith.constant 0 : index
    %c0_20 = arith.constant 0 : index
    %26 = vector.load %arg8[%c0_19, %c0_20] : memref<64x128xbf16, #tpu.memory_space<vmem>>, vector<64x128xbf16>
    %27 = arith.truncf %25 : vector<256x64xf32> to vector<256x64xbf16>
    %cst_21 = arith.constant dense<0.000000e+00> : vector<256x128xf32>
    %28 = tpu.matmul %27, %26, %cst_21 {dimension_numbers = #tpu.dot_dimension_numbers<[1], [0], [0], [1], [0, 0, 1, 1], [], []>} : vector<256x64xbf16>, vector<64x128xbf16>, vector<256x128xf32> -> vector<256x128xf32>
    %c0_22 = arith.constant 0 : index
    %c0_23 = arith.constant 0 : index
    %29 = vector.load %arg9[%c0_22, %c0_23] : memref<1x128xf32, #tpu.memory_space<vmem>>, vector<1x128xf32>
    %30 = vector.broadcast %29 : vector<1x128xf32> to vector<256x128xf32>
    %31 = arith.addf %28, %30 : vector<256x128xf32>
    %cst_24 = arith.constant 0.000000e+00 : f32
    %32 = vector.broadcast %cst_24 : f32 to vector<256x128xf32>
    %33 = arith.maximumf %31, %32 : vector<256x128xf32>
    %34 = arith.truncf %33 : vector<256x128xf32> to vector<256x128xbf16>
    %c0_25 = arith.constant 0 : index
    %c0_26 = arith.constant 0 : index
    %35 = vector.load %arg10[%c0_25, %c0_26] : memref<128x1024xbf16, #tpu.memory_space<vmem>>, vector<128x256xbf16>
    %cst_27 = arith.constant dense<0.000000e+00> : vector<256x256xf32>
    %36 = tpu.matmul %34, %35, %cst_27 {dimension_numbers = #tpu.dot_dimension_numbers<[1], [0], [0], [1], [0, 0, 1, 1], [], []>} : vector<256x128xbf16>, vector<128x256xbf16>, vector<256x256xf32> -> vector<256x256xf32>
    %c0_28 = arith.constant 0 : index
    %c0_29 = arith.constant 0 : index
    %37 = vector.load %arg11[%c0_28, %c0_29] : memref<1x1024xf32, #tpu.memory_space<vmem>>, vector<1x256xf32>
    %38 = vector.broadcast %37 : vector<1x256xf32> to vector<256x256xf32>
    %39 = arith.addf %36, %38 : vector<256x256xf32>
    %cst_30 = arith.constant 0.000000e+00 : f32
    %40 = vector.broadcast %cst_30 : f32 to vector<256x256xf32>
    %41 = arith.maximumf %39, %40 : vector<256x256xf32>
    %42 = vector.shape_cast %41 : vector<256x256xf32> to vector<2x128x256xf32>
    %cst_31 = arith.constant dense<0xFF800000> : vector<2x256xf32>
    %43 = vector.multi_reduction <maximumf>, %42, %cst_31 [1] : vector<2x128x256xf32> to vector<2x256xf32>
    %c0_32 = arith.constant 0 : index
    %c256 = arith.constant 256 : index
    %44 = vector.load %arg10[%c0_32, %c256] : memref<128x1024xbf16, #tpu.memory_space<vmem>>, vector<128x256xbf16>
    %cst_33 = arith.constant dense<0.000000e+00> : vector<256x256xf32>
    %45 = tpu.matmul %34, %44, %cst_33 {dimension_numbers = #tpu.dot_dimension_numbers<[1], [0], [0], [1], [0, 0, 1, 1], [], []>} : vector<256x128xbf16>, vector<128x256xbf16>, vector<256x256xf32> -> vector<256x256xf32>
    %c0_34 = arith.constant 0 : index
    %c256_35 = arith.constant 256 : index
    %46 = vector.load %arg11[%c0_34, %c256_35] : memref<1x1024xf32, #tpu.memory_space<vmem>>, vector<1x256xf32>
    %47 = vector.broadcast %46 : vector<1x256xf32> to vector<256x256xf32>
    %48 = arith.addf %45, %47 : vector<256x256xf32>
    %cst_36 = arith.constant 0.000000e+00 : f32
    %49 = vector.broadcast %cst_36 : f32 to vector<256x256xf32>
    %50 = arith.maximumf %48, %49 : vector<256x256xf32>
    %51 = vector.shape_cast %50 : vector<256x256xf32> to vector<2x128x256xf32>
    %cst_37 = arith.constant dense<0xFF800000> : vector<2x256xf32>
    %52 = vector.multi_reduction <maximumf>, %51, %cst_37 [1] : vector<2x128x256xf32> to vector<2x256xf32>
    %c0_38 = arith.constant 0 : index
    %c512 = arith.constant 512 : index
    %53 = vector.load %arg10[%c0_38, %c512] : memref<128x1024xbf16, #tpu.memory_space<vmem>>, vector<128x256xbf16>
    %cst_39 = arith.constant dense<0.000000e+00> : vector<256x256xf32>
    %54 = tpu.matmul %34, %53, %cst_39 {dimension_numbers = #tpu.dot_dimension_numbers<[1], [0], [0], [1], [0, 0, 1, 1], [], []>} : vector<256x128xbf16>, vector<128x256xbf16>, vector<256x256xf32> -> vector<256x256xf32>
    %c0_40 = arith.constant 0 : index
    %c512_41 = arith.constant 512 : index
    %55 = vector.load %arg11[%c0_40, %c512_41] : memref<1x1024xf32, #tpu.memory_space<vmem>>, vector<1x256xf32>
    %56 = vector.broadcast %55 : vector<1x256xf32> to vector<256x256xf32>
    %57 = arith.addf %54, %56 : vector<256x256xf32>
    %cst_42 = arith.constant 0.000000e+00 : f32
    %58 = vector.broadcast %cst_42 : f32 to vector<256x256xf32>
    %59 = arith.maximumf %57, %58 : vector<256x256xf32>
    %60 = vector.shape_cast %59 : vector<256x256xf32> to vector<2x128x256xf32>
    %cst_43 = arith.constant dense<0xFF800000> : vector<2x256xf32>
    %61 = vector.multi_reduction <maximumf>, %60, %cst_43 [1] : vector<2x128x256xf32> to vector<2x256xf32>
    %c0_44 = arith.constant 0 : index
    %c768 = arith.constant 768 : index
    %62 = vector.load %arg10[%c0_44, %c768] : memref<128x1024xbf16, #tpu.memory_space<vmem>>, vector<128x256xbf16>
    %cst_45 = arith.constant dense<0.000000e+00> : vector<256x256xf32>
    %63 = tpu.matmul %34, %62, %cst_45 {dimension_numbers = #tpu.dot_dimension_numbers<[1], [0], [0], [1], [0, 0, 1, 1], [], []>} : vector<256x128xbf16>, vector<128x256xbf16>, vector<256x256xf32> -> vector<256x256xf32>
    %c0_46 = arith.constant 0 : index
    %c768_47 = arith.constant 768 : index
    %64 = vector.load %arg11[%c0_46, %c768_47] : memref<1x1024xf32, #tpu.memory_space<vmem>>, vector<1x256xf32>
    %65 = vector.broadcast %64 : vector<1x256xf32> to vector<256x256xf32>
    %66 = arith.addf %63, %65 : vector<256x256xf32>
    %cst_48 = arith.constant 0.000000e+00 : f32
    %67 = vector.broadcast %cst_48 : f32 to vector<256x256xf32>
    %68 = arith.maximumf %66, %67 : vector<256x256xf32>
    %69 = vector.shape_cast %68 : vector<256x256xf32> to vector<2x128x256xf32>
    %cst_49 = arith.constant dense<0xFF800000> : vector<2x256xf32>
    %70 = vector.multi_reduction <maximumf>, %69, %cst_49 [1] : vector<2x128x256xf32> to vector<2x256xf32>
    %71 = tpu.concatenate %43, %52, %61, %70 in 1 : vector<2x256xf32>, vector<2x256xf32>, vector<2x256xf32>, vector<2x256xf32> -> vector<2x1024xf32>
    %c0_50 = arith.constant 0 : index
    %c0_51 = arith.constant 0 : index
    %72 = vector.load %arg13[%c0_50, %c0_51] : memref<1024x512xbf16, #tpu.memory_space<vmem>>, vector<1024x512xbf16>
    %73 = arith.truncf %71 : vector<2x1024xf32> to vector<2x1024xbf16>
    %cst_52 = arith.constant dense<0.000000e+00> : vector<2x512xf32>
    %74 = tpu.matmul %73, %72, %cst_52 {dimension_numbers = #tpu.dot_dimension_numbers<[1], [0], [0], [1], [0, 0, 1, 1], [], []>} : vector<2x1024xbf16>, vector<1024x512xbf16>, vector<2x512xf32> -> vector<2x512xf32>
    %c0_53 = arith.constant 0 : index
    %c0_54 = arith.constant 0 : index
    %75 = vector.load %arg12[%c0_53, %c0_54] : memref<64x512xbf16, #tpu.memory_space<vmem>>, vector<64x512xbf16>
    %cst_55 = arith.constant dense<0.000000e+00> : vector<256x512xf32>
    %76 = tpu.matmul %18, %75, %cst_55 {dimension_numbers = #tpu.dot_dimension_numbers<[1], [0], [0], [1], [0, 0, 1, 1], [], []>} : vector<256x64xbf16>, vector<64x512xbf16>, vector<256x512xf32> -> vector<256x512xf32>
    %c0_56 = arith.constant 0 : index
    %c0_57 = arith.constant 0 : index
    %77 = vector.load %arg14[%c0_56, %c0_57] : memref<1x512xf32, #tpu.memory_space<vmem>>, vector<1x512xf32>
    %78 = vector.broadcast %77 : vector<1x512xf32> to vector<256x512xf32>
    %79 = arith.addf %76, %78 : vector<256x512xf32>
    %80 = vector.shape_cast %79 : vector<256x512xf32> to vector<2x128x512xf32>
    %81 = vector.shape_cast %74 : vector<2x512xf32> to vector<2x1x512xf32>
    %82 = vector.broadcast %81 : vector<2x1x512xf32> to vector<2x128x512xf32>
    %83 = arith.addf %80, %82 : vector<2x128x512xf32>
    %cst_58 = arith.constant 0.000000e+00 : f32
    %84 = vector.broadcast %cst_58 : f32 to vector<2x128x512xf32>
    %85 = arith.maximumf %83, %84 : vector<2x128x512xf32>
    %86 = vector.shape_cast %85 : vector<2x128x512xf32> to vector<256x512xf32>
    %c0_59 = arith.constant 0 : index
    %c0_60 = arith.constant 0 : index
    %87 = vector.load %arg15[%c0_59, %c0_60] : memref<512x256xbf16, #tpu.memory_space<vmem>>, vector<512x256xbf16>
    %88 = arith.truncf %86 : vector<256x512xf32> to vector<256x512xbf16>
    %cst_61 = arith.constant dense<0.000000e+00> : vector<256x256xf32>
    %89 = tpu.matmul %88, %87, %cst_61 {dimension_numbers = #tpu.dot_dimension_numbers<[1], [0], [0], [1], [0, 0, 1, 1], [], []>} : vector<256x512xbf16>, vector<512x256xbf16>, vector<256x256xf32> -> vector<256x256xf32>
    %c0_62 = arith.constant 0 : index
    %c0_63 = arith.constant 0 : index
    %90 = vector.load %arg16[%c0_62, %c0_63] : memref<1x256xf32, #tpu.memory_space<vmem>>, vector<1x256xf32>
    %91 = vector.broadcast %90 : vector<1x256xf32> to vector<256x256xf32>
    %92 = arith.addf %89, %91 : vector<256x256xf32>
    %cst_64 = arith.constant 0.000000e+00 : f32
    %93 = vector.broadcast %cst_64 : f32 to vector<256x256xf32>
    %94 = arith.maximumf %92, %93 : vector<256x256xf32>
    %c0_65 = arith.constant 0 : index
    %c0_66 = arith.constant 0 : index
    %95 = vector.load %arg17[%c0_65, %c0_66] : memref<256x128xbf16, #tpu.memory_space<vmem>>, vector<256x128xbf16>
    %96 = arith.truncf %94 : vector<256x256xf32> to vector<256x256xbf16>
    %cst_67 = arith.constant dense<0.000000e+00> : vector<256x128xf32>
    %97 = tpu.matmul %96, %95, %cst_67 {dimension_numbers = #tpu.dot_dimension_numbers<[1], [0], [0], [1], [0, 0, 1, 1], [], []>} : vector<256x256xbf16>, vector<256x128xbf16>, vector<256x128xf32> -> vector<256x128xf32>
    %c0_68 = arith.constant 0 : index
    %c0_69 = arith.constant 0 : index
    %98 = vector.load %arg18[%c0_68, %c0_69] : memref<1x128xf32, #tpu.memory_space<vmem>>, vector<1x128xf32>
    %99 = vector.broadcast %98 : vector<1x128xf32> to vector<256x128xf32>
    %100 = arith.addf %97, %99 : vector<256x128xf32>
    %cst_70 = arith.constant 0.000000e+00 : f32
    %101 = vector.broadcast %cst_70 : f32 to vector<256x128xf32>
    %102 = arith.maximumf %100, %101 : vector<256x128xf32>
    %c0_71 = arith.constant 0 : index
    %c0_72 = arith.constant 0 : index
    %103 = vector.load %arg19[%c0_71, %c0_72] : memref<128x128xbf16, #tpu.memory_space<vmem>>, vector<128x128xbf16>
    %104 = arith.truncf %102 : vector<256x128xf32> to vector<256x128xbf16>
    %cst_73 = arith.constant dense<0.000000e+00> : vector<256x128xf32>
    %105 = tpu.matmul %104, %103, %cst_73 {dimension_numbers = #tpu.dot_dimension_numbers<[1], [0], [0], [1], [0, 0, 1, 1], [], []>} : vector<256x128xbf16>, vector<128x128xbf16>, vector<256x128xf32> -> vector<256x128xf32>
    %c0_74 = arith.constant 0 : index
    %c0_75 = arith.constant 0 : index
    %106 = vector.load %arg20[%c0_74, %c0_75] : memref<1x128xf32, #tpu.memory_space<vmem>>, vector<1x128xf32>
    %107 = vector.broadcast %106 : vector<1x128xf32> to vector<256x128xf32>
    %108 = arith.addf %105, %107 : vector<256x128xf32>
    %109 = vector.shape_cast %108 : vector<256x128xf32> to vector<2x128x128xf32>
    %c0_76 = arith.constant 0 : index
    %c0_77 = arith.constant 0 : index
    %c0_78 = arith.constant 0 : index
    %110 = vector.load %arg21[%c0_76, %c0_77, %c0_78] : memref<2x128x128xf32, #tpu.memory_space<vmem>>, vector<2x128x128xf32>
    tpu.vector_store %arg21[%c0_76, %c0_77, %c0_78], %109 {strides = array<i32>} : memref<2x128x128xf32, #tpu.memory_space<vmem>>, vector<2x128x128xf32>,
    return
  }
  func.func @transform_0(%arg0: i32) -> (i32, i32, i32) {
    %c0_i32 = arith.constant 0 : i32
    %c0_i32_0 = arith.constant 0 : i32
    %c0_i32_1 = arith.constant 0 : i32
    return %arg0, %c0_i32, %c0_i32_0 : i32, i32, i32
  }
  func.func @transform_1(%arg0: i32) -> (i32, i32) {
    %c0_i32 = arith.constant 0 : i32
    %c0_i32_0 = arith.constant 0 : i32
    %c0_i32_1 = arith.constant 0 : i32
    return %c0_i32, %c0_i32_0 : i32, i32
  }
  func.func @transform_2(%arg0: i32) -> (i32, i32) {
    %c0_i32 = arith.constant 0 : i32
    %c0_i32_0 = arith.constant 0 : i32
    %c0_i32_1 = arith.constant 0 : i32
    return %c0_i32, %c0_i32_0 : i32, i32
  }
  func.func @transform_3(%arg0: i32) -> (i32, i32) {
    %c0_i32 = arith.constant 0 : i32
    %c0_i32_0 = arith.constant 0 : i32
    %c0_i32_1 = arith.constant 0 : i32
    return %c0_i32, %c0_i32_0 : i32, i32
  }
  func.func @transform_4(%arg0: i32) -> (i32, i32) {
    %c0_i32 = arith.constant 0 : i32
    %c0_i32_0 = arith.constant 0 : i32
    %c0_i32_1 = arith.constant 0 : i32
    return %c0_i32, %c0_i32_0 : i32, i32
  }
  func.func @transform_5(%arg0: i32) -> (i32, i32) {
    %c0_i32 = arith.constant 0 : i32
    %c0_i32_0 = arith.constant 0 : i32
    %c0_i32_1 = arith.constant 0 : i32
    return %c0_i32, %c0_i32_0 : i32, i32
  }
  func.func @transform_6(%arg0: i32) -> (i32, i32) {
    %c0_i32 = arith.constant 0 : i32
    %c0_i32_0 = arith.constant 0 : i32
    %c0_i32_1 = arith.constant 0 : i32
    return %c0_i32, %c0_i32_0 : i32, i32
  }
  func.func @transform_7(%arg0: i32) -> (i32, i32) {
    %c0_i32 = arith.constant 0 : i32
    %c0_i32_0 = arith.constant 0 : i32
    %c0_i32_1 = arith.constant 0 : i32
    return %c0_i32, %c0_i32_0 : i32, i32
  }
  func.func @transform_8(%arg0: i32) -> (i32, i32) {
    %c0_i32 = arith.constant 0 : i32
    %c0_i32_0 = arith.constant 0 : i32
    %c0_i32_1 = arith.constant 0 : i32
    return %c0_i32, %c0_i32_0 : i32, i32
  }
  func.func @transform_9(%arg0: i32) -> (i32, i32) {
    %c0_i32 = arith.constant 0 : i32
    %c0_i32_0 = arith.constant 0 : i32
    %c0_i32_1 = arith.constant 0 : i32
    return %c0_i32, %c0_i32_0 : i32, i32
  }
  func.func @transform_10(%arg0: i32) -> (i32, i32) {
    %c0_i32 = arith.constant 0 : i32
    %c0_i32_0 = arith.constant 0 : i32
    %c0_i32_1 = arith.constant 0 : i32
    return %c0_i32, %c0_i32_0 : i32, i32
  }
  func.func @transform_11(%arg0: i32) -> (i32, i32) {
    %c0_i32 = arith.constant 0 : i32
    %c0_i32_0 = arith.constant 0 : i32
    %c0_i32_1 = arith.constant 0 : i32
    return %c0_i32, %c0_i32_0 : i32, i32
  }
  func.func @transform_12(%arg0: i32) -> (i32, i32) {
    %c0_i32 = arith.constant 0 : i32
    %c0_i32_0 = arith.constant 0 : i32
    %c0_i32_1 = arith.constant 0 : i32
    return %c0_i32, %c0_i32_0 : i32, i32
  }
  func.func @transform_13(%arg0: i32) -> (i32, i32) {
    %c0_i32 = arith.constant 0 : i32
    %c0_i32_0 = arith.constant 0 : i32
    %c0_i32_1 = arith.constant 0 : i32
    return %c0_i32, %c0_i32_0 : i32, i32
  }
  func.func @transform_14(%arg0: i32) -> (i32, i32) {
    %c0_i32 = arith.constant 0 : i32
    %c0_i32_0 = arith.constant 0 : i32
    %c0_i32_1 = arith.constant 0 : i32
    return %c0_i32, %c0_i32_0 : i32, i32
  }
  func.func @transform_15(%arg0: i32) -> (i32, i32) {
    %c0_i32 = arith.constant 0 : i32
    %c0_i32_0 = arith.constant 0 : i32
    %c0_i32_1 = arith.constant 0 : i32
    return %c0_i32, %c0_i32_0 : i32, i32
  }
  func.func @transform_16(%arg0: i32) -> (i32, i32) {
    %c0_i32 = arith.constant 0 : i32
    %c0_i32_0 = arith.constant 0 : i32
    %c0_i32_1 = arith.constant 0 : i32
    return %c0_i32, %c0_i32_0 : i32, i32
  }
  func.func @transform_17(%arg0: i32) -> (i32, i32) {
    %c0_i32 = arith.constant 0 : i32
    %c0_i32_0 = arith.constant 0 : i32
    %c0_i32_1 = arith.constant 0 : i32
    return %c0_i32, %c0_i32_0 : i32, i32
  }
  func.func @transform_18(%arg0: i32) -> (i32, i32) {
    %c0_i32 = arith.constant 0 : i32
    %c0_i32_0 = arith.constant 0 : i32
    %c0_i32_1 = arith.constant 0 : i32
    return %c0_i32, %c0_i32_0 : i32, i32
  }
  func.func @transform_19(%arg0: i32) -> (i32, i32) {
    %c0_i32 = arith.constant 0 : i32
    %c0_i32_0 = arith.constant 0 : i32
    %c0_i32_1 = arith.constant 0 : i32
    return %c0_i32, %c0_i32_0 : i32, i32
  }
  func.func @transform_20(%arg0: i32) -> (i32, i32, i32) {
    %c0_i32 = arith.constant 0 : i32
    %c0_i32_0 = arith.constant 0 : i32
    %c0_i32_1 = arith.constant 0 : i32
    return %arg0, %c0_i32, %c0_i32_0 : i32, i32, i32
  }
}

</mosaic_0001>

<llo_original>
// kernel: pointnet_seg_forward.1
$region0: #{pointnet_seg_forward.1}
  #allocation0 [shape = 'u32[]', space=smem, size = 0x4, offset = 0x4, fixed_abs, tag = 'smem constant byte address 0x4 - core index']
  #allocation1 [shape = 'u32[144,128]{1,0:T(1,128)}', space=vmem, size = 0x12000, scoped, tag = 'internal scratch']
  %s0 = inlined_call_operand.vmem [shape: f32[2,128,8], index: 0, kind: input, shape index: {}]
  %s1 = inlined_call_operand.hbm [shape: bf16[8,64], index: 1, kind: input, shape index: {}]
  %s2 = inlined_call_operand.vmem [shape: f32[1,64], index: 2, kind: input, shape index: {}]
  %s3 = inlined_call_operand.hbm [shape: bf16[64,64], index: 3, kind: input, shape index: {}]
  %s4 = inlined_call_operand.hbm [shape: f32[1,64], index: 4, kind: input, shape index: {}]
  %s5 = inlined_call_operand.hbm [shape: bf16[64,64], index: 5, kind: input, shape index: {}]
  %s6 = inlined_call_operand.hbm [shape: f32[1,64], index: 6, kind: input, shape index: {}]
  %s7 = inlined_call_operand.hbm [shape: bf16[64,128], index: 7, kind: input, shape index: {}]
  %s8 = inlined_call_operand.hbm [shape: f32[1,128], index: 8, kind: input, shape index: {}]
  %s9 = inlined_call_operand.vmem [shape: bf16[128,1024], index: 9, kind: input, shape index: {}]
  %s10 = inlined_call_operand.vmem [shape: f32[1,1024], index: 10, kind: input, shape index: {}]
  %s11 = inlined_call_operand.vmem [shape: bf16[64,512], index: 11, kind: input, shape index: {}]
  %s12 = inlined_call_operand.hbm [shape: bf16[1024,512], index: 12, kind: input, shape index: {}]
  %s13 = inlined_call_operand.hbm [shape: f32[1,512], index: 13, kind: input, shape index: {}]
  %s14 = inlined_call_operand.hbm [shape: bf16[512,256], index: 14, kind: input, shape index: {}]
  %s15 = inlined_call_operand.vmem [shape: f32[1,256], index: 15, kind: input, shape index: {}]
  %s16 = inlined_call_operand.vmem [shape: bf16[256,128], index: 16, kind: input, shape index: {}]
  %s17 = inlined_call_operand.hbm [shape: f32[1,128], index: 17, kind: input, shape index: {}]
  %s18 = inlined_call_operand.vmem [shape: bf16[128,128], index: 18, kind: input, shape index: {}]
  %s19 = inlined_call_operand.hbm [shape: f32[1,128], index: 19, kind: input, shape index: {}]
  %s20 = inlined_call_operand.vmem [shape: f32[2,128,128], index: 20, kind: output, shape index: {}]
  %s21 = sld [smem:[#allocation0]]
  $region138: #{pointnet_seg_forward.1} parent=0
    _
  %s23 = ssub.s32 1, %s21
  %s24 = scalar_select 0, %s23, %s21
  $region1: #{pointnet_seg_forward.1} parent=0
    #allocation2 [shape = 'u8[2048]{0}', space=vmem, size = 0x800, scoped, tag = 'input window, operand 1, single buffered']
    #allocation3 [shape = 's32[1]{0}', space=sflag, size = 0x4, scoped, tag = 'scoped memory for pointnet_seg_forward.1']
    #allocation4 [shape = 'u8[16384]{0}', space=vmem, size = 0x4000, scoped, tag = 'input window, operand 3, single buffered']
    #allocation5 [shape = 's32[1]{0}', space=sflag, size = 0x4, scoped, tag = 'scoped memory for pointnet_seg_forward.1']
    #allocation6 [shape = 'u8[512]{0}', space=vmem, size = 0x400, scoped, tag = 'input window, operand 4, single buffered']
    #allocation7 [shape = 'u8[16384]{0}', space=vmem, size = 0x4000, scoped, tag = 'input window, operand 5, single buffered']
    #allocation8 [shape = 's32[1]{0}', space=sflag, size = 0x4, scoped, tag = 'scoped memory for pointnet_seg_forward.1']
    #allocation9 [shape = 'u8[512]{0}', space=vmem, size = 0x400, scoped, tag = 'input window, operand 6, single buffered']
    #allocation10 [shape = 'u8[16384]{0}', space=vmem, size = 0x4000, scoped, tag = 'input window, operand 7, single buffered']
    #allocation11 [shape = 's32[1]{0}', space=sflag, size = 0x4, scoped, tag = 'scoped memory for pointnet_seg_forward.1']
    #allocation12 [shape = 'u8[512]{0}', space=vmem, size = 0x400, scoped, tag = 'input window, operand 8, single buffered']
    #allocation13 [shape = 'u8[1048576]{0}', space=vmem, size = 0x100000, scoped, tag = 'input window, operand 12, single buffered']
    #allocation14 [shape = 's32[1]{0}', space=sflag, size = 0x4, scoped, tag = 'scoped memory for pointnet_seg_forward.1']
    #allocation15 [shape = 'u8[2048]{0}', space=vmem, size = 0x800, scoped, tag = 'input window, operand 13, single buffered']
    #allocation16 [shape = 'u8[262144]{0}', space=vmem, size = 0x40000, scoped, tag = 'input window, operand 14, single buffered']
    #allocation17 [shape = 's32[1]{0}', space=sflag, size = 0x4, scoped, tag = 'scoped memory for pointnet_seg_forward.1']
    #allocation18 [shape = 'u8[512]{0}', space=vmem, size = 0x400, scoped, tag = 'input window, operand 17, single buffered']
    #allocation19 [shape = 'u8[512]{0}', space=vmem, size = 0x400, scoped, tag = 'input window, operand 19, single buffered']
    #allocation20 [shape = 's32[1]{0}', space=sflag, size = 0x4, scoped, tag = 'scoped memory for pointnet_seg_forward.1']
    %25 = vsyncpa [#allocation3], 0
    %26 = vsyncpa [#allocation5], 0
    %27 = vsyncpa [#allocation8], 0
    %28 = vsyncpa [#allocation11], 0
    %29 = vsyncpa [#allocation14], 0
    %30 = vsyncpa [#allocation17], 0
    %31 = vsyncpa [#allocation20], 0
    // Predicated region
    $region2: #{pointnet_seg_forward.1} parent=1 // pred_check
      _
    $region3: #{pointnet_seg_forward.1} parent=1 // pred_check_branch
      %33 = sbr.rel (0) target = $region5
    $region4: #{pointnet_seg_forward.1} parent=1 // pred_region
      _
    $region5: #{pointnet_seg_forward.1} parent=1 // pred_fallthru
      _
    // Predicated region
    $region6: #{pointnet_seg_forward.1} parent=1 // pred_check
      _
    $region7: #{pointnet_seg_forward.1} parent=1 // pred_check_branch
      %35 = sbr.rel (0) target = $region9
    $region8: #{pointnet_seg_forward.1} parent=1 // pred_region
      %s37 = ssub.s32 64, 64
      %38 = vsyncadd [#allocation3], %s37
      %s40 = sshll.u32 [#allocation2], 4
      %s41 = int_to_ptr.vmem [resolvable:$true] %s40
      %43 = dma.hbm_to_vmem [thread:$0]  %s1, 64, %s41, [#allocation3]
    $region9: #{pointnet_seg_forward.1} parent=1 // pred_fallthru
      _
    // Predicated region
    $region10: #{pointnet_seg_forward.1} parent=1 // pred_check
      _
    $region11: #{pointnet_seg_forward.1} parent=1 // pred_check_branch
      %45 = sbr.rel (0) target = $region13
    $region12: #{pointnet_seg_forward.1} parent=1 // pred_region
      _
    $region13: #{pointnet_seg_forward.1} parent=1 // pred_fallthru
      _
    // Predicated region
    $region14: #{pointnet_seg_forward.1} parent=1 // pred_check
      _
    $region15: #{pointnet_seg_forward.1} parent=1 // pred_check_branch
      %47 = sbr.rel (0) target = $region17
    $region16: #{pointnet_seg_forward.1} parent=1 // pred_region
      %s49 = ssub.s32 512, 512
      %50 = vsyncadd [#allocation5], %s49
      %s51 = sshll.u32 [#allocation4], 4
      %s52 = int_to_ptr.vmem [resolvable:$true] %s51
      %57 = dma.hbm_to_vmem [thread:$0]  %s3, 512, %s52, [#allocation5], 64, 64, 4
    $region17: #{pointnet_seg_forward.1} parent=1 // pred_fallthru
      _
    // Predicated region
    $region18: #{pointnet_seg_forward.1} parent=1 // pred_check
      _
    $region19: #{pointnet_seg_forward.1} parent=1 // pred_check_branch
      %59 = sbr.rel (0) target = $region21
    $region20: #{pointnet_seg_forward.1} parent=1 // pred_region
      %s61 = ssub.s32 16, 16
      %62 = vsyncadd [#allocation5], %s61
      %s64 = sshll.u32 [#allocation6], 4
      %s65 = int_to_ptr.vmem [resolvable:$true] %s64
      %67 = dma.hbm_to_vmem [thread:$0]  %s4, 16, %s65, [#allocation5]
    $region21: #{pointnet_seg_forward.1} parent=1 // pred_fallthru
      _
    // Predicated region
    $region22: #{pointnet_seg_forward.1} parent=1 // pred_check
      _
    $region23: #{pointnet_seg_forward.1} parent=1 // pred_check_branch
      %69 = sbr.rel (0) target = $region25
    $region24: #{pointnet_seg_forward.1} parent=1 // pred_region
      %s71 = ssub.s32 512, 512
      %72 = vsyncadd [#allocation8], %s71
      %s73 = sshll.u32 [#allocation7], 4
      %s74 = int_to_ptr.vmem [resolvable:$true] %s73
      %79 = dma.hbm_to_vmem [thread:$0]  %s5, 512, %s74, [#allocation8], 64, 64, 4
    $region25: #{pointnet_seg_forward.1} parent=1 // pred_fallthru
      _
    // Predicated region
    $region26: #{pointnet_seg_forward.1} parent=1 // pred_check
      _
    $region27: #{pointnet_seg_forward.1} parent=1 // pred_check_branch
      %81 = sbr.rel (0) target = $region29
    $region28: #{pointnet_seg_forward.1} parent=1 // pred_region
      %s83 = ssub.s32 16, 16
      %84 = vsyncadd [#allocation8], %s83
      %s86 = sshll.u32 [#allocation9], 4
      %s87 = int_to_ptr.vmem [resolvable:$true] %s86
      %89 = dma.hbm_to_vmem [thread:$0]  %s6, 16, %s87, [#allocation8]
    $region29: #{pointnet_seg_forward.1} parent=1 // pred_fallthru
      _
    // Predicated region
    $region30: #{pointnet_seg_forward.1} parent=1 // pred_check
      _
    $region31: #{pointnet_seg_forward.1} parent=1 // pred_check_branch
      %91 = sbr.rel (0) target = $region33
    $region32: #{pointnet_seg_forward.1} parent=1 // pred_region
      %s93 = ssub.s32 512, 512
      %94 = vsyncadd [#allocation11], %s93
      %s95 = sshll.u32 [#allocation10], 4
      %s96 = int_to_ptr.vmem [resolvable:$true] %s95
      %101 = dma.hbm_to_vmem [thread:$0]  %s7, 512, %s96, [#allocation11], 64, 64, 4
    $region33: #{pointnet_seg_forward.1} parent=1 // pred_fallthru
      _
    // Predicated region
    $region34: #{pointnet_seg_forward.1} parent=1 // pred_check
      _
    $region35: #{pointnet_seg_forward.1} parent=1 // pred_check_branch
      %103 = sbr.rel (0) target = $region37
    $region36: #{pointnet_seg_forward.1} parent=1 // pred_region
      %s105 = ssub.s32 16, 16
      %106 = vsyncadd [#allocation11], %s105
      %s108 = sshll.u32 [#allocation12], 4
      %s109 = int_to_ptr.vmem [resolvable:$true] %s108
      %111 = dma.hbm_to_vmem [thread:$0]  %s8, 16, %s109, [#allocation11]
    $region37: #{pointnet_seg_forward.1} parent=1 // pred_fallthru
      _
    // Predicated region
    $region38: #{pointnet_seg_forward.1} parent=1 // pred_check
      _
    $region39: #{pointnet_seg_forward.1} parent=1 // pred_check_branch
      %113 = sbr.rel (0) target = $region41
    $region40: #{pointnet_seg_forward.1} parent=1 // pred_region
      _
    $region41: #{pointnet_seg_forward.1} parent=1 // pred_fallthru
      _
    // Predicated region
    $region42: #{pointnet_seg_forward.1} parent=1 // pred_check
      _
    $region43: #{pointnet_seg_forward.1} parent=1 // pred_check_branch
      %115 = sbr.rel (0) target = $region45
    $region44: #{pointnet_seg_forward.1} parent=1 // pred_region
      _
    $region45: #{pointnet_seg_forward.1} parent=1 // pred_fallthru
      _
    // Predicated region
    $region46: #{pointnet_seg_forward.1} parent=1 // pred_check
      _
    $region47: #{pointnet_seg_forward.1} parent=1 // pred_check_branch
      %117 = sbr.rel (0) target = $region49
    $region48: #{pointnet_seg_forward.1} parent=1 // pred_region
      _
    $region49: #{pointnet_seg_forward.1} parent=1 // pred_fallthru
      _
    // Predicated region
    $region50: #{pointnet_seg_forward.1} parent=1 // pred_check
      _
    $region51: #{pointnet_seg_forward.1} parent=1 // pred_check_branch
      %119 = sbr.rel (0) target = $region53
    $region52: #{pointnet_seg_forward.1} parent=1 // pred_region
      %s121 = ssub.s32 32768, 32768
      %122 = vsyncadd [#allocation14], %s121
      %s123 = sshll.u32 [#allocation13], 4
      %s124 = int_to_ptr.vmem [resolvable:$true] %s123
      %129 = dma.hbm_to_vmem [thread:$0]  %s12, 32768, %s124, [#allocation14], 256, 256, 16
    $region53: #{pointnet_seg_forward.1} parent=1 // pred_fallthru
      _
    // Predicated region
    $region54: #{pointnet_seg_forward.1} parent=1 // pred_check
      _
    $region55: #{pointnet_seg_forward.1} parent=1 // pred_check_branch
      %131 = sbr.rel (0) target = $region57
    $region56: #{pointnet_seg_forward.1} parent=1 // pred_region
      %s133 = ssub.s32 64, 64
      %134 = vsyncadd [#allocation14], %s133
      %s136 = sshll.u32 [#allocation15], 4
      %s137 = int_to_ptr.vmem [resolvable:$true] %s136
      %139 = dma.hbm_to_vmem [thread:$0]  %s13, 64, %s137, [#allocation14]
    $region57: #{pointnet_seg_forward.1} parent=1 // pred_fallthru
      _
    // Predicated region
    $region58: #{pointnet_seg_forward.1} parent=1 // pred_check
      _
    $region59: #{pointnet_seg_forward.1} parent=1 // pred_check_branch
      %141 = sbr.rel (0) target = $region61
    $region60: #{pointnet_seg_forward.1} parent=1 // pred_region
      %s143 = ssub.s32 8192, 8192
      %144 = vsyncadd [#allocation17], %s143
      %s145 = sshll.u32 [#allocation16], 4
      %s146 = int_to_ptr.vmem [resolvable:$true] %s145
      %151 = dma.hbm_to_vmem [thread:$0]  %s14, 8192, %s146, [#allocation17], 128, 128, 8
    $region61: #{pointnet_seg_forward.1} parent=1 // pred_fallthru
      _
    // Predicated region
    $region62: #{pointnet_seg_forward.1} parent=1 // pred_check
      _
    $region63: #{pointnet_seg_forward.1} parent=1 // pred_check_branch
      %153 = sbr.rel (0) target = $region65
    $region64: #{pointnet_seg_forward.1} parent=1 // pred_region
      _
    $region65: #{pointnet_seg_forward.1} parent=1 // pred_fallthru
      _
    // Predicated region
    $region66: #{pointnet_seg_forward.1} parent=1 // pred_check
      _
    $region67: #{pointnet_seg_forward.1} parent=1 // pred_check_branch
      %155 = sbr.rel (0) target = $region69
    $region68: #{pointnet_seg_forward.1} parent=1 // pred_region
      _
    $region69: #{pointnet_seg_forward.1} parent=1 // pred_fallthru
      _
    // Predicated region
    $region70: #{pointnet_seg_forward.1} parent=1 // pred_check
      _
    $region71: #{pointnet_seg_forward.1} parent=1 // pred_check_branch
      %157 = sbr.rel (0) target = $region73
    $region72: #{pointnet_seg_forward.1} parent=1 // pred_region
      %s159 = ssub.s32 16, 16
      %160 = vsyncadd [#allocation17], %s159
      %s162 = sshll.u32 [#allocation18], 4
      %s163 = int_to_ptr.vmem [resolvable:$true] %s162
      %165 = dma.hbm_to_vmem [thread:$0]  %s17, 16, %s163, [#allocation17]
    $region73: #{pointnet_seg_forward.1} parent=1 // pred_fallthru
      _
    // Predicated region
    $region74: #{pointnet_seg_forward.1} parent=1 // pred_check
      _
    $region75: #{pointnet_seg_forward.1} parent=1 // pred_check_branch
      %167 = sbr.rel (0) target = $region77
    $region76: #{pointnet_seg_forward.1} parent=1 // pred_region
      _
    $region77: #{pointnet_seg_forward.1} parent=1 // pred_fallthru
      _
    // Predicated region
    $region78: #{pointnet_seg_forward.1} parent=1 // pred_check
      _
    $region79: #{pointnet_seg_forward.1} parent=1 // pred_check_branch
      %169 = sbr.rel (0) target = $region81
    $region80: #{pointnet_seg_forward.1} parent=1 // pred_region
      %s171 = ssub.s32 16, 16
      %172 = vsyncadd [#allocation20], %s171
      %s174 = sshll.u32 [#allocation19], 4
      %s175 = int_to_ptr.vmem [resolvable:$true] %s174
      %177 = dma.hbm_to_vmem [thread:$0]  %s19, 16, %s175, [#allocation20]
    $region81: #{pointnet_seg_forward.1} parent=1 // pred_fallthru
      _
    // Predicated region
    $region82: #{pointnet_seg_forward.1} parent=1 // pred_check
      _
    $region83: #{pointnet_seg_forward.1} parent=1 // pred_check_branch
      %179 = sbr.rel (0) target = $region85
    $region84: #{pointnet_seg_forward.1} parent=1 // pred_region
      %180 = dma.done [#allocation3], 64
    $region85: #{pointnet_seg_forward.1} parent=1 // pred_fallthru
      _
    // Predicated region
    $region86: #{pointnet_seg_forward.1} parent=1 // pred_check
      _
    $region87: #{pointnet_seg_forward.1} parent=1 // pred_check_branch
      %182 = sbr.rel (0) target = $region89
    $region88: #{pointnet_seg_forward.1} parent=1 // pred_region
      %183 = dma.done [#allocation5], 512
    $region89: #{pointnet_seg_forward.1} parent=1 // pred_fallthru
      _
    // Predicated region
    $region90: #{pointnet_seg_forward.1} parent=1 // pred_check
      _
    $region91: #{pointnet_seg_forward.1} parent=1 // pred_check_branch
      %185 = sbr.rel (0) target = $region93
    $region92: #{pointnet_seg_forward.1} parent=1 // pred_region
      %186 = dma.done [#allocation5], 16
    $region93: #{pointnet_seg_forward.1} parent=1 // pred_fallthru
      _
    // Predicated region
    $region94: #{pointnet_seg_forward.1} parent=1 // pred_check
      _
    $region95: #{pointnet_seg_forward.1} parent=1 // pred_check_branch
      %188 = sbr.rel (0) target = $region97
    $region96: #{pointnet_seg_forward.1} parent=1 // pred_region
      %189 = dma.done [#allocation8], 512
    $region97: #{pointnet_seg_forward.1} parent=1 // pred_fallthru
      _
    // Predicated region
    $region98: #{pointnet_seg_forward.1} parent=1 // pred_check
      _
    $region99: #{pointnet_seg_forward.1} parent=1 // pred_check_branch
      %191 = sbr.rel (0) target = $region101
    $region100: #{pointnet_seg_forward.1} parent=1 // pred_region
      %192 = dma.done [#allocation8], 16
    $region101: #{pointnet_seg_forward.1} parent=1 // pred_fallthru
      _
    // Predicated region
    $region102: #{pointnet_seg_forward.1} parent=1 // pred_check
      _
    $region103: #{pointnet_seg_forward.1} parent=1 // pred_check_branch
      %194 = sbr.rel (0) target = $region105
    $region104: #{pointnet_seg_forward.1} parent=1 // pred_region
      %195 = dma.done [#allocation11], 512
    $region105: #{pointnet_seg_forward.1} parent=1 // pred_fallthru
      _
    // Predicated region
    $region106: #{pointnet_seg_forward.1} parent=1 // pred_check
      _
    $region107: #{pointnet_seg_forward.1} parent=1 // pred_check_branch
      %197 = sbr.rel (0) target = $region109
    $region108: #{pointnet_seg_forward.1} parent=1 // pred_region
      %198 = dma.done [#allocation11], 16
    $region109: #{pointnet_seg_forward.1} parent=1 // pred_fallthru
      _
    // Predicated region
    $region110: #{pointnet_seg_forward.1} parent=1 // pred_check
      _
    $region111: #{pointnet_seg_forward.1} parent=1 // pred_check_branch
      %200 = sbr.rel (0) target = $region113
    $region112: #{pointnet_seg_forward.1} parent=1 // pred_region
      %201 = dma.done [#allocation14], 32768
    $region113: #{pointnet_seg_forward.1} parent=1 // pred_fallthru
      _
    // Predicated region
    $region114: #{pointnet_seg_forward.1} parent=1 // pred_check
      _
    $region115: #{pointnet_seg_forward.1} parent=1 // pred_check_branch
      %203 = sbr.rel (0) target = $region117
    $region116: #{pointnet_seg_forward.1} parent=1 // pred_region
      %204 = dma.done [#allocation14], 64
    $region117: #{pointnet_seg_forward.1} parent=1 // pred_fallthru
      _
    // Predicated region
    $region118: #{pointnet_seg_forward.1} parent=1 // pred_check
      _
    $region119: #{pointnet_seg_forward.1} parent=1 // pred_check_branch
      %206 = sbr.rel (0) target = $region121
    $region120: #{pointnet_seg_forward.1} parent=1 // pred_region
      %207 = dma.done [#allocation17], 8192
    $region121: #{pointnet_seg_forward.1} parent=1 // pred_fallthru
      _
    // Predicated region
    $region122: #{pointnet_seg_forward.1} parent=1 // pred_check
      _
    $region123: #{pointnet_seg_forward.1} parent=1 // pred_check_branch
      %209 = sbr.rel (0) target = $region125
    $region124: #{pointnet_seg_forward.1} parent=1 // pred_region
      %210 = dma.done [#allocation17], 16
    $region125: #{pointnet_seg_forward.1} parent=1 // pred_fallthru
      _
    // Predicated region
    $region126: #{pointnet_seg_forward.1} parent=1 // pred_check
      _
    $region127: #{pointnet_seg_forward.1} parent=1 // pred_check_branch
      %212 = sbr.rel (0) target = $region129
    $region128: #{pointnet_seg_forward.1} parent=1 // pred_region
      %213 = dma.done [#allocation20], 16
    $region129: #{pointnet_seg_forward.1} parent=1 // pred_fallthru
      _
    %v215 = vld [vmem:[%s0] sm:$0xff]
    %v216 = vld [vmem:[%s0 + $0x8] sm:$0xff]
    %v217 = vld [vmem:[%s0 + $0x10] sm:$0xff]
    %v218 = vld [vmem:[%s0 + $0x18] sm:$0xff]
    %v219 = vld [vmem:[%s0 + $0x20] sm:$0xff]
    %v220 = vld [vmem:[%s0 + $0x28] sm:$0xff]
    %v221 = vld [vmem:[%s0 + $0x30] sm:$0xff]
    %v222 = vld [vmem:[%s0 + $0x38] sm:$0xff]
    %v223 = vld [vmem:[%s0 + $0x40] sm:$0xff]
    %v224 = vld [vmem:[%s0 + $0x48] sm:$0xff]
    %v225 = vld [vmem:[%s0 + $0x50] sm:$0xff]
    %v226 = vld [vmem:[%s0 + $0x58] sm:$0xff]
    %v227 = vld [vmem:[%s0 + $0x60] sm:$0xff]
    %v228 = vld [vmem:[%s0 + $0x68] sm:$0xff]
    %v229 = vld [vmem:[%s0 + $0x70] sm:$0xff]
    %v230 = vld [vmem:[%s0 + $0x78] sm:$0xff]
    %v231 = vld [vmem:[%s0 + $0x80] sm:$0xff]
    %v232 = vld [vmem:[%s0 + $0x88] sm:$0xff]
    %v233 = vld [vmem:[%s0 + $0x90] sm:$0xff]
    %v234 = vld [vmem:[%s0 + $0x98] sm:$0xff]
    %v235 = vld [vmem:[%s0 + $0xa0] sm:$0xff]
    %v236 = vld [vmem:[%s0 + $0xa8] sm:$0xff]
    %v237 = vld [vmem:[%s0 + $0xb0] sm:$0xff]
    %v238 = vld [vmem:[%s0 + $0xb8] sm:$0xff]
    %v239 = vld [vmem:[%s0 + $0xc0] sm:$0xff]
    %v240 = vld [vmem:[%s0 + $0xc8] sm:$0xff]
    %v241 = vld [vmem:[%s0 + $0xd0] sm:$0xff]
    %v242 = vld [vmem:[%s0 + $0xd8] sm:$0xff]
    %v243 = vld [vmem:[%s0 + $0xe0] sm:$0xff]
    %v244 = vld [vmem:[%s0 + $0xe8] sm:$0xff]
    %v245 = vld [vmem:[%s0 + $0xf0] sm:$0xff]
    %v246 = vld [vmem:[%s0 + $0xf8] sm:$0xff]
    %v247 = vld [vmem:[#allocation2] sm:$0xf]
    %v248 = vpack.c.bf16 %v216, %v215
    %v249 = vpack.c.bf16 %v218, %v217
    %v250 = vpack.c.bf16 %v220, %v219
    %v251 = vpack.c.bf16 %v222, %v221
    %v252 = vpack.c.bf16 %v224, %v223
    %v253 = vpack.c.bf16 %v226, %v225
    %v254 = vpack.c.bf16 %v228, %v227
    %v255 = vpack.c.bf16 %v230, %v229
    %v256 = vpack.c.bf16 %v232, %v231
    %v257 = vpack.c.bf16 %v234, %v233
    %v258 = vpack.c.bf16 %v236, %v235
    %v259 = vpack.c.bf16 %v238, %v237
    %v260 = vpack.c.bf16 %v240, %v239
    %v261 = vpack.c.bf16 %v242, %v241
    %v262 = vpack.c.bf16 %v244, %v243
    %v263 = vpack.c.bf16 %v246, %v245
    %v264 = vld [vmem:[%s2] sm:$0x1]
    %v266 = vlaneseq
    %v267 = vshrl.u32 %v266, 7
    %v268 = vsub.s32 0, %v267
    %v269 = vrot.slane %v264, %v268
    %vm271 = vcmask 64512
    %v273 = vsel %vm271, %v248, 0
    %v276 = vsel %vm271, %v249, 0
    %v279 = vsel %vm271, %v250, 0
    %v282 = vsel %vm271, %v251, 0
    %v285 = vsel %vm271, %v252, 0
    %v288 = vsel %vm271, %v253, 0
    %v291 = vsel %vm271, %v254, 0
    %v294 = vsel %vm271, %v255, 0
    %v297 = vsel %vm271, %v256, 0
    %v300 = vsel %vm271, %v257, 0
    %v303 = vsel %vm271, %v258, 0
    %v306 = vsel %vm271, %v259, 0
    %v309 = vsel %vm271, %v260, 0
    %v312 = vsel %vm271, %v261, 0
    %v315 = vsel %vm271, %v262, 0
    %v318 = vsel %vm271, %v263, 0
    %vm320 = vcmask 1043456
    %v322 = vsel %vm320, %v247, 0
    %324 = vmatprep.subr.bf16.mxu0 0
    %325 = vmatpush1.bf16.msra.mxu0 %v322
    %326 = vmatprep.subr.bf16.mxu0 0
    %327 = vmatpush1.bf16.msra.mxu0 0
    %328 = vmatprep.subr.bf16.mxu0 0
    %329 = vmatpush1.bf16.msra.mxu0 0
    %330 = vmatprep.subr.bf16.mxu0 0
    %331 = vmatpush1.bf16.msra.mxu0 0
    %332 = vmatprep.subr.bf16.mxu0 0
    %333 = vmatpush1.bf16.msra.mxu0 0
    %334 = vmatprep.subr.bf16.mxu0 0
    %335 = vmatpush1.bf16.msra.mxu0 0
    %336 = vmatprep.subr.bf16.mxu0 0
    %337 = vmatpush1.bf16.msra.mxu0 0
    %338 = vmatprep.subr.bf16.mxu0 0
    %339 = vmatpush1.bf16.msra.mxu0 0
    %340 = vmatprep.subr.bf16.mxu0 0
    %341 = vmatpush1.bf16.msra.mxu0 0
    %342 = vmatprep.subr.bf16.mxu0 0
    %343 = vmatpush1.bf16.msra.mxu0 0
    %344 = vmatprep.subr.bf16.mxu0 0
    %345 = vmatpush1.bf16.msra.mxu0 0
    %346 = vmatprep.subr.bf16.mxu0 0
    %347 = vmatpush1.bf16.msra.mxu0 0
    %348 = vmatprep.subr.bf16.mxu0 0
    %349 = vmatpush1.bf16.msra.mxu0 0
    %350 = vmatprep.subr.bf16.mxu0 0
    %351 = vmatpush1.bf16.msra.mxu0 0
    %352 = vmatprep.subr.bf16.mxu0 0
    %353 = vmatpush1.bf16.msra.mxu0 0
    %354 = vmatprep.subr.bf16.mxu0 0
    %355 = vmatpush1.bf16.msra.mxu0 0
    %356 = vmatprep.mubr.bf16.mxu0 0
    %357 = vmatmul.mubr.bf16.gmra.mrb[0].mxu0 %v273
    %v358 = vpop.f32.mrb[0].mxu0
    %v359 = vadd.f32 %v269, %v358
    %v360 = vpop.f32.mrb[0].mxu0
    %v361 = vpop.f32.mrb[0].mxu0
    %v362 = vadd.f32 %v269, %v361
    %v363 = vpop.f32.mrb[0].mxu0
    %364 = vmatprep.mubr.bf16.mxu0 0
    %365 = vmatmul.mubr.bf16.gmra.mrb[0].mxu0 %v276
    %v366 = vpop.f32.mrb[0].mxu0
    %v367 = vadd.f32 %v269, %v366
    %v368 = vpop.f32.mrb[0].mxu0
    %v369 = vpop.f32.mrb[0].mxu0
    %v370 = vadd.f32 %v269, %v369
    %v371 = vpop.f32.mrb[0].mxu0
    %372 = vmatprep.mubr.bf16.mxu0 0
    %373 = vmatmul.mubr.bf16.gmra.mrb[0].mxu0 %v279
    %v374 = vpop.f32.mrb[0].mxu0
    %v375 = vadd.f32 %v269, %v374
    %v376 = vpop.f32.mrb[0].mxu0
    %v377 = vpop.f32.mrb[0].mxu0
    %v378 = vadd.f32 %v269, %v377
    %v379 = vpop.f32.mrb[0].mxu0
    %380 = vmatprep.mubr.bf16.mxu0 0
    %381 = vmatmul.mubr.bf16.gmra.mrb[0].mxu0 %v282
    %v382 = vpop.f32.mrb[0].mxu0
    %v383 = vadd.f32 %v269, %v382
    %v384 = vpop.f32.mrb[0].mxu0
    %v385 = vpop.f32.mrb[0].mxu0
    %v386 = vadd.f32 %v269, %v385
    %v387 = vpop.f32.mrb[0].mxu0
    %388 = vmatprep.mubr.bf16.mxu0 0
    %389 = vmatmul.mubr.bf16.gmra.mrb[0].mxu0 %v285
    %v390 = vpop.f32.mrb[0].mxu0
    %v391 = vadd.f32 %v269, %v390
    %v392 = vpop.f32.mrb[0].mxu0
    %v393 = vpop.f32.mrb[0].mxu0
    %v394 = vadd.f32 %v269, %v393
    %v395 = vpop.f32.mrb[0].mxu0
    %396 = vmatprep.mubr.bf16.mxu0 0
    %397 = vmatmul.mubr.bf16.gmra.mrb[0].mxu0 %v288
    %v398 = vpop.f32.mrb[0].mxu0
    %v399 = vadd.f32 %v269, %v398
    %v400 = vpop.f32.mrb[0].mxu0
    %v401 = vpop.f32.mrb[0].mxu0
    %v402 = vadd.f32 %v269, %v401
    %v403 = vpop.f32.mrb[0].mxu0
    %404 = vmatprep.mubr.bf16.mxu0 0
    %405 = vmatmul.mubr.bf16.gmra.mrb[0].mxu0 %v291
    %v406 = vpop.f32.mrb[0].mxu0
    %v407 = vadd.f32 %v269, %v406
    %v408 = vpop.f32.mrb[0].mxu0
    %v409 = vpop.f32.mrb[0].mxu0
    %v410 = vadd.f32 %v269, %v409
    %v411 = vpop.f32.mrb[0].mxu0
    %412 = vmatprep.mubr.bf16.mxu0 0
    %413 = vmatmul.mubr.bf16.gmra.mrb[0].mxu0 %v294
    %v414 = vpop.f32.mrb[0].mxu0
    %v415 = vadd.f32 %v269, %v414
    %v416 = vpop.f32.mrb[0].mxu0
    %v417 = vpop.f32.mrb[0].mxu0
    %v418 = vadd.f32 %v269, %v417
    %v419 = vpop.f32.mrb[0].mxu0
    %420 = vmatprep.mubr.bf16.mxu0 0
    %421 = vmatmul.mubr.bf16.gmra.mrb[0].mxu0 %v297
    %v422 = vpop.f32.mrb[0].mxu0
    %v423 = vadd.f32 %v269, %v422
    %v424 = vpop.f32.mrb[0].mxu0
    %v425 = vpop.f32.mrb[0].mxu0
    %v426 = vadd.f32 %v269, %v425
    %v427 = vpop.f32.mrb[0].mxu0
    %428 = vmatprep.mubr.bf16.mxu0 0
    %429 = vmatmul.mubr.bf16.gmra.mrb[0].mxu0 %v300
    %v430 = vpop.f32.mrb[0].mxu0
    %v431 = vadd.f32 %v269, %v430
    %v432 = vpop.f32.mrb[0].mxu0
    %v433 = vpop.f32.mrb[0].mxu0
    %v434 = vadd.f32 %v269, %v433
    %v435 = vpop.f32.mrb[0].mxu0
    %436 = vmatprep.mubr.bf16.mxu0 0
    %437 = vmatmul.mubr.bf16.gmra.mrb[0].mxu0 %v303
    %v438 = vpop.f32.mrb[0].mxu0
    %v439 = vadd.f32 %v269, %v438
    %v440 = vpop.f32.mrb[0].mxu0
    %v441 = vpop.f32.mrb[0].mxu0
    %v442 = vadd.f32 %v269, %v441
    %v443 = vpop.f32.mrb[0].mxu0
    %444 = vmatprep.mubr.bf16.mxu0 0
    %445 = vmatmul.mubr.bf16.gmra.mrb[0].mxu0 %v306
    %v446 = vpop.f32.mrb[0].mxu0
    %v447 = vadd.f32 %v269, %v446
    %v448 = vpop.f32.mrb[0].mxu0
    %v449 = vpop.f32.mrb[0].mxu0
    %v450 = vadd.f32 %v269, %v449
    %v451 = vpop.f32.mrb[0].mxu0
    %452 = vmatprep.mubr.bf16.mxu0 0
    %453 = vmatmul.mubr.bf16.gmra.mrb[0].mxu0 %v309
    %v454 = vpop.f32.mrb[0].mxu0
    %v455 = vadd.f32 %v269, %v454
    %v456 = vpop.f32.mrb[0].mxu0
    %v457 = vpop.f32.mrb[0].mxu0
    %v458 = vadd.f32 %v269, %v457
    %v459 = vpop.f32.mrb[0].mxu0
    %460 = vmatprep.mubr.bf16.mxu0 0
    %461 = vmatmul.mubr.bf16.gmra.mrb[0].mxu0 %v312
    %v462 = vpop.f32.mrb[0].mxu0
    %v463 = vadd.f32 %v269, %v462
    %v464 = vpop.f32.mrb[0].mxu0
    %v465 = vpop.f32.mrb[0].mxu0
    %v466 = vadd.f32 %v269, %v465
    %v467 = vpop.f32.mrb[0].mxu0
    %468 = vmatprep.mubr.bf16.mxu0 0
    %469 = vmatmul.mubr.bf16.gmra.mrb[0].mxu0 %v315
    %v470 = vpop.f32.mrb[0].mxu0
    %v471 = vadd.f32 %v269, %v470
    %v472 = vpop.f32.mrb[0].mxu0
    %v473 = vpop.f32.mrb[0].mxu0
    %v474 = vadd.f32 %v269, %v473
    %v475 = vpop.f32.mrb[0].mxu0
    %476 = vmatprep.mubr.bf16.mxu0 0
    %477 = vmatmul.mubr.bf16.gmra.mrb[0].mxu0 %v318
    %v478 = vpop.f32.mrb[0].mxu0
    %v479 = vadd.f32 %v269, %v478
    %v480 = vpop.f32.mrb[0].mxu0
    %v481 = vpop.f32.mrb[0].mxu0
    %v482 = vadd.f32 %v269, %v481
    %v483 = vpop.f32.mrb[0].mxu0
    %484 = vdwg.mxu0
    %v485 = vmax.f32 %v359, 0.0
    %v486 = vmax.f32 %v362, 0.0
    %v487 = vmax.f32 %v367, 0.0
    %v488 = vmax.f32 %v370, 0.0
    %v489 = vmax.f32 %v375, 0.0
    %v490 = vmax.f32 %v378, 0.0
    %v491 = vmax.f32 %v383, 0.0
    %v492 = vmax.f32 %v386, 0.0
    %v493 = vmax.f32 %v391, 0.0
    %v494 = vmax.f32 %v394, 0.0
    %v495 = vmax.f32 %v399, 0.0
    %v496 = vmax.f32 %v402, 0.0
    %v497 = vmax.f32 %v407, 0.0
    %v498 = vmax.f32 %v410, 0.0
    %v499 = vmax.f32 %v415, 0.0
    %v500 = vmax.f32 %v418, 0.0
    %v501 = vmax.f32 %v423, 0.0
    %v502 = vmax.f32 %v426, 0.0
    %v503 = vmax.f32 %v431, 0.0
    %v504 = vmax.f32 %v434, 0.0
    %v505 = vmax.f32 %v439, 0.0
    %v506 = vmax.f32 %v442, 0.0
    %v507 = vmax.f32 %v447, 0.0
    %v508 = vmax.f32 %v450, 0.0
    %v509 = vmax.f32 %v455, 0.0
    %v510 = vmax.f32 %v458, 0.0
    %v511 = vmax.f32 %v463, 0.0
    %v512 = vmax.f32 %v466, 0.0
    %v513 = vmax.f32 %v471, 0.0
    %v514 = vmax.f32 %v474, 0.0
    %v515 = vmax.f32 %v479, 0.0
    %v516 = vmax.f32 %v482, 0.0
    %v517 = vld [vmem:[#allocation4] sm:$0xf]
    %v518 = vld [vmem:[#allocation4 + $0x4] sm:$0xf]
    %v519 = vld [vmem:[#allocation4 + $0x8] sm:$0xf]
    %v520 = vld [vmem:[#allocation4 + $0xc] sm:$0xf]
    %v521 = vld [vmem:[#allocation4 + $0x10] sm:$0xf]
    %v522 = vld [vmem:[#allocation4 + $0x14] sm:$0xf]
    %v523 = vld [vmem:[#allocation4 + $0x18] sm:$0xf]
    %v524 = vld [vmem:[#allocation4 + $0x1c] sm:$0xf]
    %v525 = vpack.c.bf16 %v486, %v485
    %v526 = vpack.c.bf16 %v488, %v487
    %v527 = vpack.c.bf16 %v490, %v489
    %v528 = vpack.c.bf16 %v492, %v491
    %v529 = vpack.c.bf16 %v494, %v493
    %v530 = vpack.c.bf16 %v496, %v495
    %v531 = vpack.c.bf16 %v498, %v497
    %v532 = vpack.c.bf16 %v500, %v499
    %v533 = vpack.c.bf16 %v502, %v501
    %v534 = vpack.c.bf16 %v504, %v503
    %v535 = vpack.c.bf16 %v506, %v505
    %v536 = vpack.c.bf16 %v508, %v507
    %v537 = vpack.c.bf16 %v510, %v509
    %v538 = vpack.c.bf16 %v512, %v511
    %v539 = vpack.c.bf16 %v514, %v513
    %v540 = vpack.c.bf16 %v516, %v515
    %v541 = vld [vmem:[#allocation6] sm:$0x1]
    %v543 = vlaneseq
    %v544 = vshrl.u32 %v543, 7
    %v545 = vsub.s32 0, %v544
    %v546 = vrot.slane %v541, %v545
    %v556 = vunpack.c.l.b16 %v517
    %v557 = vunpack.c.l.b16 %v518
    %v558 = vunpack.c.l.b16 %v519
    %v559 = vunpack.c.l.b16 %v520
    %v560 = vunpack.c.l.b16 %v521
    %v561 = vunpack.c.l.b16 %v522
    %v562 = vunpack.c.l.b16 %v523
    %v563 = vunpack.c.l.b16 %v524
    %v564 = vpack.c.b16 %v557, %v556
    %v565 = vpack.c.b16 %v559, %v558
    %v566 = vpack.c.b16 %v561, %v560
    %v567 = vpack.c.b16 %v563, %v562
    %vm572 = vcmask 523264
    %v574 = vsel %vm572, %v525, 0
    %v577 = vsel %vm572, %v526, 0
    %v580 = vsel %vm572, %v527, 0
    %v583 = vsel %vm572, %v528, 0
    %v586 = vsel %vm572, %v529, 0
    %v589 = vsel %vm572, %v530, 0
    %v592 = vsel %vm572, %v531, 0
    %v595 = vsel %vm572, %v532, 0
    %v598 = vsel %vm572, %v533, 0
    %v601 = vsel %vm572, %v534, 0
    %v604 = vsel %vm572, %v535, 0
    %v607 = vsel %vm572, %v536, 0
    %v610 = vsel %vm572, %v537, 0
    %v613 = vsel %vm572, %v538, 0
    %v616 = vsel %vm572, %v539, 0
    %v619 = vsel %vm572, %v540, 0
    %621 = vmatprep.subr.bf16.mxu0 0
    %622 = vmatpush1.bf16.msra.mxu0 %v564
    %623 = vmatprep.subr.bf16.mxu0 0
    %624 = vmatpush1.bf16.msra.mxu0 %v565
    %625 = vmatprep.subr.bf16.mxu0 0
    %626 = vmatpush1.bf16.msra.mxu0 %v566
    %627 = vmatprep.subr.bf16.mxu0 0
    %628 = vmatpush1.bf16.msra.mxu0 %v567
    %629 = vmatprep.subr.bf16.mxu0 0
    %630 = vmatpush1.bf16.msra.mxu0 0
    %631 = vmatprep.subr.bf16.mxu0 0
    %632 = vmatpush1.bf16.msra.mxu0 0
    %633 = vmatprep.subr.bf16.mxu0 0
    %634 = vmatpush1.bf16.msra.mxu0 0
    %635 = vmatprep.subr.bf16.mxu0 0
    %636 = vmatpush1.bf16.msra.mxu0 0
    %637 = vmatprep.subr.bf16.mxu0 0
    %638 = vmatpush1.bf16.msra.mxu0 0
    %639 = vmatprep.subr.bf16.mxu0 0
    %640 = vmatpush1.bf16.msra.mxu0 0
    %641 = vmatprep.subr.bf16.mxu0 0
    %642 = vmatpush1.bf16.msra.mxu0 0
    %643 = vmatprep.subr.bf16.mxu0 0
    %644 = vmatpush1.bf16.msra.mxu0 0
    %645 = vmatprep.subr.bf16.mxu0 0
    %646 = vmatpush1.bf16.msra.mxu0 0
    %647 = vmatprep.subr.bf16.mxu0 0
    %648 = vmatpush1.bf16.msra.mxu0 0
    %649 = vmatprep.subr.bf16.mxu0 0
    %650 = vmatpush1.bf16.msra.mxu0 0
    %651 = vmatprep.subr.bf16.mxu0 0
    %652 = vmatpush1.bf16.msra.mxu0 0
    %653 = vmatprep.mubr.bf16.mxu0 0
    %654 = vmatmul.mubr.bf16.gmra.mrb[0].mxu0 %v574
    %v655 = vpop.f32.mrb[0].mxu0
    %v656 = vadd.f32 %v546, %v655
    %v657 = vpop.f32.mrb[0].mxu0
    %v658 = vpop.f32.mrb[0].mxu0
    %v659 = vadd.f32 %v546, %v658
    %v660 = vpop.f32.mrb[0].mxu0
    %661 = vmatprep.mubr.bf16.mxu0 0
    %662 = vmatmul.mubr.bf16.gmra.mrb[0].mxu0 %v577
    %v663 = vpop.f32.mrb[0].mxu0
    %v664 = vadd.f32 %v546, %v663
    %v665 = vpop.f32.mrb[0].mxu0
    %v666 = vpop.f32.mrb[0].mxu0
    %v667 = vadd.f32 %v546, %v666
    %v668 = vpop.f32.mrb[0].mxu0
    %669 = vmatprep.mubr.bf16.mxu0 0
    %670 = vmatmul.mubr.bf16.gmra.mrb[0].mxu0 %v580
    %v671 = vpop.f32.mrb[0].mxu0
    %v672 = vadd.f32 %v546, %v671
    %v673 = vpop.f32.mrb[0].mxu0
    %v674 = vpop.f32.mrb[0].mxu0
    %v675 = vadd.f32 %v546, %v674
    %v676 = vpop.f32.mrb[0].mxu0
    %677 = vmatprep.mubr.bf16.mxu0 0
    %678 = vmatmul.mubr.bf16.gmra.mrb[0].mxu0 %v583
    %v679 = vpop.f32.mrb[0].mxu0
    %v680 = vadd.f32 %v546, %v679
    %v681 = vpop.f32.mrb[0].mxu0
    %v682 = vpop.f32.mrb[0].mxu0
    %v683 = vadd.f32 %v546, %v682
    %v684 = vpop.f32.mrb[0].mxu0
    %685 = vmatprep.mubr.bf16.mxu0 0
    %686 = vmatmul.mubr.bf16.gmra.mrb[0].mxu0 %v586
    %v687 = vpop.f32.mrb[0].mxu0
    %v688 = vadd.f32 %v546, %v687
    %v689 = vpop.f32.mrb[0].mxu0
    %v690 = vpop.f32.mrb[0].mxu0
    %v691 = vadd.f32 %v546, %v690
    %v692 = vpop.f32.mrb[0].mxu0
    %693 = vmatprep.mubr.bf16.mxu0 0
    %694 = vmatmul.mubr.bf16.gmra.mrb[0].mxu0 %v589
    %v695 = vpop.f32.mrb[0].mxu0
    %v696 = vadd.f32 %v546, %v695
    %v697 = vpop.f32.mrb[0].mxu0
    %v698 = vpop.f32.mrb[0].mxu0
    %v699 = vadd.f32 %v546, %v698
    %v700 = vpop.f32.mrb[0].mxu0
    %701 = vmatprep.mubr.bf16.mxu0 0
    %702 = vmatmul.mubr.bf16.gmra.mrb[0].mxu0 %v592
    %v703 = vpop.f32.mrb[0].mxu0
    %v704 = vadd.f32 %v546, %v703
    %v705 = vpop.f32.mrb[0].mxu0
    %v706 = vpop.f32.mrb[0].mxu0
    %v707 = vadd.f32 %v546, %v706
    %v708 = vpop.f32.mrb[0].mxu0
    %709 = vmatprep.mubr.bf16.mxu0 0
    %710 = vmatmul.mubr.bf16.gmra.mrb[0].mxu0 %v595
    %v711 = vpop.f32.mrb[0].mxu0
    %v712 = vadd.f32 %v546, %v711
    %v713 = vpop.f32.mrb[0].mxu0
    %v714 = vpop.f32.mrb[0].mxu0
    %v715 = vadd.f32 %v546, %v714
    %v716 = vpop.f32.mrb[0].mxu0
    %717 = vmatprep.mubr.bf16.mxu0 0
    %718 = vmatmul.mubr.bf16.gmra.mrb[0].mxu0 %v598
    %v719 = vpop.f32.mrb[0].mxu0
    %v720 = vadd.f32 %v546, %v719
    %v721 = vpop.f32.mrb[0].mxu0
    %v722 = vpop.f32.mrb[0].mxu0
    %v723 = vadd.f32 %v546, %v722
    %v724 = vpop.f32.mrb[0].mxu0
    %725 = vmatprep.mubr.bf16.mxu0 0
    %726 = vmatmul.mubr.bf16.gmra.mrb[0].mxu0 %v601
    %v727 = vpop.f32.mrb[0].mxu0
    %v728 = vadd.f32 %v546, %v727
    %v729 = vpop.f32.mrb[0].mxu0
    %v730 = vpop.f32.mrb[0].mxu0
    %v731 = vadd.f32 %v546, %v730
    %v732 = vpop.f32.mrb[0].mxu0
    %733 = vmatprep.mubr.bf16.mxu0 0
    %734 = vmatmul.mubr.bf16.gmra.mrb[0].mxu0 %v604
    %v735 = vpop.f32.mrb[0].mxu0
    %v736 = vadd.f32 %v546, %v735
    %v737 = vpop.f32.mrb[0].mxu0
    %v738 = vpop.f32.mrb[0].mxu0
    %v739 = vadd.f32 %v546, %v738
    %v740 = vpop.f32.mrb[0].mxu0
    %741 = vmatprep.mubr.bf16.mxu0 0
    %742 = vmatmul.mubr.bf16.gmra.mrb[0].mxu0 %v607
    %v743 = vpop.f32.mrb[0].mxu0
    %v744 = vadd.f32 %v546, %v743
    %v745 = vpop.f32.mrb[0].mxu0
    %v746 = vpop.f32.mrb[0].mxu0
    %v747 = vadd.f32 %v546, %v746
    %v748 = vpop.f32.mrb[0].mxu0
    %749 = vmatprep.mubr.bf16.mxu0 0
    %750 = vmatmul.mubr.bf16.gmra.mrb[0].mxu0 %v610
    %v751 = vpop.f32.mrb[0].mxu0
    %v752 = vadd.f32 %v546, %v751
    %v753 = vpop.f32.mrb[0].mxu0
    %v754 = vpop.f32.mrb[0].mxu0
    %v755 = vadd.f32 %v546, %v754
    %v756 = vpop.f32.mrb[0].mxu0
    %757 = vmatprep.mubr.bf16.mxu0 0
    %758 = vmatmul.mubr.bf16.gmra.mrb[0].mxu0 %v613
    %v759 = vpop.f32.mrb[0].mxu0
    %v760 = vadd.f32 %v546, %v759
    %v761 = vpop.f32.mrb[0].mxu0
    %v762 = vpop.f32.mrb[0].mxu0
    %v763 = vadd.f32 %v546, %v762
    %v764 = vpop.f32.mrb[0].mxu0
    %765 = vmatprep.mubr.bf16.mxu0 0
    %766 = vmatmul.mubr.bf16.gmra.mrb[0].mxu0 %v616
    %v767 = vpop.f32.mrb[0].mxu0
    %v768 = vadd.f32 %v546, %v767
    %v769 = vpop.f32.mrb[0].mxu0
    %v770 = vpop.f32.mrb[0].mxu0
    %v771 = vadd.f32 %v546, %v770
    %v772 = vpop.f32.mrb[0].mxu0
    %773 = vmatprep.mubr.bf16.mxu0 0
    %774 = vmatmul.mubr.bf16.gmra.mrb[0].mxu0 %v619
    %v775 = vpop.f32.mrb[0].mxu0
    %v776 = vadd.f32 %v546, %v775
    %v777 = vpop.f32.mrb[0].mxu0
    %v778 = vpop.f32.mrb[0].mxu0
    %v779 = vadd.f32 %v546, %v778
    %v780 = vpop.f32.mrb[0].mxu0
    %781 = vdwg.mxu0
    %v782 = vmax.f32 %v656, 0.0
    %v783 = vmax.f32 %v659, 0.0
    %v784 = vmax.f32 %v664, 0.0
    %v785 = vmax.f32 %v667, 0.0
    %v786 = vmax.f32 %v672, 0.0
    %v787 = vmax.f32 %v675, 0.0
    %v788 = vmax.f32 %v680, 0.0
    %v789 = vmax.f32 %v683, 0.0
    %v790 = vmax.f32 %v688, 0.0
    %v791 = vmax.f32 %v691, 0.0
    %v792 = vmax.f32 %v696, 0.0
    %v793 = vmax.f32 %v699, 0.0
    %v794 = vmax.f32 %v704, 0.0
    %v795 = vmax.f32 %v707, 0.0
    %v796 = vmax.f32 %v712, 0.0
    %v797 = vmax.f32 %v715, 0.0
    %v798 = vmax.f32 %v720, 0.0
    %v799 = vmax.f32 %v723, 0.0
    %v800 = vmax.f32 %v728, 0.0
    %v801 = vmax.f32 %v731, 0.0
    %v802 = vmax.f32 %v736, 0.0
    %v803 = vmax.f32 %v739, 0.0
    %v804 = vmax.f32 %v744, 0.0
    %v805 = vmax.f32 %v747, 0.0
    %v806 = vmax.f32 %v752, 0.0
    %v807 = vmax.f32 %v755, 0.0
    %v808 = vmax.f32 %v760, 0.0
    %v809 = vmax.f32 %v763, 0.0
    %v810 = vmax.f32 %v768, 0.0
    %v811 = vmax.f32 %v771, 0.0
    %v812 = vmax.f32 %v776, 0.0
    %v813 = vmax.f32 %v779, 0.0
    %v814 = vpack.c.bf16 %v783, %v782
    %v815 = vpack.c.bf16 %v785, %v784
    %v816 = vpack.c.bf16 %v787, %v786
    %v817 = vpack.c.bf16 %v789, %v788
    %v818 = vpack.c.bf16 %v791, %v790
    %v819 = vpack.c.bf16 %v793, %v792
    %v820 = vpack.c.bf16 %v795, %v794
    %v821 = vpack.c.bf16 %v797, %v796
    %v822 = vpack.c.bf16 %v799, %v798
    %v823 = vpack.c.bf16 %v801, %v800
    %v824 = vpack.c.bf16 %v803, %v802
    %v825 = vpack.c.bf16 %v805, %v804
    %v826 = vpack.c.bf16 %v807, %v806
    %v827 = vpack.c.bf16 %v809, %v808
    %v828 = vpack.c.bf16 %v811, %v810
    %v829 = vpack.c.bf16 %v813, %v812
    %v830 = vld [vmem:[#allocation7] sm:$0xf]
    %v831 = vld [vmem:[#allocation7 + $0x4] sm:$0xf]
    %v832 = vld [vmem:[#allocation7 + $0x8] sm:$0xf]
    %v833 = vld [vmem:[#allocation7 + $0xc] sm:$0xf]
    %v834 = vld [vmem:[#allocation7 + $0x10] sm:$0xf]
    %v835 = vld [vmem:[#allocation7 + $0x14] sm:$0xf]
    %v836 = vld [vmem:[#allocation7 + $0x18] sm:$0xf]
    %v837 = vld [vmem:[#allocation7 + $0x1c] sm:$0xf]
    %v838 = vld [vmem:[#allocation9] sm:$0x1]
    %v840 = vlaneseq
    %v841 = vshrl.u32 %v840, 7
    %v842 = vsub.s32 0, %v841
    %v843 = vrot.slane %v838, %v842
    %v853 = vunpack.c.l.b16 %v830
    %v854 = vunpack.c.l.b16 %v831
    %v855 = vunpack.c.l.b16 %v832
    %v856 = vunpack.c.l.b16 %v833
    %v857 = vunpack.c.l.b16 %v834
    %v858 = vunpack.c.l.b16 %v835
    %v859 = vunpack.c.l.b16 %v836
    %v860 = vunpack.c.l.b16 %v837
    %v861 = vpack.c.b16 %v854, %v853
    %v862 = vpack.c.b16 %v856, %v855
    %v863 = vpack.c.b16 %v858, %v857
    %v864 = vpack.c.b16 %v860, %v859
    %v870 = vsel %vm572, %v814, 0
    %v873 = vsel %vm572, %v815, 0
    %v876 = vsel %vm572, %v816, 0
    %v879 = vsel %vm572, %v817, 0
    %v882 = vsel %vm572, %v818, 0
    %v885 = vsel %vm572, %v819, 0
    %v888 = vsel %vm572, %v820, 0
    %v891 = vsel %vm572, %v821, 0
    %v894 = vsel %vm572, %v822, 0
    %v897 = vsel %vm572, %v823, 0
    %v900 = vsel %vm572, %v824, 0
    %v903 = vsel %vm572, %v825, 0
    %v906 = vsel %vm572, %v826, 0
    %v909 = vsel %vm572, %v827, 0
    %v912 = vsel %vm572, %v828, 0
    %v915 = vsel %vm572, %v829, 0
    %917 = vmatprep.subr.bf16.mxu0 0
    %918 = vmatpush1.bf16.msra.mxu0 %v861
    %919 = vmatprep.subr.bf16.mxu0 0
    %920 = vmatpush1.bf16.msra.mxu0 %v862
    %921 = vmatprep.subr.bf16.mxu0 0
    %922 = vmatpush1.bf16.msra.mxu0 %v863
    %923 = vmatprep.subr.bf16.mxu0 0
    %924 = vmatpush1.bf16.msra.mxu0 %v864
    %925 = vmatprep.subr.bf16.mxu0 0
    %926 = vmatpush1.bf16.msra.mxu0 0
    %927 = vmatprep.subr.bf16.mxu0 0
    %928 = vmatpush1.bf16.msra.mxu0 0
    %929 = vmatprep.subr.bf16.mxu0 0
    %930 = vmatpush1.bf16.msra.mxu0 0
    %931 = vmatprep.subr.bf16.mxu0 0
    %932 = vmatpush1.bf16.msra.mxu0 0
    %933 = vmatprep.subr.bf16.mxu0 0
    %934 = vmatpush1.bf16.msra.mxu0 0
    %935 = vmatprep.subr.bf16.mxu0 0
    %936 = vmatpush1.bf16.msra.mxu0 0
    %937 = vmatprep.subr.bf16.mxu0 0
    %938 = vmatpush1.bf16.msra.mxu0 0
    %939 = vmatprep.subr.bf16.mxu0 0
    %940 = vmatpush1.bf16.msra.mxu0 0
    %941 = vmatprep.subr.bf16.mxu0 0
    %942 = vmatpush1.bf16.msra.mxu0 0
    %943 = vmatprep.subr.bf16.mxu0 0
    %944 = vmatpush1.bf16.msra.mxu0 0
    %945 = vmatprep.subr.bf16.mxu0 0
    %946 = vmatpush1.bf16.msra.mxu0 0
    %947 = vmatprep.subr.bf16.mxu0 0
    %948 = vmatpush1.bf16.msra.mxu0 0
    %949 = vmatprep.mubr.bf16.mxu0 0
    %950 = vmatmul.mubr.bf16.gmra.mrb[0].mxu0 %v870
    %v951 = vpop.f32.mrb[0].mxu0
    %v952 = vadd.f32 %v843, %v951
    %v953 = vpop.f32.mrb[0].mxu0
    %v954 = vpop.f32.mrb[0].mxu0
    %v955 = vadd.f32 %v843, %v954
    %v956 = vpop.f32.mrb[0].mxu0
    %957 = vmatprep.mubr.bf16.mxu0 0
    %958 = vmatmul.mubr.bf16.gmra.mrb[0].mxu0 %v873
    %v959 = vpop.f32.mrb[0].mxu0
    %v960 = vadd.f32 %v843, %v959
    %v961 = vpop.f32.mrb[0].mxu0
    %v962 = vpop.f32.mrb[0].mxu0
    %v963 = vadd.f32 %v843, %v962
    %v964 = vpop.f32.mrb[0].mxu0
    %965 = vmatprep.mubr.bf16.mxu0 0
    %966 = vmatmul.mubr.bf16.gmra.mrb[0].mxu0 %v876
    %v967 = vpop.f32.mrb[0].mxu0
    %v968 = vadd.f32 %v843, %v967
    %v969 = vpop.f32.mrb[0].mxu0
    %v970 = vpop.f32.mrb[0].mxu0
    %v971 = vadd.f32 %v843, %v970
    %v972 = vpop.f32.mrb[0].mxu0
    %973 = vmatprep.mubr.bf16.mxu0 0
    %974 = vmatmul.mubr.bf16.gmra.mrb[0].mxu0 %v879
    %v975 = vpop.f32.mrb[0].mxu0
    %v976 = vadd.f32 %v843, %v975
    %v977 = vpop.f32.mrb[0].mxu0
    %v978 = vpop.f32.mrb[0].mxu0
    %v979 = vadd.f32 %v843, %v978
    %v980 = vpop.f32.mrb[0].mxu0
    %981 = vmatprep.mubr.bf16.mxu0 0
    %982 = vmatmul.mubr.bf16.gmra.mrb[0].mxu0 %v882
    %v983 = vpop.f32.mrb[0].mxu0
    %v984 = vadd.f32 %v843, %v983
    %v985 = vpop.f32.mrb[0].mxu0
    %v986 = vpop.f32.mrb[0].mxu0
    %v987 = vadd.f32 %v843, %v986
    %v988 = vpop.f32.mrb[0].mxu0
    %989 = vmatprep.mubr.bf16.mxu0 0
    %990 = vmatmul.mubr.bf16.gmra.mrb[0].mxu0 %v885
    %v991 = vpop.f32.mrb[0].mxu0
    %v992 = vadd.f32 %v843, %v991
    %v993 = vpop.f32.mrb[0].mxu0
    %v994 = vpop.f32.mrb[0].mxu0
    %v995 = vadd.f32 %v843, %v994
    %v996 = vpop.f32.mrb[0].mxu0
    %997 = vmatprep.mubr.bf16.mxu0 0
    %998 = vmatmul.mubr.bf16.gmra.mrb[0].mxu0 %v888
    %v999 = vpop.f32.mrb[0].mxu0
    %v1000 = vadd.f32 %v843, %v999
    %v1001 = vpop.f32.mrb[0].mxu0
    %v1002 = vpop.f32.mrb[0].mxu0
    %v1003 = vadd.f32 %v843, %v1002
    %v1004 = vpop.f32.mrb[0].mxu0
    %1005 = vmatprep.mubr.bf16.mxu0 0
    %1006 = vmatmul.mubr.bf16.gmra.mrb[0].mxu0 %v891
    %v1007 = vpop.f32.mrb[0].mxu0
    %v1008 = vadd.f32 %v843, %v1007
    %v1009 = vpop.f32.mrb[0].mxu0
    %v1010 = vpop.f32.mrb[0].mxu0
    %v1011 = vadd.f32 %v843, %v1010
    %v1012 = vpop.f32.mrb[0].mxu0
    %1013 = vmatprep.mubr.bf16.mxu0 0
    %1014 = vmatmul.mubr.bf16.gmra.mrb[0].mxu0 %v894
    %v1015 = vpop.f32.mrb[0].mxu0
    %v1016 = vadd.f32 %v843, %v1015
    %v1017 = vpop.f32.mrb[0].mxu0
    %v1018 = vpop.f32.mrb[0].mxu0
    %v1019 = vadd.f32 %v843, %v1018
    %v1020 = vpop.f32.mrb[0].mxu0
    %1021 = vmatprep.mubr.bf16.mxu0 0
    %1022 = vmatmul.mubr.bf16.gmra.mrb[0].mxu0 %v897
    %v1023 = vpop.f32.mrb[0].mxu0
    %v1024 = vadd.f32 %v843, %v1023
    %v1025 = vpop.f32.mrb[0].mxu0
    %v1026 = vpop.f32.mrb[0].mxu0
    %v1027 = vadd.f32 %v843, %v1026
    %v1028 = vpop.f32.mrb[0].mxu0
    %1029 = vmatprep.mubr.bf16.mxu0 0
    %1030 = vmatmul.mubr.bf16.gmra.mrb[0].mxu0 %v900
    %v1031 = vpop.f32.mrb[0].mxu0
    %v1032 = vadd.f32 %v843, %v1031
    %v1033 = vpop.f32.mrb[0].mxu0
    %v1034 = vpop.f32.mrb[0].mxu0
    %v1035 = vadd.f32 %v843, %v1034
    %v1036 = vpop.f32.mrb[0].mxu0
    %1037 = vmatprep.mubr.bf16.mxu0 0
    %1038 = vmatmul.mubr.bf16.gmra.mrb[0].mxu0 %v903
    %v1039 = vpop.f32.mrb[0].mxu0
    %v1040 = vadd.f32 %v843, %v1039
    %v1041 = vpop.f32.mrb[0].mxu0
    %v1042 = vpop.f32.mrb[0].mxu0
    %v1043 = vadd.f32 %v843, %v1042
    %v1044 = vpop.f32.mrb[0].mxu0
    %1045 = vmatprep.mubr.bf16.mxu0 0
    %1046 = vmatmul.mubr.bf16.gmra.mrb[0].mxu0 %v906
    %v1047 = vpop.f32.mrb[0].mxu0
    %v1048 = vadd.f32 %v843, %v1047
    %v1049 = vpop.f32.mrb[0].mxu0
    %v1050 = vpop.f32.mrb[0].mxu0
    %v1051 = vadd.f32 %v843, %v1050
    %v1052 = vpop.f32.mrb[0].mxu0
    %1053 = vmatprep.mubr.bf16.mxu0 0
    %1054 = vmatmul.mubr.bf16.gmra.mrb[0].mxu0 %v909
    %v1055 = vpop.f32.mrb[0].mxu0
    %v1056 = vadd.f32 %v843, %v1055
    %v1057 = vpop.f32.mrb[0].mxu0
    %v1058 = vpop.f32.mrb[0].mxu0
    %v1059 = vadd.f32 %v843, %v1058
    %v1060 = vpop.f32.mrb[0].mxu0
    %1061 = vmatprep.mubr.bf16.mxu0 0
    %1062 = vmatmul.mubr.bf16.gmra.mrb[0].mxu0 %v912
    %v1063 = vpop.f32.mrb[0].mxu0
    %v1064 = vadd.f32 %v843, %v1063
    %v1065 = vpop.f32.mrb[0].mxu0
    %v1066 = vpop.f32.mrb[0].mxu0
    %v1067 = vadd.f32 %v843, %v1066
    %v1068 = vpop.f32.mrb[0].mxu0
    %1069 = vmatprep.mubr.bf16.mxu0 0
    %1070 = vmatmul.mubr.bf16.gmra.mrb[0].mxu0 %v915
    %v1071 = vpop.f32.mrb[0].mxu0
    %v1072 = vadd.f32 %v843, %v1071
    %v1073 = vpop.f32.mrb[0].mxu0
    %v1074 = vpop.f32.mrb[0].mxu0
    %v1075 = vadd.f32 %v843, %v1074
    %v1076 = vpop.f32.mrb[0].mxu0
    %1077 = vdwg.mxu0
    %v1078 = vmax.f32 %v952, 0.0
    %v1079 = vmax.f32 %v955, 0.0
    %v1080 = vmax.f32 %v960, 0.0
    %v1081 = vmax.f32 %v963, 0.0
    %v1082 = vmax.f32 %v968, 0.0
    %v1083 = vmax.f32 %v971, 0.0
    %v1084 = vmax.f32 %v976, 0.0
    %v1085 = vmax.f32 %v979, 0.0
    %v1086 = vmax.f32 %v984, 0.0
    %v1087 = vmax.f32 %v987, 0.0
    %v1088 = vmax.f32 %v992, 0.0
    %v1089 = vmax.f32 %v995, 0.0
    %v1090 = vmax.f32 %v1000, 0.0
    %v1091 = vmax.f32 %v1003, 0.0
    %v1092 = vmax.f32 %v1008, 0.0
    %v1093 = vmax.f32 %v1011, 0.0
    %v1094 = vmax.f32 %v1016, 0.0
    %v1095 = vmax.f32 %v1019, 0.0
    %v1096 = vmax.f32 %v1024, 0.0
    %v1097 = vmax.f32 %v1027, 0.0
    %v1098 = vmax.f32 %v1032, 0.0
    %v1099 = vmax.f32 %v1035, 0.0
    %v1100 = vmax.f32 %v1040, 0.0
    %v1101 = vmax.f32 %v1043, 0.0
    %v1102 = vmax.f32 %v1048, 0.0
    %v1103 = vmax.f32 %v1051, 0.0
    %v1104 = vmax.f32 %v1056, 0.0
    %v1105 = vmax.f32 %v1059, 0.0
    %v1106 = vmax.f32 %v1064, 0.0
    %v1107 = vmax.f32 %v1067, 0.0
    %v1108 = vmax.f32 %v1072, 0.0
    %v1109 = vmax.f32 %v1075, 0.0
    %v1110 = vld [vmem:[#allocation10] sm:$0xf]
    %v1111 = vld [vmem:[#allocation10 + $0x4] sm:$0xf]
    %v1112 = vld [vmem:[#allocation10 + $0x8] sm:$0xf]
    %v1113 = vld [vmem:[#allocation10 + $0xc] sm:$0xf]
    %v1114 = vld [vmem:[#allocation10 + $0x10] sm:$0xf]
    %v1115 = vld [vmem:[#allocation10 + $0x14] sm:$0xf]
    %v1116 = vld [vmem:[#allocation10 + $0x18] sm:$0xf]
    %v1117 = vld [vmem:[#allocation10 + $0x1c] sm:$0xf]
    %v1118 = vpack.c.bf16 %v1079, %v1078
    %v1119 = vpack.c.bf16 %v1081, %v1080
    %v1120 = vpack.c.bf16 %v1083, %v1082
    %v1121 = vpack.c.bf16 %v1085, %v1084
    %v1122 = vpack.c.bf16 %v1087, %v1086
    %v1123 = vpack.c.bf16 %v1089, %v1088
    %v1124 = vpack.c.bf16 %v1091, %v1090
    %v1125 = vpack.c.bf16 %v1093, %v1092
    %v1126 = vpack.c.bf16 %v1095, %v1094
    %v1127 = vpack.c.bf16 %v1097, %v1096
    %v1128 = vpack.c.bf16 %v1099, %v1098
    %v1129 = vpack.c.bf16 %v1101, %v1100
    %v1130 = vpack.c.bf16 %v1103, %v1102
    %v1131 = vpack.c.bf16 %v1105, %v1104
    %v1132 = vpack.c.bf16 %v1107, %v1106
    %v1133 = vpack.c.bf16 %v1109, %v1108
    %v1134 = vld [vmem:[#allocation12] sm:$0x1]
    %v1136 = vlaneseq
    %v1137 = vshrl.u32 %v1136, 7
    %v1138 = vsub.s32 0, %v1137
    %v1139 = vrot.slane %v1134, %v1138
    %v1149 = vunpack.c.l.b16 %v1110
    %v1150 = vunpack.c.l.b16 %v1111
    %v1151 = vunpack.c.l.b16 %v1112
    %v1152 = vunpack.c.l.b16 %v1113
    %v1153 = vunpack.c.l.b16 %v1114
    %v1154 = vunpack.c.l.b16 %v1115
    %v1155 = vunpack.c.l.b16 %v1116
    %v1156 = vunpack.c.l.b16 %v1117
    %v1157 = vpack.c.b16 %v1150, %v1149
    %v1158 = vpack.c.b16 %v1152, %v1151
    %v1159 = vpack.c.b16 %v1154, %v1153
    %v1160 = vpack.c.b16 %v1156, %v1155
    %v1166 = vsel %vm572, %v1118, 0
    %v1169 = vsel %vm572, %v1119, 0
    %v1172 = vsel %vm572, %v1120, 0
    %v1175 = vsel %vm572, %v1121, 0
    %v1178 = vsel %vm572, %v1122, 0
    %v1181 = vsel %vm572, %v1123, 0
    %v1184 = vsel %vm572, %v1124, 0
    %v1187 = vsel %vm572, %v1125, 0
    %v1190 = vsel %vm572, %v1126, 0
    %v1193 = vsel %vm572, %v1127, 0
    %v1196 = vsel %vm572, %v1128, 0
    %v1199 = vsel %vm572, %v1129, 0
    %v1202 = vsel %vm572, %v1130, 0
    %v1205 = vsel %vm572, %v1131, 0
    %v1208 = vsel %vm572, %v1132, 0
    %v1211 = vsel %vm572, %v1133, 0
    %1213 = vmatprep.subr.bf16.mxu0 0
    %1214 = vmatpush1.bf16.msra.mxu0 %v1157
    %1215 = vmatprep.subr.bf16.mxu0 0
    %1216 = vmatpush1.bf16.msra.mxu0 %v1158
    %1217 = vmatprep.subr.bf16.mxu0 0
    %1218 = vmatpush1.bf16.msra.mxu0 %v1159
    %1219 = vmatprep.subr.bf16.mxu0 0
    %1220 = vmatpush1.bf16.msra.mxu0 %v1160
    %1221 = vmatprep.subr.bf16.mxu0 0
    %1222 = vmatpush1.bf16.msra.mxu0 0
    %1223 = vmatprep.subr.bf16.mxu0 0
    %1224 = vmatpush1.bf16.msra.mxu0 0
    %1225 = vmatprep.subr.bf16.mxu0 0
    %1226 = vmatpush1.bf16.msra.mxu0 0
    %1227 = vmatprep.subr.bf16.mxu0 0
    %1228 = vmatpush1.bf16.msra.mxu0 0
    %1229 = vmatprep.subr.bf16.mxu0 0
    %1230 = vmatpush1.bf16.msra.mxu0 0
    %1231 = vmatprep.subr.bf16.mxu0 0
    %1232 = vmatpush1.bf16.msra.mxu0 0
    %1233 = vmatprep.subr.bf16.mxu0 0
    %1234 = vmatpush1.bf16.msra.mxu0 0
    %1235 = vmatprep.subr.bf16.mxu0 0
    %1236 = vmatpush1.bf16.msra.mxu0 0
    %1237 = vmatprep.subr.bf16.mxu0 0
    %1238 = vmatpush1.bf16.msra.mxu0 0
    %1239 = vmatprep.subr.bf16.mxu0 0
    %1240 = vmatpush1.bf16.msra.mxu0 0
    %1241 = vmatprep.subr.bf16.mxu0 0
    %1242 = vmatpush1.bf16.msra.mxu0 0
    %1243 = vmatprep.subr.bf16.mxu0 0
    %1244 = vmatpush1.bf16.msra.mxu0 0
    %1245 = vmatprep.mubr.bf16.mxu0 0
    %1246 = vmatmul.mubr.bf16.gmra.mrb[0].mxu0 %v1166
    %v1247 = vpop.f32.mrb[0].mxu0
    %v1248 = vadd.f32 %v1139, %v1247
    %v1249 = vpop.f32.mrb[0].mxu0
    %v1250 = vpop.f32.mrb[0].mxu0
    %v1251 = vadd.f32 %v1139, %v1250
    %v1252 = vpop.f32.mrb[0].mxu0
    %1253 = vmatprep.mubr.bf16.mxu0 0
    %1254 = vmatmul.mubr.bf16.gmra.mrb[0].mxu0 %v1169
    %v1255 = vpop.f32.mrb[0].mxu0
    %v1256 = vadd.f32 %v1139, %v1255
    %v1257 = vpop.f32.mrb[0].mxu0
    %v1258 = vpop.f32.mrb[0].mxu0
    %v1259 = vadd.f32 %v1139, %v1258
    %v1260 = vpop.f32.mrb[0].mxu0
    %1261 = vmatprep.mubr.bf16.mxu0 0
    %1262 = vmatmul.mubr.bf16.gmra.mrb[0].mxu0 %v1172
    %v1263 = vpop.f32.mrb[0].mxu0
    %v1264 = vadd.f32 %v1139, %v1263
    %v1265 = vpop.f32.mrb[0].mxu0
    %v1266 = vpop.f32.mrb[0].mxu0
    %v1267 = vadd.f32 %v1139, %v1266
    %v1268 = vpop.f32.mrb[0].mxu0
    %1269 = vmatprep.mubr.bf16.mxu0 0
    %1270 = vmatmul.mubr.bf16.gmra.mrb[0].mxu0 %v1175
    %v1271 = vpop.f32.mrb[0].mxu0
    %v1272 = vadd.f32 %v1139, %v1271
    %v1273 = vpop.f32.mrb[0].mxu0
    %v1274 = vpop.f32.mrb[0].mxu0
    %v1275 = vadd.f32 %v1139, %v1274
    %v1276 = vpop.f32.mrb[0].mxu0
    %1277 = vmatprep.mubr.bf16.mxu0 0
    %1278 = vmatmul.mubr.bf16.gmra.mrb[0].mxu0 %v1178
    %v1279 = vpop.f32.mrb[0].mxu0
    %v1280 = vadd.f32 %v1139, %v1279
    %v1281 = vpop.f32.mrb[0].mxu0
    %v1282 = vpop.f32.mrb[0].mxu0
    %v1283 = vadd.f32 %v1139, %v1282
    %v1284 = vpop.f32.mrb[0].mxu0
    %1285 = vmatprep.mubr.bf16.mxu0 0
    %1286 = vmatmul.mubr.bf16.gmra.mrb[0].mxu0 %v1181
    %v1287 = vpop.f32.mrb[0].mxu0
    %v1288 = vadd.f32 %v1139, %v1287
    %v1289 = vpop.f32.mrb[0].mxu0
    %v1290 = vpop.f32.mrb[0].mxu0
    %v1291 = vadd.f32 %v1139, %v1290
    %v1292 = vpop.f32.mrb[0].mxu0
    %1293 = vmatprep.mubr.bf16.mxu0 0
    %1294 = vmatmul.mubr.bf16.gmra.mrb[0].mxu0 %v1184
    %v1295 = vpop.f32.mrb[0].mxu0
    %v1296 = vadd.f32 %v1139, %v1295
    %v1297 = vpop.f32.mrb[0].mxu0
    %v1298 = vpop.f32.mrb[0].mxu0
    %v1299 = vadd.f32 %v1139, %v1298
    %v1300 = vpop.f32.mrb[0].mxu0
    %1301 = vmatprep.mubr.bf16.mxu0 0
    %1302 = vmatmul.mubr.bf16.gmra.mrb[0].mxu0 %v1187
    %v1303 = vpop.f32.mrb[0].mxu0
    %v1304 = vadd.f32 %v1139, %v1303
    %v1305 = vpop.f32.mrb[0].mxu0
    %v1306 = vpop.f32.mrb[0].mxu0
    %v1307 = vadd.f32 %v1139, %v1306
    %v1308 = vpop.f32.mrb[0].mxu0
    %1309 = vmatprep.mubr.bf16.mxu0 0
    %1310 = vmatmul.mubr.bf16.gmra.mrb[0].mxu0 %v1190
    %v1311 = vpop.f32.mrb[0].mxu0
    %v1312 = vadd.f32 %v1139, %v1311
    %v1313 = vpop.f32.mrb[0].mxu0
    %v1314 = vpop.f32.mrb[0].mxu0
    %v1315 = vadd.f32 %v1139, %v1314
    %v1316 = vpop.f32.mrb[0].mxu0
    %1317 = vmatprep.mubr.bf16.mxu0 0
    %1318 = vmatmul.mubr.bf16.gmra.mrb[0].mxu0 %v1193
    %v1319 = vpop.f32.mrb[0].mxu0
    %v1320 = vadd.f32 %v1139, %v1319
    %v1321 = vpop.f32.mrb[0].mxu0
    %v1322 = vpop.f32.mrb[0].mxu0
    %v1323 = vadd.f32 %v1139, %v1322
    %v1324 = vpop.f32.mrb[0].mxu0
    %1325 = vmatprep.mubr.bf16.mxu0 0
    %1326 = vmatmul.mubr.bf16.gmra.mrb[0].mxu0 %v1196
    %v1327 = vpop.f32.mrb[0].mxu0
    %v1328 = vadd.f32 %v1139, %v1327
    %v1329 = vpop.f32.mrb[0].mxu0
    %v1330 = vpop.f32.mrb[0].mxu0
    %v1331 = vadd.f32 %v1139, %v1330
    %v1332 = vpop.f32.mrb[0].mxu0
    %1333 = vmatprep.mubr.bf16.mxu0 0
    %1334 = vmatmul.mubr.bf16.gmra.mrb[0].mxu0 %v1199
    %v1335 = vpop.f32.mrb[0].mxu0
    %v1336 = vadd.f32 %v1139, %v1335
    %v1337 = vpop.f32.mrb[0].mxu0
    %v1338 = vpop.f32.mrb[0].mxu0
    %v1339 = vadd.f32 %v1139, %v1338
    %v1340 = vpop.f32.mrb[0].mxu0
    %1341 = vmatprep.mubr.bf16.mxu0 0
    %1342 = vmatmul.mubr.bf16.gmra.mrb[0].mxu0 %v1202
    %v1343 = vpop.f32.mrb[0].mxu0
    %v1344 = vadd.f32 %v1139, %v1343
    %v1345 = vpop.f32.mrb[0].mxu0
    %v1346 = vpop.f32.mrb[0].mxu0
    %v1347 = vadd.f32 %v1139, %v1346
    %v1348 = vpop.f32.mrb[0].mxu0
    %1349 = vmatprep.mubr.bf16.mxu0 0
    %1350 = vmatmul.mubr.bf16.gmra.mrb[0].mxu0 %v1205
    %v1351 = vpop.f32.mrb[0].mxu0
    %v1352 = vadd.f32 %v1139, %v1351
    %v1353 = vpop.f32.mrb[0].mxu0
    %v1354 = vpop.f32.mrb[0].mxu0
    %v1355 = vadd.f32 %v1139, %v1354
    %v1356 = vpop.f32.mrb[0].mxu0
    %1357 = vmatprep.mubr.bf16.mxu0 0
    %1358 = vmatmul.mubr.bf16.gmra.mrb[0].mxu0 %v1208
    %v1359 = vpop.f32.mrb[0].mxu0
    %v1360 = vadd.f32 %v1139, %v1359
    %v1361 = vpop.f32.mrb[0].mxu0
    %v1362 = vpop.f32.mrb[0].mxu0
    %v1363 = vadd.f32 %v1139, %v1362
    %v1364 = vpop.f32.mrb[0].mxu0
    %1365 = vmatprep.mubr.bf16.mxu0 0
    %1366 = vmatmul.mubr.bf16.gmra.mrb[0].mxu0 %v1211
    %v1367 = vpop.f32.mrb[0].mxu0
    %v1368 = vadd.f32 %v1139, %v1367
    %v1369 = vpop.f32.mrb[0].mxu0
    %v1370 = vpop.f32.mrb[0].mxu0
    %v1371 = vadd.f32 %v1139, %v1370
    %v1372 = vpop.f32.mrb[0].mxu0
    %1373 = vdwg.mxu0
    %v1374 = vmax.f32 %v1248, 0.0
    %v1375 = vmax.f32 %v1251, 0.0
    %v1376 = vmax.f32 %v1256, 0.0
    %v1377 = vmax.f32 %v1259, 0.0
    %v1378 = vmax.f32 %v1264, 0.0
    %v1379 = vmax.f32 %v1267, 0.0
    %v1380 = vmax.f32 %v1272, 0.0
    %v1381 = vmax.f32 %v1275, 0.0
    %v1382 = vmax.f32 %v1280, 0.0
    %v1383 = vmax.f32 %v1283, 0.0
    %v1384 = vmax.f32 %v1288, 0.0
    %v1385 = vmax.f32 %v1291, 0.0
    %v1386 = vmax.f32 %v1296, 0.0
    %v1387 = vmax.f32 %v1299, 0.0
    %v1388 = vmax.f32 %v1304, 0.0
    %v1389 = vmax.f32 %v1307, 0.0
    %v1390 = vmax.f32 %v1312, 0.0
    %v1391 = vmax.f32 %v1315, 0.0
    %v1392 = vmax.f32 %v1320, 0.0
    %v1393 = vmax.f32 %v1323, 0.0
    %v1394 = vmax.f32 %v1328, 0.0
    %v1395 = vmax.f32 %v1331, 0.0
    %v1396 = vmax.f32 %v1336, 0.0
    %v1397 = vmax.f32 %v1339, 0.0
    %v1398 = vmax.f32 %v1344, 0.0
    %v1399 = vmax.f32 %v1347, 0.0
    %v1400 = vmax.f32 %v1352, 0.0
    %v1401 = vmax.f32 %v1355, 0.0
    %v1402 = vmax.f32 %v1360, 0.0
    %v1403 = vmax.f32 %v1363, 0.0
    %v1404 = vmax.f32 %v1368, 0.0
    %v1405 = vmax.f32 %v1371, 0.0
    %v1406 = vpack.c.bf16 %v1375, %v1374
    %v1407 = vpack.c.bf16 %v1377, %v1376
    %v1408 = vpack.c.bf16 %v1379, %v1378
    %v1409 = vpack.c.bf16 %v1381, %v1380
    %v1410 = vpack.c.bf16 %v1383, %v1382
    %v1411 = vpack.c.bf16 %v1385, %v1384
    %v1412 = vpack.c.bf16 %v1387, %v1386
    %v1413 = vpack.c.bf16 %v1389, %v1388
    %v1414 = vpack.c.bf16 %v1391, %v1390
    %v1415 = vpack.c.bf16 %v1393, %v1392
    %v1416 = vpack.c.bf16 %v1395, %v1394
    %v1417 = vpack.c.bf16 %v1397, %v1396
    %v1418 = vpack.c.bf16 %v1399, %v1398
    %v1419 = vpack.c.bf16 %v1401, %v1400
    %v1420 = vpack.c.bf16 %v1403, %v1402
    %v1421 = vpack.c.bf16 %v1405, %v1404
    %v1422 = vld [vmem:[%s9] sm:$0xff]
    %v1423 = vld [vmem:[%s9 + $0x20] sm:$0xff]
    %v1424 = vld [vmem:[%s9 + $0x40] sm:$0xff]
    %v1425 = vld [vmem:[%s9 + $0x60] sm:$0xff]
    %v1426 = vld [vmem:[%s9 + $0x80] sm:$0xff]
    %v1427 = vld [vmem:[%s9 + $0xa0] sm:$0xff]
    %v1428 = vld [vmem:[%s9 + $0xc0] sm:$0xff]
    %v1429 = vld [vmem:[%s9 + $0xe0] sm:$0xff]
    %v1430 = vld [vmem:[%s9 + $0x100] sm:$0xff]
    %v1431 = vld [vmem:[%s9 + $0x120] sm:$0xff]
    %v1432 = vld [vmem:[%s9 + $0x140] sm:$0xff]
    %v1433 = vld [vmem:[%s9 + $0x160] sm:$0xff]
    %v1434 = vld [vmem:[%s9 + $0x180] sm:$0xff]
    %v1435 = vld [vmem:[%s9 + $0x1a0] sm:$0xff]
    %v1436 = vld [vmem:[%s9 + $0x1c0] sm:$0xff]
    %v1437 = vld [vmem:[%s9 + $0x1e0] sm:$0xff]
    %v1438 = vld [vmem:[%s10] sm:$0x3]
    %v1440 = vlaneseq
    %v1441 = vshrl.u32 %v1440, 7
    %v1442 = vsub.s32 0, %v1441
    %v1443 = vrot.slane %v1438, %v1442
    %v1444 = vlaneseq
    %v1445 = vshrl.u32 %v1444, 7
    %v1446 = vsub.s32 1, %v1445
    %v1447 = vrot.slane %v1438, %v1446
    %v1466 = vunpack.c.l.b16 %v1422
    %v1467 = vunpack.c.h.b16 %v1422
    %v1468 = vunpack.c.l.b16 %v1423
    %v1469 = vunpack.c.h.b16 %v1423
    %v1470 = vunpack.c.l.b16 %v1424
    %v1471 = vunpack.c.h.b16 %v1424
    %v1472 = vunpack.c.l.b16 %v1425
    %v1473 = vunpack.c.h.b16 %v1425
    %v1474 = vunpack.c.l.b16 %v1426
    %v1475 = vunpack.c.h.b16 %v1426
    %v1476 = vunpack.c.l.b16 %v1427
    %v1477 = vunpack.c.h.b16 %v1427
    %v1478 = vunpack.c.l.b16 %v1428
    %v1479 = vunpack.c.h.b16 %v1428
    %v1480 = vunpack.c.l.b16 %v1429
    %v1481 = vunpack.c.h.b16 %v1429
    %v1482 = vunpack.c.l.b16 %v1430
    %v1483 = vunpack.c.h.b16 %v1430
    %v1484 = vunpack.c.l.b16 %v1431
    %v1485 = vunpack.c.h.b16 %v1431
    %v1486 = vunpack.c.l.b16 %v1432
    %v1487 = vunpack.c.h.b16 %v1432
    %v1488 = vunpack.c.l.b16 %v1433
    %v1489 = vunpack.c.h.b16 %v1433
    %v1490 = vunpack.c.l.b16 %v1434
    %v1491 = vunpack.c.h.b16 %v1434
    %v1492 = vunpack.c.l.b16 %v1435
    %v1493 = vunpack.c.h.b16 %v1435
    %v1494 = vunpack.c.l.b16 %v1436
    %v1495 = vunpack.c.h.b16 %v1436
    %v1496 = vunpack.c.l.b16 %v1437
    %v1497 = vunpack.c.h.b16 %v1437
    %v1498 = vpack.c.b16 %v1468, %v1466
    %v1499 = vpack.c.b16 %v1469, %v1467
    %v1500 = vpack.c.b16 %v1472, %v1470
    %v1501 = vpack.c.b16 %v1473, %v1471
    %v1502 = vpack.c.b16 %v1476, %v1474
    %v1503 = vpack.c.b16 %v1477, %v1475
    %v1504 = vpack.c.b16 %v1480, %v1478
    %v1505 = vpack.c.b16 %v1481, %v1479
    %v1506 = vpack.c.b16 %v1484, %v1482
    %v1507 = vpack.c.b16 %v1485, %v1483
    %v1508 = vpack.c.b16 %v1488, %v1486
    %v1509 = vpack.c.b16 %v1489, %v1487
    %v1510 = vpack.c.b16 %v1492, %v1490
    %v1511 = vpack.c.b16 %v1493, %v1491
    %v1512 = vpack.c.b16 %v1496, %v1494
    %v1513 = vpack.c.b16 %v1497, %v1495
    %1530 = vmatprep.subr.bf16.mxu0 %v1499
    %1531 = vmatpush1.bf16.msra.mxu0 %v1498
    %1532 = vmatprep.subr.bf16.mxu0 %v1501
    %1533 = vmatpush1.bf16.msra.mxu0 %v1500
    %1534 = vmatprep.subr.bf16.mxu0 %v1503
    %1535 = vmatpush1.bf16.msra.mxu0 %v1502
    %1536 = vmatprep.subr.bf16.mxu0 %v1505
    %1537 = vmatpush1.bf16.msra.mxu0 %v1504
    %1538 = vmatprep.subr.bf16.mxu0 %v1507
    %1539 = vmatpush1.bf16.msra.mxu0 %v1506
    %1540 = vmatprep.subr.bf16.mxu0 %v1509
    %1541 = vmatpush1.bf16.msra.mxu0 %v1508
    %1542 = vmatprep.subr.bf16.mxu0 %v1511
    %1543 = vmatpush1.bf16.msra.mxu0 %v1510
    %1544 = vmatprep.subr.bf16.mxu0 %v1513
    %1545 = vmatpush1.bf16.msra.mxu0 %v1512
    %1546 = vmatprep.subr.bf16.mxu0 0
    %1547 = vmatpush1.bf16.msra.mxu0 0
    %1548 = vmatprep.subr.bf16.mxu0 0
    %1549 = vmatpush1.bf16.msra.mxu0 0
    %1550 = vmatprep.subr.bf16.mxu0 0
    %1551 = vmatpush1.bf16.msra.mxu0 0
    %1552 = vmatprep.subr.bf16.mxu0 0
    %1553 = vmatpush1.bf16.msra.mxu0 0
    %1554 = vmatprep.subr.bf16.mxu0 0
    %1555 = vmatpush1.bf16.msra.mxu0 0
    %1556 = vmatprep.subr.bf16.mxu0 0
    %1557 = vmatpush1.bf16.msra.mxu0 0
    %1558 = vmatprep.subr.bf16.mxu0 0
    %1559 = vmatpush1.bf16.msra.mxu0 0
    %1560 = vmatprep.subr.bf16.mxu0 0
    %1561 = vmatpush1.bf16.msra.mxu0 0
    %1562 = vmatprep.mubr.bf16.mxu0 0
    %1563 = vmatmul.mubr.bf16.gmra.mrb[0].mxu0 %v1406
    %v1564 = vpop.f32.mrb[0].mxu0
    %v1565 = vadd.f32 %v1443, %v1564
    %v1566 = vpop.f32.mrb[0].mxu0
    %v1567 = vadd.f32 %v1447, %v1566
    %v1568 = vpop.f32.mrb[0].mxu0
    %v1569 = vadd.f32 %v1443, %v1568
    %v1570 = vpop.f32.mrb[0].mxu0
    %v1571 = vadd.f32 %v1447, %v1570
    %1572 = vmatprep.mubr.bf16.mxu0 0
    %1573 = vmatmul.mubr.bf16.gmra.mrb[0].mxu0 %v1407
    %v1574 = vpop.f32.mrb[0].mxu0
    %v1575 = vadd.f32 %v1443, %v1574
    %v1576 = vpop.f32.mrb[0].mxu0
    %v1577 = vadd.f32 %v1447, %v1576
    %v1578 = vpop.f32.mrb[0].mxu0
    %v1579 = vadd.f32 %v1443, %v1578
    %v1580 = vpop.f32.mrb[0].mxu0
    %v1581 = vadd.f32 %v1447, %v1580
    %1582 = vmatprep.mubr.bf16.mxu0 0
    %1583 = vmatmul.mubr.bf16.gmra.mrb[0].mxu0 %v1408
    %v1584 = vpop.f32.mrb[0].mxu0
    %v1585 = vadd.f32 %v1443, %v1584
    %v1586 = vpop.f32.mrb[0].mxu0
    %v1587 = vadd.f32 %v1447, %v1586
    %v1588 = vpop.f32.mrb[0].mxu0
    %v1589 = vadd.f32 %v1443, %v1588
    %v1590 = vpop.f32.mrb[0].mxu0
    %v1591 = vadd.f32 %v1447, %v1590
    %1592 = vmatprep.mubr.bf16.mxu0 0
    %1593 = vmatmul.mubr.bf16.gmra.mrb[0].mxu0 %v1409
    %v1594 = vpop.f32.mrb[0].mxu0
    %v1595 = vadd.f32 %v1443, %v1594
    %v1596 = vpop.f32.mrb[0].mxu0
    %v1597 = vadd.f32 %v1447, %v1596
    %v1598 = vpop.f32.mrb[0].mxu0
    %v1599 = vadd.f32 %v1443, %v1598
    %v1600 = vpop.f32.mrb[0].mxu0
    %v1601 = vadd.f32 %v1447, %v1600
    %1602 = vmatprep.mubr.bf16.mxu0 0
    %1603 = vmatmul.mubr.bf16.gmra.mrb[0].mxu0 %v1410
    %v1604 = vpop.f32.mrb[0].mxu0
    %v1605 = vadd.f32 %v1443, %v1604
    %v1606 = vpop.f32.mrb[0].mxu0
    %v1607 = vadd.f32 %v1447, %v1606
    %v1608 = vpop.f32.mrb[0].mxu0
    %v1609 = vadd.f32 %v1443, %v1608
    %v1610 = vpop.f32.mrb[0].mxu0
    %v1611 = vadd.f32 %v1447, %v1610
    %1612 = vmatprep.mubr.bf16.mxu0 0
    %1613 = vmatmul.mubr.bf16.gmra.mrb[0].mxu0 %v1411
    %v1614 = vpop.f32.mrb[0].mxu0
    %v1615 = vadd.f32 %v1443, %v1614
    %v1616 = vpop.f32.mrb[0].mxu0
    %v1617 = vadd.f32 %v1447, %v1616
    %v1618 = vpop.f32.mrb[0].mxu0
    %v1619 = vadd.f32 %v1443, %v1618
    %v1620 = vpop.f32.mrb[0].mxu0
    %v1621 = vadd.f32 %v1447, %v1620
    %1622 = vmatprep.mubr.bf16.mxu0 0
    %1623 = vmatmul.mubr.bf16.gmra.mrb[0].mxu0 %v1412
    %v1624 = vpop.f32.mrb[0].mxu0
    %v1625 = vadd.f32 %v1443, %v1624
    %v1626 = vpop.f32.mrb[0].mxu0
    %v1627 = vadd.f32 %v1447, %v1626
    %v1628 = vpop.f32.mrb[0].mxu0
    %v1629 = vadd.f32 %v1443, %v1628
    %v1630 = vpop.f32.mrb[0].mxu0
    %v1631 = vadd.f32 %v1447, %v1630
    %1632 = vmatprep.mubr.bf16.mxu0 0
    %1633 = vmatmul.mubr.bf16.gmra.mrb[0].mxu0 %v1413
    %v1634 = vpop.f32.mrb[0].mxu0
    %v1635 = vadd.f32 %v1443, %v1634
    %v1636 = vpop.f32.mrb[0].mxu0
    %v1637 = vadd.f32 %v1447, %v1636
    %v1638 = vpop.f32.mrb[0].mxu0
    %v1639 = vadd.f32 %v1443, %v1638
    %v1640 = vpop.f32.mrb[0].mxu0
    %v1641 = vadd.f32 %v1447, %v1640
    %1642 = vmatprep.mubr.bf16.mxu0 0
    %1643 = vmatmul.mubr.bf16.gmra.mrb[0].mxu0 %v1414
    %v1644 = vpop.f32.mrb[0].mxu0
    %v1645 = vadd.f32 %v1443, %v1644
    %v1646 = vpop.f32.mrb[0].mxu0
    %v1647 = vadd.f32 %v1447, %v1646
    %v1648 = vpop.f32.mrb[0].mxu0
    %v1649 = vadd.f32 %v1443, %v1648
    %v1650 = vpop.f32.mrb[0].mxu0
    %v1651 = vadd.f32 %v1447, %v1650
    %1652 = vmatprep.mubr.bf16.mxu0 0
    %1653 = vmatmul.mubr.bf16.gmra.mrb[0].mxu0 %v1415
    %v1654 = vpop.f32.mrb[0].mxu0
    %v1655 = vadd.f32 %v1443, %v1654
    %v1656 = vpop.f32.mrb[0].mxu0
    %v1657 = vadd.f32 %v1447, %v1656
    %v1658 = vpop.f32.mrb[0].mxu0
    %v1659 = vadd.f32 %v1443, %v1658
    %v1660 = vpop.f32.mrb[0].mxu0
    %v1661 = vadd.f32 %v1447, %v1660
    %1662 = vmatprep.mubr.bf16.mxu0 0
    %1663 = vmatmul.mubr.bf16.gmra.mrb[0].mxu0 %v1416
    %v1664 = vpop.f32.mrb[0].mxu0
    %v1665 = vadd.f32 %v1443, %v1664
    %v1666 = vpop.f32.mrb[0].mxu0
    %v1667 = vadd.f32 %v1447, %v1666
    %v1668 = vpop.f32.mrb[0].mxu0
    %v1669 = vadd.f32 %v1443, %v1668
    %v1670 = vpop.f32.mrb[0].mxu0
    %v1671 = vadd.f32 %v1447, %v1670
    %1672 = vmatprep.mubr.bf16.mxu0 0
    %1673 = vmatmul.mubr.bf16.gmra.mrb[0].mxu0 %v1417
    %v1674 = vpop.f32.mrb[0].mxu0
    %v1675 = vadd.f32 %v1443, %v1674
    %v1676 = vpop.f32.mrb[0].mxu0
    %v1677 = vadd.f32 %v1447, %v1676
    %v1678 = vpop.f32.mrb[0].mxu0
    %v1679 = vadd.f32 %v1443, %v1678
    %v1680 = vpop.f32.mrb[0].mxu0
    %v1681 = vadd.f32 %v1447, %v1680
    %1682 = vmatprep.mubr.bf16.mxu0 0
    %1683 = vmatmul.mubr.bf16.gmra.mrb[0].mxu0 %v1418
    %v1684 = vpop.f32.mrb[0].mxu0
    %v1685 = vadd.f32 %v1443, %v1684
    %v1686 = vpop.f32.mrb[0].mxu0
    %v1687 = vadd.f32 %v1447, %v1686
    %v1688 = vpop.f32.mrb[0].mxu0
    %v1689 = vadd.f32 %v1443, %v1688
    %v1690 = vpop.f32.mrb[0].mxu0
    %v1691 = vadd.f32 %v1447, %v1690
    %1692 = vmatprep.mubr.bf16.mxu0 0
    %1693 = vmatmul.mubr.bf16.gmra.mrb[0].mxu0 %v1419
    %v1694 = vpop.f32.mrb[0].mxu0
    %v1695 = vadd.f32 %v1443, %v1694
    %v1696 = vpop.f32.mrb[0].mxu0
    %v1697 = vadd.f32 %v1447, %v1696
    %v1698 = vpop.f32.mrb[0].mxu0
    %v1699 = vadd.f32 %v1443, %v1698
    %v1700 = vpop.f32.mrb[0].mxu0
    %v1701 = vadd.f32 %v1447, %v1700
    %1702 = vmatprep.mubr.bf16.mxu0 0
    %1703 = vmatmul.mubr.bf16.gmra.mrb[0].mxu0 %v1420
    %v1704 = vpop.f32.mrb[0].mxu0
    %v1705 = vadd.f32 %v1443, %v1704
    %v1706 = vpop.f32.mrb[0].mxu0
    %v1707 = vadd.f32 %v1447, %v1706
    %v1708 = vpop.f32.mrb[0].mxu0
    %v1709 = vadd.f32 %v1443, %v1708
    %v1710 = vpop.f32.mrb[0].mxu0
    %v1711 = vadd.f32 %v1447, %v1710
    %1712 = vmatprep.mubr.bf16.mxu0 0
    %1713 = vmatmul.mubr.bf16.gmra.mrb[0].mxu0 %v1421
    %v1714 = vpop.f32.mrb[0].mxu0
    %v1715 = vadd.f32 %v1443, %v1714
    %v1716 = vpop.f32.mrb[0].mxu0
    %v1717 = vadd.f32 %v1447, %v1716
    %v1718 = vpop.f32.mrb[0].mxu0
    %v1719 = vadd.f32 %v1443, %v1718
    %v1720 = vpop.f32.mrb[0].mxu0
    %v1721 = vadd.f32 %v1447, %v1720
    %1722 = vdwg.mxu0
    %v1723 = vmax.f32 %v1565, 0.0
    %v1724 = vmax.f32 %v1567, 0.0
    %v1725 = vmax.f32 %v1569, 0.0
    %v1726 = vmax.f32 %v1571, 0.0
    %v1727 = vmax.f32 %v1575, 0.0
    %v1728 = vmax.f32 %v1577, 0.0
    %v1729 = vmax.f32 %v1579, 0.0
    %v1730 = vmax.f32 %v1581, 0.0
    %v1731 = vmax.f32 %v1585, 0.0
    %v1732 = vmax.f32 %v1587, 0.0
    %v1733 = vmax.f32 %v1589, 0.0
    %v1734 = vmax.f32 %v1591, 0.0
    %v1735 = vmax.f32 %v1595, 0.0
    %v1736 = vmax.f32 %v1597, 0.0
    %v1737 = vmax.f32 %v1599, 0.0
    %v1738 = vmax.f32 %v1601, 0.0
    %v1739 = vmax.f32 %v1605, 0.0
    %v1740 = vmax.f32 %v1607, 0.0
    %v1741 = vmax.f32 %v1609, 0.0
    %v1742 = vmax.f32 %v1611, 0.0
    %v1743 = vmax.f32 %v1615, 0.0
    %v1744 = vmax.f32 %v1617, 0.0
    %v1745 = vmax.f32 %v1619, 0.0
    %v1746 = vmax.f32 %v1621, 0.0
    %v1747 = vmax.f32 %v1625, 0.0
    %v1748 = vmax.f32 %v1627, 0.0
    %v1749 = vmax.f32 %v1629, 0.0
    %v1750 = vmax.f32 %v1631, 0.0
    %v1751 = vmax.f32 %v1635, 0.0
    %v1752 = vmax.f32 %v1637, 0.0
    %v1753 = vmax.f32 %v1639, 0.0
    %v1754 = vmax.f32 %v1641, 0.0
    %v1755 = vmax.f32 %v1645, 0.0
    %v1756 = vmax.f32 %v1647, 0.0
    %v1757 = vmax.f32 %v1649, 0.0
    %v1758 = vmax.f32 %v1651, 0.0
    %v1759 = vmax.f32 %v1655, 0.0
    %v1760 = vmax.f32 %v1657, 0.0
    %v1761 = vmax.f32 %v1659, 0.0
    %v1762 = vmax.f32 %v1661, 0.0
    %v1763 = vmax.f32 %v1665, 0.0
    %v1764 = vmax.f32 %v1667, 0.0
    %v1765 = vmax.f32 %v1669, 0.0
    %v1766 = vmax.f32 %v1671, 0.0
    %v1767 = vmax.f32 %v1675, 0.0
    %v1768 = vmax.f32 %v1677, 0.0
    %v1769 = vmax.f32 %v1679, 0.0
    %v1770 = vmax.f32 %v1681, 0.0
    %v1771 = vmax.f32 %v1685, 0.0
    %v1772 = vmax.f32 %v1687, 0.0
    %v1773 = vmax.f32 %v1689, 0.0
    %v1774 = vmax.f32 %v1691, 0.0
    %v1775 = vmax.f32 %v1695, 0.0
    %v1776 = vmax.f32 %v1697, 0.0
    %v1777 = vmax.f32 %v1699, 0.0
    %v1778 = vmax.f32 %v1701, 0.0
    %v1779 = vmax.f32 %v1705, 0.0
    %v1780 = vmax.f32 %v1707, 0.0
    %v1781 = vmax.f32 %v1709, 0.0
    %v1782 = vmax.f32 %v1711, 0.0
    %v1783 = vmax.f32 %v1715, 0.0
    %v1784 = vmax.f32 %v1717, 0.0
    %v1785 = vmax.f32 %v1719, 0.0
    %v1786 = vmax.f32 %v1721, 0.0
    %v1787 = vmax.f32 %v1723, %v1725
    %v1788 = vmax.f32 %v1787, %v1727
    %v1789 = vmax.f32 %v1788, %v1729
    %v1790 = vmax.f32 %v1789, %v1731
    %v1791 = vmax.f32 %v1790, %v1733
    %v1792 = vmax.f32 %v1791, %v1735
    %v1793 = vmax.f32 %v1792, %v1737
    %v1794 = vmax.f32 %v1793, %v1739
    %v1795 = vmax.f32 %v1794, %v1741
    %v1796 = vmax.f32 %v1795, %v1743
    %v1797 = vmax.f32 %v1796, %v1745
    %v1798 = vmax.f32 %v1797, %v1747
    %v1799 = vmax.f32 %v1798, %v1749
    %v1800 = vmax.f32 %v1799, %v1751
    %v1801 = vmax.f32 %v1800, %v1753
    %v1802 = vrot.slane %v1801, 4
    %v1803 = vmax.f32 %v1801, %v1802
    %v1804 = vrot.slane %v1803, 2
    %v1805 = vmax.f32 %v1803, %v1804
    %v1806 = vrot.slane %v1805, 1
    %v1807 = vmax.f32 %v1805, %v1806
    %v1808 = vmax.f32 %v1724, %v1726
    %v1809 = vmax.f32 %v1808, %v1728
    %v1810 = vmax.f32 %v1809, %v1730
    %v1811 = vmax.f32 %v1810, %v1732
    %v1812 = vmax.f32 %v1811, %v1734
    %v1813 = vmax.f32 %v1812, %v1736
    %v1814 = vmax.f32 %v1813, %v1738
    %v1815 = vmax.f32 %v1814, %v1740
    %v1816 = vmax.f32 %v1815, %v1742
    %v1817 = vmax.f32 %v1816, %v1744
    %v1818 = vmax.f32 %v1817, %v1746
    %v1819 = vmax.f32 %v1818, %v1748
    %v1820 = vmax.f32 %v1819, %v1750
    %v1821 = vmax.f32 %v1820, %v1752
    %v1822 = vmax.f32 %v1821, %v1754
    %v1823 = vrot.slane %v1822, 4
    %v1824 = vmax.f32 %v1822, %v1823
    %v1825 = vrot.slane %v1824, 2
    %v1826 = vmax.f32 %v1824, %v1825
    %v1827 = vrot.slane %v1826, 1
    %v1828 = vmax.f32 %v1826, %v1827
    %v1829 = vmax.f32 %v1755, %v1757
    %v1830 = vmax.f32 %v1829, %v1759
    %v1831 = vmax.f32 %v1830, %v1761
    %v1832 = vmax.f32 %v1831, %v1763
    %v1833 = vmax.f32 %v1832, %v1765
    %v1834 = vmax.f32 %v1833, %v1767
    %v1835 = vmax.f32 %v1834, %v1769
    %v1836 = vmax.f32 %v1835, %v1771
    %v1837 = vmax.f32 %v1836, %v1773
    %v1838 = vmax.f32 %v1837, %v1775
    %v1839 = vmax.f32 %v1838, %v1777
    %v1840 = vmax.f32 %v1839, %v1779
    %v1841 = vmax.f32 %v1840, %v1781
    %v1842 = vmax.f32 %v1841, %v1783
    %v1843 = vmax.f32 %v1842, %v1785
    %v1844 = vrot.slane %v1843, 4
    %v1845 = vmax.f32 %v1843, %v1844
    %v1846 = vrot.slane %v1845, 2
    %v1847 = vmax.f32 %v1845, %v1846
    %v1848 = vrot.slane %v1847, 1
    %v1849 = vmax.f32 %v1847, %v1848
    %v1850 = vmax.f32 %v1756, %v1758
    %v1851 = vmax.f32 %v1850, %v1760
    %v1852 = vmax.f32 %v1851, %v1762
    %v1853 = vmax.f32 %v1852, %v1764
    %v1854 = vmax.f32 %v1853, %v1766
    %v1855 = vmax.f32 %v1854, %v1768
    %v1856 = vmax.f32 %v1855, %v1770
    %v1857 = vmax.f32 %v1856, %v1772
    %v1858 = vmax.f32 %v1857, %v1774
    %v1859 = vmax.f32 %v1858, %v1776
    %v1860 = vmax.f32 %v1859, %v1778
    %v1861 = vmax.f32 %v1860, %v1780
    %v1862 = vmax.f32 %v1861, %v1782
    %v1863 = vmax.f32 %v1862, %v1784
    %v1864 = vmax.f32 %v1863, %v1786
    %v1865 = vrot.slane %v1864, 4
    %v1866 = vmax.f32 %v1864, %v1865
    %v1867 = vrot.slane %v1866, 2
    %v1868 = vmax.f32 %v1866, %v1867
    %v1869 = vrot.slane %v1868, 1
    %v1870 = vmax.f32 %v1868, %v1869
    %v1871 = vld [vmem:[%s9 + $0x8] sm:$0xff]
    %v1872 = vld [vmem:[%s9 + $0x28] sm:$0xff]
    %v1873 = vld [vmem:[%s9 + $0x48] sm:$0xff]
    %v1874 = vld [vmem:[%s9 + $0x68] sm:$0xff]
    %v1875 = vld [vmem:[%s9 + $0x88] sm:$0xff]
    %v1876 = vld [vmem:[%s9 + $0xa8] sm:$0xff]
    %v1877 = vld [vmem:[%s9 + $0xc8] sm:$0xff]
    %v1878 = vld [vmem:[%s9 + $0xe8] sm:$0xff]
    %v1879 = vld [vmem:[%s9 + $0x108] sm:$0xff]
    %v1880 = vld [vmem:[%s9 + $0x128] sm:$0xff]
    %v1881 = vld [vmem:[%s9 + $0x148] sm:$0xff]
    %v1882 = vld [vmem:[%s9 + $0x168] sm:$0xff]
    %v1883 = vld [vmem:[%s9 + $0x188] sm:$0xff]
    %v1884 = vld [vmem:[%s9 + $0x1a8] sm:$0xff]
    %v1885 = vld [vmem:[%s9 + $0x1c8] sm:$0xff]
    %v1886 = vld [vmem:[%s9 + $0x1e8] sm:$0xff]
    %v1887 = vld [vmem:[%s10 + $0x2] sm:$0x3]
    %v1889 = vlaneseq
    %v1890 = vshrl.u32 %v1889, 7
    %v1891 = vsub.s32 0, %v1890
    %v1892 = vrot.slane %v1887, %v1891
    %v1893 = vlaneseq
    %v1894 = vshrl.u32 %v1893, 7
    %v1895 = vsub.s32 1, %v1894
    %v1896 = vrot.slane %v1887, %v1895
    %v1915 = vunpack.c.l.b16 %v1871
    %v1916 = vunpack.c.h.b16 %v1871
    %v1917 = vunpack.c.l.b16 %v1872
    %v1918 = vunpack.c.h.b16 %v1872
    %v1919 = vunpack.c.l.b16 %v1873
    %v1920 = vunpack.c.h.b16 %v1873
    %v1921 = vunpack.c.l.b16 %v1874
    %v1922 = vunpack.c.h.b16 %v1874
    %v1923 = vunpack.c.l.b16 %v1875
    %v1924 = vunpack.c.h.b16 %v1875
    %v1925 = vunpack.c.l.b16 %v1876
    %v1926 = vunpack.c.h.b16 %v1876
    %v1927 = vunpack.c.l.b16 %v1877
    %v1928 = vunpack.c.h.b16 %v1877
    %v1929 = vunpack.c.l.b16 %v1878
    %v1930 = vunpack.c.h.b16 %v1878
    %v1931 = vunpack.c.l.b16 %v1879
    %v1932 = vunpack.c.h.b16 %v1879
    %v1933 = vunpack.c.l.b16 %v1880
    %v1934 = vunpack.c.h.b16 %v1880
    %v1935 = vunpack.c.l.b16 %v1881
    %v1936 = vunpack.c.h.b16 %v1881
    %v1937 = vunpack.c.l.b16 %v1882
    %v1938 = vunpack.c.h.b16 %v1882
    %v1939 = vunpack.c.l.b16 %v1883
    %v1940 = vunpack.c.h.b16 %v1883
    %v1941 = vunpack.c.l.b16 %v1884
    %v1942 = vunpack.c.h.b16 %v1884
    %v1943 = vunpack.c.l.b16 %v1885
    %v1944 = vunpack.c.h.b16 %v1885
    %v1945 = vunpack.c.l.b16 %v1886
    %v1946 = vunpack.c.h.b16 %v1886
    %v1947 = vpack.c.b16 %v1917, %v1915
    %v1948 = vpack.c.b16 %v1918, %v1916
    %v1949 = vpack.c.b16 %v1921, %v1919
    %v1950 = vpack.c.b16 %v1922, %v1920
    %v1951 = vpack.c.b16 %v1925, %v1923
    %v1952 = vpack.c.b16 %v1926, %v1924
    %v1953 = vpack.c.b16 %v1929, %v1927
    %v1954 = vpack.c.b16 %v1930, %v1928
    %v1955 = vpack.c.b16 %v1933, %v1931
    %v1956 = vpack.c.b16 %v1934, %v1932
    %v1957 = vpack.c.b16 %v1937, %v1935
    %v1958 = vpack.c.b16 %v1938, %v1936
    %v1959 = vpack.c.b16 %v1941, %v1939
    %v1960 = vpack.c.b16 %v1942, %v1940
    %v1961 = vpack.c.b16 %v1945, %v1943
    %v1962 = vpack.c.b16 %v1946, %v1944
    %1979 = vmatprep.subr.bf16.mxu0 %v1948
    %1980 = vmatpush1.bf16.msra.mxu0 %v1947
    %1981 = vmatprep.subr.bf16.mxu0 %v1950
    %1982 = vmatpush1.bf16.msra.mxu0 %v1949
    %1983 = vmatprep.subr.bf16.mxu0 %v1952
    %1984 = vmatpush1.bf16.msra.mxu0 %v1951
    %1985 = vmatprep.subr.bf16.mxu0 %v1954
    %1986 = vmatpush1.bf16.msra.mxu0 %v1953
    %1987 = vmatprep.subr.bf16.mxu0 %v1956
    %1988 = vmatpush1.bf16.msra.mxu0 %v1955
    %1989 = vmatprep.subr.bf16.mxu0 %v1958
    %1990 = vmatpush1.bf16.msra.mxu0 %v1957
    %1991 = vmatprep.subr.bf16.mxu0 %v1960
    %1992 = vmatpush1.bf16.msra.mxu0 %v1959
    %1993 = vmatprep.subr.bf16.mxu0 %v1962
    %1994 = vmatpush1.bf16.msra.mxu0 %v1961
    %1995 = vmatprep.subr.bf16.mxu0 0
    %1996 = vmatpush1.bf16.msra.mxu0 0
    %1997 = vmatprep.subr.bf16.mxu0 0
    %1998 = vmatpush1.bf16.msra.mxu0 0
    %1999 = vmatprep.subr.bf16.mxu0 0
    %2000 = vmatpush1.bf16.msra.mxu0 0
    %2001 = vmatprep.subr.bf16.mxu0 0
    %2002 = vmatpush1.bf16.msra.mxu0 0
    %2003 = vmatprep.subr.bf16.mxu0 0
    %2004 = vmatpush1.bf16.msra.mxu0 0
    %2005 = vmatprep.subr.bf16.mxu0 0
    %2006 = vmatpush1.bf16.msra.mxu0 0
    %2007 = vmatprep.subr.bf16.mxu0 0
    %2008 = vmatpush1.bf16.msra.mxu0 0
    %2009 = vmatprep.subr.bf16.mxu0 0
    %2010 = vmatpush1.bf16.msra.mxu0 0
    %2011 = vmatprep.mubr.bf16.mxu0 0
    %2012 = vmatmul.mubr.bf16.gmra.mrb[0].mxu0 %v1406
    %v2013 = vpop.f32.mrb[0].mxu0
    %v2014 = vadd.f32 %v1892, %v2013
    %v2015 = vpop.f32.mrb[0].mxu0
    %v2016 = vadd.f32 %v1896, %v2015
    %v2017 = vpop.f32.mrb[0].mxu0
    %v2018 = vadd.f32 %v1892, %v2017
    %v2019 = vpop.f32.mrb[0].mxu0
    %v2020 = vadd.f32 %v1896, %v2019
    %2021 = vmatprep.mubr.bf16.mxu0 0
    %2022 = vmatmul.mubr.bf16.gmra.mrb[0].mxu0 %v1407
    %v2023 = vpop.f32.mrb[0].mxu0
    %v2024 = vadd.f32 %v1892, %v2023
    %v2025 = vpop.f32.mrb[0].mxu0
    %v2026 = vadd.f32 %v1896, %v2025
    %v2027 = vpop.f32.mrb[0].mxu0
    %v2028 = vadd.f32 %v1892, %v2027
    %v2029 = vpop.f32.mrb[0].mxu0
    %v2030 = vadd.f32 %v1896, %v2029
    %2031 = vmatprep.mubr.bf16.mxu0 0
    %2032 = vmatmul.mubr.bf16.gmra.mrb[0].mxu0 %v1408
    %v2033 = vpop.f32.mrb[0].mxu0
    %v2034 = vadd.f32 %v1892, %v2033
    %v2035 = vpop.f32.mrb[0].mxu0
    %v2036 = vadd.f32 %v1896, %v2035
    %v2037 = vpop.f32.mrb[0].mxu0
    %v2038 = vadd.f32 %v1892, %v2037
    %v2039 = vpop.f32.mrb[0].mxu0
    %v2040 = vadd.f32 %v1896, %v2039
    %2041 = vmatprep.mubr.bf16.mxu0 0
    %2042 = vmatmul.mubr.bf16.gmra.mrb[0].mxu0 %v1409
    %v2043 = vpop.f32.mrb[0].mxu0
    %v2044 = vadd.f32 %v1892, %v2043
    %v2045 = vpop.f32.mrb[0].mxu0
    %v2046 = vadd.f32 %v1896, %v2045
    %v2047 = vpop.f32.mrb[0].mxu0
    %v2048 = vadd.f32 %v1892, %v2047
    %v2049 = vpop.f32.mrb[0].mxu0
    %v2050 = vadd.f32 %v1896, %v2049
    %2051 = vmatprep.mubr.bf16.mxu0 0
    %2052 = vmatmul.mubr.bf16.gmra.mrb[0].mxu0 %v1410
    %v2053 = vpop.f32.mrb[0].mxu0
    %v2054 = vadd.f32 %v1892, %v2053
    %v2055 = vpop.f32.mrb[0].mxu0
    %v2056 = vadd.f32 %v1896, %v2055
    %v2057 = vpop.f32.mrb[0].mxu0
    %v2058 = vadd.f32 %v1892, %v2057
    %v2059 = vpop.f32.mrb[0].mxu0
    %v2060 = vadd.f32 %v1896, %v2059
    %2061 = vmatprep.mubr.bf16.mxu0 0
    %2062 = vmatmul.mubr.bf16.gmra.mrb[0].mxu0 %v1411
    %v2063 = vpop.f32.mrb[0].mxu0
    %v2064 = vadd.f32 %v1892, %v2063
    %v2065 = vpop.f32.mrb[0].mxu0
    %v2066 = vadd.f32 %v1896, %v2065
    %v2067 = vpop.f32.mrb[0].mxu0
    %v2068 = vadd.f32 %v1892, %v2067
    %v2069 = vpop.f32.mrb[0].mxu0
    %v2070 = vadd.f32 %v1896, %v2069
    %2071 = vmatprep.mubr.bf16.mxu0 0
    %2072 = vmatmul.mubr.bf16.gmra.mrb[0].mxu0 %v1412
    %v2073 = vpop.f32.mrb[0].mxu0
    %v2074 = vadd.f32 %v1892, %v2073
    %v2075 = vpop.f32.mrb[0].mxu0
    %v2076 = vadd.f32 %v1896, %v2075
    %v2077 = vpop.f32.mrb[0].mxu0
    %v2078 = vadd.f32 %v1892, %v2077
    %v2079 = vpop.f32.mrb[0].mxu0
    %v2080 = vadd.f32 %v1896, %v2079
    %2081 = vmatprep.mubr.bf16.mxu0 0
    %2082 = vmatmul.mubr.bf16.gmra.mrb[0].mxu0 %v1413
    %v2083 = vpop.f32.mrb[0].mxu0
    %v2084 = vadd.f32 %v1892, %v2083
    %v2085 = vpop.f32.mrb[0].mxu0
    %v2086 = vadd.f32 %v1896, %v2085
    %v2087 = vpop.f32.mrb[0].mxu0
    %v2088 = vadd.f32 %v1892, %v2087
    %v2089 = vpop.f32.mrb[0].mxu0
    %v2090 = vadd.f32 %v1896, %v2089
    %2091 = vmatprep.mubr.bf16.mxu0 0
    %2092 = vmatmul.mubr.bf16.gmra.mrb[0].mxu0 %v1414
    %v2093 = vpop.f32.mrb[0].mxu0
    %v2094 = vadd.f32 %v1892, %v2093
    %v2095 = vpop.f32.mrb[0].mxu0
    %v2096 = vadd.f32 %v1896, %v2095
    %v2097 = vpop.f32.mrb[0].mxu0
    %v2098 = vadd.f32 %v1892, %v2097
    %v2099 = vpop.f32.mrb[0].mxu0
    %v2100 = vadd.f32 %v1896, %v2099
    %2101 = vmatprep.mubr.bf16.mxu0 0
    %2102 = vmatmul.mubr.bf16.gmra.mrb[0].mxu0 %v1415
    %v2103 = vpop.f32.mrb[0].mxu0
    %v2104 = vadd.f32 %v1892, %v2103
    %v2105 = vpop.f32.mrb[0].mxu0
    %v2106 = vadd.f32 %v1896, %v2105
    %v2107 = vpop.f32.mrb[0].mxu0
    %v2108 = vadd.f32 %v1892, %v2107
    %v2109 = vpop.f32.mrb[0].mxu0
    %v2110 = vadd.f32 %v1896, %v2109
    %2111 = vmatprep.mubr.bf16.mxu0 0
    %2112 = vmatmul.mubr.bf16.gmra.mrb[0].mxu0 %v1416
    %v2113 = vpop.f32.mrb[0].mxu0
    %v2114 = vadd.f32 %v1892, %v2113
    %v2115 = vpop.f32.mrb[0].mxu0
    %v2116 = vadd.f32 %v1896, %v2115
    %v2117 = vpop.f32.mrb[0].mxu0
    %v2118 = vadd.f32 %v1892, %v2117
    %v2119 = vpop.f32.mrb[0].mxu0
    %v2120 = vadd.f32 %v1896, %v2119
    %2121 = vmatprep.mubr.bf16.mxu0 0
    %2122 = vmatmul.mubr.bf16.gmra.mrb[0].mxu0 %v1417
    %v2123 = vpop.f32.mrb[0].mxu0
    %v2124 = vadd.f32 %v1892, %v2123
    %v2125 = vpop.f32.mrb[0].mxu0
    %v2126 = vadd.f32 %v1896, %v2125
    %v2127 = vpop.f32.mrb[0].mxu0
    %v2128 = vadd.f32 %v1892, %v2127
    %v2129 = vpop.f32.mrb[0].mxu0
    %v2130 = vadd.f32 %v1896, %v2129
    %2131 = vmatprep.mubr.bf16.mxu0 0
    %2132 = vmatmul.mubr.bf16.gmra.mrb[0].mxu0 %v1418
    %v2133 = vpop.f32.mrb[0].mxu0
    %v2134 = vadd.f32 %v1892, %v2133
    %v2135 = vpop.f32.mrb[0].mxu0
    %v2136 = vadd.f32 %v1896, %v2135
    %v2137 = vpop.f32.mrb[0].mxu0
    %v2138 = vadd.f32 %v1892, %v2137
    %v2139 = vpop.f32.mrb[0].mxu0
    %v2140 = vadd.f32 %v1896, %v2139
    %2141 = vmatprep.mubr.bf16.mxu0 0
    %2142 = vmatmul.mubr.bf16.gmra.mrb[0].mxu0 %v1419
    %v2143 = vpop.f32.mrb[0].mxu0
    %v2144 = vadd.f32 %v1892, %v2143
    %v2145 = vpop.f32.mrb[0].mxu0
    %v2146 = vadd.f32 %v1896, %v2145
    %v2147 = vpop.f32.mrb[0].mxu0
    %v2148 = vadd.f32 %v1892, %v2147
    %v2149 = vpop.f32.mrb[0].mxu0
    %v2150 = vadd.f32 %v1896, %v2149
    %2151 = vmatprep.mubr.bf16.mxu0 0
    %2152 = vmatmul.mubr.bf16.gmra.mrb[0].mxu0 %v1420
    %v2153 = vpop.f32.mrb[0].mxu0
    %v2154 = vadd.f32 %v1892, %v2153
    %v2155 = vpop.f32.mrb[0].mxu0
    %v2156 = vadd.f32 %v1896, %v2155
    %v2157 = vpop.f32.mrb[0].mxu0
    %v2158 = vadd.f32 %v1892, %v2157
    %v2159 = vpop.f32.mrb[0].mxu0
    %v2160 = vadd.f32 %v1896, %v2159
    %2161 = vmatprep.mubr.bf16.mxu0 0
    %2162 = vmatmul.mubr.bf16.gmra.mrb[0].mxu0 %v1421
    %v2163 = vpop.f32.mrb[0].mxu0
    %v2164 = vadd.f32 %v1892, %v2163
    %v2165 = vpop.f32.mrb[0].mxu0
    %v2166 = vadd.f32 %v1896, %v2165
    %v2167 = vpop.f32.mrb[0].mxu0
    %v2168 = vadd.f32 %v1892, %v2167
    %v2169 = vpop.f32.mrb[0].mxu0
    %v2170 = vadd.f32 %v1896, %v2169
    %2171 = vdwg.mxu0
    %v2172 = vmax.f32 %v2014, 0.0
    %v2173 = vmax.f32 %v2016, 0.0
    %v2174 = vmax.f32 %v2018, 0.0
    %v2175 = vmax.f32 %v2020, 0.0
    %v2176 = vmax.f32 %v2024, 0.0
    %v2177 = vmax.f32 %v2026, 0.0
    %v2178 = vmax.f32 %v2028, 0.0
    %v2179 = vmax.f32 %v2030, 0.0
    %v2180 = vmax.f32 %v2034, 0.0
    %v2181 = vmax.f32 %v2036, 0.0
    %v2182 = vmax.f32 %v2038, 0.0
    %v2183 = vmax.f32 %v2040, 0.0
    %v2184 = vmax.f32 %v2044, 0.0
    %v2185 = vmax.f32 %v2046, 0.0
    %v2186 = vmax.f32 %v2048, 0.0
    %v2187 = vmax.f32 %v2050, 0.0
    %v2188 = vmax.f32 %v2054, 0.0
    %v2189 = vmax.f32 %v2056, 0.0
    %v2190 = vmax.f32 %v2058, 0.0
    %v2191 = vmax.f32 %v2060, 0.0
    %v2192 = vmax.f32 %v2064, 0.0
    %v2193 = vmax.f32 %v2066, 0.0
    %v2194 = vmax.f32 %v2068, 0.0
    %v2195 = vmax.f32 %v2070, 0.0
    %v2196 = vmax.f32 %v2074, 0.0
    %v2197 = vmax.f32 %v2076, 0.0
    %v2198 = vmax.f32 %v2078, 0.0
    %v2199 = vmax.f32 %v2080, 0.0
    %v2200 = vmax.f32 %v2084, 0.0
    %v2201 = vmax.f32 %v2086, 0.0
    %v2202 = vmax.f32 %v2088, 0.0
    %v2203 = vmax.f32 %v2090, 0.0
    %v2204 = vmax.f32 %v2094, 0.0
    %v2205 = vmax.f32 %v2096, 0.0
    %v2206 = vmax.f32 %v2098, 0.0
    %v2207 = vmax.f32 %v2100, 0.0
    %v2208 = vmax.f32 %v2104, 0.0
    %v2209 = vmax.f32 %v2106, 0.0
    %v2210 = vmax.f32 %v2108, 0.0
    %v2211 = vmax.f32 %v2110, 0.0
    %v2212 = vmax.f32 %v2114, 0.0
    %v2213 = vmax.f32 %v2116, 0.0
    %v2214 = vmax.f32 %v2118, 0.0
    %v2215 = vmax.f32 %v2120, 0.0
    %v2216 = vmax.f32 %v2124, 0.0
    %v2217 = vmax.f32 %v2126, 0.0
    %v2218 = vmax.f32 %v2128, 0.0
    %v2219 = vmax.f32 %v2130, 0.0
    %v2220 = vmax.f32 %v2134, 0.0
    %v2221 = vmax.f32 %v2136, 0.0
    %v2222 = vmax.f32 %v2138, 0.0
    %v2223 = vmax.f32 %v2140, 0.0
    %v2224 = vmax.f32 %v2144, 0.0
    %v2225 = vmax.f32 %v2146, 0.0
    %v2226 = vmax.f32 %v2148, 0.0
    %v2227 = vmax.f32 %v2150, 0.0
    %v2228 = vmax.f32 %v2154, 0.0
    %v2229 = vmax.f32 %v2156, 0.0
    %v2230 = vmax.f32 %v2158, 0.0
    %v2231 = vmax.f32 %v2160, 0.0
    %v2232 = vmax.f32 %v2164, 0.0
    %v2233 = vmax.f32 %v2166, 0.0
    %v2234 = vmax.f32 %v2168, 0.0
    %v2235 = vmax.f32 %v2170, 0.0
    %v2236 = vmax.f32 %v2172, %v2174
    %v2237 = vmax.f32 %v2236, %v2176
    %v2238 = vmax.f32 %v2237, %v2178
    %v2239 = vmax.f32 %v2238, %v2180
    %v2240 = vmax.f32 %v2239, %v2182
    %v2241 = vmax.f32 %v2240, %v2184
    %v2242 = vmax.f32 %v2241, %v2186
    %v2243 = vmax.f32 %v2242, %v2188
    %v2244 = vmax.f32 %v2243, %v2190
    %v2245 = vmax.f32 %v2244, %v2192
    %v2246 = vmax.f32 %v2245, %v2194
    %v2247 = vmax.f32 %v2246, %v2196
    %v2248 = vmax.f32 %v2247, %v2198
    %v2249 = vmax.f32 %v2248, %v2200
    %v2250 = vmax.f32 %v2249, %v2202
    %v2251 = vrot.slane %v2250, 4
    %v2252 = vmax.f32 %v2250, %v2251
    %v2253 = vrot.slane %v2252, 2
    %v2254 = vmax.f32 %v2252, %v2253
    %v2255 = vrot.slane %v2254, 1
    %v2256 = vmax.f32 %v2254, %v2255
    %v2257 = vmax.f32 %v2173, %v2175
    %v2258 = vmax.f32 %v2257, %v2177
    %v2259 = vmax.f32 %v2258, %v2179
    %v2260 = vmax.f32 %v2259, %v2181
    %v2261 = vmax.f32 %v2260, %v2183
    %v2262 = vmax.f32 %v2261, %v2185
    %v2263 = vmax.f32 %v2262, %v2187
    %v2264 = vmax.f32 %v2263, %v2189
    %v2265 = vmax.f32 %v2264, %v2191
    %v2266 = vmax.f32 %v2265, %v2193
    %v2267 = vmax.f32 %v2266, %v2195
    %v2268 = vmax.f32 %v2267, %v2197
    %v2269 = vmax.f32 %v2268, %v2199
    %v2270 = vmax.f32 %v2269, %v2201
    %v2271 = vmax.f32 %v2270, %v2203
    %v2272 = vrot.slane %v2271, 4
    %v2273 = vmax.f32 %v2271, %v2272
    %v2274 = vrot.slane %v2273, 2
    %v2275 = vmax.f32 %v2273, %v2274
    %v2276 = vrot.slane %v2275, 1
    %v2277 = vmax.f32 %v2275, %v2276
    %v2278 = vmax.f32 %v2204, %v2206
    %v2279 = vmax.f32 %v2278, %v2208
    %v2280 = vmax.f32 %v2279, %v2210
    %v2281 = vmax.f32 %v2280, %v2212
    %v2282 = vmax.f32 %v2281, %v2214
    %v2283 = vmax.f32 %v2282, %v2216
    %v2284 = vmax.f32 %v2283, %v2218
    %v2285 = vmax.f32 %v2284, %v2220
    %v2286 = vmax.f32 %v2285, %v2222
    %v2287 = vmax.f32 %v2286, %v2224
    %v2288 = vmax.f32 %v2287, %v2226
    %v2289 = vmax.f32 %v2288, %v2228
    %v2290 = vmax.f32 %v2289, %v2230
    %v2291 = vmax.f32 %v2290, %v2232
    %v2292 = vmax.f32 %v2291, %v2234
    %v2293 = vrot.slane %v2292, 4
    %v2294 = vmax.f32 %v2292, %v2293
    %v2295 = vrot.slane %v2294, 2
    %v2296 = vmax.f32 %v2294, %v2295
    %v2297 = vrot.slane %v2296, 1
    %v2298 = vmax.f32 %v2296, %v2297
    %v2299 = vmax.f32 %v2205, %v2207
    %v2300 = vmax.f32 %v2299, %v2209
    %v2301 = vmax.f32 %v2300, %v2211
    %v2302 = vmax.f32 %v2301, %v2213
    %v2303 = vmax.f32 %v2302, %v2215
    %v2304 = vmax.f32 %v2303, %v2217
    %v2305 = vmax.f32 %v2304, %v2219
    %v2306 = vmax.f32 %v2305, %v2221
    %v2307 = vmax.f32 %v2306, %v2223
    %v2308 = vmax.f32 %v2307, %v2225
    %v2309 = vmax.f32 %v2308, %v2227
    %v2310 = vmax.f32 %v2309, %v2229
    %v2311 = vmax.f32 %v2310, %v2231
    %v2312 = vmax.f32 %v2311, %v2233
    %v2313 = vmax.f32 %v2312, %v2235
    %v2314 = vrot.slane %v2313, 4
    %v2315 = vmax.f32 %v2313, %v2314
    %v2316 = vrot.slane %v2315, 2
    %v2317 = vmax.f32 %v2315, %v2316
    %v2318 = vrot.slane %v2317, 1
    %v2319 = vmax.f32 %v2317, %v2318
    %v2320 = vld [vmem:[%s9 + $0x10] sm:$0xff]
    %v2321 = vld [vmem:[%s9 + $0x30] sm:$0xff]
    %v2322 = vld [vmem:[%s9 + $0x50] sm:$0xff]
    %v2323 = vld [vmem:[%s9 + $0x70] sm:$0xff]
    %v2324 = vld [vmem:[%s9 + $0x90] sm:$0xff]
    %v2325 = vld [vmem:[%s9 + $0xb0] sm:$0xff]
    %v2326 = vld [vmem:[%s9 + $0xd0] sm:$0xff]
    %v2327 = vld [vmem:[%s9 + $0xf0] sm:$0xff]
    %v2328 = vld [vmem:[%s9 + $0x110] sm:$0xff]
    %v2329 = vld [vmem:[%s9 + $0x130] sm:$0xff]
    %v2330 = vld [vmem:[%s9 + $0x150] sm:$0xff]
    %v2331 = vld [vmem:[%s9 + $0x170] sm:$0xff]
    %v2332 = vld [vmem:[%s9 + $0x190] sm:$0xff]
    %v2333 = vld [vmem:[%s9 + $0x1b0] sm:$0xff]
    %v2334 = vld [vmem:[%s9 + $0x1d0] sm:$0xff]
    %v2335 = vld [vmem:[%s9 + $0x1f0] sm:$0xff]
    %v2336 = vld [vmem:[%s10 + $0x4] sm:$0x3]
    %v2338 = vlaneseq
    %v2339 = vshrl.u32 %v2338, 7
    %v2340 = vsub.s32 0, %v2339
    %v2341 = vrot.slane %v2336, %v2340
    %v2342 = vlaneseq
    %v2343 = vshrl.u32 %v2342, 7
    %v2344 = vsub.s32 1, %v2343
    %v2345 = vrot.slane %v2336, %v2344
    %v2364 = vunpack.c.l.b16 %v2320
    %v2365 = vunpack.c.h.b16 %v2320
    %v2366 = vunpack.c.l.b16 %v2321
    %v2367 = vunpack.c.h.b16 %v2321
    %v2368 = vunpack.c.l.b16 %v2322
    %v2369 = vunpack.c.h.b16 %v2322
    %v2370 = vunpack.c.l.b16 %v2323
    %v2371 = vunpack.c.h.b16 %v2323
    %v2372 = vunpack.c.l.b16 %v2324
    %v2373 = vunpack.c.h.b16 %v2324
    %v2374 = vunpack.c.l.b16 %v2325
    %v2375 = vunpack.c.h.b16 %v2325
    %v2376 = vunpack.c.l.b16 %v2326
    %v2377 = vunpack.c.h.b16 %v2326
    %v2378 = vunpack.c.l.b16 %v2327
    %v2379 = vunpack.c.h.b16 %v2327
    %v2380 = vunpack.c.l.b16 %v2328
    %v2381 = vunpack.c.h.b16 %v2328
    %v2382 = vunpack.c.l.b16 %v2329
    %v2383 = vunpack.c.h.b16 %v2329
    %v2384 = vunpack.c.l.b16 %v2330
    %v2385 = vunpack.c.h.b16 %v2330
    %v2386 = vunpack.c.l.b16 %v2331
    %v2387 = vunpack.c.h.b16 %v2331
    %v2388 = vunpack.c.l.b16 %v2332
    %v2389 = vunpack.c.h.b16 %v2332
    %v2390 = vunpack.c.l.b16 %v2333
    %v2391 = vunpack.c.h.b16 %v2333
    %v2392 = vunpack.c.l.b16 %v2334
    %v2393 = vunpack.c.h.b16 %v2334
    %v2394 = vunpack.c.l.b16 %v2335
    %v2395 = vunpack.c.h.b16 %v2335
    %v2396 = vpack.c.b16 %v2366, %v2364
    %v2397 = vpack.c.b16 %v2367, %v2365
    %v2398 = vpack.c.b16 %v2370, %v2368
    %v2399 = vpack.c.b16 %v2371, %v2369
    %v2400 = vpack.c.b16 %v2374, %v2372
    %v2401 = vpack.c.b16 %v2375, %v2373
    %v2402 = vpack.c.b16 %v2378, %v2376
    %v2403 = vpack.c.b16 %v2379, %v2377
    %v2404 = vpack.c.b16 %v2382, %v2380
    %v2405 = vpack.c.b16 %v2383, %v2381
    %v2406 = vpack.c.b16 %v2386, %v2384
    %v2407 = vpack.c.b16 %v2387, %v2385
    %v2408 = vpack.c.b16 %v2390, %v2388
    %v2409 = vpack.c.b16 %v2391, %v2389
    %v2410 = vpack.c.b16 %v2394, %v2392
    %v2411 = vpack.c.b16 %v2395, %v2393
    %2428 = vmatprep.subr.bf16.mxu0 %v2397
    %2429 = vmatpush1.bf16.msra.mxu0 %v2396
    %2430 = vmatprep.subr.bf16.mxu0 %v2399
    %2431 = vmatpush1.bf16.msra.mxu0 %v2398
    %2432 = vmatprep.subr.bf16.mxu0 %v2401
    %2433 = vmatpush1.bf16.msra.mxu0 %v2400
    %2434 = vmatprep.subr.bf16.mxu0 %v2403
    %2435 = vmatpush1.bf16.msra.mxu0 %v2402
    %2436 = vmatprep.subr.bf16.mxu0 %v2405
    %2437 = vmatpush1.bf16.msra.mxu0 %v2404
    %2438 = vmatprep.subr.bf16.mxu0 %v2407
    %2439 = vmatpush1.bf16.msra.mxu0 %v2406
    %2440 = vmatprep.subr.bf16.mxu0 %v2409
    %2441 = vmatpush1.bf16.msra.mxu0 %v2408
    %2442 = vmatprep.subr.bf16.mxu0 %v2411
    %2443 = vmatpush1.bf16.msra.mxu0 %v2410
    %2444 = vmatprep.subr.bf16.mxu0 0
    %2445 = vmatpush1.bf16.msra.mxu0 0
    %2446 = vmatprep.subr.bf16.mxu0 0
    %2447 = vmatpush1.bf16.msra.mxu0 0
    %2448 = vmatprep.subr.bf16.mxu0 0
    %2449 = vmatpush1.bf16.msra.mxu0 0
    %2450 = vmatprep.subr.bf16.mxu0 0
    %2451 = vmatpush1.bf16.msra.mxu0 0
    %2452 = vmatprep.subr.bf16.mxu0 0
    %2453 = vmatpush1.bf16.msra.mxu0 0
    %2454 = vmatprep.subr.bf16.mxu0 0
    %2455 = vmatpush1.bf16.msra.mxu0 0
    %2456 = vmatprep.subr.bf16.mxu0 0
    %2457 = vmatpush1.bf16.msra.mxu0 0
    %2458 = vmatprep.subr.bf16.mxu0 0
    %2459 = vmatpush1.bf16.msra.mxu0 0
    %2460 = vmatprep.mubr.bf16.mxu0 0
    %2461 = vmatmul.mubr.bf16.gmra.mrb[0].mxu0 %v1406
    %v2462 = vpop.f32.mrb[0].mxu0
    %v2463 = vadd.f32 %v2341, %v2462
    %v2464 = vpop.f32.mrb[0].mxu0
    %v2465 = vadd.f32 %v2345, %v2464
    %v2466 = vpop.f32.mrb[0].mxu0
    %v2467 = vadd.f32 %v2341, %v2466
    %v2468 = vpop.f32.mrb[0].mxu0
    %v2469 = vadd.f32 %v2345, %v2468
    %2470 = vmatprep.mubr.bf16.mxu0 0
    %2471 = vmatmul.mubr.bf16.gmra.mrb[0].mxu0 %v1407
    %v2472 = vpop.f32.mrb[0].mxu0
    %v2473 = vadd.f32 %v2341, %v2472
    %v2474 = vpop.f32.mrb[0].mxu0
    %v2475 = vadd.f32 %v2345, %v2474
    %v2476 = vpop.f32.mrb[0].mxu0
    %v2477 = vadd.f32 %v2341, %v2476
    %v2478 = vpop.f32.mrb[0].mxu0
    %v2479 = vadd.f32 %v2345, %v2478
    %2480 = vmatprep.mubr.bf16.mxu0 0
    %2481 = vmatmul.mubr.bf16.gmra.mrb[0].mxu0 %v1408
    %v2482 = vpop.f32.mrb[0].mxu0
    %v2483 = vadd.f32 %v2341, %v2482
    %v2484 = vpop.f32.mrb[0].mxu0
    %v2485 = vadd.f32 %v2345, %v2484
    %v2486 = vpop.f32.mrb[0].mxu0
    %v2487 = vadd.f32 %v2341, %v2486
    %v2488 = vpop.f32.mrb[0].mxu0
    %v2489 = vadd.f32 %v2345, %v2488
    %2490 = vmatprep.mubr.bf16.mxu0 0
    %2491 = vmatmul.mubr.bf16.gmra.mrb[0].mxu0 %v1409
    %v2492 = vpop.f32.mrb[0].mxu0
    %v2493 = vadd.f32 %v2341, %v2492
    %v2494 = vpop.f32.mrb[0].mxu0
    %v2495 = vadd.f32 %v2345, %v2494
    %v2496 = vpop.f32.mrb[0].mxu0
    %v2497 = vadd.f32 %v2341, %v2496
    %v2498 = vpop.f32.mrb[0].mxu0
    %v2499 = vadd.f32 %v2345, %v2498
    %2500 = vmatprep.mubr.bf16.mxu0 0
    %2501 = vmatmul.mubr.bf16.gmra.mrb[0].mxu0 %v1410
    %v2502 = vpop.f32.mrb[0].mxu0
    %v2503 = vadd.f32 %v2341, %v2502
    %v2504 = vpop.f32.mrb[0].mxu0
    %v2505 = vadd.f32 %v2345, %v2504
    %v2506 = vpop.f32.mrb[0].mxu0
    %v2507 = vadd.f32 %v2341, %v2506
    %v2508 = vpop.f32.mrb[0].mxu0
    %v2509 = vadd.f32 %v2345, %v2508
    %2510 = vmatprep.mubr.bf16.mxu0 0
    %2511 = vmatmul.mubr.bf16.gmra.mrb[0].mxu0 %v1411
    %v2512 = vpop.f32.mrb[0].mxu0
    %v2513 = vadd.f32 %v2341, %v2512
    %v2514 = vpop.f32.mrb[0].mxu0
    %v2515 = vadd.f32 %v2345, %v2514
    %v2516 = vpop.f32.mrb[0].mxu0
    %v2517 = vadd.f32 %v2341, %v2516
    %v2518 = vpop.f32.mrb[0].mxu0
    %v2519 = vadd.f32 %v2345, %v2518
    %2520 = vmatprep.mubr.bf16.mxu0 0
    %2521 = vmatmul.mubr.bf16.gmra.mrb[0].mxu0 %v1412
    %v2522 = vpop.f32.mrb[0].mxu0
    %v2523 = vadd.f32 %v2341, %v2522
    %v2524 = vpop.f32.mrb[0].mxu0
    %v2525 = vadd.f32 %v2345, %v2524
    %v2526 = vpop.f32.mrb[0].mxu0
    %v2527 = vadd.f32 %v2341, %v2526
    %v2528 = vpop.f32.mrb[0].mxu0
    %v2529 = vadd.f32 %v2345, %v2528
    %2530 = vmatprep.mubr.bf16.mxu0 0
    %2531 = vmatmul.mubr.bf16.gmra.mrb[0].mxu0 %v1413
    %v2532 = vpop.f32.mrb[0].mxu0
    %v2533 = vadd.f32 %v2341, %v2532
    %v2534 = vpop.f32.mrb[0].mxu0
    %v2535 = vadd.f32 %v2345, %v2534
    %v2536 = vpop.f32.mrb[0].mxu0
    %v2537 = vadd.f32 %v2341, %v2536
    %v2538 = vpop.f32.mrb[0].mxu0
    %v2539 = vadd.f32 %v2345, %v2538
    %2540 = vmatprep.mubr.bf16.mxu0 0
    %2541 = vmatmul.mubr.bf16.gmra.mrb[0].mxu0 %v1414
    %v2542 = vpop.f32.mrb[0].mxu0
    %v2543 = vadd.f32 %v2341, %v2542
    %v2544 = vpop.f32.mrb[0].mxu0
    %v2545 = vadd.f32 %v2345, %v2544
    %v2546 = vpop.f32.mrb[0].mxu0
    %v2547 = vadd.f32 %v2341, %v2546
    %v2548 = vpop.f32.mrb[0].mxu0
    %v2549 = vadd.f32 %v2345, %v2548
    %2550 = vmatprep.mubr.bf16.mxu0 0
    %2551 = vmatmul.mubr.bf16.gmra.mrb[0].mxu0 %v1415
    %v2552 = vpop.f32.mrb[0].mxu0
    %v2553 = vadd.f32 %v2341, %v2552
    %v2554 = vpop.f32.mrb[0].mxu0
    %v2555 = vadd.f32 %v2345, %v2554
    %v2556 = vpop.f32.mrb[0].mxu0
    %v2557 = vadd.f32 %v2341, %v2556
    %v2558 = vpop.f32.mrb[0].mxu0
    %v2559 = vadd.f32 %v2345, %v2558
    %2560 = vmatprep.mubr.bf16.mxu0 0
    %2561 = vmatmul.mubr.bf16.gmra.mrb[0].mxu0 %v1416
    %v2562 = vpop.f32.mrb[0].mxu0
    %v2563 = vadd.f32 %v2341, %v2562
    %v2564 = vpop.f32.mrb[0].mxu0
    %v2565 = vadd.f32 %v2345, %v2564
    %v2566 = vpop.f32.mrb[0].mxu0
    %v2567 = vadd.f32 %v2341, %v2566
    %v2568 = vpop.f32.mrb[0].mxu0
    %v2569 = vadd.f32 %v2345, %v2568
    %2570 = vmatprep.mubr.bf16.mxu0 0
    %2571 = vmatmul.mubr.bf16.gmra.mrb[0].mxu0 %v1417
    %v2572 = vpop.f32.mrb[0].mxu0
    %v2573 = vadd.f32 %v2341, %v2572
    %v2574 = vpop.f32.mrb[0].mxu0
    %v2575 = vadd.f32 %v2345, %v2574
    %v2576 = vpop.f32.mrb[0].mxu0
    %v2577 = vadd.f32 %v2341, %v2576
    %v2578 = vpop.f32.mrb[0].mxu0
    %v2579 = vadd.f32 %v2345, %v2578
    %2580 = vmatprep.mubr.bf16.mxu0 0
    %2581 = vmatmul.mubr.bf16.gmra.mrb[0].mxu0 %v1418
    %v2582 = vpop.f32.mrb[0].mxu0
    %v2583 = vadd.f32 %v2341, %v2582
    %v2584 = vpop.f32.mrb[0].mxu0
    %v2585 = vadd.f32 %v2345, %v2584
    %v2586 = vpop.f32.mrb[0].mxu0
    %v2587 = vadd.f32 %v2341, %v2586
    %v2588 = vpop.f32.mrb[0].mxu0
    %v2589 = vadd.f32 %v2345, %v2588
    %2590 = vmatprep.mubr.bf16.mxu0 0
    %2591 = vmatmul.mubr.bf16.gmra.mrb[0].mxu0 %v1419
    %v2592 = vpop.f32.mrb[0].mxu0
    %v2593 = vadd.f32 %v2341, %v2592
    %v2594 = vpop.f32.mrb[0].mxu0
    %v2595 = vadd.f32 %v2345, %v2594
    %v2596 = vpop.f32.mrb[0].mxu0
    %v2597 = vadd.f32 %v2341, %v2596
    %v2598 = vpop.f32.mrb[0].mxu0
    %v2599 = vadd.f32 %v2345, %v2598
    %2600 = vmatprep.mubr.bf16.mxu0 0
    %2601 = vmatmul.mubr.bf16.gmra.mrb[0].mxu0 %v1420
    %v2602 = vpop.f32.mrb[0].mxu0
    %v2603 = vadd.f32 %v2341, %v2602
    %v2604 = vpop.f32.mrb[0].mxu0
    %v2605 = vadd.f32 %v2345, %v2604
    %v2606 = vpop.f32.mrb[0].mxu0
    %v2607 = vadd.f32 %v2341, %v2606
    %v2608 = vpop.f32.mrb[0].mxu0
    %v2609 = vadd.f32 %v2345, %v2608
    %2610 = vmatprep.mubr.bf16.mxu0 0
    %2611 = vmatmul.mubr.bf16.gmra.mrb[0].mxu0 %v1421
    %v2612 = vpop.f32.mrb[0].mxu0
    %v2613 = vadd.f32 %v2341, %v2612
    %v2614 = vpop.f32.mrb[0].mxu0
    %v2615 = vadd.f32 %v2345, %v2614
    %v2616 = vpop.f32.mrb[0].mxu0
    %v2617 = vadd.f32 %v2341, %v2616
    %v2618 = vpop.f32.mrb[0].mxu0
    %v2619 = vadd.f32 %v2345, %v2618
    %2620 = vdwg.mxu0
    %v2621 = vmax.f32 %v2463, 0.0
    %v2622 = vmax.f32 %v2465, 0.0
    %v2623 = vmax.f32 %v2467, 0.0
    %v2624 = vmax.f32 %v2469, 0.0
    %v2625 = vmax.f32 %v2473, 0.0
    %v2626 = vmax.f32 %v2475, 0.0
    %v2627 = vmax.f32 %v2477, 0.0
    %v2628 = vmax.f32 %v2479, 0.0
    %v2629 = vmax.f32 %v2483, 0.0
    %v2630 = vmax.f32 %v2485, 0.0
    %v2631 = vmax.f32 %v2487, 0.0
    %v2632 = vmax.f32 %v2489, 0.0
    %v2633 = vmax.f32 %v2493, 0.0
    %v2634 = vmax.f32 %v2495, 0.0
    %v2635 = vmax.f32 %v2497, 0.0
    %v2636 = vmax.f32 %v2499, 0.0
    %v2637 = vmax.f32 %v2503, 0.0
    %v2638 = vmax.f32 %v2505, 0.0
    %v2639 = vmax.f32 %v2507, 0.0
    %v2640 = vmax.f32 %v2509, 0.0
    %v2641 = vmax.f32 %v2513, 0.0
    %v2642 = vmax.f32 %v2515, 0.0
    %v2643 = vmax.f32 %v2517, 0.0
    %v2644 = vmax.f32 %v2519, 0.0
    %v2645 = vmax.f32 %v2523, 0.0
    %v2646 = vmax.f32 %v2525, 0.0
    %v2647 = vmax.f32 %v2527, 0.0
    %v2648 = vmax.f32 %v2529, 0.0
    %v2649 = vmax.f32 %v2533, 0.0
    %v2650 = vmax.f32 %v2535, 0.0
    %v2651 = vmax.f32 %v2537, 0.0
    %v2652 = vmax.f32 %v2539, 0.0
    %v2653 = vmax.f32 %v2543, 0.0
    %v2654 = vmax.f32 %v2545, 0.0
    %v2655 = vmax.f32 %v2547, 0.0
    %v2656 = vmax.f32 %v2549, 0.0
    %v2657 = vmax.f32 %v2553, 0.0
    %v2658 = vmax.f32 %v2555, 0.0
    %v2659 = vmax.f32 %v2557, 0.0
    %v2660 = vmax.f32 %v2559, 0.0
    %v2661 = vmax.f32 %v2563, 0.0
    %v2662 = vmax.f32 %v2565, 0.0
    %v2663 = vmax.f32 %v2567, 0.0
    %v2664 = vmax.f32 %v2569, 0.0
    %v2665 = vmax.f32 %v2573, 0.0
    %v2666 = vmax.f32 %v2575, 0.0
    %v2667 = vmax.f32 %v2577, 0.0
    %v2668 = vmax.f32 %v2579, 0.0
    %v2669 = vmax.f32 %v2583, 0.0
    %v2670 = vmax.f32 %v2585, 0.0
    %v2671 = vmax.f32 %v2587, 0.0
    %v2672 = vmax.f32 %v2589, 0.0
    %v2673 = vmax.f32 %v2593, 0.0
    %v2674 = vmax.f32 %v2595, 0.0
    %v2675 = vmax.f32 %v2597, 0.0
    %v2676 = vmax.f32 %v2599, 0.0
    %v2677 = vmax.f32 %v2603, 0.0
    %v2678 = vmax.f32 %v2605, 0.0
    %v2679 = vmax.f32 %v2607, 0.0
    %v2680 = vmax.f32 %v2609, 0.0
    %v2681 = vmax.f32 %v2613, 0.0
    %v2682 = vmax.f32 %v2615, 0.0
    %v2683 = vmax.f32 %v2617, 0.0
    %v2684 = vmax.f32 %v2619, 0.0
    %v2685 = vmax.f32 %v2621, %v2623
    %v2686 = vmax.f32 %v2685, %v2625
    %v2687 = vmax.f32 %v2686, %v2627
    %v2688 = vmax.f32 %v2687, %v2629
    %v2689 = vmax.f32 %v2688, %v2631
    %v2690 = vmax.f32 %v2689, %v2633
    %v2691 = vmax.f32 %v2690, %v2635
    %v2692 = vmax.f32 %v2691, %v2637
    %v2693 = vmax.f32 %v2692, %v2639
    %v2694 = vmax.f32 %v2693, %v2641
    %v2695 = vmax.f32 %v2694, %v2643
    %v2696 = vmax.f32 %v2695, %v2645
    %v2697 = vmax.f32 %v2696, %v2647
    %v2698 = vmax.f32 %v2697, %v2649
    %v2699 = vmax.f32 %v2698, %v2651
    %v2700 = vrot.slane %v2699, 4
    %v2701 = vmax.f32 %v2699, %v2700
    %v2702 = vrot.slane %v2701, 2
    %v2703 = vmax.f32 %v2701, %v2702
    %v2704 = vrot.slane %v2703, 1
    %v2705 = vmax.f32 %v2703, %v2704
    %v2706 = vmax.f32 %v2622, %v2624
    %v2707 = vmax.f32 %v2706, %v2626
    %v2708 = vmax.f32 %v2707, %v2628
    %v2709 = vmax.f32 %v2708, %v2630
    %v2710 = vmax.f32 %v2709, %v2632
    %v2711 = vmax.f32 %v2710, %v2634
    %v2712 = vmax.f32 %v2711, %v2636
    %v2713 = vmax.f32 %v2712, %v2638
    %v2714 = vmax.f32 %v2713, %v2640
    %v2715 = vmax.f32 %v2714, %v2642
    %v2716 = vmax.f32 %v2715, %v2644
    %v2717 = vmax.f32 %v2716, %v2646
    %v2718 = vmax.f32 %v2717, %v2648
    %v2719 = vmax.f32 %v2718, %v2650
    %v2720 = vmax.f32 %v2719, %v2652
    %v2721 = vrot.slane %v2720, 4
    %v2722 = vmax.f32 %v2720, %v2721
    %v2723 = vrot.slane %v2722, 2
    %v2724 = vmax.f32 %v2722, %v2723
    %v2725 = vrot.slane %v2724, 1
    %v2726 = vmax.f32 %v2724, %v2725
    %v2727 = vmax.f32 %v2653, %v2655
    %v2728 = vmax.f32 %v2727, %v2657
    %v2729 = vmax.f32 %v2728, %v2659
    %v2730 = vmax.f32 %v2729, %v2661
    %v2731 = vmax.f32 %v2730, %v2663
    %v2732 = vmax.f32 %v2731, %v2665
    %v2733 = vmax.f32 %v2732, %v2667
    %v2734 = vmax.f32 %v2733, %v2669
    %v2735 = vmax.f32 %v2734, %v2671
    %v2736 = vmax.f32 %v2735, %v2673
    %v2737 = vmax.f32 %v2736, %v2675
    %v2738 = vmax.f32 %v2737, %v2677
    %v2739 = vmax.f32 %v2738, %v2679
    %v2740 = vmax.f32 %v2739, %v2681
    %v2741 = vmax.f32 %v2740, %v2683
    %v2742 = vrot.slane %v2741, 4
    %v2743 = vmax.f32 %v2741, %v2742
    %v2744 = vrot.slane %v2743, 2
    %v2745 = vmax.f32 %v2743, %v2744
    %v2746 = vrot.slane %v2745, 1
    %v2747 = vmax.f32 %v2745, %v2746
    %v2748 = vmax.f32 %v2654, %v2656
    %v2749 = vmax.f32 %v2748, %v2658
    %v2750 = vmax.f32 %v2749, %v2660
    %v2751 = vmax.f32 %v2750, %v2662
    %v2752 = vmax.f32 %v2751, %v2664
    %v2753 = vmax.f32 %v2752, %v2666
    %v2754 = vmax.f32 %v2753, %v2668
    %v2755 = vmax.f32 %v2754, %v2670
    %v2756 = vmax.f32 %v2755, %v2672
    %v2757 = vmax.f32 %v2756, %v2674
    %v2758 = vmax.f32 %v2757, %v2676
    %v2759 = vmax.f32 %v2758, %v2678
    %v2760 = vmax.f32 %v2759, %v2680
    %v2761 = vmax.f32 %v2760, %v2682
    %v2762 = vmax.f32 %v2761, %v2684
    %v2763 = vrot.slane %v2762, 4
    %v2764 = vmax.f32 %v2762, %v2763
    %v2765 = vrot.slane %v2764, 2
    %v2766 = vmax.f32 %v2764, %v2765
    %v2767 = vrot.slane %v2766, 1
    %v2768 = vmax.f32 %v2766, %v2767
    %v2769 = vld [vmem:[%s9 + $0x18] sm:$0xff]
    %v2770 = vld [vmem:[%s9 + $0x38] sm:$0xff]
    %v2771 = vld [vmem:[%s9 + $0x58] sm:$0xff]
    %v2772 = vld [vmem:[%s9 + $0x78] sm:$0xff]
    %v2773 = vld [vmem:[%s9 + $0x98] sm:$0xff]
    %v2774 = vld [vmem:[%s9 + $0xb8] sm:$0xff]
    %v2775 = vld [vmem:[%s9 + $0xd8] sm:$0xff]
    %v2776 = vld [vmem:[%s9 + $0xf8] sm:$0xff]
    %v2777 = vld [vmem:[%s9 + $0x118] sm:$0xff]
    %v2778 = vld [vmem:[%s9 + $0x138] sm:$0xff]
    %v2779 = vld [vmem:[%s9 + $0x158] sm:$0xff]
    %v2780 = vld [vmem:[%s9 + $0x178] sm:$0xff]
    %v2781 = vld [vmem:[%s9 + $0x198] sm:$0xff]
    %v2782 = vld [vmem:[%s9 + $0x1b8] sm:$0xff]
    %v2783 = vld [vmem:[%s9 + $0x1d8] sm:$0xff]
    %v2784 = vld [vmem:[%s9 + $0x1f8] sm:$0xff]
    %v2785 = vld [vmem:[%s10 + $0x6] sm:$0x3]
    %v2787 = vlaneseq
    %v2788 = vshrl.u32 %v2787, 7
    %v2789 = vsub.s32 0, %v2788
    %v2790 = vrot.slane %v2785, %v2789
    %v2791 = vlaneseq
    %v2792 = vshrl.u32 %v2791, 7
    %v2793 = vsub.s32 1, %v2792
    %v2794 = vrot.slane %v2785, %v2793
    %v2813 = vunpack.c.l.b16 %v2769
    %v2814 = vunpack.c.h.b16 %v2769
    %v2815 = vunpack.c.l.b16 %v2770
    %v2816 = vunpack.c.h.b16 %v2770
    %v2817 = vunpack.c.l.b16 %v2771
    %v2818 = vunpack.c.h.b16 %v2771
    %v2819 = vunpack.c.l.b16 %v2772
    %v2820 = vunpack.c.h.b16 %v2772
    %v2821 = vunpack.c.l.b16 %v2773
    %v2822 = vunpack.c.h.b16 %v2773
    %v2823 = vunpack.c.l.b16 %v2774
    %v2824 = vunpack.c.h.b16 %v2774
    %v2825 = vunpack.c.l.b16 %v2775
    %v2826 = vunpack.c.h.b16 %v2775
    %v2827 = vunpack.c.l.b16 %v2776
    %v2828 = vunpack.c.h.b16 %v2776
    %v2829 = vunpack.c.l.b16 %v2777
    %v2830 = vunpack.c.h.b16 %v2777
    %v2831 = vunpack.c.l.b16 %v2778
    %v2832 = vunpack.c.h.b16 %v2778
    %v2833 = vunpack.c.l.b16 %v2779
    %v2834 = vunpack.c.h.b16 %v2779
    %v2835 = vunpack.c.l.b16 %v2780
    %v2836 = vunpack.c.h.b16 %v2780
    %v2837 = vunpack.c.l.b16 %v2781
    %v2838 = vunpack.c.h.b16 %v2781
    %v2839 = vunpack.c.l.b16 %v2782
    %v2840 = vunpack.c.h.b16 %v2782
    %v2841 = vunpack.c.l.b16 %v2783
    %v2842 = vunpack.c.h.b16 %v2783
    %v2843 = vunpack.c.l.b16 %v2784
    %v2844 = vunpack.c.h.b16 %v2784
    %v2845 = vpack.c.b16 %v2815, %v2813
    %v2846 = vpack.c.b16 %v2816, %v2814
    %v2847 = vpack.c.b16 %v2819, %v2817
    %v2848 = vpack.c.b16 %v2820, %v2818
    %v2849 = vpack.c.b16 %v2823, %v2821
    %v2850 = vpack.c.b16 %v2824, %v2822
    %v2851 = vpack.c.b16 %v2827, %v2825
    %v2852 = vpack.c.b16 %v2828, %v2826
    %v2853 = vpack.c.b16 %v2831, %v2829
    %v2854 = vpack.c.b16 %v2832, %v2830
    %v2855 = vpack.c.b16 %v2835, %v2833
    %v2856 = vpack.c.b16 %v2836, %v2834
    %v2857 = vpack.c.b16 %v2839, %v2837
    %v2858 = vpack.c.b16 %v2840, %v2838
    %v2859 = vpack.c.b16 %v2843, %v2841
    %v2860 = vpack.c.b16 %v2844, %v2842
    %2877 = vmatprep.subr.bf16.mxu0 %v2846
    %2878 = vmatpush1.bf16.msra.mxu0 %v2845
    %2879 = vmatprep.subr.bf16.mxu0 %v2848
    %2880 = vmatpush1.bf16.msra.mxu0 %v2847
    %2881 = vmatprep.subr.bf16.mxu0 %v2850
    %2882 = vmatpush1.bf16.msra.mxu0 %v2849
    %2883 = vmatprep.subr.bf16.mxu0 %v2852
    %2884 = vmatpush1.bf16.msra.mxu0 %v2851
    %2885 = vmatprep.subr.bf16.mxu0 %v2854
    %2886 = vmatpush1.bf16.msra.mxu0 %v2853
    %2887 = vmatprep.subr.bf16.mxu0 %v2856
    %2888 = vmatpush1.bf16.msra.mxu0 %v2855
    %2889 = vmatprep.subr.bf16.mxu0 %v2858
    %2890 = vmatpush1.bf16.msra.mxu0 %v2857
    %2891 = vmatprep.subr.bf16.mxu0 %v2860
    %2892 = vmatpush1.bf16.msra.mxu0 %v2859
    %2893 = vmatprep.subr.bf16.mxu0 0
    %2894 = vmatpush1.bf16.msra.mxu0 0
    %2895 = vmatprep.subr.bf16.mxu0 0
    %2896 = vmatpush1.bf16.msra.mxu0 0
    %2897 = vmatprep.subr.bf16.mxu0 0
    %2898 = vmatpush1.bf16.msra.mxu0 0
    %2899 = vmatprep.subr.bf16.mxu0 0
    %2900 = vmatpush1.bf16.msra.mxu0 0
    %2901 = vmatprep.subr.bf16.mxu0 0
    %2902 = vmatpush1.bf16.msra.mxu0 0
    %2903 = vmatprep.subr.bf16.mxu0 0
    %2904 = vmatpush1.bf16.msra.mxu0 0
    %2905 = vmatprep.subr.bf16.mxu0 0
    %2906 = vmatpush1.bf16.msra.mxu0 0
    %2907 = vmatprep.subr.bf16.mxu0 0
    %2908 = vmatpush1.bf16.msra.mxu0 0
    %2909 = vmatprep.mubr.bf16.mxu0 0
    %2910 = vmatmul.mubr.bf16.gmra.mrb[0].mxu0 %v1406
    %v2911 = vpop.f32.mrb[0].mxu0
    %v2912 = vadd.f32 %v2790, %v2911
    %v2913 = vpop.f32.mrb[0].mxu0
    %v2914 = vadd.f32 %v2794, %v2913
    %v2915 = vpop.f32.mrb[0].mxu0
    %v2916 = vadd.f32 %v2790, %v2915
    %v2917 = vpop.f32.mrb[0].mxu0
    %v2918 = vadd.f32 %v2794, %v2917
    %2919 = vmatprep.mubr.bf16.mxu0 0
    %2920 = vmatmul.mubr.bf16.gmra.mrb[0].mxu0 %v1407
    %v2921 = vpop.f32.mrb[0].mxu0
    %v2922 = vadd.f32 %v2790, %v2921
    %v2923 = vpop.f32.mrb[0].mxu0
    %v2924 = vadd.f32 %v2794, %v2923
    %v2925 = vpop.f32.mrb[0].mxu0
    %v2926 = vadd.f32 %v2790, %v2925
    %v2927 = vpop.f32.mrb[0].mxu0
    %v2928 = vadd.f32 %v2794, %v2927
    %2929 = vmatprep.mubr.bf16.mxu0 0
    %2930 = vmatmul.mubr.bf16.gmra.mrb[0].mxu0 %v1408
    %v2931 = vpop.f32.mrb[0].mxu0
    %v2932 = vadd.f32 %v2790, %v2931
    %v2933 = vpop.f32.mrb[0].mxu0
    %v2934 = vadd.f32 %v2794, %v2933
    %v2935 = vpop.f32.mrb[0].mxu0
    %v2936 = vadd.f32 %v2790, %v2935
    %v2937 = vpop.f32.mrb[0].mxu0
    %v2938 = vadd.f32 %v2794, %v2937
    %2939 = vmatprep.mubr.bf16.mxu0 0
    %2940 = vmatmul.mubr.bf16.gmra.mrb[0].mxu0 %v1409
    %v2941 = vpop.f32.mrb[0].mxu0
    %v2942 = vadd.f32 %v2790, %v2941
    %v2943 = vpop.f32.mrb[0].mxu0
    %v2944 = vadd.f32 %v2794, %v2943
    %v2945 = vpop.f32.mrb[0].mxu0
    %v2946 = vadd.f32 %v2790, %v2945
    %v2947 = vpop.f32.mrb[0].mxu0
    %v2948 = vadd.f32 %v2794, %v2947
    %2949 = vmatprep.mubr.bf16.mxu0 0
    %2950 = vmatmul.mubr.bf16.gmra.mrb[0].mxu0 %v1410
    %v2951 = vpop.f32.mrb[0].mxu0
    %v2952 = vadd.f32 %v2790, %v2951
    %v2953 = vpop.f32.mrb[0].mxu0
    %v2954 = vadd.f32 %v2794, %v2953
    %v2955 = vpop.f32.mrb[0].mxu0
    %v2956 = vadd.f32 %v2790, %v2955
    %v2957 = vpop.f32.mrb[0].mxu0
    %v2958 = vadd.f32 %v2794, %v2957
    %2959 = vmatprep.mubr.bf16.mxu0 0
    %2960 = vmatmul.mubr.bf16.gmra.mrb[0].mxu0 %v1411
    %v2961 = vpop.f32.mrb[0].mxu0
    %v2962 = vadd.f32 %v2790, %v2961
    %v2963 = vpop.f32.mrb[0].mxu0
    %v2964 = vadd.f32 %v2794, %v2963
    %v2965 = vpop.f32.mrb[0].mxu0
    %v2966 = vadd.f32 %v2790, %v2965
    %v2967 = vpop.f32.mrb[0].mxu0
    %v2968 = vadd.f32 %v2794, %v2967
    %2969 = vmatprep.mubr.bf16.mxu0 0
    %2970 = vmatmul.mubr.bf16.gmra.mrb[0].mxu0 %v1412
    %v2971 = vpop.f32.mrb[0].mxu0
    %v2972 = vadd.f32 %v2790, %v2971
    %v2973 = vpop.f32.mrb[0].mxu0
    %v2974 = vadd.f32 %v2794, %v2973
    %v2975 = vpop.f32.mrb[0].mxu0
    %v2976 = vadd.f32 %v2790, %v2975
    %v2977 = vpop.f32.mrb[0].mxu0
    %v2978 = vadd.f32 %v2794, %v2977
    %2979 = vmatprep.mubr.bf16.mxu0 0
    %2980 = vmatmul.mubr.bf16.gmra.mrb[0].mxu0 %v1413
    %v2981 = vpop.f32.mrb[0].mxu0
    %v2982 = vadd.f32 %v2790, %v2981
    %v2983 = vpop.f32.mrb[0].mxu0
    %v2984 = vadd.f32 %v2794, %v2983
    %v2985 = vpop.f32.mrb[0].mxu0
    %v2986 = vadd.f32 %v2790, %v2985
    %v2987 = vpop.f32.mrb[0].mxu0
    %v2988 = vadd.f32 %v2794, %v2987
    %2989 = vmatprep.mubr.bf16.mxu0 0
    %2990 = vmatmul.mubr.bf16.gmra.mrb[0].mxu0 %v1414
    %v2991 = vpop.f32.mrb[0].mxu0
    %v2992 = vadd.f32 %v2790, %v2991
    %v2993 = vpop.f32.mrb[0].mxu0
    %v2994 = vadd.f32 %v2794, %v2993
    %v2995 = vpop.f32.mrb[0].mxu0
    %v2996 = vadd.f32 %v2790, %v2995
    %v2997 = vpop.f32.mrb[0].mxu0
    %v2998 = vadd.f32 %v2794, %v2997
    %2999 = vmatprep.mubr.bf16.mxu0 0
    %3000 = vmatmul.mubr.bf16.gmra.mrb[0].mxu0 %v1415
    %v3001 = vpop.f32.mrb[0].mxu0
    %v3002 = vadd.f32 %v2790, %v3001
    %v3003 = vpop.f32.mrb[0].mxu0
    %v3004 = vadd.f32 %v2794, %v3003
    %v3005 = vpop.f32.mrb[0].mxu0
    %v3006 = vadd.f32 %v2790, %v3005
    %v3007 = vpop.f32.mrb[0].mxu0
    %v3008 = vadd.f32 %v2794, %v3007
    %3009 = vmatprep.mubr.bf16.mxu0 0
    %3010 = vmatmul.mubr.bf16.gmra.mrb[0].mxu0 %v1416
    %v3011 = vpop.f32.mrb[0].mxu0
    %v3012 = vadd.f32 %v2790, %v3011
    %v3013 = vpop.f32.mrb[0].mxu0
    %v3014 = vadd.f32 %v2794, %v3013
    %v3015 = vpop.f32.mrb[0].mxu0
    %v3016 = vadd.f32 %v2790, %v3015
    %v3017 = vpop.f32.mrb[0].mxu0
    %v3018 = vadd.f32 %v2794, %v3017
    %3019 = vmatprep.mubr.bf16.mxu0 0
    %3020 = vmatmul.mubr.bf16.gmra.mrb[0].mxu0 %v1417
    %v3021 = vpop.f32.mrb[0].mxu0
    %v3022 = vadd.f32 %v2790, %v3021
    %v3023 = vpop.f32.mrb[0].mxu0
    %v3024 = vadd.f32 %v2794, %v3023
    %v3025 = vpop.f32.mrb[0].mxu0
    %v3026 = vadd.f32 %v2790, %v3025
    %v3027 = vpop.f32.mrb[0].mxu0
    %v3028 = vadd.f32 %v2794, %v3027
    %3029 = vmatprep.mubr.bf16.mxu0 0
    %3030 = vmatmul.mubr.bf16.gmra.mrb[0].mxu0 %v1418
    %v3031 = vpop.f32.mrb[0].mxu0
    %v3032 = vadd.f32 %v2790, %v3031
    %v3033 = vpop.f32.mrb[0].mxu0
    %v3034 = vadd.f32 %v2794, %v3033
    %v3035 = vpop.f32.mrb[0].mxu0
    %v3036 = vadd.f32 %v2790, %v3035
    %v3037 = vpop.f32.mrb[0].mxu0
    %v3038 = vadd.f32 %v2794, %v3037
    %3039 = vmatprep.mubr.bf16.mxu0 0
    %3040 = vmatmul.mubr.bf16.gmra.mrb[0].mxu0 %v1419
    %v3041 = vpop.f32.mrb[0].mxu0
    %v3042 = vadd.f32 %v2790, %v3041
    %v3043 = vpop.f32.mrb[0].mxu0
    %v3044 = vadd.f32 %v2794, %v3043
    %v3045 = vpop.f32.mrb[0].mxu0
    %v3046 = vadd.f32 %v2790, %v3045
    %v3047 = vpop.f32.mrb[0].mxu0
    %v3048 = vadd.f32 %v2794, %v3047
    %3049 = vmatprep.mubr.bf16.mxu0 0
    %3050 = vmatmul.mubr.bf16.gmra.mrb[0].mxu0 %v1420
    %v3051 = vpop.f32.mrb[0].mxu0
    %v3052 = vadd.f32 %v2790, %v3051
    %v3053 = vpop.f32.mrb[0].mxu0
    %v3054 = vadd.f32 %v2794, %v3053
    %v3055 = vpop.f32.mrb[0].mxu0
    %v3056 = vadd.f32 %v2790, %v3055
    %v3057 = vpop.f32.mrb[0].mxu0
    %v3058 = vadd.f32 %v2794, %v3057
    %3059 = vmatprep.mubr.bf16.mxu0 0
    %3060 = vmatmul.mubr.bf16.gmra.mrb[0].mxu0 %v1421
    %v3061 = vpop.f32.mrb[0].mxu0
    %v3062 = vadd.f32 %v2790, %v3061
    %v3063 = vpop.f32.mrb[0].mxu0
    %v3064 = vadd.f32 %v2794, %v3063
    %v3065 = vpop.f32.mrb[0].mxu0
    %v3066 = vadd.f32 %v2790, %v3065
    %v3067 = vpop.f32.mrb[0].mxu0
    %v3068 = vadd.f32 %v2794, %v3067
    %3069 = vdwg.mxu0
    %v3070 = vmax.f32 %v2912, 0.0
    %v3071 = vmax.f32 %v2914, 0.0
    %v3072 = vmax.f32 %v2916, 0.0
    %v3073 = vmax.f32 %v2918, 0.0
    %v3074 = vmax.f32 %v2922, 0.0
    %v3075 = vmax.f32 %v2924, 0.0
    %v3076 = vmax.f32 %v2926, 0.0
    %v3077 = vmax.f32 %v2928, 0.0
    %v3078 = vmax.f32 %v2932, 0.0
    %v3079 = vmax.f32 %v2934, 0.0
    %v3080 = vmax.f32 %v2936, 0.0
    %v3081 = vmax.f32 %v2938, 0.0
    %v3082 = vmax.f32 %v2942, 0.0
    %v3083 = vmax.f32 %v2944, 0.0
    %v3084 = vmax.f32 %v2946, 0.0
    %v3085 = vmax.f32 %v2948, 0.0
    %v3086 = vmax.f32 %v2952, 0.0
    %v3087 = vmax.f32 %v2954, 0.0
    %v3088 = vmax.f32 %v2956, 0.0
    %v3089 = vmax.f32 %v2958, 0.0
    %v3090 = vmax.f32 %v2962, 0.0
    %v3091 = vmax.f32 %v2964, 0.0
    %v3092 = vmax.f32 %v2966, 0.0
    %v3093 = vmax.f32 %v2968, 0.0
    %v3094 = vmax.f32 %v2972, 0.0
    %v3095 = vmax.f32 %v2974, 0.0
    %v3096 = vmax.f32 %v2976, 0.0
    %v3097 = vmax.f32 %v2978, 0.0
    %v3098 = vmax.f32 %v2982, 0.0
    %v3099 = vmax.f32 %v2984, 0.0
    %v3100 = vmax.f32 %v2986, 0.0
    %v3101 = vmax.f32 %v2988, 0.0
    %v3102 = vmax.f32 %v2992, 0.0
    %v3103 = vmax.f32 %v2994, 0.0
    %v3104 = vmax.f32 %v2996, 0.0
    %v3105 = vmax.f32 %v2998, 0.0
    %v3106 = vmax.f32 %v3002, 0.0
    %v3107 = vmax.f32 %v3004, 0.0
    %v3108 = vmax.f32 %v3006, 0.0
    %v3109 = vmax.f32 %v3008, 0.0
    %v3110 = vmax.f32 %v3012, 0.0
    %v3111 = vmax.f32 %v3014, 0.0
    %v3112 = vmax.f32 %v3016, 0.0
    %v3113 = vmax.f32 %v3018, 0.0
    %v3114 = vmax.f32 %v3022, 0.0
    %v3115 = vmax.f32 %v3024, 0.0
    %v3116 = vmax.f32 %v3026, 0.0
    %v3117 = vmax.f32 %v3028, 0.0
    %v3118 = vmax.f32 %v3032, 0.0
    %v3119 = vmax.f32 %v3034, 0.0
    %v3120 = vmax.f32 %v3036, 0.0
    %v3121 = vmax.f32 %v3038, 0.0
    %v3122 = vmax.f32 %v3042, 0.0
    %v3123 = vmax.f32 %v3044, 0.0
    %v3124 = vmax.f32 %v3046, 0.0
    %v3125 = vmax.f32 %v3048, 0.0
    %v3126 = vmax.f32 %v3052, 0.0
    %v3127 = vmax.f32 %v3054, 0.0
    %v3128 = vmax.f32 %v3056, 0.0
    %v3129 = vmax.f32 %v3058, 0.0
    %v3130 = vmax.f32 %v3062, 0.0
    %v3131 = vmax.f32 %v3064, 0.0
    %v3132 = vmax.f32 %v3066, 0.0
    %v3133 = vmax.f32 %v3068, 0.0
    %v3134 = vmax.f32 %v3070, %v3072
    %v3135 = vmax.f32 %v3134, %v3074
    %v3136 = vmax.f32 %v3135, %v3076
    %v3137 = vmax.f32 %v3136, %v3078
    %v3138 = vmax.f32 %v3137, %v3080
    %v3139 = vmax.f32 %v3138, %v3082
    %v3140 = vmax.f32 %v3139, %v3084
    %v3141 = vmax.f32 %v3140, %v3086
    %v3142 = vmax.f32 %v3141, %v3088
    %v3143 = vmax.f32 %v3142, %v3090
    %v3144 = vmax.f32 %v3143, %v3092
    %v3145 = vmax.f32 %v3144, %v3094
    %v3146 = vmax.f32 %v3145, %v3096
    %v3147 = vmax.f32 %v3146, %v3098
    %v3148 = vmax.f32 %v3147, %v3100
    %v3149 = vrot.slane %v3148, 4
    %v3150 = vmax.f32 %v3148, %v3149
    %v3151 = vrot.slane %v3150, 2
    %v3152 = vmax.f32 %v3150, %v3151
    %v3153 = vrot.slane %v3152, 1
    %v3154 = vmax.f32 %v3152, %v3153
    %v3155 = vmax.f32 %v3071, %v3073
    %v3156 = vmax.f32 %v3155, %v3075
    %v3157 = vmax.f32 %v3156, %v3077
    %v3158 = vmax.f32 %v3157, %v3079
    %v3159 = vmax.f32 %v3158, %v3081
    %v3160 = vmax.f32 %v3159, %v3083
    %v3161 = vmax.f32 %v3160, %v3085
    %v3162 = vmax.f32 %v3161, %v3087
    %v3163 = vmax.f32 %v3162, %v3089
    %v3164 = vmax.f32 %v3163, %v3091
    %v3165 = vmax.f32 %v3164, %v3093
    %v3166 = vmax.f32 %v3165, %v3095
    %v3167 = vmax.f32 %v3166, %v3097
    %v3168 = vmax.f32 %v3167, %v3099
    %v3169 = vmax.f32 %v3168, %v3101
    %v3170 = vrot.slane %v3169, 4
    %v3171 = vmax.f32 %v3169, %v3170
    %v3172 = vrot.slane %v3171, 2
    %v3173 = vmax.f32 %v3171, %v3172
    %v3174 = vrot.slane %v3173, 1
    %v3175 = vmax.f32 %v3173, %v3174
    %v3176 = vmax.f32 %v3102, %v3104
    %v3177 = vmax.f32 %v3176, %v3106
    %v3178 = vmax.f32 %v3177, %v3108
    %v3179 = vmax.f32 %v3178, %v3110
    %v3180 = vmax.f32 %v3179, %v3112
    %v3181 = vmax.f32 %v3180, %v3114
    %v3182 = vmax.f32 %v3181, %v3116
    %v3183 = vmax.f32 %v3182, %v3118
    %v3184 = vmax.f32 %v3183, %v3120
    %v3185 = vmax.f32 %v3184, %v3122
    %v3186 = vmax.f32 %v3185, %v3124
    %v3187 = vmax.f32 %v3186, %v3126
    %v3188 = vmax.f32 %v3187, %v3128
    %v3189 = vmax.f32 %v3188, %v3130
    %v3190 = vmax.f32 %v3189, %v3132
    %v3191 = vrot.slane %v3190, 4
    %v3192 = vmax.f32 %v3190, %v3191
    %v3193 = vrot.slane %v3192, 2
    %v3194 = vmax.f32 %v3192, %v3193
    %v3195 = vrot.slane %v3194, 1
    %v3196 = vmax.f32 %v3194, %v3195
    %v3197 = vmax.f32 %v3103, %v3105
    %v3198 = vmax.f32 %v3197, %v3107
    %v3199 = vmax.f32 %v3198, %v3109
    %v3200 = vmax.f32 %v3199, %v3111
    %v3201 = vmax.f32 %v3200, %v3113
    %v3202 = vmax.f32 %v3201, %v3115
    %v3203 = vmax.f32 %v3202, %v3117
    %v3204 = vmax.f32 %v3203, %v3119
    %v3205 = vmax.f32 %v3204, %v3121
    %v3206 = vmax.f32 %v3205, %v3123
    %v3207 = vmax.f32 %v3206, %v3125
    %v3208 = vmax.f32 %v3207, %v3127
    %v3209 = vmax.f32 %v3208, %v3129
    %v3210 = vmax.f32 %v3209, %v3131
    %v3211 = vmax.f32 %v3210, %v3133
    %v3212 = vrot.slane %v3211, 4
    %v3213 = vmax.f32 %v3211, %v3212
    %v3214 = vrot.slane %v3213, 2
    %v3215 = vmax.f32 %v3213, %v3214
    %v3216 = vrot.slane %v3215, 1
    %v3217 = vmax.f32 %v3215, %v3216
    %vm3222 = vcmask 1041409
    %v3223 = vsel %vm3222, %v1849, %v1807
    %v3224 = vsel %vm3222, %v1870, %v1828
    %v3231 = vsel %vm3222, %v2298, %v2256
    %v3232 = vsel %vm3222, %v2319, %v2277
    %v3239 = vsel %vm3222, %v2747, %v2705
    %v3240 = vsel %vm3222, %v2768, %v2726
    %v3247 = vsel %vm3222, %v3196, %v3154
    %v3248 = vsel %vm3222, %v3217, %v3175
    %v3251 = vld [vmem:[#allocation13] sm:$0xff]
    %v3252 = vld [vmem:[#allocation13 + $0x8] sm:$0xff]
    %v3253 = vld [vmem:[#allocation13 + $0x10] sm:$0xff]
    %v3254 = vld [vmem:[#allocation13 + $0x18] sm:$0xff]
    %v3255 = vld [vmem:[#allocation13 + $0x20] sm:$0xff]
    %v3256 = vld [vmem:[#allocation13 + $0x28] sm:$0xff]
    %v3257 = vld [vmem:[#allocation13 + $0x30] sm:$0xff]
    %v3258 = vld [vmem:[#allocation13 + $0x38] sm:$0xff]
    %v3259 = vld [vmem:[#allocation13 + $0x40] sm:$0xff]
    %v3260 = vld [vmem:[#allocation13 + $0x48] sm:$0xff]
    %v3261 = vld [vmem:[#allocation13 + $0x50] sm:$0xff]
    %v3262 = vld [vmem:[#allocation13 + $0x58] sm:$0xff]
    %v3263 = vld [vmem:[#allocation13 + $0x60] sm:$0xff]
    %v3264 = vld [vmem:[#allocation13 + $0x68] sm:$0xff]
    %v3265 = vld [vmem:[#allocation13 + $0x70] sm:$0xff]
    %v3266 = vld [vmem:[#allocation13 + $0x78] sm:$0xff]
    %v3267 = vld [vmem:[#allocation13 + $0x80] sm:$0xff]
    %v3268 = vld [vmem:[#allocation13 + $0x88] sm:$0xff]
    %v3269 = vld [vmem:[#allocation13 + $0x90] sm:$0xff]
    %v3270 = vld [vmem:[#allocation13 + $0x98] sm:$0xff]
    %v3271 = vld [vmem:[#allocation13 + $0xa0] sm:$0xff]
    %v3272 = vld [vmem:[#allocation13 + $0xa8] sm:$0xff]
    %v3273 = vld [vmem:[#allocation13 + $0xb0] sm:$0xff]
    %v3274 = vld [vmem:[#allocation13 + $0xb8] sm:$0xff]
    %v3275 = vld [vmem:[#allocation13 + $0xc0] sm:$0xff]
    %v3276 = vld [vmem:[#allocation13 + $0xc8] sm:$0xff]
    %v3277 = vld [vmem:[#allocation13 + $0xd0] sm:$0xff]
    %v3278 = vld [vmem:[#allocation13 + $0xd8] sm:$0xff]
    %v3279 = vld [vmem:[#allocation13 + $0xe0] sm:$0xff]
    %v3280 = vld [vmem:[#allocation13 + $0xe8] sm:$0xff]
    %v3281 = vld [vmem:[#allocation13 + $0xf0] sm:$0xff]
    %v3282 = vld [vmem:[#allocation13 + $0xf8] sm:$0xff]
    %v3283 = vld [vmem:[#allocation13 + $0x100] sm:$0xff]
    %v3284 = vld [vmem:[#allocation13 + $0x108] sm:$0xff]
    %v3285 = vld [vmem:[#allocation13 + $0x110] sm:$0xff]
    %v3286 = vld [vmem:[#allocation13 + $0x118] sm:$0xff]
    %v3287 = vld [vmem:[#allocation13 + $0x120] sm:$0xff]
    %v3288 = vld [vmem:[#allocation13 + $0x128] sm:$0xff]
    %v3289 = vld [vmem:[#allocation13 + $0x130] sm:$0xff]
    %v3290 = vld [vmem:[#allocation13 + $0x138] sm:$0xff]
    %v3291 = vld [vmem:[#allocation13 + $0x140] sm:$0xff]
    %v3292 = vld [vmem:[#allocation13 + $0x148] sm:$0xff]
    %v3293 = vld [vmem:[#allocation13 + $0x150] sm:$0xff]
    %v3294 = vld [vmem:[#allocation13 + $0x158] sm:$0xff]
    %v3295 = vld [vmem:[#allocation13 + $0x160] sm:$0xff]
    %v3296 = vld [vmem:[#allocation13 + $0x168] sm:$0xff]
    %v3297 = vld [vmem:[#allocation13 + $0x170] sm:$0xff]
    %v3298 = vld [vmem:[#allocation13 + $0x178] sm:$0xff]
    %v3299 = vld [vmem:[#allocation13 + $0x180] sm:$0xff]
    %v3300 = vld [vmem:[#allocation13 + $0x188] sm:$0xff]
    %v3301 = vld [vmem:[#allocation13 + $0x190] sm:$0xff]
    %v3302 = vld [vmem:[#allocation13 + $0x198] sm:$0xff]
    %v3303 = vld [vmem:[#allocation13 + $0x1a0] sm:$0xff]
    %v3304 = vld [vmem:[#allocation13 + $0x1a8] sm:$0xff]
    %v3305 = vld [vmem:[#allocation13 + $0x1b0] sm:$0xff]
    %v3306 = vld [vmem:[#allocation13 + $0x1b8] sm:$0xff]
    %v3307 = vld [vmem:[#allocation13 + $0x1c0] sm:$0xff]
    %v3308 = vld [vmem:[#allocation13 + $0x1c8] sm:$0xff]
    %v3309 = vld [vmem:[#allocation13 + $0x1d0] sm:$0xff]
    %v3310 = vld [vmem:[#allocation13 + $0x1d8] sm:$0xff]
    %v3311 = vld [vmem:[#allocation13 + $0x1e0] sm:$0xff]
    %v3312 = vld [vmem:[#allocation13 + $0x1e8] sm:$0xff]
    %v3313 = vld [vmem:[#allocation13 + $0x1f0] sm:$0xff]
    %v3314 = vld [vmem:[#allocation13 + $0x1f8] sm:$0xff]
    %v3315 = vld [vmem:[#allocation13 + $0x200] sm:$0xff]
    %v3316 = vld [vmem:[#allocation13 + $0x208] sm:$0xff]
    %v3317 = vld [vmem:[#allocation13 + $0x210] sm:$0xff]
    %v3318 = vld [vmem:[#allocation13 + $0x218] sm:$0xff]
    %v3319 = vld [vmem:[#allocation13 + $0x220] sm:$0xff]
    %v3320 = vld [vmem:[#allocation13 + $0x228] sm:$0xff]
    %v3321 = vld [vmem:[#allocation13 + $0x230] sm:$0xff]
    %v3322 = vld [vmem:[#allocation13 + $0x238] sm:$0xff]
    %v3323 = vld [vmem:[#allocation13 + $0x240] sm:$0xff]
    %v3324 = vld [vmem:[#allocation13 + $0x248] sm:$0xff]
    %v3325 = vld [vmem:[#allocation13 + $0x250] sm:$0xff]
    %v3326 = vld [vmem:[#allocation13 + $0x258] sm:$0xff]
    %v3327 = vld [vmem:[#allocation13 + $0x260] sm:$0xff]
    %v3328 = vld [vmem:[#allocation13 + $0x268] sm:$0xff]
    %v3329 = vld [vmem:[#allocation13 + $0x270] sm:$0xff]
    %v3330 = vld [vmem:[#allocation13 + $0x278] sm:$0xff]
    %v3331 = vld [vmem:[#allocation13 + $0x280] sm:$0xff]
    %v3332 = vld [vmem:[#allocation13 + $0x288] sm:$0xff]
    %v3333 = vld [vmem:[#allocation13 + $0x290] sm:$0xff]
    %v3334 = vld [vmem:[#allocation13 + $0x298] sm:$0xff]
    %v3335 = vld [vmem:[#allocation13 + $0x2a0] sm:$0xff]
    %v3336 = vld [vmem:[#allocation13 + $0x2a8] sm:$0xff]
    %v3337 = vld [vmem:[#allocation13 + $0x2b0] sm:$0xff]
    %v3338 = vld [vmem:[#allocation13 + $0x2b8] sm:$0xff]
    %v3339 = vld [vmem:[#allocation13 + $0x2c0] sm:$0xff]
    %v3340 = vld [vmem:[#allocation13 + $0x2c8] sm:$0xff]
    %v3341 = vld [vmem:[#allocation13 + $0x2d0] sm:$0xff]
    %v3342 = vld [vmem:[#allocation13 + $0x2d8] sm:$0xff]
    %v3343 = vld [vmem:[#allocation13 + $0x2e0] sm:$0xff]
    %v3344 = vld [vmem:[#allocation13 + $0x2e8] sm:$0xff]
    %v3345 = vld [vmem:[#allocation13 + $0x2f0] sm:$0xff]
    %v3346 = vld [vmem:[#allocation13 + $0x2f8] sm:$0xff]
    %v3347 = vld [vmem:[#allocation13 + $0x300] sm:$0xff]
    %v3348 = vld [vmem:[#allocation13 + $0x308] sm:$0xff]
    %v3349 = vld [vmem:[#allocation13 + $0x310] sm:$0xff]
    %v3350 = vld [vmem:[#allocation13 + $0x318] sm:$0xff]
    %v3351 = vld [vmem:[#allocation13 + $0x320] sm:$0xff]
    %v3352 = vld [vmem:[#allocation13 + $0x328] sm:$0xff]
    %v3353 = vld [vmem:[#allocation13 + $0x330] sm:$0xff]
    %v3354 = vld [vmem:[#allocation13 + $0x338] sm:$0xff]
    %v3355 = vld [vmem:[#allocation13 + $0x340] sm:$0xff]
    %v3356 = vld [vmem:[#allocation13 + $0x348] sm:$0xff]
    %v3357 = vld [vmem:[#allocation13 + $0x350] sm:$0xff]
    %v3358 = vld [vmem:[#allocation13 + $0x358] sm:$0xff]
    %v3359 = vld [vmem:[#allocation13 + $0x360] sm:$0xff]
    %v3360 = vld [vmem:[#allocation13 + $0x368] sm:$0xff]
    %v3361 = vld [vmem:[#allocation13 + $0x370] sm:$0xff]
    %v3362 = vld [vmem:[#allocation13 + $0x378] sm:$0xff]
    %v3363 = vld [vmem:[#allocation13 + $0x380] sm:$0xff]
    %v3364 = vld [vmem:[#allocation13 + $0x388] sm:$0xff]
    %v3365 = vld [vmem:[#allocation13 + $0x390] sm:$0xff]
    %v3366 = vld [vmem:[#allocation13 + $0x398] sm:$0xff]
    %v3367 = vld [vmem:[#allocation13 + $0x3a0] sm:$0xff]
    %v3368 = vld [vmem:[#allocation13 + $0x3a8] sm:$0xff]
    %v3369 = vld [vmem:[#allocation13 + $0x3b0] sm:$0xff]
    %v3370 = vld [vmem:[#allocation13 + $0x3b8] sm:$0xff]
    %v3371 = vld [vmem:[#allocation13 + $0x3c0] sm:$0xff]
    %v3372 = vld [vmem:[#allocation13 + $0x3c8] sm:$0xff]
    %v3373 = vld [vmem:[#allocation13 + $0x3d0] sm:$0xff]
    %v3374 = vld [vmem:[#allocation13 + $0x3d8] sm:$0xff]
    %v3375 = vld [vmem:[#allocation13 + $0x3e0] sm:$0xff]
    %v3376 = vld [vmem:[#allocation13 + $0x3e8] sm:$0xff]
    %v3377 = vld [vmem:[#allocation13 + $0x3f0] sm:$0xff]
    %v3378 = vld [vmem:[#allocation13 + $0x3f8] sm:$0xff]
    %v3379 = vld [vmem:[#allocation13 + $0x400] sm:$0xff]
    %v3380 = vld [vmem:[#allocation13 + $0x408] sm:$0xff]
    %v3381 = vld [vmem:[#allocation13 + $0x410] sm:$0xff]
    %v3382 = vld [vmem:[#allocation13 + $0x418] sm:$0xff]
    %v3383 = vld [vmem:[#allocation13 + $0x420] sm:$0xff]
    %v3384 = vld [vmem:[#allocation13 + $0x428] sm:$0xff]
    %v3385 = vld [vmem:[#allocation13 + $0x430] sm:$0xff]
    %v3386 = vld [vmem:[#allocation13 + $0x438] sm:$0xff]
    %v3387 = vld [vmem:[#allocation13 + $0x440] sm:$0xff]
    %v3388 = vld [vmem:[#allocation13 + $0x448] sm:$0xff]
    %v3389 = vld [vmem:[#allocation13 + $0x450] sm:$0xff]
    %v3390 = vld [vmem:[#allocation13 + $0x458] sm:$0xff]
    %v3391 = vld [vmem:[#allocation13 + $0x460] sm:$0xff]
    %v3392 = vld [vmem:[#allocation13 + $0x468] sm:$0xff]
    %v3393 = vld [vmem:[#allocation13 + $0x470] sm:$0xff]
    %v3394 = vld [vmem:[#allocation13 + $0x478] sm:$0xff]
    %v3395 = vld [vmem:[#allocation13 + $0x480] sm:$0xff]
    %v3396 = vld [vmem:[#allocation13 + $0x488] sm:$0xff]
    %v3397 = vld [vmem:[#allocation13 + $0x490] sm:$0xff]
    %v3398 = vld [vmem:[#allocation13 + $0x498] sm:$0xff]
    %v3399 = vld [vmem:[#allocation13 + $0x4a0] sm:$0xff]
    %v3400 = vld [vmem:[#allocation13 + $0x4a8] sm:$0xff]
    %v3401 = vld [vmem:[#allocation13 + $0x4b0] sm:$0xff]
    %v3402 = vld [vmem:[#allocation13 + $0x4b8] sm:$0xff]
    %v3403 = vld [vmem:[#allocation13 + $0x4c0] sm:$0xff]
    %v3404 = vld [vmem:[#allocation13 + $0x4c8] sm:$0xff]
    %v3405 = vld [vmem:[#allocation13 + $0x4d0] sm:$0xff]
    %v3406 = vld [vmem:[#allocation13 + $0x4d8] sm:$0xff]
    %v3407 = vld [vmem:[#allocation13 + $0x4e0] sm:$0xff]
    %v3408 = vld [vmem:[#allocation13 + $0x4e8] sm:$0xff]
    %v3409 = vld [vmem:[#allocation13 + $0x4f0] sm:$0xff]
    %v3410 = vld [vmem:[#allocation13 + $0x4f8] sm:$0xff]
    %v3411 = vld [vmem:[#allocation13 + $0x500] sm:$0xff]
    %v3412 = vld [vmem:[#allocation13 + $0x508] sm:$0xff]
    %v3413 = vld [vmem:[#allocation13 + $0x510] sm:$0xff]
    %v3414 = vld [vmem:[#allocation13 + $0x518] sm:$0xff]
    %v3415 = vld [vmem:[#allocation13 + $0x520] sm:$0xff]
    %v3416 = vld [vmem:[#allocation13 + $0x528] sm:$0xff]
    %v3417 = vld [vmem:[#allocation13 + $0x530] sm:$0xff]
    %v3418 = vld [vmem:[#allocation13 + $0x538] sm:$0xff]
    %v3419 = vld [vmem:[#allocation13 + $0x540] sm:$0xff]
    %v3420 = vld [vmem:[#allocation13 + $0x548] sm:$0xff]
    %v3421 = vld [vmem:[#allocation13 + $0x550] sm:$0xff]
    %v3422 = vld [vmem:[#allocation13 + $0x558] sm:$0xff]
    %v3423 = vld [vmem:[#allocation13 + $0x560] sm:$0xff]
    %v3424 = vld [vmem:[#allocation13 + $0x568] sm:$0xff]
    %v3425 = vld [vmem:[#allocation13 + $0x570] sm:$0xff]
    %v3426 = vld [vmem:[#allocation13 + $0x578] sm:$0xff]
    %v3427 = vld [vmem:[#allocation13 + $0x580] sm:$0xff]
    %v3428 = vld [vmem:[#allocation13 + $0x588] sm:$0xff]
    %v3429 = vld [vmem:[#allocation13 + $0x590] sm:$0xff]
    %v3430 = vld [vmem:[#allocation13 + $0x598] sm:$0xff]
    %v3431 = vld [vmem:[#allocation13 + $0x5a0] sm:$0xff]
    %v3432 = vld [vmem:[#allocation13 + $0x5a8] sm:$0xff]
    %v3433 = vld [vmem:[#allocation13 + $0x5b0] sm:$0xff]
    %v3434 = vld [vmem:[#allocation13 + $0x5b8] sm:$0xff]
    %v3435 = vld [vmem:[#allocation13 + $0x5c0] sm:$0xff]
    %v3436 = vld [vmem:[#allocation13 + $0x5c8] sm:$0xff]
    %v3437 = vld [vmem:[#allocation13 + $0x5d0] sm:$0xff]
    %v3438 = vld [vmem:[#allocation13 + $0x5d8] sm:$0xff]
    %v3439 = vld [vmem:[#allocation13 + $0x5e0] sm:$0xff]
    %v3440 = vld [vmem:[#allocation13 + $0x5e8] sm:$0xff]
    %v3441 = vld [vmem:[#allocation13 + $0x5f0] sm:$0xff]
    %v3442 = vld [vmem:[#allocation13 + $0x5f8] sm:$0xff]
    %v3443 = vld [vmem:[#allocation13 + $0x600] sm:$0xff]
    %v3444 = vld [vmem:[#allocation13 + $0x608] sm:$0xff]
    %v3445 = vld [vmem:[#allocation13 + $0x610] sm:$0xff]
    %v3446 = vld [vmem:[#allocation13 + $0x618] sm:$0xff]
    %v3447 = vld [vmem:[#allocation13 + $0x620] sm:$0xff]
    %v3448 = vld [vmem:[#allocation13 + $0x628] sm:$0xff]
    %v3449 = vld [vmem:[#allocation13 + $0x630] sm:$0xff]
    %v3450 = vld [vmem:[#allocation13 + $0x638] sm:$0xff]
    %v3451 = vld [vmem:[#allocation13 + $0x640] sm:$0xff]
    %v3452 = vld [vmem:[#allocation13 + $0x648] sm:$0xff]
    %v3453 = vld [vmem:[#allocation13 + $0x650] sm:$0xff]
    %v3454 = vld [vmem:[#allocation13 + $0x658] sm:$0xff]
    %v3455 = vld [vmem:[#allocation13 + $0x660] sm:$0xff]
    %v3456 = vld [vmem:[#allocation13 + $0x668] sm:$0xff]
    %v3457 = vld [vmem:[#allocation13 + $0x670] sm:$0xff]
    %v3458 = vld [vmem:[#allocation13 + $0x678] sm:$0xff]
    %v3459 = vld [vmem:[#allocation13 + $0x680] sm:$0xff]
    %v3460 = vld [vmem:[#allocation13 + $0x688] sm:$0xff]
    %v3461 = vld [vmem:[#allocation13 + $0x690] sm:$0xff]
    %v3462 = vld [vmem:[#allocation13 + $0x698] sm:$0xff]
    %v3463 = vld [vmem:[#allocation13 + $0x6a0] sm:$0xff]
    %v3464 = vld [vmem:[#allocation13 + $0x6a8] sm:$0xff]
    %v3465 = vld [vmem:[#allocation13 + $0x6b0] sm:$0xff]
    %v3466 = vld [vmem:[#allocation13 + $0x6b8] sm:$0xff]
    %v3467 = vld [vmem:[#allocation13 + $0x6c0] sm:$0xff]
    %v3468 = vld [vmem:[#allocation13 + $0x6c8] sm:$0xff]
    %v3469 = vld [vmem:[#allocation13 + $0x6d0] sm:$0xff]
    %v3470 = vld [vmem:[#allocation13 + $0x6d8] sm:$0xff]
    %v3471 = vld [vmem:[#allocation13 + $0x6e0] sm:$0xff]
    %v3472 = vld [vmem:[#allocation13 + $0x6e8] sm:$0xff]
    %v3473 = vld [vmem:[#allocation13 + $0x6f0] sm:$0xff]
    %v3474 = vld [vmem:[#allocation13 + $0x6f8] sm:$0xff]
    %v3475 = vld [vmem:[#allocation13 + $0x700] sm:$0xff]
    %v3476 = vld [vmem:[#allocation13 + $0x708] sm:$0xff]
    %v3477 = vld [vmem:[#allocation13 + $0x710] sm:$0xff]
    %v3478 = vld [vmem:[#allocation13 + $0x718] sm:$0xff]
    %v3479 = vld [vmem:[#allocation13 + $0x720] sm:$0xff]
    %v3480 = vld [vmem:[#allocation13 + $0x728] sm:$0xff]
    %v3481 = vld [vmem:[#allocation13 + $0x730] sm:$0xff]
    %v3482 = vld [vmem:[#allocation13 + $0x738] sm:$0xff]
    %v3483 = vld [vmem:[#allocation13 + $0x740] sm:$0xff]
    %v3484 = vld [vmem:[#allocation13 + $0x748] sm:$0xff]
    %v3485 = vld [vmem:[#allocation13 + $0x750] sm:$0xff]
    %v3486 = vld [vmem:[#allocation13 + $0x758] sm:$0xff]
    %v3487 = vld [vmem:[#allocation13 + $0x760] sm:$0xff]
    %v3488 = vld [vmem:[#allocation13 + $0x768] sm:$0xff]
    %v3489 = vld [vmem:[#allocation13 + $0x770] sm:$0xff]
    %v3490 = vld [vmem:[#allocation13 + $0x778] sm:$0xff]
    %v3491 = vld [vmem:[#allocation13 + $0x780] sm:$0xff]
    %v3492 = vld [vmem:[#allocation13 + $0x788] sm:$0xff]
    %v3493 = vld [vmem:[#allocation13 + $0x790] sm:$0xff]
    %v3494 = vld [vmem:[#allocation13 + $0x798] sm:$0xff]
    %v3495 = vld [vmem:[#allocation13 + $0x7a0] sm:$0xff]
    %v3496 = vld [vmem:[#allocation13 + $0x7a8] sm:$0xff]
    %v3497 = vld [vmem:[#allocation13 + $0x7b0] sm:$0xff]
    %v3498 = vld [vmem:[#allocation13 + $0x7b8] sm:$0xff]
    %v3499 = vld [vmem:[#allocation13 + $0x7c0] sm:$0xff]
    %v3500 = vld [vmem:[#allocation13 + $0x7c8] sm:$0xff]
    %v3501 = vld [vmem:[#allocation13 + $0x7d0] sm:$0xff]
    %v3502 = vld [vmem:[#allocation13 + $0x7d8] sm:$0xff]
    %v3503 = vld [vmem:[#allocation13 + $0x7e0] sm:$0xff]
    %v3504 = vld [vmem:[#allocation13 + $0x7e8] sm:$0xff]
    %v3505 = vld [vmem:[#allocation13 + $0x7f0] sm:$0xff]
    %v3506 = vld [vmem:[#allocation13 + $0x7f8] sm:$0xff]
    %v3507 = vpack.c.bf16 %v3223, %v3223
    %v3508 = vpack.c.bf16 %v3224, %v3224
    %v3509 = vpack.c.bf16 %v3231, %v3231
    %v3510 = vpack.c.bf16 %v3232, %v3232
    %v3511 = vpack.c.bf16 %v3239, %v3239
    %v3512 = vpack.c.bf16 %v3240, %v3240
    %v3513 = vpack.c.bf16 %v3247, %v3247
    %v3514 = vpack.c.bf16 %v3248, %v3248
    %v3771 = vunpack.c.l.b16 %v3251
    %v3772 = vunpack.c.h.b16 %v3251
    %v3773 = vunpack.c.l.b16 %v3252
    %v3774 = vunpack.c.h.b16 %v3252
    %v3775 = vunpack.c.l.b16 %v3253
    %v3776 = vunpack.c.h.b16 %v3253
    %v3777 = vunpack.c.l.b16 %v3254
    %v3778 = vunpack.c.h.b16 %v3254
    %v3779 = vunpack.c.l.b16 %v3255
    %v3780 = vunpack.c.h.b16 %v3255
    %v3781 = vunpack.c.l.b16 %v3256
    %v3782 = vunpack.c.h.b16 %v3256
    %v3783 = vunpack.c.l.b16 %v3257
    %v3784 = vunpack.c.h.b16 %v3257
    %v3785 = vunpack.c.l.b16 %v3258
    %v3786 = vunpack.c.h.b16 %v3258
    %v3787 = vunpack.c.l.b16 %v3259
    %v3788 = vunpack.c.h.b16 %v3259
    %v3789 = vunpack.c.l.b16 %v3260
    %v3790 = vunpack.c.h.b16 %v3260
    %v3791 = vunpack.c.l.b16 %v3261
    %v3792 = vunpack.c.h.b16 %v3261
    %v3793 = vunpack.c.l.b16 %v3262
    %v3794 = vunpack.c.h.b16 %v3262
    %v3795 = vunpack.c.l.b16 %v3263
    %v3796 = vunpack.c.h.b16 %v3263
    %v3797 = vunpack.c.l.b16 %v3264
    %v3798 = vunpack.c.h.b16 %v3264
    %v3799 = vunpack.c.l.b16 %v3265
    %v3800 = vunpack.c.h.b16 %v3265
    %v3801 = vunpack.c.l.b16 %v3266
    %v3802 = vunpack.c.h.b16 %v3266
    %v3803 = vunpack.c.l.b16 %v3267
    %v3804 = vunpack.c.h.b16 %v3267
    %v3805 = vunpack.c.l.b16 %v3268
    %v3806 = vunpack.c.h.b16 %v3268
    %v3807 = vunpack.c.l.b16 %v3269
    %v3808 = vunpack.c.h.b16 %v3269
    %v3809 = vunpack.c.l.b16 %v3270
    %v3810 = vunpack.c.h.b16 %v3270
    %v3811 = vunpack.c.l.b16 %v3271
    %v3812 = vunpack.c.h.b16 %v3271
    %v3813 = vunpack.c.l.b16 %v3272
    %v3814 = vunpack.c.h.b16 %v3272
    %v3815 = vunpack.c.l.b16 %v3273
    %v3816 = vunpack.c.h.b16 %v3273
    %v3817 = vunpack.c.l.b16 %v3274
    %v3818 = vunpack.c.h.b16 %v3274
    %v3819 = vunpack.c.l.b16 %v3275
    %v3820 = vunpack.c.h.b16 %v3275
    %v3821 = vunpack.c.l.b16 %v3276
    %v3822 = vunpack.c.h.b16 %v3276
    %v3823 = vunpack.c.l.b16 %v3277
    %v3824 = vunpack.c.h.b16 %v3277
    %v3825 = vunpack.c.l.b16 %v3278
    %v3826 = vunpack.c.h.b16 %v3278
    %v3827 = vunpack.c.l.b16 %v3279
    %v3828 = vunpack.c.h.b16 %v3279
    %v3829 = vunpack.c.l.b16 %v3280
    %v3830 = vunpack.c.h.b16 %v3280
    %v3831 = vunpack.c.l.b16 %v3281
    %v3832 = vunpack.c.h.b16 %v3281
    %v3833 = vunpack.c.l.b16 %v3282
    %v3834 = vunpack.c.h.b16 %v3282
    %v3835 = vunpack.c.l.b16 %v3283
    %v3836 = vunpack.c.h.b16 %v3283
    %v3837 = vunpack.c.l.b16 %v3284
    %v3838 = vunpack.c.h.b16 %v3284
    %v3839 = vunpack.c.l.b16 %v3285
    %v3840 = vunpack.c.h.b16 %v3285
    %v3841 = vunpack.c.l.b16 %v3286
    %v3842 = vunpack.c.h.b16 %v3286
    %v3843 = vunpack.c.l.b16 %v3287
    %v3844 = vunpack.c.h.b16 %v3287
    %v3845 = vunpack.c.l.b16 %v3288
    %v3846 = vunpack.c.h.b16 %v3288
    %v3847 = vunpack.c.l.b16 %v3289
    %v3848 = vunpack.c.h.b16 %v3289
    %v3849 = vunpack.c.l.b16 %v3290
    %v3850 = vunpack.c.h.b16 %v3290
    %v3851 = vunpack.c.l.b16 %v3291
    %v3852 = vunpack.c.h.b16 %v3291
    %v3853 = vunpack.c.l.b16 %v3292
    %v3854 = vunpack.c.h.b16 %v3292
    %v3855 = vunpack.c.l.b16 %v3293
    %v3856 = vunpack.c.h.b16 %v3293
    %v3857 = vunpack.c.l.b16 %v3294
    %v3858 = vunpack.c.h.b16 %v3294
    %v3859 = vunpack.c.l.b16 %v3295
    %v3860 = vunpack.c.h.b16 %v3295
    %v3861 = vunpack.c.l.b16 %v3296
    %v3862 = vunpack.c.h.b16 %v3296
    %v3863 = vunpack.c.l.b16 %v3297
    %v3864 = vunpack.c.h.b16 %v3297
    %v3865 = vunpack.c.l.b16 %v3298
    %v3866 = vunpack.c.h.b16 %v3298
    %v3867 = vunpack.c.l.b16 %v3299
    %v3868 = vunpack.c.h.b16 %v3299
    %v3869 = vunpack.c.l.b16 %v3300
    %v3870 = vunpack.c.h.b16 %v3300
    %v3871 = vunpack.c.l.b16 %v3301
    %v3872 = vunpack.c.h.b16 %v3301
    %v3873 = vunpack.c.l.b16 %v3302
    %v3874 = vunpack.c.h.b16 %v3302
    %v3875 = vunpack.c.l.b16 %v3303
    %v3876 = vunpack.c.h.b16 %v3303
    %v3877 = vunpack.c.l.b16 %v3304
    %v3878 = vunpack.c.h.b16 %v3304
    %v3879 = vunpack.c.l.b16 %v3305
    %v3880 = vunpack.c.h.b16 %v3305
    %v3881 = vunpack.c.l.b16 %v3306
    %v3882 = vunpack.c.h.b16 %v3306
    %v3883 = vunpack.c.l.b16 %v3307
    %v3884 = vunpack.c.h.b16 %v3307
    %v3885 = vunpack.c.l.b16 %v3308
    %v3886 = vunpack.c.h.b16 %v3308
    %v3887 = vunpack.c.l.b16 %v3309
    %v3888 = vunpack.c.h.b16 %v3309
    %v3889 = vunpack.c.l.b16 %v3310
    %v3890 = vunpack.c.h.b16 %v3310
    %v3891 = vunpack.c.l.b16 %v3311
    %v3892 = vunpack.c.h.b16 %v3311
    %v3893 = vunpack.c.l.b16 %v3312
    %v3894 = vunpack.c.h.b16 %v3312
    %v3895 = vunpack.c.l.b16 %v3313
    %v3896 = vunpack.c.h.b16 %v3313
    %v3897 = vunpack.c.l.b16 %v3314
    %v3898 = vunpack.c.h.b16 %v3314
    %v3899 = vunpack.c.l.b16 %v3315
    %v3900 = vunpack.c.h.b16 %v3315
    %v3901 = vunpack.c.l.b16 %v3316
    %v3902 = vunpack.c.h.b16 %v3316
    %v3903 = vunpack.c.l.b16 %v3317
    %v3904 = vunpack.c.h.b16 %v3317
    %v3905 = vunpack.c.l.b16 %v3318
    %v3906 = vunpack.c.h.b16 %v3318
    %v3907 = vunpack.c.l.b16 %v3319
    %v3908 = vunpack.c.h.b16 %v3319
    %v3909 = vunpack.c.l.b16 %v3320
    %v3910 = vunpack.c.h.b16 %v3320
    %v3911 = vunpack.c.l.b16 %v3321
    %v3912 = vunpack.c.h.b16 %v3321
    %v3913 = vunpack.c.l.b16 %v3322
    %v3914 = vunpack.c.h.b16 %v3322
    %v3915 = vunpack.c.l.b16 %v3323
    %v3916 = vunpack.c.h.b16 %v3323
    %v3917 = vunpack.c.l.b16 %v3324
    %v3918 = vunpack.c.h.b16 %v3324
    %v3919 = vunpack.c.l.b16 %v3325
    %v3920 = vunpack.c.h.b16 %v3325
    %v3921 = vunpack.c.l.b16 %v3326
    %v3922 = vunpack.c.h.b16 %v3326
    %v3923 = vunpack.c.l.b16 %v3327
    %v3924 = vunpack.c.h.b16 %v3327
    %v3925 = vunpack.c.l.b16 %v3328
    %v3926 = vunpack.c.h.b16 %v3328
    %v3927 = vunpack.c.l.b16 %v3329
    %v3928 = vunpack.c.h.b16 %v3329
    %v3929 = vunpack.c.l.b16 %v3330
    %v3930 = vunpack.c.h.b16 %v3330
    %v3931 = vunpack.c.l.b16 %v3331
    %v3932 = vunpack.c.h.b16 %v3331
    %v3933 = vunpack.c.l.b16 %v3332
    %v3934 = vunpack.c.h.b16 %v3332
    %v3935 = vunpack.c.l.b16 %v3333
    %v3936 = vunpack.c.h.b16 %v3333
    %v3937 = vunpack.c.l.b16 %v3334
    %v3938 = vunpack.c.h.b16 %v3334
    %v3939 = vunpack.c.l.b16 %v3335
    %v3940 = vunpack.c.h.b16 %v3335
    %v3941 = vunpack.c.l.b16 %v3336
    %v3942 = vunpack.c.h.b16 %v3336
    %v3943 = vunpack.c.l.b16 %v3337
    %v3944 = vunpack.c.h.b16 %v3337
    %v3945 = vunpack.c.l.b16 %v3338
    %v3946 = vunpack.c.h.b16 %v3338
    %v3947 = vunpack.c.l.b16 %v3339
    %v3948 = vunpack.c.h.b16 %v3339
    %v3949 = vunpack.c.l.b16 %v3340
    %v3950 = vunpack.c.h.b16 %v3340
    %v3951 = vunpack.c.l.b16 %v3341
    %v3952 = vunpack.c.h.b16 %v3341
    %v3953 = vunpack.c.l.b16 %v3342
    %v3954 = vunpack.c.h.b16 %v3342
    %v3955 = vunpack.c.l.b16 %v3343
    %v3956 = vunpack.c.h.b16 %v3343
    %v3957 = vunpack.c.l.b16 %v3344
    %v3958 = vunpack.c.h.b16 %v3344
    %v3959 = vunpack.c.l.b16 %v3345
    %v3960 = vunpack.c.h.b16 %v3345
    %v3961 = vunpack.c.l.b16 %v3346
    %v3962 = vunpack.c.h.b16 %v3346
    %v3963 = vunpack.c.l.b16 %v3347
    %v3964 = vunpack.c.h.b16 %v3347
    %v3965 = vunpack.c.l.b16 %v3348
    %v3966 = vunpack.c.h.b16 %v3348
    %v3967 = vunpack.c.l.b16 %v3349
    %v3968 = vunpack.c.h.b16 %v3349
    %v3969 = vunpack.c.l.b16 %v3350
    %v3970 = vunpack.c.h.b16 %v3350
    %v3971 = vunpack.c.l.b16 %v3351
    %v3972 = vunpack.c.h.b16 %v3351
    %v3973 = vunpack.c.l.b16 %v3352
    %v3974 = vunpack.c.h.b16 %v3352
    %v3975 = vunpack.c.l.b16 %v3353
    %v3976 = vunpack.c.h.b16 %v3353
    %v3977 = vunpack.c.l.b16 %v3354
    %v3978 = vunpack.c.h.b16 %v3354
    %v3979 = vunpack.c.l.b16 %v3355
    %v3980 = vunpack.c.h.b16 %v3355
    %v3981 = vunpack.c.l.b16 %v3356
    %v3982 = vunpack.c.h.b16 %v3356
    %v3983 = vunpack.c.l.b16 %v3357
    %v3984 = vunpack.c.h.b16 %v3357
    %v3985 = vunpack.c.l.b16 %v3358
    %v3986 = vunpack.c.h.b16 %v3358
    %v3987 = vunpack.c.l.b16 %v3359
    %v3988 = vunpack.c.h.b16 %v3359
    %v3989 = vunpack.c.l.b16 %v3360
    %v3990 = vunpack.c.h.b16 %v3360
    %v3991 = vunpack.c.l.b16 %v3361
    %v3992 = vunpack.c.h.b16 %v3361
    %v3993 = vunpack.c.l.b16 %v3362
    %v3994 = vunpack.c.h.b16 %v3362
    %v3995 = vunpack.c.l.b16 %v3363
    %v3996 = vunpack.c.h.b16 %v3363
    %v3997 = vunpack.c.l.b16 %v3364
    %v3998 = vunpack.c.h.b16 %v3364
    %v3999 = vunpack.c.l.b16 %v3365
    %v4000 = vunpack.c.h.b16 %v3365
    %v4001 = vunpack.c.l.b16 %v3366
    %v4002 = vunpack.c.h.b16 %v3366
    %v4003 = vunpack.c.l.b16 %v3367
    %v4004 = vunpack.c.h.b16 %v3367
    %v4005 = vunpack.c.l.b16 %v3368
    %v4006 = vunpack.c.h.b16 %v3368
    %v4007 = vunpack.c.l.b16 %v3369
    %v4008 = vunpack.c.h.b16 %v3369
    %v4009 = vunpack.c.l.b16 %v3370
    %v4010 = vunpack.c.h.b16 %v3370
    %v4011 = vunpack.c.l.b16 %v3371
    %v4012 = vunpack.c.h.b16 %v3371
    %v4013 = vunpack.c.l.b16 %v3372
    %v4014 = vunpack.c.h.b16 %v3372
    %v4015 = vunpack.c.l.b16 %v3373
    %v4016 = vunpack.c.h.b16 %v3373
    %v4017 = vunpack.c.l.b16 %v3374
    %v4018 = vunpack.c.h.b16 %v3374
    %v4019 = vunpack.c.l.b16 %v3375
    %v4020 = vunpack.c.h.b16 %v3375
    %v4021 = vunpack.c.l.b16 %v3376
    %v4022 = vunpack.c.h.b16 %v3376
    %v4023 = vunpack.c.l.b16 %v3377
    %v4024 = vunpack.c.h.b16 %v3377
    %v4025 = vunpack.c.l.b16 %v3378
    %v4026 = vunpack.c.h.b16 %v3378
    %v4027 = vunpack.c.l.b16 %v3379
    %v4028 = vunpack.c.h.b16 %v3379
    %v4029 = vunpack.c.l.b16 %v3380
    %v4030 = vunpack.c.h.b16 %v3380
    %v4031 = vunpack.c.l.b16 %v3381
    %v4032 = vunpack.c.h.b16 %v3381
    %v4033 = vunpack.c.l.b16 %v3382
    %v4034 = vunpack.c.h.b16 %v3382
    %v4035 = vunpack.c.l.b16 %v3383
    %v4036 = vunpack.c.h.b16 %v3383
    %v4037 = vunpack.c.l.b16 %v3384
    %v4038 = vunpack.c.h.b16 %v3384
    %v4039 = vunpack.c.l.b16 %v3385
    %v4040 = vunpack.c.h.b16 %v3385
    %v4041 = vunpack.c.l.b16 %v3386
    %v4042 = vunpack.c.h.b16 %v3386
    %v4043 = vunpack.c.l.b16 %v3387
    %v4044 = vunpack.c.h.b16 %v3387
    %v4045 = vunpack.c.l.b16 %v3388
    %v4046 = vunpack.c.h.b16 %v3388
    %v4047 = vunpack.c.l.b16 %v3389
    %v4048 = vunpack.c.h.b16 %v3389
    %v4049 = vunpack.c.l.b16 %v3390
    %v4050 = vunpack.c.h.b16 %v3390
    %v4051 = vunpack.c.l.b16 %v3391
    %v4052 = vunpack.c.h.b16 %v3391
    %v4053 = vunpack.c.l.b16 %v3392
    %v4054 = vunpack.c.h.b16 %v3392
    %v4055 = vunpack.c.l.b16 %v3393
    %v4056 = vunpack.c.h.b16 %v3393
    %v4057 = vunpack.c.l.b16 %v3394
    %v4058 = vunpack.c.h.b16 %v3394
    %v4059 = vunpack.c.l.b16 %v3395
    %v4060 = vunpack.c.h.b16 %v3395
    %v4061 = vunpack.c.l.b16 %v3396
    %v4062 = vunpack.c.h.b16 %v3396
    %v4063 = vunpack.c.l.b16 %v3397
    %v4064 = vunpack.c.h.b16 %v3397
    %v4065 = vunpack.c.l.b16 %v3398
    %v4066 = vunpack.c.h.b16 %v3398
    %v4067 = vunpack.c.l.b16 %v3399
    %v4068 = vunpack.c.h.b16 %v3399
    %v4069 = vunpack.c.l.b16 %v3400
    %v4070 = vunpack.c.h.b16 %v3400
    %v4071 = vunpack.c.l.b16 %v3401
    %v4072 = vunpack.c.h.b16 %v3401
    %v4073 = vunpack.c.l.b16 %v3402
    %v4074 = vunpack.c.h.b16 %v3402
    %v4075 = vunpack.c.l.b16 %v3403
    %v4076 = vunpack.c.h.b16 %v3403
    %v4077 = vunpack.c.l.b16 %v3404
    %v4078 = vunpack.c.h.b16 %v3404
    %v4079 = vunpack.c.l.b16 %v3405
    %v4080 = vunpack.c.h.b16 %v3405
    %v4081 = vunpack.c.l.b16 %v3406
    %v4082 = vunpack.c.h.b16 %v3406
    %v4083 = vunpack.c.l.b16 %v3407
    %v4084 = vunpack.c.h.b16 %v3407
    %v4085 = vunpack.c.l.b16 %v3408
    %v4086 = vunpack.c.h.b16 %v3408
    %v4087 = vunpack.c.l.b16 %v3409
    %v4088 = vunpack.c.h.b16 %v3409
    %v4089 = vunpack.c.l.b16 %v3410
    %v4090 = vunpack.c.h.b16 %v3410
    %v4091 = vunpack.c.l.b16 %v3411
    %v4092 = vunpack.c.h.b16 %v3411
    %v4093 = vunpack.c.l.b16 %v3412
    %v4094 = vunpack.c.h.b16 %v3412
    %v4095 = vunpack.c.l.b16 %v3413
    %v4096 = vunpack.c.h.b16 %v3413
    %v4097 = vunpack.c.l.b16 %v3414
    %v4098 = vunpack.c.h.b16 %v3414
    %v4099 = vunpack.c.l.b16 %v3415
    %v4100 = vunpack.c.h.b16 %v3415
    %v4101 = vunpack.c.l.b16 %v3416
    %v4102 = vunpack.c.h.b16 %v3416
    %v4103 = vunpack.c.l.b16 %v3417
    %v4104 = vunpack.c.h.b16 %v3417
    %v4105 = vunpack.c.l.b16 %v3418
    %v4106 = vunpack.c.h.b16 %v3418
    %v4107 = vunpack.c.l.b16 %v3419
    %v4108 = vunpack.c.h.b16 %v3419
    %v4109 = vunpack.c.l.b16 %v3420
    %v4110 = vunpack.c.h.b16 %v3420
    %v4111 = vunpack.c.l.b16 %v3421
    %v4112 = vunpack.c.h.b16 %v3421
    %v4113 = vunpack.c.l.b16 %v3422
    %v4114 = vunpack.c.h.b16 %v3422
    %v4115 = vunpack.c.l.b16 %v3423
    %v4116 = vunpack.c.h.b16 %v3423
    %v4117 = vunpack.c.l.b16 %v3424
    %v4118 = vunpack.c.h.b16 %v3424
    %v4119 = vunpack.c.l.b16 %v3425
    %v4120 = vunpack.c.h.b16 %v3425
    %v4121 = vunpack.c.l.b16 %v3426
    %v4122 = vunpack.c.h.b16 %v3426
    %v4123 = vunpack.c.l.b16 %v3427
    %v4124 = vunpack.c.h.b16 %v3427
    %v4125 = vunpack.c.l.b16 %v3428
    %v4126 = vunpack.c.h.b16 %v3428
    %v4127 = vunpack.c.l.b16 %v3429
    %v4128 = vunpack.c.h.b16 %v3429
    %v4129 = vunpack.c.l.b16 %v3430
    %v4130 = vunpack.c.h.b16 %v3430
    %v4131 = vunpack.c.l.b16 %v3431
    %v4132 = vunpack.c.h.b16 %v3431
    %v4133 = vunpack.c.l.b16 %v3432
    %v4134 = vunpack.c.h.b16 %v3432
    %v4135 = vunpack.c.l.b16 %v3433
    %v4136 = vunpack.c.h.b16 %v3433
    %v4137 = vunpack.c.l.b16 %v3434
    %v4138 = vunpack.c.h.b16 %v3434
    %v4139 = vunpack.c.l.b16 %v3435
    %v4140 = vunpack.c.h.b16 %v3435
    %v4141 = vunpack.c.l.b16 %v3436
    %v4142 = vunpack.c.h.b16 %v3436
    %v4143 = vunpack.c.l.b16 %v3437
    %v4144 = vunpack.c.h.b16 %v3437
    %v4145 = vunpack.c.l.b16 %v3438
    %v4146 = vunpack.c.h.b16 %v3438
    %v4147 = vunpack.c.l.b16 %v3439
    %v4148 = vunpack.c.h.b16 %v3439
    %v4149 = vunpack.c.l.b16 %v3440
    %v4150 = vunpack.c.h.b16 %v3440
    %v4151 = vunpack.c.l.b16 %v3441
    %v4152 = vunpack.c.h.b16 %v3441
    %v4153 = vunpack.c.l.b16 %v3442
    %v4154 = vunpack.c.h.b16 %v3442
    %v4155 = vunpack.c.l.b16 %v3443
    %v4156 = vunpack.c.h.b16 %v3443
    %v4157 = vunpack.c.l.b16 %v3444
    %v4158 = vunpack.c.h.b16 %v3444
    %v4159 = vunpack.c.l.b16 %v3445
    %v4160 = vunpack.c.h.b16 %v3445
    %v4161 = vunpack.c.l.b16 %v3446
    %v4162 = vunpack.c.h.b16 %v3446
    %v4163 = vunpack.c.l.b16 %v3447
    %v4164 = vunpack.c.h.b16 %v3447
    %v4165 = vunpack.c.l.b16 %v3448
    %v4166 = vunpack.c.h.b16 %v3448
    %v4167 = vunpack.c.l.b16 %v3449
    %v4168 = vunpack.c.h.b16 %v3449
    %v4169 = vunpack.c.l.b16 %v3450
    %v4170 = vunpack.c.h.b16 %v3450
    %v4171 = vunpack.c.l.b16 %v3451
    %v4172 = vunpack.c.h.b16 %v3451
    %v4173 = vunpack.c.l.b16 %v3452
    %v4174 = vunpack.c.h.b16 %v3452
    %v4175 = vunpack.c.l.b16 %v3453
    %v4176 = vunpack.c.h.b16 %v3453
    %v4177 = vunpack.c.l.b16 %v3454
    %v4178 = vunpack.c.h.b16 %v3454
    %v4179 = vunpack.c.l.b16 %v3455
    %v4180 = vunpack.c.h.b16 %v3455
    %v4181 = vunpack.c.l.b16 %v3456
    %v4182 = vunpack.c.h.b16 %v3456
    %v4183 = vunpack.c.l.b16 %v3457
    %v4184 = vunpack.c.h.b16 %v3457
    %v4185 = vunpack.c.l.b16 %v3458
    %v4186 = vunpack.c.h.b16 %v3458
    %v4187 = vunpack.c.l.b16 %v3459
    %v4188 = vunpack.c.h.b16 %v3459
    %v4189 = vunpack.c.l.b16 %v3460
    %v4190 = vunpack.c.h.b16 %v3460
    %v4191 = vunpack.c.l.b16 %v3461
    %v4192 = vunpack.c.h.b16 %v3461
    %v4193 = vunpack.c.l.b16 %v3462
    %v4194 = vunpack.c.h.b16 %v3462
    %v4195 = vunpack.c.l.b16 %v3463
    %v4196 = vunpack.c.h.b16 %v3463
    %v4197 = vunpack.c.l.b16 %v3464
    %v4198 = vunpack.c.h.b16 %v3464
    %v4199 = vunpack.c.l.b16 %v3465
    %v4200 = vunpack.c.h.b16 %v3465
    %v4201 = vunpack.c.l.b16 %v3466
    %v4202 = vunpack.c.h.b16 %v3466
    %v4203 = vunpack.c.l.b16 %v3467
    %v4204 = vunpack.c.h.b16 %v3467
    %v4205 = vunpack.c.l.b16 %v3468
    %v4206 = vunpack.c.h.b16 %v3468
    %v4207 = vunpack.c.l.b16 %v3469
    %v4208 = vunpack.c.h.b16 %v3469
    %v4209 = vunpack.c.l.b16 %v3470
    %v4210 = vunpack.c.h.b16 %v3470
    %v4211 = vunpack.c.l.b16 %v3471
    %v4212 = vunpack.c.h.b16 %v3471
    %v4213 = vunpack.c.l.b16 %v3472
    %v4214 = vunpack.c.h.b16 %v3472
    %v4215 = vunpack.c.l.b16 %v3473
    %v4216 = vunpack.c.h.b16 %v3473
    %v4217 = vunpack.c.l.b16 %v3474
    %v4218 = vunpack.c.h.b16 %v3474
    %v4219 = vunpack.c.l.b16 %v3475
    %v4220 = vunpack.c.h.b16 %v3475
    %v4221 = vunpack.c.l.b16 %v3476
    %v4222 = vunpack.c.h.b16 %v3476
    %v4223 = vunpack.c.l.b16 %v3477
    %v4224 = vunpack.c.h.b16 %v3477
    %v4225 = vunpack.c.l.b16 %v3478
    %v4226 = vunpack.c.h.b16 %v3478
    %v4227 = vunpack.c.l.b16 %v3479
    %v4228 = vunpack.c.h.b16 %v3479
    %v4229 = vunpack.c.l.b16 %v3480
    %v4230 = vunpack.c.h.b16 %v3480
    %v4231 = vunpack.c.l.b16 %v3481
    %v4232 = vunpack.c.h.b16 %v3481
    %v4233 = vunpack.c.l.b16 %v3482
    %v4234 = vunpack.c.h.b16 %v3482
    %v4235 = vunpack.c.l.b16 %v3483
    %v4236 = vunpack.c.h.b16 %v3483
    %v4237 = vunpack.c.l.b16 %v3484
    %v4238 = vunpack.c.h.b16 %v3484
    %v4239 = vunpack.c.l.b16 %v3485
    %v4240 = vunpack.c.h.b16 %v3485
    %v4241 = vunpack.c.l.b16 %v3486
    %v4242 = vunpack.c.h.b16 %v3486
    %v4243 = vunpack.c.l.b16 %v3487
    %v4244 = vunpack.c.h.b16 %v3487
    %v4245 = vunpack.c.l.b16 %v3488
    %v4246 = vunpack.c.h.b16 %v3488
    %v4247 = vunpack.c.l.b16 %v3489
    %v4248 = vunpack.c.h.b16 %v3489
    %v4249 = vunpack.c.l.b16 %v3490
    %v4250 = vunpack.c.h.b16 %v3490
    %v4251 = vunpack.c.l.b16 %v3491
    %v4252 = vunpack.c.h.b16 %v3491
    %v4253 = vunpack.c.l.b16 %v3492
    %v4254 = vunpack.c.h.b16 %v3492
    %v4255 = vunpack.c.l.b16 %v3493
    %v4256 = vunpack.c.h.b16 %v3493
    %v4257 = vunpack.c.l.b16 %v3494
    %v4258 = vunpack.c.h.b16 %v3494
    %v4259 = vunpack.c.l.b16 %v3495
    %v4260 = vunpack.c.h.b16 %v3495
    %v4261 = vunpack.c.l.b16 %v3496
    %v4262 = vunpack.c.h.b16 %v3496
    %v4263 = vunpack.c.l.b16 %v3497
    %v4264 = vunpack.c.h.b16 %v3497
    %v4265 = vunpack.c.l.b16 %v3498
    %v4266 = vunpack.c.h.b16 %v3498
    %v4267 = vunpack.c.l.b16 %v3499
    %v4268 = vunpack.c.h.b16 %v3499
    %v4269 = vunpack.c.l.b16 %v3500
    %v4270 = vunpack.c.h.b16 %v3500
    %v4271 = vunpack.c.l.b16 %v3501
    %v4272 = vunpack.c.h.b16 %v3501
    %v4273 = vunpack.c.l.b16 %v3502
    %v4274 = vunpack.c.h.b16 %v3502
    %v4275 = vunpack.c.l.b16 %v3503
    %v4276 = vunpack.c.h.b16 %v3503
    %v4277 = vunpack.c.l.b16 %v3504
    %v4278 = vunpack.c.h.b16 %v3504
    %v4279 = vunpack.c.l.b16 %v3505
    %v4280 = vunpack.c.h.b16 %v3505
    %v4281 = vunpack.c.l.b16 %v3506
    %v4282 = vunpack.c.h.b16 %v3506
    %v4283 = vpack.c.b16 %v3775, %v3771
    %v4284 = vpack.c.b16 %v3776, %v3772
    %v4285 = vpack.c.b16 %v3777, %v3773
    %v4286 = vpack.c.b16 %v3778, %v3774
    %v4287 = vpack.c.b16 %v3783, %v3779
    %v4288 = vpack.c.b16 %v3784, %v3780
    %v4289 = vpack.c.b16 %v3785, %v3781
    %v4290 = vpack.c.b16 %v3786, %v3782
    %v4291 = vpack.c.b16 %v3791, %v3787
    %v4292 = vpack.c.b16 %v3792, %v3788
    %v4293 = vpack.c.b16 %v3793, %v3789
    %v4294 = vpack.c.b16 %v3794, %v3790
    %v4295 = vpack.c.b16 %v3799, %v3795
    %v4296 = vpack.c.b16 %v3800, %v3796
    %v4297 = vpack.c.b16 %v3801, %v3797
    %v4298 = vpack.c.b16 %v3802, %v3798
    %v4299 = vpack.c.b16 %v3807, %v3803
    %v4300 = vpack.c.b16 %v3808, %v3804
    %v4301 = vpack.c.b16 %v3809, %v3805
    %v4302 = vpack.c.b16 %v3810, %v3806
    %v4303 = vpack.c.b16 %v3815, %v3811
    %v4304 = vpack.c.b16 %v3816, %v3812
    %v4305 = vpack.c.b16 %v3817, %v3813
    %v4306 = vpack.c.b16 %v3818, %v3814
    %v4307 = vpack.c.b16 %v3823, %v3819
    %v4308 = vpack.c.b16 %v3824, %v3820
    %v4309 = vpack.c.b16 %v3825, %v3821
    %v4310 = vpack.c.b16 %v3826, %v3822
    %v4311 = vpack.c.b16 %v3831, %v3827
    %v4312 = vpack.c.b16 %v3832, %v3828
    %v4313 = vpack.c.b16 %v3833, %v3829
    %v4314 = vpack.c.b16 %v3834, %v3830
    %v4315 = vpack.c.b16 %v3839, %v3835
    %v4316 = vpack.c.b16 %v3840, %v3836
    %v4317 = vpack.c.b16 %v3841, %v3837
    %v4318 = vpack.c.b16 %v3842, %v3838
    %v4319 = vpack.c.b16 %v3847, %v3843
    %v4320 = vpack.c.b16 %v3848, %v3844
    %v4321 = vpack.c.b16 %v3849, %v3845
    %v4322 = vpack.c.b16 %v3850, %v3846
    %v4323 = vpack.c.b16 %v3855, %v3851
    %v4324 = vpack.c.b16 %v3856, %v3852
    %v4325 = vpack.c.b16 %v3857, %v3853
    %v4326 = vpack.c.b16 %v3858, %v3854
    %v4327 = vpack.c.b16 %v3863, %v3859
    %v4328 = vpack.c.b16 %v3864, %v3860
    %v4329 = vpack.c.b16 %v3865, %v3861
    %v4330 = vpack.c.b16 %v3866, %v3862
    %v4331 = vpack.c.b16 %v3871, %v3867
    %v4332 = vpack.c.b16 %v3872, %v3868
    %v4333 = vpack.c.b16 %v3873, %v3869
    %v4334 = vpack.c.b16 %v3874, %v3870
    %v4335 = vpack.c.b16 %v3879, %v3875
    %v4336 = vpack.c.b16 %v3880, %v3876
    %v4337 = vpack.c.b16 %v3881, %v3877
    %v4338 = vpack.c.b16 %v3882, %v3878
    %v4339 = vpack.c.b16 %v3887, %v3883
    %v4340 = vpack.c.b16 %v3888, %v3884
    %v4341 = vpack.c.b16 %v3889, %v3885
    %v4342 = vpack.c.b16 %v3890, %v3886
    %v4343 = vpack.c.b16 %v3895, %v3891
    %v4344 = vpack.c.b16 %v3896, %v3892
    %v4345 = vpack.c.b16 %v3897, %v3893
    %v4346 = vpack.c.b16 %v3898, %v3894
    %v4347 = vpack.c.b16 %v3903, %v3899
    %v4348 = vpack.c.b16 %v3904, %v3900
    %v4349 = vpack.c.b16 %v3905, %v3901
    %v4350 = vpack.c.b16 %v3906, %v3902
    %v4351 = vpack.c.b16 %v3911, %v3907
    %v4352 = vpack.c.b16 %v3912, %v3908
    %v4353 = vpack.c.b16 %v3913, %v3909
    %v4354 = vpack.c.b16 %v3914, %v3910
    %v4355 = vpack.c.b16 %v3919, %v3915
    %v4356 = vpack.c.b16 %v3920, %v3916
    %v4357 = vpack.c.b16 %v3921, %v3917
    %v4358 = vpack.c.b16 %v3922, %v3918
    %v4359 = vpack.c.b16 %v3927, %v3923
    %v4360 = vpack.c.b16 %v3928, %v3924
    %v4361 = vpack.c.b16 %v3929, %v3925
    %v4362 = vpack.c.b16 %v3930, %v3926
    %v4363 = vpack.c.b16 %v3935, %v3931
    %v4364 = vpack.c.b16 %v3936, %v3932
    %v4365 = vpack.c.b16 %v3937, %v3933
    %v4366 = vpack.c.b16 %v3938, %v3934
    %v4367 = vpack.c.b16 %v3943, %v3939
    %v4368 = vpack.c.b16 %v3944, %v3940
    %v4369 = vpack.c.b16 %v3945, %v3941
    %v4370 = vpack.c.b16 %v3946, %v3942
    %v4371 = vpack.c.b16 %v3951, %v3947
    %v4372 = vpack.c.b16 %v3952, %v3948
    %v4373 = vpack.c.b16 %v3953, %v3949
    %v4374 = vpack.c.b16 %v3954, %v3950
    %v4375 = vpack.c.b16 %v3959, %v3955
    %v4376 = vpack.c.b16 %v3960, %v3956
    %v4377 = vpack.c.b16 %v3961, %v3957
    %v4378 = vpack.c.b16 %v3962, %v3958
    %v4379 = vpack.c.b16 %v3967, %v3963
    %v4380 = vpack.c.b16 %v3968, %v3964
    %v4381 = vpack.c.b16 %v3969, %v3965
    %v4382 = vpack.c.b16 %v3970, %v3966
    %v4383 = vpack.c.b16 %v3975, %v3971
    %v4384 = vpack.c.b16 %v3976, %v3972
    %v4385 = vpack.c.b16 %v3977, %v3973
    %v4386 = vpack.c.b16 %v3978, %v3974
    %v4387 = vpack.c.b16 %v3983, %v3979
    %v4388 = vpack.c.b16 %v3984, %v3980
    %v4389 = vpack.c.b16 %v3985, %v3981
    %v4390 = vpack.c.b16 %v3986, %v3982
    %v4391 = vpack.c.b16 %v3991, %v3987
    %v4392 = vpack.c.b16 %v3992, %v3988
    %v4393 = vpack.c.b16 %v3993, %v3989
    %v4394 = vpack.c.b16 %v3994, %v3990
    %v4395 = vpack.c.b16 %v3999, %v3995
    %v4396 = vpack.c.b16 %v4000, %v3996
    %v4397 = vpack.c.b16 %v4001, %v3997
    %v4398 = vpack.c.b16 %v4002, %v3998
    %v4399 = vpack.c.b16 %v4007, %v4003
    %v4400 = vpack.c.b16 %v4008, %v4004
    %v4401 = vpack.c.b16 %v4009, %v4005
    %v4402 = vpack.c.b16 %v4010, %v4006
    %v4403 = vpack.c.b16 %v4015, %v4011
    %v4404 = vpack.c.b16 %v4016, %v4012
    %v4405 = vpack.c.b16 %v4017, %v4013
    %v4406 = vpack.c.b16 %v4018, %v4014
    %v4407 = vpack.c.b16 %v4023, %v4019
    %v4408 = vpack.c.b16 %v4024, %v4020
    %v4409 = vpack.c.b16 %v4025, %v4021
    %v4410 = vpack.c.b16 %v4026, %v4022
    %v4411 = vpack.c.b16 %v4031, %v4027
    %v4412 = vpack.c.b16 %v4032, %v4028
    %v4413 = vpack.c.b16 %v4033, %v4029
    %v4414 = vpack.c.b16 %v4034, %v4030
    %v4415 = vpack.c.b16 %v4039, %v4035
    %v4416 = vpack.c.b16 %v4040, %v4036
    %v4417 = vpack.c.b16 %v4041, %v4037
    %v4418 = vpack.c.b16 %v4042, %v4038
    %v4419 = vpack.c.b16 %v4047, %v4043
    %v4420 = vpack.c.b16 %v4048, %v4044
    %v4421 = vpack.c.b16 %v4049, %v4045
    %v4422 = vpack.c.b16 %v4050, %v4046
    %v4423 = vpack.c.b16 %v4055, %v4051
    %v4424 = vpack.c.b16 %v4056, %v4052
    %v4425 = vpack.c.b16 %v4057, %v4053
    %v4426 = vpack.c.b16 %v4058, %v4054
    %v4427 = vpack.c.b16 %v4063, %v4059
    %v4428 = vpack.c.b16 %v4064, %v4060
    %v4429 = vpack.c.b16 %v4065, %v4061
    %v4430 = vpack.c.b16 %v4066, %v4062
    %v4431 = vpack.c.b16 %v4071, %v4067
    %v4432 = vpack.c.b16 %v4072, %v4068
    %v4433 = vpack.c.b16 %v4073, %v4069
    %v4434 = vpack.c.b16 %v4074, %v4070
    %v4435 = vpack.c.b16 %v4079, %v4075
    %v4436 = vpack.c.b16 %v4080, %v4076
    %v4437 = vpack.c.b16 %v4081, %v4077
    %v4438 = vpack.c.b16 %v4082, %v4078
    %v4439 = vpack.c.b16 %v4087, %v4083
    %v4440 = vpack.c.b16 %v4088, %v4084
    %v4441 = vpack.c.b16 %v4089, %v4085
    %v4442 = vpack.c.b16 %v4090, %v4086
    %v4443 = vpack.c.b16 %v4095, %v4091
    %v4444 = vpack.c.b16 %v4096, %v4092
    %v4445 = vpack.c.b16 %v4097, %v4093
    %v4446 = vpack.c.b16 %v4098, %v4094
    %v4447 = vpack.c.b16 %v4103, %v4099
    %v4448 = vpack.c.b16 %v4104, %v4100
    %v4449 = vpack.c.b16 %v4105, %v4101
    %v4450 = vpack.c.b16 %v4106, %v4102
    %v4451 = vpack.c.b16 %v4111, %v4107
    %v4452 = vpack.c.b16 %v4112, %v4108
    %v4453 = vpack.c.b16 %v4113, %v4109
    %v4454 = vpack.c.b16 %v4114, %v4110
    %v4455 = vpack.c.b16 %v4119, %v4115
    %v4456 = vpack.c.b16 %v4120, %v4116
    %v4457 = vpack.c.b16 %v4121, %v4117
    %v4458 = vpack.c.b16 %v4122, %v4118
    %v4459 = vpack.c.b16 %v4127, %v4123
    %v4460 = vpack.c.b16 %v4128, %v4124
    %v4461 = vpack.c.b16 %v4129, %v4125
    %v4462 = vpack.c.b16 %v4130, %v4126
    %v4463 = vpack.c.b16 %v4135, %v4131
    %v4464 = vpack.c.b16 %v4136, %v4132
    %v4465 = vpack.c.b16 %v4137, %v4133
    %v4466 = vpack.c.b16 %v4138, %v4134
    %v4467 = vpack.c.b16 %v4143, %v4139
    %v4468 = vpack.c.b16 %v4144, %v4140
    %v4469 = vpack.c.b16 %v4145, %v4141
    %v4470 = vpack.c.b16 %v4146, %v4142
    %v4471 = vpack.c.b16 %v4151, %v4147
    %v4472 = vpack.c.b16 %v4152, %v4148
    %v4473 = vpack.c.b16 %v4153, %v4149
    %v4474 = vpack.c.b16 %v4154, %v4150
    %v4475 = vpack.c.b16 %v4159, %v4155
    %v4476 = vpack.c.b16 %v4160, %v4156
    %v4477 = vpack.c.b16 %v4161, %v4157
    %v4478 = vpack.c.b16 %v4162, %v4158
    %v4479 = vpack.c.b16 %v4167, %v4163
    %v4480 = vpack.c.b16 %v4168, %v4164
    %v4481 = vpack.c.b16 %v4169, %v4165
    %v4482 = vpack.c.b16 %v4170, %v4166
    %v4483 = vpack.c.b16 %v4175, %v4171
    %v4484 = vpack.c.b16 %v4176, %v4172
    %v4485 = vpack.c.b16 %v4177, %v4173
    %v4486 = vpack.c.b16 %v4178, %v4174
    %v4487 = vpack.c.b16 %v4183, %v4179
    %v4488 = vpack.c.b16 %v4184, %v4180
    %v4489 = vpack.c.b16 %v4185, %v4181
    %v4490 = vpack.c.b16 %v4186, %v4182
    %v4491 = vpack.c.b16 %v4191, %v4187
    %v4492 = vpack.c.b16 %v4192, %v4188
    %v4493 = vpack.c.b16 %v4193, %v4189
    %v4494 = vpack.c.b16 %v4194, %v4190
    %v4495 = vpack.c.b16 %v4199, %v4195
    %v4496 = vpack.c.b16 %v4200, %v4196
    %v4497 = vpack.c.b16 %v4201, %v4197
    %v4498 = vpack.c.b16 %v4202, %v4198
    %v4499 = vpack.c.b16 %v4207, %v4203
    %v4500 = vpack.c.b16 %v4208, %v4204
    %v4501 = vpack.c.b16 %v4209, %v4205
    %v4502 = vpack.c.b16 %v4210, %v4206
    %v4503 = vpack.c.b16 %v4215, %v4211
    %v4504 = vpack.c.b16 %v4216, %v4212
    %v4505 = vpack.c.b16 %v4217, %v4213
    %v4506 = vpack.c.b16 %v4218, %v4214
    %v4507 = vpack.c.b16 %v4223, %v4219
    %v4508 = vpack.c.b16 %v4224, %v4220
    %v4509 = vpack.c.b16 %v4225, %v4221
    %v4510 = vpack.c.b16 %v4226, %v4222
    %v4511 = vpack.c.b16 %v4231, %v4227
    %v4512 = vpack.c.b16 %v4232, %v4228
    %v4513 = vpack.c.b16 %v4233, %v4229
    %v4514 = vpack.c.b16 %v4234, %v4230
    %v4515 = vpack.c.b16 %v4239, %v4235
    %v4516 = vpack.c.b16 %v4240, %v4236
    %v4517 = vpack.c.b16 %v4241, %v4237
    %v4518 = vpack.c.b16 %v4242, %v4238
    %v4519 = vpack.c.b16 %v4247, %v4243
    %v4520 = vpack.c.b16 %v4248, %v4244
    %v4521 = vpack.c.b16 %v4249, %v4245
    %v4522 = vpack.c.b16 %v4250, %v4246
    %v4523 = vpack.c.b16 %v4255, %v4251
    %v4524 = vpack.c.b16 %v4256, %v4252
    %v4525 = vpack.c.b16 %v4257, %v4253
    %v4526 = vpack.c.b16 %v4258, %v4254
    %v4527 = vpack.c.b16 %v4263, %v4259
    %v4528 = vpack.c.b16 %v4264, %v4260
    %v4529 = vpack.c.b16 %v4265, %v4261
    %v4530 = vpack.c.b16 %v4266, %v4262
    %v4531 = vpack.c.b16 %v4271, %v4267
    %v4532 = vpack.c.b16 %v4272, %v4268
    %v4533 = vpack.c.b16 %v4273, %v4269
    %v4534 = vpack.c.b16 %v4274, %v4270
    %v4535 = vpack.c.b16 %v4279, %v4275
    %v4536 = vpack.c.b16 %v4280, %v4276
    %v4537 = vpack.c.b16 %v4281, %v4277
    %v4538 = vpack.c.b16 %v4282, %v4278
    %4795 = vmatprep.subr.bf16.mxu0 %v4284
    %4796 = vmatpush1.bf16.msra.mxu0 %v4283
    %4797 = vmatprep.subr.bf16.mxu0 %v4288
    %4798 = vmatpush1.bf16.msra.mxu0 %v4287
    %4799 = vmatprep.subr.bf16.mxu0 %v4292
    %4800 = vmatpush1.bf16.msra.mxu0 %v4291
    %4801 = vmatprep.subr.bf16.mxu0 %v4296
    %4802 = vmatpush1.bf16.msra.mxu0 %v4295
    %4803 = vmatprep.subr.bf16.mxu0 %v4300
    %4804 = vmatpush1.bf16.msra.mxu0 %v4299
    %4805 = vmatprep.subr.bf16.mxu0 %v4304
    %4806 = vmatpush1.bf16.msra.mxu0 %v4303
    %4807 = vmatprep.subr.bf16.mxu0 %v4308
    %4808 = vmatpush1.bf16.msra.mxu0 %v4307
    %4809 = vmatprep.subr.bf16.mxu0 %v4312
    %4810 = vmatpush1.bf16.msra.mxu0 %v4311
    %4811 = vmatprep.subr.bf16.mxu0 %v4316
    %4812 = vmatpush1.bf16.msra.mxu0 %v4315
    %4813 = vmatprep.subr.bf16.mxu0 %v4320
    %4814 = vmatpush1.bf16.msra.mxu0 %v4319
    %4815 = vmatprep.subr.bf16.mxu0 %v4324
    %4816 = vmatpush1.bf16.msra.mxu0 %v4323
    %4817 = vmatprep.subr.bf16.mxu0 %v4328
    %4818 = vmatpush1.bf16.msra.mxu0 %v4327
    %4819 = vmatprep.subr.bf16.mxu0 %v4332
    %4820 = vmatpush1.bf16.msra.mxu0 %v4331
    %4821 = vmatprep.subr.bf16.mxu0 %v4336
    %4822 = vmatpush1.bf16.msra.mxu0 %v4335
    %4823 = vmatprep.subr.bf16.mxu0 %v4340
    %4824 = vmatpush1.bf16.msra.mxu0 %v4339
    %4825 = vmatprep.subr.bf16.mxu0 %v4344
    %4826 = vmatpush1.bf16.msra.mxu0 %v4343
    %4827 = vmatprep.mubr.bf16.mxu0 %v3508
    %4828 = vmatmul.mubr.bf16.gmra.mrb[0].mxu0 %v3507
    %v4829 = vpop.f32.mrb[0].mxu0
    %v4830 = vadd.f32 0.0, %v4829
    %v4831 = vpop.f32.mrb[0].mxu0
    %v4832 = vadd.f32 0.0, %v4831
    %v4833 = vpop.f32.mrb[0].mxu0
    %v4834 = vpop.f32.mrb[0].mxu0
    %4835 = vdwg.mxu0
    %4836 = vmatprep.subr.bf16.mxu0 %v4348
    %4837 = vmatpush1.bf16.msra.mxu0 %v4347
    %4838 = vmatprep.subr.bf16.mxu0 %v4352
    %4839 = vmatpush1.bf16.msra.mxu0 %v4351
    %4840 = vmatprep.subr.bf16.mxu0 %v4356
    %4841 = vmatpush1.bf16.msra.mxu0 %v4355
    %4842 = vmatprep.subr.bf16.mxu0 %v4360
    %4843 = vmatpush1.bf16.msra.mxu0 %v4359
    %4844 = vmatprep.subr.bf16.mxu0 %v4364
    %4845 = vmatpush1.bf16.msra.mxu0 %v4363
    %4846 = vmatprep.subr.bf16.mxu0 %v4368
    %4847 = vmatpush1.bf16.msra.mxu0 %v4367
    %4848 = vmatprep.subr.bf16.mxu0 %v4372
    %4849 = vmatpush1.bf16.msra.mxu0 %v4371
    %4850 = vmatprep.subr.bf16.mxu0 %v4376
    %4851 = vmatpush1.bf16.msra.mxu0 %v4375
    %4852 = vmatprep.subr.bf16.mxu0 %v4380
    %4853 = vmatpush1.bf16.msra.mxu0 %v4379
    %4854 = vmatprep.subr.bf16.mxu0 %v4384
    %4855 = vmatpush1.bf16.msra.mxu0 %v4383
    %4856 = vmatprep.subr.bf16.mxu0 %v4388
    %4857 = vmatpush1.bf16.msra.mxu0 %v4387
    %4858 = vmatprep.subr.bf16.mxu0 %v4392
    %4859 = vmatpush1.bf16.msra.mxu0 %v4391
    %4860 = vmatprep.subr.bf16.mxu0 %v4396
    %4861 = vmatpush1.bf16.msra.mxu0 %v4395
    %4862 = vmatprep.subr.bf16.mxu0 %v4400
    %4863 = vmatpush1.bf16.msra.mxu0 %v4399
    %4864 = vmatprep.subr.bf16.mxu0 %v4404
    %4865 = vmatpush1.bf16.msra.mxu0 %v4403
    %4866 = vmatprep.subr.bf16.mxu0 %v4408
    %4867 = vmatpush1.bf16.msra.mxu0 %v4407
    %4868 = vmatprep.mubr.bf16.mxu0 %v3510
    %4869 = vmatmul.mubr.bf16.gmra.mrb[0].mxu0 %v3509
    %v4870 = vpop.f32.mrb[0].mxu0
    %v4871 = vadd.f32 %v4830, %v4870
    %v4872 = vpop.f32.mrb[0].mxu0
    %v4873 = vadd.f32 %v4832, %v4872
    %v4874 = vpop.f32.mrb[0].mxu0
    %v4875 = vpop.f32.mrb[0].mxu0
    %4876 = vdwg.mxu0
    %4877 = vmatprep.subr.bf16.mxu0 %v4412
    %4878 = vmatpush1.bf16.msra.mxu0 %v4411
    %4879 = vmatprep.subr.bf16.mxu0 %v4416
    %4880 = vmatpush1.bf16.msra.mxu0 %v4415
    %4881 = vmatprep.subr.bf16.mxu0 %v4420
    %4882 = vmatpush1.bf16.msra.mxu0 %v4419
    %4883 = vmatprep.subr.bf16.mxu0 %v4424
    %4884 = vmatpush1.bf16.msra.mxu0 %v4423
    %4885 = vmatprep.subr.bf16.mxu0 %v4428
    %4886 = vmatpush1.bf16.msra.mxu0 %v4427
    %4887 = vmatprep.subr.bf16.mxu0 %v4432
    %4888 = vmatpush1.bf16.msra.mxu0 %v4431
    %4889 = vmatprep.subr.bf16.mxu0 %v4436
    %4890 = vmatpush1.bf16.msra.mxu0 %v4435
    %4891 = vmatprep.subr.bf16.mxu0 %v4440
    %4892 = vmatpush1.bf16.msra.mxu0 %v4439
    %4893 = vmatprep.subr.bf16.mxu0 %v4444
    %4894 = vmatpush1.bf16.msra.mxu0 %v4443
    %4895 = vmatprep.subr.bf16.mxu0 %v4448
    %4896 = vmatpush1.bf16.msra.mxu0 %v4447
    %4897 = vmatprep.subr.bf16.mxu0 %v4452
    %4898 = vmatpush1.bf16.msra.mxu0 %v4451
    %4899 = vmatprep.subr.bf16.mxu0 %v4456
    %4900 = vmatpush1.bf16.msra.mxu0 %v4455
    %4901 = vmatprep.subr.bf16.mxu0 %v4460
    %4902 = vmatpush1.bf16.msra.mxu0 %v4459
    %4903 = vmatprep.subr.bf16.mxu0 %v4464
    %4904 = vmatpush1.bf16.msra.mxu0 %v4463
    %4905 = vmatprep.subr.bf16.mxu0 %v4468
    %4906 = vmatpush1.bf16.msra.mxu0 %v4467
    %4907 = vmatprep.subr.bf16.mxu0 %v4472
    %4908 = vmatpush1.bf16.msra.mxu0 %v4471
    %4909 = vmatprep.mubr.bf16.mxu0 %v3512
    %4910 = vmatmul.mubr.bf16.gmra.mrb[0].mxu0 %v3511
    %v4911 = vpop.f32.mrb[0].mxu0
    %v4912 = vadd.f32 %v4871, %v4911
    %v4913 = vpop.f32.mrb[0].mxu0
    %v4914 = vadd.f32 %v4873, %v4913
    %v4915 = vpop.f32.mrb[0].mxu0
    %v4916 = vpop.f32.mrb[0].mxu0
    %4917 = vdwg.mxu0
    %4918 = vmatprep.subr.bf16.mxu0 %v4476
    %4919 = vmatpush1.bf16.msra.mxu0 %v4475
    %4920 = vmatprep.subr.bf16.mxu0 %v4480
    %4921 = vmatpush1.bf16.msra.mxu0 %v4479
    %4922 = vmatprep.subr.bf16.mxu0 %v4484
    %4923 = vmatpush1.bf16.msra.mxu0 %v4483
    %4924 = vmatprep.subr.bf16.mxu0 %v4488
    %4925 = vmatpush1.bf16.msra.mxu0 %v4487
    %4926 = vmatprep.subr.bf16.mxu0 %v4492
    %4927 = vmatpush1.bf16.msra.mxu0 %v4491
    %4928 = vmatprep.subr.bf16.mxu0 %v4496
    %4929 = vmatpush1.bf16.msra.mxu0 %v4495
    %4930 = vmatprep.subr.bf16.mxu0 %v4500
    %4931 = vmatpush1.bf16.msra.mxu0 %v4499
    %4932 = vmatprep.subr.bf16.mxu0 %v4504
    %4933 = vmatpush1.bf16.msra.mxu0 %v4503
    %4934 = vmatprep.subr.bf16.mxu0 %v4508
    %4935 = vmatpush1.bf16.msra.mxu0 %v4507
    %4936 = vmatprep.subr.bf16.mxu0 %v4512
    %4937 = vmatpush1.bf16.msra.mxu0 %v4511
    %4938 = vmatprep.subr.bf16.mxu0 %v4516
    %4939 = vmatpush1.bf16.msra.mxu0 %v4515
    %4940 = vmatprep.subr.bf16.mxu0 %v4520
    %4941 = vmatpush1.bf16.msra.mxu0 %v4519
    %4942 = vmatprep.subr.bf16.mxu0 %v4524
    %4943 = vmatpush1.bf16.msra.mxu0 %v4523
    %4944 = vmatprep.subr.bf16.mxu0 %v4528
    %4945 = vmatpush1.bf16.msra.mxu0 %v4527
    %4946 = vmatprep.subr.bf16.mxu0 %v4532
    %4947 = vmatpush1.bf16.msra.mxu0 %v4531
    %4948 = vmatprep.subr.bf16.mxu0 %v4536
    %4949 = vmatpush1.bf16.msra.mxu0 %v4535
    %4950 = vmatprep.mubr.bf16.mxu0 %v3514
    %4951 = vmatmul.mubr.bf16.gmra.mrb[0].mxu0 %v3513
    %v4952 = vpop.f32.mrb[0].mxu0
    %v4953 = vadd.f32 %v4912, %v4952
    %v4954 = vpop.f32.mrb[0].mxu0
    %v4955 = vadd.f32 %v4914, %v4954
    %v4956 = vpop.f32.mrb[0].mxu0
    %v4957 = vpop.f32.mrb[0].mxu0
    %4958 = vdwg.mxu0
    %4959 = vmatprep.subr.bf16.mxu0 %v4286
    %4960 = vmatpush1.bf16.msra.mxu0 %v4285
    %4961 = vmatprep.subr.bf16.mxu0 %v4290
    %4962 = vmatpush1.bf16.msra.mxu0 %v4289
    %4963 = vmatprep.subr.bf16.mxu0 %v4294
    %4964 = vmatpush1.bf16.msra.mxu0 %v4293
    %4965 = vmatprep.subr.bf16.mxu0 %v4298
    %4966 = vmatpush1.bf16.msra.mxu0 %v4297
    %4967 = vmatprep.subr.bf16.mxu0 %v4302
    %4968 = vmatpush1.bf16.msra.mxu0 %v4301
    %4969 = vmatprep.subr.bf16.mxu0 %v4306
    %4970 = vmatpush1.bf16.msra.mxu0 %v4305
    %4971 = vmatprep.subr.bf16.mxu0 %v4310
    %4972 = vmatpush1.bf16.msra.mxu0 %v4309
    %4973 = vmatprep.subr.bf16.mxu0 %v4314
    %4974 = vmatpush1.bf16.msra.mxu0 %v4313
    %4975 = vmatprep.subr.bf16.mxu0 %v4318
    %4976 = vmatpush1.bf16.msra.mxu0 %v4317
    %4977 = vmatprep.subr.bf16.mxu0 %v4322
    %4978 = vmatpush1.bf16.msra.mxu0 %v4321
    %4979 = vmatprep.subr.bf16.mxu0 %v4326
    %4980 = vmatpush1.bf16.msra.mxu0 %v4325
    %4981 = vmatprep.subr.bf16.mxu0 %v4330
    %4982 = vmatpush1.bf16.msra.mxu0 %v4329
    %4983 = vmatprep.subr.bf16.mxu0 %v4334
    %4984 = vmatpush1.bf16.msra.mxu0 %v4333
    %4985 = vmatprep.subr.bf16.mxu0 %v4338
    %4986 = vmatpush1.bf16.msra.mxu0 %v4337
    %4987 = vmatprep.subr.bf16.mxu0 %v4342
    %4988 = vmatpush1.bf16.msra.mxu0 %v4341
    %4989 = vmatprep.subr.bf16.mxu0 %v4346
    %4990 = vmatpush1.bf16.msra.mxu0 %v4345
    %4991 = vmatprep.mubr.bf16.mxu0 %v3508
    %4992 = vmatmul.mubr.bf16.gmra.mrb[0].mxu0 %v3507
    %v4993 = vpop.f32.mrb[0].mxu0
    %v4994 = vadd.f32 0.0, %v4993
    %v4995 = vpop.f32.mrb[0].mxu0
    %v4996 = vadd.f32 0.0, %v4995
    %v4997 = vpop.f32.mrb[0].mxu0
    %v4998 = vpop.f32.mrb[0].mxu0
    %4999 = vdwg.mxu0
    %5000 = vmatprep.subr.bf16.mxu0 %v4350
    %5001 = vmatpush1.bf16.msra.mxu0 %v4349
    %5002 = vmatprep.subr.bf16.mxu0 %v4354
    %5003 = vmatpush1.bf16.msra.mxu0 %v4353
    %5004 = vmatprep.subr.bf16.mxu0 %v4358
    %5005 = vmatpush1.bf16.msra.mxu0 %v4357
    %5006 = vmatprep.subr.bf16.mxu0 %v4362
    %5007 = vmatpush1.bf16.msra.mxu0 %v4361
    %5008 = vmatprep.subr.bf16.mxu0 %v4366
    %5009 = vmatpush1.bf16.msra.mxu0 %v4365
    %5010 = vmatprep.subr.bf16.mxu0 %v4370
    %5011 = vmatpush1.bf16.msra.mxu0 %v4369
    %5012 = vmatprep.subr.bf16.mxu0 %v4374
    %5013 = vmatpush1.bf16.msra.mxu0 %v4373
    %5014 = vmatprep.subr.bf16.mxu0 %v4378
    %5015 = vmatpush1.bf16.msra.mxu0 %v4377
    %5016 = vmatprep.subr.bf16.mxu0 %v4382
    %5017 = vmatpush1.bf16.msra.mxu0 %v4381
    %5018 = vmatprep.subr.bf16.mxu0 %v4386
    %5019 = vmatpush1.bf16.msra.mxu0 %v4385
    %5020 = vmatprep.subr.bf16.mxu0 %v4390
    %5021 = vmatpush1.bf16.msra.mxu0 %v4389
    %5022 = vmatprep.subr.bf16.mxu0 %v4394
    %5023 = vmatpush1.bf16.msra.mxu0 %v4393
    %5024 = vmatprep.subr.bf16.mxu0 %v4398
    %5025 = vmatpush1.bf16.msra.mxu0 %v4397
    %5026 = vmatprep.subr.bf16.mxu0 %v4402
    %5027 = vmatpush1.bf16.msra.mxu0 %v4401
    %5028 = vmatprep.subr.bf16.mxu0 %v4406
    %5029 = vmatpush1.bf16.msra.mxu0 %v4405
    %5030 = vmatprep.subr.bf16.mxu0 %v4410
    %5031 = vmatpush1.bf16.msra.mxu0 %v4409
    %5032 = vmatprep.mubr.bf16.mxu0 %v3510
    %5033 = vmatmul.mubr.bf16.gmra.mrb[0].mxu0 %v3509
    %v5034 = vpop.f32.mrb[0].mxu0
    %v5035 = vadd.f32 %v4994, %v5034
    %v5036 = vpop.f32.mrb[0].mxu0
    %v5037 = vadd.f32 %v4996, %v5036
    %v5038 = vpop.f32.mrb[0].mxu0
    %v5039 = vpop.f32.mrb[0].mxu0
    %5040 = vdwg.mxu0
    %5041 = vmatprep.subr.bf16.mxu0 %v4414
    %5042 = vmatpush1.bf16.msra.mxu0 %v4413
    %5043 = vmatprep.subr.bf16.mxu0 %v4418
    %5044 = vmatpush1.bf16.msra.mxu0 %v4417
    %5045 = vmatprep.subr.bf16.mxu0 %v4422
    %5046 = vmatpush1.bf16.msra.mxu0 %v4421
    %5047 = vmatprep.subr.bf16.mxu0 %v4426
    %5048 = vmatpush1.bf16.msra.mxu0 %v4425
    %5049 = vmatprep.subr.bf16.mxu0 %v4430
    %5050 = vmatpush1.bf16.msra.mxu0 %v4429
    %5051 = vmatprep.subr.bf16.mxu0 %v4434
    %5052 = vmatpush1.bf16.msra.mxu0 %v4433
    %5053 = vmatprep.subr.bf16.mxu0 %v4438
    %5054 = vmatpush1.bf16.msra.mxu0 %v4437
    %5055 = vmatprep.subr.bf16.mxu0 %v4442
    %5056 = vmatpush1.bf16.msra.mxu0 %v4441
    %5057 = vmatprep.subr.bf16.mxu0 %v4446
    %5058 = vmatpush1.bf16.msra.mxu0 %v4445
    %5059 = vmatprep.subr.bf16.mxu0 %v4450
    %5060 = vmatpush1.bf16.msra.mxu0 %v4449
    %5061 = vmatprep.subr.bf16.mxu0 %v4454
    %5062 = vmatpush1.bf16.msra.mxu0 %v4453
    %5063 = vmatprep.subr.bf16.mxu0 %v4458
    %5064 = vmatpush1.bf16.msra.mxu0 %v4457
    %5065 = vmatprep.subr.bf16.mxu0 %v4462
    %5066 = vmatpush1.bf16.msra.mxu0 %v4461
    %5067 = vmatprep.subr.bf16.mxu0 %v4466
    %5068 = vmatpush1.bf16.msra.mxu0 %v4465
    %5069 = vmatprep.subr.bf16.mxu0 %v4470
    %5070 = vmatpush1.bf16.msra.mxu0 %v4469
    %5071 = vmatprep.subr.bf16.mxu0 %v4474
    %5072 = vmatpush1.bf16.msra.mxu0 %v4473
    %5073 = vmatprep.mubr.bf16.mxu0 %v3512
    %5074 = vmatmul.mubr.bf16.gmra.mrb[0].mxu0 %v3511
    %v5075 = vpop.f32.mrb[0].mxu0
    %v5076 = vadd.f32 %v5035, %v5075
    %v5077 = vpop.f32.mrb[0].mxu0
    %v5078 = vadd.f32 %v5037, %v5077
    %v5079 = vpop.f32.mrb[0].mxu0
    %v5080 = vpop.f32.mrb[0].mxu0
    %5081 = vdwg.mxu0
    %5082 = vmatprep.subr.bf16.mxu0 %v4478
    %5083 = vmatpush1.bf16.msra.mxu0 %v4477
    %5084 = vmatprep.subr.bf16.mxu0 %v4482
    %5085 = vmatpush1.bf16.msra.mxu0 %v4481
    %5086 = vmatprep.subr.bf16.mxu0 %v4486
    %5087 = vmatpush1.bf16.msra.mxu0 %v4485
    %5088 = vmatprep.subr.bf16.mxu0 %v4490
    %5089 = vmatpush1.bf16.msra.mxu0 %v4489
    %5090 = vmatprep.subr.bf16.mxu0 %v4494
    %5091 = vmatpush1.bf16.msra.mxu0 %v4493
    %5092 = vmatprep.subr.bf16.mxu0 %v4498
    %5093 = vmatpush1.bf16.msra.mxu0 %v4497
    %5094 = vmatprep.subr.bf16.mxu0 %v4502
    %5095 = vmatpush1.bf16.msra.mxu0 %v4501
    %5096 = vmatprep.subr.bf16.mxu0 %v4506
    %5097 = vmatpush1.bf16.msra.mxu0 %v4505
    %5098 = vmatprep.subr.bf16.mxu0 %v4510
    %5099 = vmatpush1.bf16.msra.mxu0 %v4509
    %5100 = vmatprep.subr.bf16.mxu0 %v4514
    %5101 = vmatpush1.bf16.msra.mxu0 %v4513
    %5102 = vmatprep.subr.bf16.mxu0 %v4518
    %5103 = vmatpush1.bf16.msra.mxu0 %v4517
    %5104 = vmatprep.subr.bf16.mxu0 %v4522
    %5105 = vmatpush1.bf16.msra.mxu0 %v4521
    %5106 = vmatprep.subr.bf16.mxu0 %v4526
    %5107 = vmatpush1.bf16.msra.mxu0 %v4525
    %5108 = vmatprep.subr.bf16.mxu0 %v4530
    %5109 = vmatpush1.bf16.msra.mxu0 %v4529
    %5110 = vmatprep.subr.bf16.mxu0 %v4534
    %5111 = vmatpush1.bf16.msra.mxu0 %v4533
    %5112 = vmatprep.subr.bf16.mxu0 %v4538
    %5113 = vmatpush1.bf16.msra.mxu0 %v4537
    %5114 = vmatprep.mubr.bf16.mxu0 %v3514
    %5115 = vmatmul.mubr.bf16.gmra.mrb[0].mxu0 %v3513
    %v5116 = vpop.f32.mrb[0].mxu0
    %v5117 = vadd.f32 %v5076, %v5116
    %v5118 = vpop.f32.mrb[0].mxu0
    %v5119 = vadd.f32 %v5078, %v5118
    %v5120 = vpop.f32.mrb[0].mxu0
    %v5121 = vpop.f32.mrb[0].mxu0
    %5122 = vdwg.mxu0
    %v5123 = vld [vmem:[%s11] sm:$0xff]
    %v5124 = vld [vmem:[%s11 + $0x8] sm:$0xff]
    %v5125 = vld [vmem:[%s11 + $0x10] sm:$0xff]
    %v5126 = vld [vmem:[%s11 + $0x18] sm:$0xff]
    %v5127 = vld [vmem:[%s11 + $0x20] sm:$0xff]
    %v5128 = vld [vmem:[%s11 + $0x28] sm:$0xff]
    %v5129 = vld [vmem:[%s11 + $0x30] sm:$0xff]
    %v5130 = vld [vmem:[%s11 + $0x38] sm:$0xff]
    %v5131 = vld [vmem:[%s11 + $0x40] sm:$0xff]
    %v5132 = vld [vmem:[%s11 + $0x48] sm:$0xff]
    %v5133 = vld [vmem:[%s11 + $0x50] sm:$0xff]
    %v5134 = vld [vmem:[%s11 + $0x58] sm:$0xff]
    %v5135 = vld [vmem:[%s11 + $0x60] sm:$0xff]
    %v5136 = vld [vmem:[%s11 + $0x68] sm:$0xff]
    %v5137 = vld [vmem:[%s11 + $0x70] sm:$0xff]
    %v5138 = vld [vmem:[%s11 + $0x78] sm:$0xff]
    %v5139 = vld [vmem:[#allocation15] sm:$0xf]
    %v5141 = vlaneseq
    %v5142 = vshrl.u32 %v5141, 7
    %v5143 = vsub.s32 0, %v5142
    %v5144 = vrot.slane %v5139, %v5143
    %v5145 = vlaneseq
    %v5146 = vshrl.u32 %v5145, 7
    %v5147 = vsub.s32 1, %v5146
    %v5148 = vrot.slane %v5139, %v5147
    %v5149 = vlaneseq
    %v5150 = vshrl.u32 %v5149, 7
    %v5151 = vsub.s32 2, %v5150
    %v5152 = vrot.slane %v5139, %v5151
    %v5153 = vlaneseq
    %v5154 = vshrl.u32 %v5153, 7
    %v5155 = vsub.s32 3, %v5154
    %v5156 = vrot.slane %v5139, %v5155
    %v5177 = vunpack.c.l.b16 %v5123
    %v5178 = vunpack.c.h.b16 %v5123
    %v5179 = vunpack.c.l.b16 %v5124
    %v5180 = vunpack.c.h.b16 %v5124
    %v5181 = vunpack.c.l.b16 %v5125
    %v5182 = vunpack.c.h.b16 %v5125
    %v5183 = vunpack.c.l.b16 %v5126
    %v5184 = vunpack.c.h.b16 %v5126
    %v5185 = vunpack.c.l.b16 %v5127
    %v5186 = vunpack.c.h.b16 %v5127
    %v5187 = vunpack.c.l.b16 %v5128
    %v5188 = vunpack.c.h.b16 %v5128
    %v5189 = vunpack.c.l.b16 %v5129
    %v5190 = vunpack.c.h.b16 %v5129
    %v5191 = vunpack.c.l.b16 %v5130
    %v5192 = vunpack.c.h.b16 %v5130
    %v5193 = vunpack.c.l.b16 %v5131
    %v5194 = vunpack.c.h.b16 %v5131
    %v5195 = vunpack.c.l.b16 %v5132
    %v5196 = vunpack.c.h.b16 %v5132
    %v5197 = vunpack.c.l.b16 %v5133
    %v5198 = vunpack.c.h.b16 %v5133
    %v5199 = vunpack.c.l.b16 %v5134
    %v5200 = vunpack.c.h.b16 %v5134
    %v5201 = vunpack.c.l.b16 %v5135
    %v5202 = vunpack.c.h.b16 %v5135
    %v5203 = vunpack.c.l.b16 %v5136
    %v5204 = vunpack.c.h.b16 %v5136
    %v5205 = vunpack.c.l.b16 %v5137
    %v5206 = vunpack.c.h.b16 %v5137
    %v5207 = vunpack.c.l.b16 %v5138
    %v5208 = vunpack.c.h.b16 %v5138
    %v5209 = vpack.c.b16 %v5181, %v5177
    %v5210 = vpack.c.b16 %v5182, %v5178
    %v5211 = vpack.c.b16 %v5183, %v5179
    %v5212 = vpack.c.b16 %v5184, %v5180
    %v5213 = vpack.c.b16 %v5189, %v5185
    %v5214 = vpack.c.b16 %v5190, %v5186
    %v5215 = vpack.c.b16 %v5191, %v5187
    %v5216 = vpack.c.b16 %v5192, %v5188
    %v5217 = vpack.c.b16 %v5197, %v5193
    %v5218 = vpack.c.b16 %v5198, %v5194
    %v5219 = vpack.c.b16 %v5199, %v5195
    %v5220 = vpack.c.b16 %v5200, %v5196
    %v5221 = vpack.c.b16 %v5205, %v5201
    %v5222 = vpack.c.b16 %v5206, %v5202
    %v5223 = vpack.c.b16 %v5207, %v5203
    %v5224 = vpack.c.b16 %v5208, %v5204
    %5241 = vmatprep.subr.bf16.mxu0 %v5210
    %5242 = vmatpush1.bf16.msra.mxu0 %v5209
    %5243 = vmatprep.subr.bf16.mxu0 %v5214
    %5244 = vmatpush1.bf16.msra.mxu0 %v5213
    %5245 = vmatprep.subr.bf16.mxu0 %v5218
    %5246 = vmatpush1.bf16.msra.mxu0 %v5217
    %5247 = vmatprep.subr.bf16.mxu0 %v5222
    %5248 = vmatpush1.bf16.msra.mxu0 %v5221
    %5249 = vmatprep.subr.bf16.mxu0 0
    %5250 = vmatpush1.bf16.msra.mxu0 0
    %5251 = vmatprep.subr.bf16.mxu0 0
    %5252 = vmatpush1.bf16.msra.mxu0 0
    %5253 = vmatprep.subr.bf16.mxu0 0
    %5254 = vmatpush1.bf16.msra.mxu0 0
    %5255 = vmatprep.subr.bf16.mxu0 0
    %5256 = vmatpush1.bf16.msra.mxu0 0
    %5257 = vmatprep.subr.bf16.mxu0 0
    %5258 = vmatpush1.bf16.msra.mxu0 0
    %5259 = vmatprep.subr.bf16.mxu0 0
    %5260 = vmatpush1.bf16.msra.mxu0 0
    %5261 = vmatprep.subr.bf16.mxu0 0
    %5262 = vmatpush1.bf16.msra.mxu0 0
    %5263 = vmatprep.subr.bf16.mxu0 0
    %5264 = vmatpush1.bf16.msra.mxu0 0
    %5265 = vmatprep.subr.bf16.mxu0 0
    %5266 = vmatpush1.bf16.msra.mxu0 0
    %5267 = vmatprep.subr.bf16.mxu0 0
    %5268 = vmatpush1.bf16.msra.mxu0 0
    %5269 = vmatprep.subr.bf16.mxu0 0
    %5270 = vmatpush1.bf16.msra.mxu0 0
    %5271 = vmatprep.subr.bf16.mxu0 0
    %5272 = vmatpush1.bf16.msra.mxu0 0
    %5273 = vmatprep.mubr.bf16.mxu0 0
    %5274 = vmatmul.mubr.bf16.gmra.mrb[0].mxu0 %v870
    %v5275 = vpop.f32.mrb[0].mxu0
    %v5276 = vadd.f32 %v5144, %v5275
    %v5277 = vpop.f32.mrb[0].mxu0
    %v5278 = vadd.f32 %v5148, %v5277
    %v5279 = vpop.f32.mrb[0].mxu0
    %v5280 = vadd.f32 %v5144, %v5279
    %v5281 = vpop.f32.mrb[0].mxu0
    %v5282 = vadd.f32 %v5148, %v5281
    %5283 = vmatprep.mubr.bf16.mxu0 0
    %5284 = vmatmul.mubr.bf16.gmra.mrb[0].mxu0 %v873
    %v5285 = vpop.f32.mrb[0].mxu0
    %v5286 = vadd.f32 %v5144, %v5285
    %v5287 = vpop.f32.mrb[0].mxu0
    %v5288 = vadd.f32 %v5148, %v5287
    %v5289 = vpop.f32.mrb[0].mxu0
    %v5290 = vadd.f32 %v5144, %v5289
    %v5291 = vpop.f32.mrb[0].mxu0
    %v5292 = vadd.f32 %v5148, %v5291
    %5293 = vmatprep.mubr.bf16.mxu0 0
    %5294 = vmatmul.mubr.bf16.gmra.mrb[0].mxu0 %v876
    %v5295 = vpop.f32.mrb[0].mxu0
    %v5296 = vadd.f32 %v5144, %v5295
    %v5297 = vpop.f32.mrb[0].mxu0
    %v5298 = vadd.f32 %v5148, %v5297
    %v5299 = vpop.f32.mrb[0].mxu0
    %v5300 = vadd.f32 %v5144, %v5299
    %v5301 = vpop.f32.mrb[0].mxu0
    %v5302 = vadd.f32 %v5148, %v5301
    %5303 = vmatprep.mubr.bf16.mxu0 0
    %5304 = vmatmul.mubr.bf16.gmra.mrb[0].mxu0 %v879
    %v5305 = vpop.f32.mrb[0].mxu0
    %v5306 = vadd.f32 %v5144, %v5305
    %v5307 = vpop.f32.mrb[0].mxu0
    %v5308 = vadd.f32 %v5148, %v5307
    %v5309 = vpop.f32.mrb[0].mxu0
    %v5310 = vadd.f32 %v5144, %v5309
    %v5311 = vpop.f32.mrb[0].mxu0
    %v5312 = vadd.f32 %v5148, %v5311
    %5313 = vmatprep.mubr.bf16.mxu0 0
    %5314 = vmatmul.mubr.bf16.gmra.mrb[0].mxu0 %v882
    %v5315 = vpop.f32.mrb[0].mxu0
    %v5316 = vadd.f32 %v5144, %v5315
    %v5317 = vpop.f32.mrb[0].mxu0
    %v5318 = vadd.f32 %v5148, %v5317
    %v5319 = vpop.f32.mrb[0].mxu0
    %v5320 = vadd.f32 %v5144, %v5319
    %v5321 = vpop.f32.mrb[0].mxu0
    %v5322 = vadd.f32 %v5148, %v5321
    %5323 = vmatprep.mubr.bf16.mxu0 0
    %5324 = vmatmul.mubr.bf16.gmra.mrb[0].mxu0 %v885
    %v5325 = vpop.f32.mrb[0].mxu0
    %v5326 = vadd.f32 %v5144, %v5325
    %v5327 = vpop.f32.mrb[0].mxu0
    %v5328 = vadd.f32 %v5148, %v5327
    %v5329 = vpop.f32.mrb[0].mxu0
    %v5330 = vadd.f32 %v5144, %v5329
    %v5331 = vpop.f32.mrb[0].mxu0
    %v5332 = vadd.f32 %v5148, %v5331
    %5333 = vmatprep.mubr.bf16.mxu0 0
    %5334 = vmatmul.mubr.bf16.gmra.mrb[0].mxu0 %v888
    %v5335 = vpop.f32.mrb[0].mxu0
    %v5336 = vadd.f32 %v5144, %v5335
    %v5337 = vpop.f32.mrb[0].mxu0
    %v5338 = vadd.f32 %v5148, %v5337
    %v5339 = vpop.f32.mrb[0].mxu0
    %v5340 = vadd.f32 %v5144, %v5339
    %v5341 = vpop.f32.mrb[0].mxu0
    %v5342 = vadd.f32 %v5148, %v5341
    %5343 = vmatprep.mubr.bf16.mxu0 0
    %5344 = vmatmul.mubr.bf16.gmra.mrb[0].mxu0 %v891
    %v5345 = vpop.f32.mrb[0].mxu0
    %v5346 = vadd.f32 %v5144, %v5345
    %v5347 = vpop.f32.mrb[0].mxu0
    %v5348 = vadd.f32 %v5148, %v5347
    %v5349 = vpop.f32.mrb[0].mxu0
    %v5350 = vadd.f32 %v5144, %v5349
    %v5351 = vpop.f32.mrb[0].mxu0
    %v5352 = vadd.f32 %v5148, %v5351
    %5353 = vmatprep.mubr.bf16.mxu0 0
    %5354 = vmatmul.mubr.bf16.gmra.mrb[0].mxu0 %v894
    %v5355 = vpop.f32.mrb[0].mxu0
    %v5356 = vadd.f32 %v5144, %v5355
    %v5357 = vpop.f32.mrb[0].mxu0
    %v5358 = vadd.f32 %v5148, %v5357
    %v5359 = vpop.f32.mrb[0].mxu0
    %v5360 = vadd.f32 %v5144, %v5359
    %v5361 = vpop.f32.mrb[0].mxu0
    %v5362 = vadd.f32 %v5148, %v5361
    %5363 = vmatprep.mubr.bf16.mxu0 0
    %5364 = vmatmul.mubr.bf16.gmra.mrb[0].mxu0 %v897
    %v5365 = vpop.f32.mrb[0].mxu0
    %v5366 = vadd.f32 %v5144, %v5365
    %v5367 = vpop.f32.mrb[0].mxu0
    %v5368 = vadd.f32 %v5148, %v5367
    %v5369 = vpop.f32.mrb[0].mxu0
    %v5370 = vadd.f32 %v5144, %v5369
    %v5371 = vpop.f32.mrb[0].mxu0
    %v5372 = vadd.f32 %v5148, %v5371
    %5373 = vmatprep.mubr.bf16.mxu0 0
    %5374 = vmatmul.mubr.bf16.gmra.mrb[0].mxu0 %v900
    %v5375 = vpop.f32.mrb[0].mxu0
    %v5376 = vadd.f32 %v5144, %v5375
    %v5377 = vpop.f32.mrb[0].mxu0
    %v5378 = vadd.f32 %v5148, %v5377
    %v5379 = vpop.f32.mrb[0].mxu0
    %v5380 = vadd.f32 %v5144, %v5379
    %v5381 = vpop.f32.mrb[0].mxu0
    %v5382 = vadd.f32 %v5148, %v5381
    %5383 = vmatprep.mubr.bf16.mxu0 0
    %5384 = vmatmul.mubr.bf16.gmra.mrb[0].mxu0 %v903
    %v5385 = vpop.f32.mrb[0].mxu0
    %v5386 = vadd.f32 %v5144, %v5385
    %v5387 = vpop.f32.mrb[0].mxu0
    %v5388 = vadd.f32 %v5148, %v5387
    %v5389 = vpop.f32.mrb[0].mxu0
    %v5390 = vadd.f32 %v5144, %v5389
    %v5391 = vpop.f32.mrb[0].mxu0
    %v5392 = vadd.f32 %v5148, %v5391
    %5393 = vmatprep.mubr.bf16.mxu0 0
    %5394 = vmatmul.mubr.bf16.gmra.mrb[0].mxu0 %v906
    %v5395 = vpop.f32.mrb[0].mxu0
    %v5396 = vadd.f32 %v5144, %v5395
    %v5397 = vpop.f32.mrb[0].mxu0
    %v5398 = vadd.f32 %v5148, %v5397
    %v5399 = vpop.f32.mrb[0].mxu0
    %v5400 = vadd.f32 %v5144, %v5399
    %v5401 = vpop.f32.mrb[0].mxu0
    %v5402 = vadd.f32 %v5148, %v5401
    %5403 = vmatprep.mubr.bf16.mxu0 0
    %5404 = vmatmul.mubr.bf16.gmra.mrb[0].mxu0 %v909
    %v5405 = vpop.f32.mrb[0].mxu0
    %v5406 = vadd.f32 %v5144, %v5405
    %v5407 = vpop.f32.mrb[0].mxu0
    %v5408 = vadd.f32 %v5148, %v5407
    %v5409 = vpop.f32.mrb[0].mxu0
    %v5410 = vadd.f32 %v5144, %v5409
    %v5411 = vpop.f32.mrb[0].mxu0
    %v5412 = vadd.f32 %v5148, %v5411
    %5413 = vmatprep.mubr.bf16.mxu0 0
    %5414 = vmatmul.mubr.bf16.gmra.mrb[0].mxu0 %v912
    %v5415 = vpop.f32.mrb[0].mxu0
    %v5416 = vadd.f32 %v5144, %v5415
    %v5417 = vpop.f32.mrb[0].mxu0
    %v5418 = vadd.f32 %v5148, %v5417
    %v5419 = vpop.f32.mrb[0].mxu0
    %v5420 = vadd.f32 %v5144, %v5419
    %v5421 = vpop.f32.mrb[0].mxu0
    %v5422 = vadd.f32 %v5148, %v5421
    %5423 = vmatprep.mubr.bf16.mxu0 0
    %5424 = vmatmul.mubr.bf16.gmra.mrb[0].mxu0 %v915
    %v5425 = vpop.f32.mrb[0].mxu0
    %v5426 = vadd.f32 %v5144, %v5425
    %v5427 = vpop.f32.mrb[0].mxu0
    %v5428 = vadd.f32 %v5148, %v5427
    %v5429 = vpop.f32.mrb[0].mxu0
    %v5430 = vadd.f32 %v5144, %v5429
    %v5431 = vpop.f32.mrb[0].mxu0
    %v5432 = vadd.f32 %v5148, %v5431
    %5433 = vdwg.mxu0
    %5434 = vmatprep.subr.bf16.mxu0 %v5212
    %5435 = vmatpush1.bf16.msra.mxu0 %v5211
    %5436 = vmatprep.subr.bf16.mxu0 %v5216
    %5437 = vmatpush1.bf16.msra.mxu0 %v5215
    %5438 = vmatprep.subr.bf16.mxu0 %v5220
    %5439 = vmatpush1.bf16.msra.mxu0 %v5219
    %5440 = vmatprep.subr.bf16.mxu0 %v5224
    %5441 = vmatpush1.bf16.msra.mxu0 %v5223
    %5442 = vmatprep.subr.bf16.mxu0 0
    %5443 = vmatpush1.bf16.msra.mxu0 0
    %5444 = vmatprep.subr.bf16.mxu0 0
    %5445 = vmatpush1.bf16.msra.mxu0 0
    %5446 = vmatprep.subr.bf16.mxu0 0
    %5447 = vmatpush1.bf16.msra.mxu0 0
    %5448 = vmatprep.subr.bf16.mxu0 0
    %5449 = vmatpush1.bf16.msra.mxu0 0
    %5450 = vmatprep.subr.bf16.mxu0 0
    %5451 = vmatpush1.bf16.msra.mxu0 0
    %5452 = vmatprep.subr.bf16.mxu0 0
    %5453 = vmatpush1.bf16.msra.mxu0 0
    %5454 = vmatprep.subr.bf16.mxu0 0
    %5455 = vmatpush1.bf16.msra.mxu0 0
    %5456 = vmatprep.subr.bf16.mxu0 0
    %5457 = vmatpush1.bf16.msra.mxu0 0
    %5458 = vmatprep.subr.bf16.mxu0 0
    %5459 = vmatpush1.bf16.msra.mxu0 0
    %5460 = vmatprep.subr.bf16.mxu0 0
    %5461 = vmatpush1.bf16.msra.mxu0 0
    %5462 = vmatprep.subr.bf16.mxu0 0
    %5463 = vmatpush1.bf16.msra.mxu0 0
    %5464 = vmatprep.subr.bf16.mxu0 0
    %5465 = vmatpush1.bf16.msra.mxu0 0
    %5466 = vmatprep.mubr.bf16.mxu0 0
    %5467 = vmatmul.mubr.bf16.gmra.mrb[0].mxu0 %v870
    %v5468 = vpop.f32.mrb[0].mxu0
    %v5469 = vadd.f32 %v5152, %v5468
    %v5470 = vpop.f32.mrb[0].mxu0
    %v5471 = vadd.f32 %v5156, %v5470
    %v5472 = vpop.f32.mrb[0].mxu0
    %v5473 = vadd.f32 %v5152, %v5472
    %v5474 = vpop.f32.mrb[0].mxu0
    %v5475 = vadd.f32 %v5156, %v5474
    %5476 = vmatprep.mubr.bf16.mxu0 0
    %5477 = vmatmul.mubr.bf16.gmra.mrb[0].mxu0 %v873
    %v5478 = vpop.f32.mrb[0].mxu0
    %v5479 = vadd.f32 %v5152, %v5478
    %v5480 = vpop.f32.mrb[0].mxu0
    %v5481 = vadd.f32 %v5156, %v5480
    %v5482 = vpop.f32.mrb[0].mxu0
    %v5483 = vadd.f32 %v5152, %v5482
    %v5484 = vpop.f32.mrb[0].mxu0
    %v5485 = vadd.f32 %v5156, %v5484
    %5486 = vmatprep.mubr.bf16.mxu0 0
    %5487 = vmatmul.mubr.bf16.gmra.mrb[0].mxu0 %v876
    %v5488 = vpop.f32.mrb[0].mxu0
    %v5489 = vadd.f32 %v5152, %v5488
    %v5490 = vpop.f32.mrb[0].mxu0
    %v5491 = vadd.f32 %v5156, %v5490
    %v5492 = vpop.f32.mrb[0].mxu0
    %v5493 = vadd.f32 %v5152, %v5492
    %v5494 = vpop.f32.mrb[0].mxu0
    %v5495 = vadd.f32 %v5156, %v5494
    %5496 = vmatprep.mubr.bf16.mxu0 0
    %5497 = vmatmul.mubr.bf16.gmra.mrb[0].mxu0 %v879
    %v5498 = vpop.f32.mrb[0].mxu0
    %v5499 = vadd.f32 %v5152, %v5498
    %v5500 = vpop.f32.mrb[0].mxu0
    %v5501 = vadd.f32 %v5156, %v5500
    %v5502 = vpop.f32.mrb[0].mxu0
    %v5503 = vadd.f32 %v5152, %v5502
    %v5504 = vpop.f32.mrb[0].mxu0
    %v5505 = vadd.f32 %v5156, %v5504
    %5506 = vmatprep.mubr.bf16.mxu0 0
    %5507 = vmatmul.mubr.bf16.gmra.mrb[0].mxu0 %v882
    %v5508 = vpop.f32.mrb[0].mxu0
    %v5509 = vadd.f32 %v5152, %v5508
    %v5510 = vpop.f32.mrb[0].mxu0
    %v5511 = vadd.f32 %v5156, %v5510
    %v5512 = vpop.f32.mrb[0].mxu0
    %v5513 = vadd.f32 %v5152, %v5512
    %v5514 = vpop.f32.mrb[0].mxu0
    %v5515 = vadd.f32 %v5156, %v5514
    %5516 = vmatprep.mubr.bf16.mxu0 0
    %5517 = vmatmul.mubr.bf16.gmra.mrb[0].mxu0 %v885
    %v5518 = vpop.f32.mrb[0].mxu0
    %v5519 = vadd.f32 %v5152, %v5518
    %v5520 = vpop.f32.mrb[0].mxu0
    %v5521 = vadd.f32 %v5156, %v5520
    %v5522 = vpop.f32.mrb[0].mxu0
    %v5523 = vadd.f32 %v5152, %v5522
    %v5524 = vpop.f32.mrb[0].mxu0
    %v5525 = vadd.f32 %v5156, %v5524
    %5526 = vmatprep.mubr.bf16.mxu0 0
    %5527 = vmatmul.mubr.bf16.gmra.mrb[0].mxu0 %v888
    %v5528 = vpop.f32.mrb[0].mxu0
    %v5529 = vadd.f32 %v5152, %v5528
    %v5530 = vpop.f32.mrb[0].mxu0
    %v5531 = vadd.f32 %v5156, %v5530
    %v5532 = vpop.f32.mrb[0].mxu0
    %v5533 = vadd.f32 %v5152, %v5532
    %v5534 = vpop.f32.mrb[0].mxu0
    %v5535 = vadd.f32 %v5156, %v5534
    %5536 = vmatprep.mubr.bf16.mxu0 0
    %5537 = vmatmul.mubr.bf16.gmra.mrb[0].mxu0 %v891
    %v5538 = vpop.f32.mrb[0].mxu0
    %v5539 = vadd.f32 %v5152, %v5538
    %v5540 = vpop.f32.mrb[0].mxu0
    %v5541 = vadd.f32 %v5156, %v5540
    %v5542 = vpop.f32.mrb[0].mxu0
    %v5543 = vadd.f32 %v5152, %v5542
    %v5544 = vpop.f32.mrb[0].mxu0
    %v5545 = vadd.f32 %v5156, %v5544
    %5546 = vmatprep.mubr.bf16.mxu0 0
    %5547 = vmatmul.mubr.bf16.gmra.mrb[0].mxu0 %v894
    %v5548 = vpop.f32.mrb[0].mxu0
    %v5549 = vadd.f32 %v5152, %v5548
    %v5550 = vpop.f32.mrb[0].mxu0
    %v5551 = vadd.f32 %v5156, %v5550
    %v5552 = vpop.f32.mrb[0].mxu0
    %v5553 = vadd.f32 %v5152, %v5552
    %v5554 = vpop.f32.mrb[0].mxu0
    %v5555 = vadd.f32 %v5156, %v5554
    %5556 = vmatprep.mubr.bf16.mxu0 0
    %5557 = vmatmul.mubr.bf16.gmra.mrb[0].mxu0 %v897
    %v5558 = vpop.f32.mrb[0].mxu0
    %v5559 = vadd.f32 %v5152, %v5558
    %v5560 = vpop.f32.mrb[0].mxu0
    %v5561 = vadd.f32 %v5156, %v5560
    %v5562 = vpop.f32.mrb[0].mxu0
    %v5563 = vadd.f32 %v5152, %v5562
    %v5564 = vpop.f32.mrb[0].mxu0
    %v5565 = vadd.f32 %v5156, %v5564
    %5566 = vmatprep.mubr.bf16.mxu0 0
    %5567 = vmatmul.mubr.bf16.gmra.mrb[0].mxu0 %v900
    %v5568 = vpop.f32.mrb[0].mxu0
    %v5569 = vadd.f32 %v5152, %v5568
    %v5570 = vpop.f32.mrb[0].mxu0
    %v5571 = vadd.f32 %v5156, %v5570
    %v5572 = vpop.f32.mrb[0].mxu0
    %v5573 = vadd.f32 %v5152, %v5572
    %v5574 = vpop.f32.mrb[0].mxu0
    %v5575 = vadd.f32 %v5156, %v5574
    %5576 = vmatprep.mubr.bf16.mxu0 0
    %5577 = vmatmul.mubr.bf16.gmra.mrb[0].mxu0 %v903
    %v5578 = vpop.f32.mrb[0].mxu0
    %v5579 = vadd.f32 %v5152, %v5578
    %v5580 = vpop.f32.mrb[0].mxu0
    %v5581 = vadd.f32 %v5156, %v5580
    %v5582 = vpop.f32.mrb[0].mxu0
    %v5583 = vadd.f32 %v5152, %v5582
    %v5584 = vpop.f32.mrb[0].mxu0
    %v5585 = vadd.f32 %v5156, %v5584
    %5586 = vmatprep.mubr.bf16.mxu0 0
    %5587 = vmatmul.mubr.bf16.gmra.mrb[0].mxu0 %v906
    %v5588 = vpop.f32.mrb[0].mxu0
    %v5589 = vadd.f32 %v5152, %v5588
    %v5590 = vpop.f32.mrb[0].mxu0
    %v5591 = vadd.f32 %v5156, %v5590
    %v5592 = vpop.f32.mrb[0].mxu0
    %v5593 = vadd.f32 %v5152, %v5592
    %v5594 = vpop.f32.mrb[0].mxu0
    %v5595 = vadd.f32 %v5156, %v5594
    %5596 = vmatprep.mubr.bf16.mxu0 0
    %5597 = vmatmul.mubr.bf16.gmra.mrb[0].mxu0 %v909
    %v5598 = vpop.f32.mrb[0].mxu0
    %v5599 = vadd.f32 %v5152, %v5598
    %v5600 = vpop.f32.mrb[0].mxu0
    %v5601 = vadd.f32 %v5156, %v5600
    %v5602 = vpop.f32.mrb[0].mxu0
    %v5603 = vadd.f32 %v5152, %v5602
    %v5604 = vpop.f32.mrb[0].mxu0
    %v5605 = vadd.f32 %v5156, %v5604
    %5606 = vmatprep.mubr.bf16.mxu0 0
    %5607 = vmatmul.mubr.bf16.gmra.mrb[0].mxu0 %v912
    %v5608 = vpop.f32.mrb[0].mxu0
    %v5609 = vadd.f32 %v5152, %v5608
    %v5610 = vpop.f32.mrb[0].mxu0
    %v5611 = vadd.f32 %v5156, %v5610
    %v5612 = vpop.f32.mrb[0].mxu0
    %v5613 = vadd.f32 %v5152, %v5612
    %v5614 = vpop.f32.mrb[0].mxu0
    %v5615 = vadd.f32 %v5156, %v5614
    %5616 = vmatprep.mubr.bf16.mxu0 0
    %5617 = vmatmul.mubr.bf16.gmra.mrb[0].mxu0 %v915
    %v5618 = vpop.f32.mrb[0].mxu0
    %v5619 = vadd.f32 %v5152, %v5618
    %v5620 = vpop.f32.mrb[0].mxu0
    %v5621 = vadd.f32 %v5156, %v5620
    %v5622 = vpop.f32.mrb[0].mxu0
    %v5623 = vadd.f32 %v5152, %v5622
    %v5624 = vpop.f32.mrb[0].mxu0
    %v5625 = vadd.f32 %v5156, %v5624
    %5626 = vdwg.mxu0
    %v5631 = vcombine.low %v4953, %v4955
    %v5632 = vcombine.low %v5117, %v5119
    %v5634 = vunpack.c.l.s4 1966171168
    %v5635 = vunpack.c.0.s8 %v5634
    %v5636 = vlaneseq
    %v5637 = vshrl.u32 %v5636, 7
    %v5638 = vsub.s32 %v5635, %v5637
    %v5639 = vrot.slane %v5631, %v5638
    %v5641 = vunpack.c.l.s4 1966171168
    %v5642 = vunpack.c.0.s8 %v5641
    %v5643 = vlaneseq
    %v5644 = vshrl.u32 %v5643, 7
    %v5645 = vsub.s32 %v5642, %v5644
    %v5646 = vrot.slane %v5632, %v5645
    %v5647 = vcombine.low %v5639, %v5646
    %v5648 = vcombine.high %v5639, %v5646
    %v5650 = vunpack.c.l.s4 1966171168
    %v5651 = vunpack.c.0.s8 %v5650
    %v5652 = vlaneseq
    %v5653 = vshrl.u32 %v5652, 7
    %v5654 = vsub.s32 %v5651, %v5653
    %v5655 = vrot.slane %v5647, %v5654
    %v5657 = vunpack.c.l.s4 1966171168
    %v5658 = vunpack.c.0.s8 %v5657
    %v5659 = vlaneseq
    %v5660 = vshrl.u32 %v5659, 7
    %v5661 = vsub.s32 %v5658, %v5660
    %v5662 = vrot.slane %v5648, %v5661
    %v5663 = vlaneseq
    %v5664 = vshrl.u32 %v5663, 7
    %v5665 = vsub.s32 0, %v5664
    %v5666 = vrot.slane %v5655, %v5665
    %v5667 = vlaneseq
    %v5668 = vshrl.u32 %v5667, 7
    %v5669 = vsub.s32 1, %v5668
    %v5670 = vrot.slane %v5655, %v5669
    %v5671 = vlaneseq
    %v5672 = vshrl.u32 %v5671, 7
    %v5673 = vsub.s32 2, %v5672
    %v5674 = vrot.slane %v5655, %v5673
    %v5675 = vlaneseq
    %v5676 = vshrl.u32 %v5675, 7
    %v5677 = vsub.s32 3, %v5676
    %v5678 = vrot.slane %v5655, %v5677
    %v5679 = vlaneseq
    %v5680 = vshrl.u32 %v5679, 7
    %v5681 = vsub.s32 0, %v5680
    %v5682 = vrot.slane %v5662, %v5681
    %v5683 = vlaneseq
    %v5684 = vshrl.u32 %v5683, 7
    %v5685 = vsub.s32 1, %v5684
    %v5686 = vrot.slane %v5662, %v5685
    %v5687 = vlaneseq
    %v5688 = vshrl.u32 %v5687, 7
    %v5689 = vsub.s32 2, %v5688
    %v5690 = vrot.slane %v5662, %v5689
    %v5691 = vlaneseq
    %v5692 = vshrl.u32 %v5691, 7
    %v5693 = vsub.s32 3, %v5692
    %v5694 = vrot.slane %v5662, %v5693
    %v5703 = vadd.f32 %v5276, %v5666
    %v5704 = vadd.f32 %v5278, %v5670
    %v5705 = vadd.f32 %v5469, %v5674
    %v5706 = vadd.f32 %v5471, %v5678
    %v5707 = vadd.f32 %v5280, %v5666
    %v5708 = vadd.f32 %v5282, %v5670
    %v5709 = vadd.f32 %v5473, %v5674
    %v5710 = vadd.f32 %v5475, %v5678
    %v5711 = vadd.f32 %v5286, %v5666
    %v5712 = vadd.f32 %v5288, %v5670
    %v5713 = vadd.f32 %v5479, %v5674
    %v5714 = vadd.f32 %v5481, %v5678
    %v5715 = vadd.f32 %v5290, %v5666
    %v5716 = vadd.f32 %v5292, %v5670
    %v5717 = vadd.f32 %v5483, %v5674
    %v5718 = vadd.f32 %v5485, %v5678
    %v5719 = vadd.f32 %v5296, %v5666
    %v5720 = vadd.f32 %v5298, %v5670
    %v5721 = vadd.f32 %v5489, %v5674
    %v5722 = vadd.f32 %v5491, %v5678
    %v5723 = vadd.f32 %v5300, %v5666
    %v5724 = vadd.f32 %v5302, %v5670
    %v5725 = vadd.f32 %v5493, %v5674
    %v5726 = vadd.f32 %v5495, %v5678
    %v5727 = vadd.f32 %v5306, %v5666
    %v5728 = vadd.f32 %v5308, %v5670
    %v5729 = vadd.f32 %v5499, %v5674
    %v5730 = vadd.f32 %v5501, %v5678
    %v5731 = vadd.f32 %v5310, %v5666
    %v5732 = vadd.f32 %v5312, %v5670
    %v5733 = vadd.f32 %v5503, %v5674
    %v5734 = vadd.f32 %v5505, %v5678
    %v5735 = vadd.f32 %v5316, %v5666
    %v5736 = vadd.f32 %v5318, %v5670
    %v5737 = vadd.f32 %v5509, %v5674
    %v5738 = vadd.f32 %v5511, %v5678
    %v5739 = vadd.f32 %v5320, %v5666
    %v5740 = vadd.f32 %v5322, %v5670
    %v5741 = vadd.f32 %v5513, %v5674
    %v5742 = vadd.f32 %v5515, %v5678
    %v5743 = vadd.f32 %v5326, %v5666
    %v5744 = vadd.f32 %v5328, %v5670
    %v5745 = vadd.f32 %v5519, %v5674
    %v5746 = vadd.f32 %v5521, %v5678
    %v5747 = vadd.f32 %v5330, %v5666
    %v5748 = vadd.f32 %v5332, %v5670
    %v5749 = vadd.f32 %v5523, %v5674
    %v5750 = vadd.f32 %v5525, %v5678
    %v5751 = vadd.f32 %v5336, %v5666
    %v5752 = vadd.f32 %v5338, %v5670
    %v5753 = vadd.f32 %v5529, %v5674
    %v5754 = vadd.f32 %v5531, %v5678
    %v5755 = vadd.f32 %v5340, %v5666
    %v5756 = vadd.f32 %v5342, %v5670
    %v5757 = vadd.f32 %v5533, %v5674
    %v5758 = vadd.f32 %v5535, %v5678
    %v5759 = vadd.f32 %v5346, %v5666
    %v5760 = vadd.f32 %v5348, %v5670
    %v5761 = vadd.f32 %v5539, %v5674
    %v5762 = vadd.f32 %v5541, %v5678
    %v5763 = vadd.f32 %v5350, %v5666
    %v5764 = vadd.f32 %v5352, %v5670
    %v5765 = vadd.f32 %v5543, %v5674
    %v5766 = vadd.f32 %v5545, %v5678
    %v5767 = vadd.f32 %v5356, %v5682
    %v5768 = vadd.f32 %v5358, %v5686
    %v5769 = vadd.f32 %v5549, %v5690
    %v5770 = vadd.f32 %v5551, %v5694
    %v5771 = vadd.f32 %v5360, %v5682
    %v5772 = vadd.f32 %v5362, %v5686
    %v5773 = vadd.f32 %v5553, %v5690
    %v5774 = vadd.f32 %v5555, %v5694
    %v5775 = vadd.f32 %v5366, %v5682
    %v5776 = vadd.f32 %v5368, %v5686
    %v5777 = vadd.f32 %v5559, %v5690
    %v5778 = vadd.f32 %v5561, %v5694
    %v5779 = vadd.f32 %v5370, %v5682
    %v5780 = vadd.f32 %v5372, %v5686
    %v5781 = vadd.f32 %v5563, %v5690
    %v5782 = vadd.f32 %v5565, %v5694
    %v5783 = vadd.f32 %v5376, %v5682
    %v5784 = vadd.f32 %v5378, %v5686
    %v5785 = vadd.f32 %v5569, %v5690
    %v5786 = vadd.f32 %v5571, %v5694
    %v5787 = vadd.f32 %v5380, %v5682
    %v5788 = vadd.f32 %v5382, %v5686
    %v5789 = vadd.f32 %v5573, %v5690
    %v5790 = vadd.f32 %v5575, %v5694
    %v5791 = vadd.f32 %v5386, %v5682
    %v5792 = vadd.f32 %v5388, %v5686
    %v5793 = vadd.f32 %v5579, %v5690
    %v5794 = vadd.f32 %v5581, %v5694
    %v5795 = vadd.f32 %v5390, %v5682
    %v5796 = vadd.f32 %v5392, %v5686
    %v5797 = vadd.f32 %v5583, %v5690
    %v5798 = vadd.f32 %v5585, %v5694
    %v5799 = vadd.f32 %v5396, %v5682
    %v5800 = vadd.f32 %v5398, %v5686
    %v5801 = vadd.f32 %v5589, %v5690
    %v5802 = vadd.f32 %v5591, %v5694
    %v5803 = vadd.f32 %v5400, %v5682
    %v5804 = vadd.f32 %v5402, %v5686
    %v5805 = vadd.f32 %v5593, %v5690
    %v5806 = vadd.f32 %v5595, %v5694
    %v5807 = vadd.f32 %v5406, %v5682
    %v5808 = vadd.f32 %v5408, %v5686
    %v5809 = vadd.f32 %v5599, %v5690
    %v5810 = vadd.f32 %v5601, %v5694
    %v5811 = vadd.f32 %v5410, %v5682
    %v5812 = vadd.f32 %v5412, %v5686
    %v5813 = vadd.f32 %v5603, %v5690
    %v5814 = vadd.f32 %v5605, %v5694
    %v5815 = vadd.f32 %v5416, %v5682
    %v5816 = vadd.f32 %v5418, %v5686
    %v5817 = vadd.f32 %v5609, %v5690
    %v5818 = vadd.f32 %v5611, %v5694
    %v5819 = vadd.f32 %v5420, %v5682
    %v5820 = vadd.f32 %v5422, %v5686
    %v5821 = vadd.f32 %v5613, %v5690
    %v5822 = vadd.f32 %v5615, %v5694
    %v5823 = vadd.f32 %v5426, %v5682
    %v5824 = vadd.f32 %v5428, %v5686
    %v5825 = vadd.f32 %v5619, %v5690
    %v5826 = vadd.f32 %v5621, %v5694
    %v5827 = vadd.f32 %v5430, %v5682
    %v5828 = vadd.f32 %v5432, %v5686
    %v5829 = vadd.f32 %v5623, %v5690
    %v5830 = vadd.f32 %v5625, %v5694
    %v5831 = vmax.f32 %v5703, 0.0
    %v5832 = vmax.f32 %v5704, 0.0
    %v5833 = vmax.f32 %v5705, 0.0
    %v5834 = vmax.f32 %v5706, 0.0
    %v5835 = vmax.f32 %v5707, 0.0
    %v5836 = vmax.f32 %v5708, 0.0
    %v5837 = vmax.f32 %v5709, 0.0
    %v5838 = vmax.f32 %v5710, 0.0
    %v5839 = vmax.f32 %v5711, 0.0
    %v5840 = vmax.f32 %v5712, 0.0
    %v5841 = vmax.f32 %v5713, 0.0
    %v5842 = vmax.f32 %v5714, 0.0
    %v5843 = vmax.f32 %v5715, 0.0
    %v5844 = vmax.f32 %v5716, 0.0
    %v5845 = vmax.f32 %v5717, 0.0
    %v5846 = vmax.f32 %v5718, 0.0
    %v5847 = vmax.f32 %v5719, 0.0
    %v5848 = vmax.f32 %v5720, 0.0
    %v5849 = vmax.f32 %v5721, 0.0
    %v5850 = vmax.f32 %v5722, 0.0
    %v5851 = vmax.f32 %v5723, 0.0
    %v5852 = vmax.f32 %v5724, 0.0
    %v5853 = vmax.f32 %v5725, 0.0
    %v5854 = vmax.f32 %v5726, 0.0
    %v5855 = vmax.f32 %v5727, 0.0
    %v5856 = vmax.f32 %v5728, 0.0
    %v5857 = vmax.f32 %v5729, 0.0
    %v5858 = vmax.f32 %v5730, 0.0
    %v5859 = vmax.f32 %v5731, 0.0
    %v5860 = vmax.f32 %v5732, 0.0
    %v5861 = vmax.f32 %v5733, 0.0
    %v5862 = vmax.f32 %v5734, 0.0
    %v5863 = vmax.f32 %v5735, 0.0
    %v5864 = vmax.f32 %v5736, 0.0
    %v5865 = vmax.f32 %v5737, 0.0
    %v5866 = vmax.f32 %v5738, 0.0
    %v5867 = vmax.f32 %v5739, 0.0
    %v5868 = vmax.f32 %v5740, 0.0
    %v5869 = vmax.f32 %v5741, 0.0
    %v5870 = vmax.f32 %v5742, 0.0
    %v5871 = vmax.f32 %v5743, 0.0
    %v5872 = vmax.f32 %v5744, 0.0
    %v5873 = vmax.f32 %v5745, 0.0
    %v5874 = vmax.f32 %v5746, 0.0
    %v5875 = vmax.f32 %v5747, 0.0
    %v5876 = vmax.f32 %v5748, 0.0
    %v5877 = vmax.f32 %v5749, 0.0
    %v5878 = vmax.f32 %v5750, 0.0
    %v5879 = vmax.f32 %v5751, 0.0
    %v5880 = vmax.f32 %v5752, 0.0
    %v5881 = vmax.f32 %v5753, 0.0
    %v5882 = vmax.f32 %v5754, 0.0
    %v5883 = vmax.f32 %v5755, 0.0
    %v5884 = vmax.f32 %v5756, 0.0
    %v5885 = vmax.f32 %v5757, 0.0
    %v5886 = vmax.f32 %v5758, 0.0
    %v5887 = vmax.f32 %v5759, 0.0
    %v5888 = vmax.f32 %v5760, 0.0
    %v5889 = vmax.f32 %v5761, 0.0
    %v5890 = vmax.f32 %v5762, 0.0
    %v5891 = vmax.f32 %v5763, 0.0
    %v5892 = vmax.f32 %v5764, 0.0
    %v5893 = vmax.f32 %v5765, 0.0
    %v5894 = vmax.f32 %v5766, 0.0
    %v5895 = vmax.f32 %v5767, 0.0
    %v5896 = vmax.f32 %v5768, 0.0
    %v5897 = vmax.f32 %v5769, 0.0
    %v5898 = vmax.f32 %v5770, 0.0
    %v5899 = vmax.f32 %v5771, 0.0
    %v5900 = vmax.f32 %v5772, 0.0
    %v5901 = vmax.f32 %v5773, 0.0
    %v5902 = vmax.f32 %v5774, 0.0
    %v5903 = vmax.f32 %v5775, 0.0
    %v5904 = vmax.f32 %v5776, 0.0
    %v5905 = vmax.f32 %v5777, 0.0
    %v5906 = vmax.f32 %v5778, 0.0
    %v5907 = vmax.f32 %v5779, 0.0
    %v5908 = vmax.f32 %v5780, 0.0
    %v5909 = vmax.f32 %v5781, 0.0
    %v5910 = vmax.f32 %v5782, 0.0
    %v5911 = vmax.f32 %v5783, 0.0
    %v5912 = vmax.f32 %v5784, 0.0
    %v5913 = vmax.f32 %v5785, 0.0
    %v5914 = vmax.f32 %v5786, 0.0
    %v5915 = vmax.f32 %v5787, 0.0
    %v5916 = vmax.f32 %v5788, 0.0
    %v5917 = vmax.f32 %v5789, 0.0
    %v5918 = vmax.f32 %v5790, 0.0
    %v5919 = vmax.f32 %v5791, 0.0
    %v5920 = vmax.f32 %v5792, 0.0
    %v5921 = vmax.f32 %v5793, 0.0
    %v5922 = vmax.f32 %v5794, 0.0
    %v5923 = vmax.f32 %v5795, 0.0
    %v5924 = vmax.f32 %v5796, 0.0
    %v5925 = vmax.f32 %v5797, 0.0
    %v5926 = vmax.f32 %v5798, 0.0
    %v5927 = vmax.f32 %v5799, 0.0
    %v5928 = vmax.f32 %v5800, 0.0
    %v5929 = vmax.f32 %v5801, 0.0
    %v5930 = vmax.f32 %v5802, 0.0
    %v5931 = vmax.f32 %v5803, 0.0
    %v5932 = vmax.f32 %v5804, 0.0
    %v5933 = vmax.f32 %v5805, 0.0
    %v5934 = vmax.f32 %v5806, 0.0
    %v5935 = vmax.f32 %v5807, 0.0
    %v5936 = vmax.f32 %v5808, 0.0
    %v5937 = vmax.f32 %v5809, 0.0
    %v5938 = vmax.f32 %v5810, 0.0
    %v5939 = vmax.f32 %v5811, 0.0
    %v5940 = vmax.f32 %v5812, 0.0
    %v5941 = vmax.f32 %v5813, 0.0
    %v5942 = vmax.f32 %v5814, 0.0
    %v5943 = vmax.f32 %v5815, 0.0
    %v5944 = vmax.f32 %v5816, 0.0
    %v5945 = vmax.f32 %v5817, 0.0
    %v5946 = vmax.f32 %v5818, 0.0
    %v5947 = vmax.f32 %v5819, 0.0
    %v5948 = vmax.f32 %v5820, 0.0
    %v5949 = vmax.f32 %v5821, 0.0
    %v5950 = vmax.f32 %v5822, 0.0
    %v5951 = vmax.f32 %v5823, 0.0
    %v5952 = vmax.f32 %v5824, 0.0
    %v5953 = vmax.f32 %v5825, 0.0
    %v5954 = vmax.f32 %v5826, 0.0
    %v5955 = vmax.f32 %v5827, 0.0
    %v5956 = vmax.f32 %v5828, 0.0
    %v5957 = vmax.f32 %v5829, 0.0
    %v5958 = vmax.f32 %v5830, 0.0
    %v5959 = vld [vmem:[#allocation16] sm:$0xff]
    %v5960 = vld [vmem:[#allocation16 + $0x8] sm:$0xff]
    %v5961 = vld [vmem:[#allocation16 + $0x10] sm:$0xff]
    %v5962 = vld [vmem:[#allocation16 + $0x18] sm:$0xff]
    %v5963 = vld [vmem:[#allocation16 + $0x20] sm:$0xff]
    %v5964 = vld [vmem:[#allocation16 + $0x28] sm:$0xff]
    %v5965 = vld [vmem:[#allocation16 + $0x30] sm:$0xff]
    %v5966 = vld [vmem:[#allocation16 + $0x38] sm:$0xff]
    %v5967 = vld [vmem:[#allocation16 + $0x40] sm:$0xff]
    %v5968 = vld [vmem:[#allocation16 + $0x48] sm:$0xff]
    %v5969 = vld [vmem:[#allocation16 + $0x50] sm:$0xff]
    %v5970 = vld [vmem:[#allocation16 + $0x58] sm:$0xff]
    %v5971 = vld [vmem:[#allocation16 + $0x60] sm:$0xff]
    %v5972 = vld [vmem:[#allocation16 + $0x68] sm:$0xff]
    %v5973 = vld [vmem:[#allocation16 + $0x70] sm:$0xff]
    %v5974 = vld [vmem:[#allocation16 + $0x78] sm:$0xff]
    %v5975 = vld [vmem:[#allocation16 + $0x80] sm:$0xff]
    %v5976 = vld [vmem:[#allocation16 + $0x88] sm:$0xff]
    %v5977 = vld [vmem:[#allocation16 + $0x90] sm:$0xff]
    %v5978 = vld [vmem:[#allocation16 + $0x98] sm:$0xff]
    %v5979 = vld [vmem:[#allocation16 + $0xa0] sm:$0xff]
    %v5980 = vld [vmem:[#allocation16 + $0xa8] sm:$0xff]
    %v5981 = vld [vmem:[#allocation16 + $0xb0] sm:$0xff]
    %v5982 = vld [vmem:[#allocation16 + $0xb8] sm:$0xff]
    %v5983 = vld [vmem:[#allocation16 + $0xc0] sm:$0xff]
    %v5984 = vld [vmem:[#allocation16 + $0xc8] sm:$0xff]
    %v5985 = vld [vmem:[#allocation16 + $0xd0] sm:$0xff]
    %v5986 = vld [vmem:[#allocation16 + $0xd8] sm:$0xff]
    %v5987 = vld [vmem:[#allocation16 + $0xe0] sm:$0xff]
    %v5988 = vld [vmem:[#allocation16 + $0xe8] sm:$0xff]
    %v5989 = vld [vmem:[#allocation16 + $0xf0] sm:$0xff]
    %v5990 = vld [vmem:[#allocation16 + $0xf8] sm:$0xff]
    %v5991 = vld [vmem:[#allocation16 + $0x100] sm:$0xff]
    %v5992 = vld [vmem:[#allocation16 + $0x108] sm:$0xff]
    %v5993 = vld [vmem:[#allocation16 + $0x110] sm:$0xff]
    %v5994 = vld [vmem:[#allocation16 + $0x118] sm:$0xff]
    %v5995 = vld [vmem:[#allocation16 + $0x120] sm:$0xff]
    %v5996 = vld [vmem:[#allocation16 + $0x128] sm:$0xff]
    %v5997 = vld [vmem:[#allocation16 + $0x130] sm:$0xff]
    %v5998 = vld [vmem:[#allocation16 + $0x138] sm:$0xff]
    %v5999 = vld [vmem:[#allocation16 + $0x140] sm:$0xff]
    %v6000 = vld [vmem:[#allocation16 + $0x148] sm:$0xff]
    %v6001 = vld [vmem:[#allocation16 + $0x150] sm:$0xff]
    %v6002 = vld [vmem:[#allocation16 + $0x158] sm:$0xff]
    %v6003 = vld [vmem:[#allocation16 + $0x160] sm:$0xff]
    %v6004 = vld [vmem:[#allocation16 + $0x168] sm:$0xff]
    %v6005 = vld [vmem:[#allocation16 + $0x170] sm:$0xff]
    %v6006 = vld [vmem:[#allocation16 + $0x178] sm:$0xff]
    %v6007 = vld [vmem:[#allocation16 + $0x180] sm:$0xff]
    %v6008 = vld [vmem:[#allocation16 + $0x188] sm:$0xff]
    %v6009 = vld [vmem:[#allocation16 + $0x190] sm:$0xff]
    %v6010 = vld [vmem:[#allocation16 + $0x198] sm:$0xff]
    %v6011 = vld [vmem:[#allocation16 + $0x1a0] sm:$0xff]
    %v6012 = vld [vmem:[#allocation16 + $0x1a8] sm:$0xff]
    %v6013 = vld [vmem:[#allocation16 + $0x1b0] sm:$0xff]
    %v6014 = vld [vmem:[#allocation16 + $0x1b8] sm:$0xff]
    %v6015 = vld [vmem:[#allocation16 + $0x1c0] sm:$0xff]
    %v6016 = vld [vmem:[#allocation16 + $0x1c8] sm:$0xff]
    %v6017 = vld [vmem:[#allocation16 + $0x1d0] sm:$0xff]
    %v6018 = vld [vmem:[#allocation16 + $0x1d8] sm:$0xff]
    %v6019 = vld [vmem:[#allocation16 + $0x1e0] sm:$0xff]
    %v6020 = vld [vmem:[#allocation16 + $0x1e8] sm:$0xff]
    %v6021 = vld [vmem:[#allocation16 + $0x1f0] sm:$0xff]
    %v6022 = vld [vmem:[#allocation16 + $0x1f8] sm:$0xff]
    %v6023 = vpack.c.bf16 %v5835, %v5831
    %v6024 = vpack.c.bf16 %v5836, %v5832
    %v6025 = vpack.c.bf16 %v5837, %v5833
    %v6026 = vpack.c.bf16 %v5838, %v5834
    %v6027 = vpack.c.bf16 %v5843, %v5839
    %v6028 = vpack.c.bf16 %v5844, %v5840
    %v6029 = vpack.c.bf16 %v5845, %v5841
    %v6030 = vpack.c.bf16 %v5846, %v5842
    %v6031 = vpack.c.bf16 %v5851, %v5847
    %v6032 = vpack.c.bf16 %v5852, %v5848
    %v6033 = vpack.c.bf16 %v5853, %v5849
    %v6034 = vpack.c.bf16 %v5854, %v5850
    %v6035 = vpack.c.bf16 %v5859, %v5855
    %v6036 = vpack.c.bf16 %v5860, %v5856
    %v6037 = vpack.c.bf16 %v5861, %v5857
    %v6038 = vpack.c.bf16 %v5862, %v5858
    %v6039 = vpack.c.bf16 %v5867, %v5863
    %v6040 = vpack.c.bf16 %v5868, %v5864
    %v6041 = vpack.c.bf16 %v5869, %v5865
    %v6042 = vpack.c.bf16 %v5870, %v5866
    %v6043 = vpack.c.bf16 %v5875, %v5871
    %v6044 = vpack.c.bf16 %v5876, %v5872
    %v6045 = vpack.c.bf16 %v5877, %v5873
    %v6046 = vpack.c.bf16 %v5878, %v5874
    %v6047 = vpack.c.bf16 %v5883, %v5879
    %v6048 = vpack.c.bf16 %v5884, %v5880
    %v6049 = vpack.c.bf16 %v5885, %v5881
    %v6050 = vpack.c.bf16 %v5886, %v5882
    %v6051 = vpack.c.bf16 %v5891, %v5887
    %v6052 = vpack.c.bf16 %v5892, %v5888
    %v6053 = vpack.c.bf16 %v5893, %v5889
    %v6054 = vpack.c.bf16 %v5894, %v5890
    %v6055 = vpack.c.bf16 %v5899, %v5895
    %v6056 = vpack.c.bf16 %v5900, %v5896
    %v6057 = vpack.c.bf16 %v5901, %v5897
    %v6058 = vpack.c.bf16 %v5902, %v5898
    %v6059 = vpack.c.bf16 %v5907, %v5903
    %v6060 = vpack.c.bf16 %v5908, %v5904
    %v6061 = vpack.c.bf16 %v5909, %v5905
    %v6062 = vpack.c.bf16 %v5910, %v5906
    %v6063 = vpack.c.bf16 %v5915, %v5911
    %v6064 = vpack.c.bf16 %v5916, %v5912
    %v6065 = vpack.c.bf16 %v5917, %v5913
    %v6066 = vpack.c.bf16 %v5918, %v5914
    %v6067 = vpack.c.bf16 %v5923, %v5919
    %v6068 = vpack.c.bf16 %v5924, %v5920
    %v6069 = vpack.c.bf16 %v5925, %v5921
    %v6070 = vpack.c.bf16 %v5926, %v5922
    %v6071 = vpack.c.bf16 %v5931, %v5927
    %v6072 = vpack.c.bf16 %v5932, %v5928
    %v6073 = vpack.c.bf16 %v5933, %v5929
    %v6074 = vpack.c.bf16 %v5934, %v5930
    %v6075 = vpack.c.bf16 %v5939, %v5935
    %v6076 = vpack.c.bf16 %v5940, %v5936
    %v6077 = vpack.c.bf16 %v5941, %v5937
    %v6078 = vpack.c.bf16 %v5942, %v5938
    %v6079 = vpack.c.bf16 %v5947, %v5943
    %v6080 = vpack.c.bf16 %v5948, %v5944
    %v6081 = vpack.c.bf16 %v5949, %v5945
    %v6082 = vpack.c.bf16 %v5950, %v5946
    %v6083 = vpack.c.bf16 %v5955, %v5951
    %v6084 = vpack.c.bf16 %v5956, %v5952
    %v6085 = vpack.c.bf16 %v5957, %v5953
    %v6086 = vpack.c.bf16 %v5958, %v5954
    %v6087 = vld [vmem:[%s15] sm:$0x3]
    %v6089 = vlaneseq
    %v6090 = vshrl.u32 %v6089, 7
    %v6091 = vsub.s32 0, %v6090
    %v6092 = vrot.slane %v6087, %v6091
    %v6093 = vlaneseq
    %v6094 = vshrl.u32 %v6093, 7
    %v6095 = vsub.s32 1, %v6094
    %v6096 = vrot.slane %v6087, %v6095
    %v6163 = vunpack.c.l.b16 %v5959
    %v6164 = vunpack.c.h.b16 %v5959
    %v6165 = vunpack.c.l.b16 %v5960
    %v6166 = vunpack.c.h.b16 %v5960
    %v6167 = vunpack.c.l.b16 %v5961
    %v6168 = vunpack.c.h.b16 %v5961
    %v6169 = vunpack.c.l.b16 %v5962
    %v6170 = vunpack.c.h.b16 %v5962
    %v6171 = vunpack.c.l.b16 %v5963
    %v6172 = vunpack.c.h.b16 %v5963
    %v6173 = vunpack.c.l.b16 %v5964
    %v6174 = vunpack.c.h.b16 %v5964
    %v6175 = vunpack.c.l.b16 %v5965
    %v6176 = vunpack.c.h.b16 %v5965
    %v6177 = vunpack.c.l.b16 %v5966
    %v6178 = vunpack.c.h.b16 %v5966
    %v6179 = vunpack.c.l.b16 %v5967
    %v6180 = vunpack.c.h.b16 %v5967
    %v6181 = vunpack.c.l.b16 %v5968
    %v6182 = vunpack.c.h.b16 %v5968
    %v6183 = vunpack.c.l.b16 %v5969
    %v6184 = vunpack.c.h.b16 %v5969
    %v6185 = vunpack.c.l.b16 %v5970
    %v6186 = vunpack.c.h.b16 %v5970
    %v6187 = vunpack.c.l.b16 %v5971
    %v6188 = vunpack.c.h.b16 %v5971
    %v6189 = vunpack.c.l.b16 %v5972
    %v6190 = vunpack.c.h.b16 %v5972
    %v6191 = vunpack.c.l.b16 %v5973
    %v6192 = vunpack.c.h.b16 %v5973
    %v6193 = vunpack.c.l.b16 %v5974
    %v6194 = vunpack.c.h.b16 %v5974
    %v6195 = vunpack.c.l.b16 %v5975
    %v6196 = vunpack.c.h.b16 %v5975
    %v6197 = vunpack.c.l.b16 %v5976
    %v6198 = vunpack.c.h.b16 %v5976
    %v6199 = vunpack.c.l.b16 %v5977
    %v6200 = vunpack.c.h.b16 %v5977
    %v6201 = vunpack.c.l.b16 %v5978
    %v6202 = vunpack.c.h.b16 %v5978
    %v6203 = vunpack.c.l.b16 %v5979
    %v6204 = vunpack.c.h.b16 %v5979
    %v6205 = vunpack.c.l.b16 %v5980
    %v6206 = vunpack.c.h.b16 %v5980
    %v6207 = vunpack.c.l.b16 %v5981
    %v6208 = vunpack.c.h.b16 %v5981
    %v6209 = vunpack.c.l.b16 %v5982
    %v6210 = vunpack.c.h.b16 %v5982
    %v6211 = vunpack.c.l.b16 %v5983
    %v6212 = vunpack.c.h.b16 %v5983
    %v6213 = vunpack.c.l.b16 %v5984
    %v6214 = vunpack.c.h.b16 %v5984
    %v6215 = vunpack.c.l.b16 %v5985
    %v6216 = vunpack.c.h.b16 %v5985
    %v6217 = vunpack.c.l.b16 %v5986
    %v6218 = vunpack.c.h.b16 %v5986
    %v6219 = vunpack.c.l.b16 %v5987
    %v6220 = vunpack.c.h.b16 %v5987
    %v6221 = vunpack.c.l.b16 %v5988
    %v6222 = vunpack.c.h.b16 %v5988
    %v6223 = vunpack.c.l.b16 %v5989
    %v6224 = vunpack.c.h.b16 %v5989
    %v6225 = vunpack.c.l.b16 %v5990
    %v6226 = vunpack.c.h.b16 %v5990
    %v6227 = vunpack.c.l.b16 %v5991
    %v6228 = vunpack.c.h.b16 %v5991
    %v6229 = vunpack.c.l.b16 %v5992
    %v6230 = vunpack.c.h.b16 %v5992
    %v6231 = vunpack.c.l.b16 %v5993
    %v6232 = vunpack.c.h.b16 %v5993
    %v6233 = vunpack.c.l.b16 %v5994
    %v6234 = vunpack.c.h.b16 %v5994
    %v6235 = vunpack.c.l.b16 %v5995
    %v6236 = vunpack.c.h.b16 %v5995
    %v6237 = vunpack.c.l.b16 %v5996
    %v6238 = vunpack.c.h.b16 %v5996
    %v6239 = vunpack.c.l.b16 %v5997
    %v6240 = vunpack.c.h.b16 %v5997
    %v6241 = vunpack.c.l.b16 %v5998
    %v6242 = vunpack.c.h.b16 %v5998
    %v6243 = vunpack.c.l.b16 %v5999
    %v6244 = vunpack.c.h.b16 %v5999
    %v6245 = vunpack.c.l.b16 %v6000
    %v6246 = vunpack.c.h.b16 %v6000
    %v6247 = vunpack.c.l.b16 %v6001
    %v6248 = vunpack.c.h.b16 %v6001
    %v6249 = vunpack.c.l.b16 %v6002
    %v6250 = vunpack.c.h.b16 %v6002
    %v6251 = vunpack.c.l.b16 %v6003
    %v6252 = vunpack.c.h.b16 %v6003
    %v6253 = vunpack.c.l.b16 %v6004
    %v6254 = vunpack.c.h.b16 %v6004
    %v6255 = vunpack.c.l.b16 %v6005
    %v6256 = vunpack.c.h.b16 %v6005
    %v6257 = vunpack.c.l.b16 %v6006
    %v6258 = vunpack.c.h.b16 %v6006
    %v6259 = vunpack.c.l.b16 %v6007
    %v6260 = vunpack.c.h.b16 %v6007
    %v6261 = vunpack.c.l.b16 %v6008
    %v6262 = vunpack.c.h.b16 %v6008
    %v6263 = vunpack.c.l.b16 %v6009
    %v6264 = vunpack.c.h.b16 %v6009
    %v6265 = vunpack.c.l.b16 %v6010
    %v6266 = vunpack.c.h.b16 %v6010
    %v6267 = vunpack.c.l.b16 %v6011
    %v6268 = vunpack.c.h.b16 %v6011
    %v6269 = vunpack.c.l.b16 %v6012
    %v6270 = vunpack.c.h.b16 %v6012
    %v6271 = vunpack.c.l.b16 %v6013
    %v6272 = vunpack.c.h.b16 %v6013
    %v6273 = vunpack.c.l.b16 %v6014
    %v6274 = vunpack.c.h.b16 %v6014
    %v6275 = vunpack.c.l.b16 %v6015
    %v6276 = vunpack.c.h.b16 %v6015
    %v6277 = vunpack.c.l.b16 %v6016
    %v6278 = vunpack.c.h.b16 %v6016
    %v6279 = vunpack.c.l.b16 %v6017
    %v6280 = vunpack.c.h.b16 %v6017
    %v6281 = vunpack.c.l.b16 %v6018
    %v6282 = vunpack.c.h.b16 %v6018
    %v6283 = vunpack.c.l.b16 %v6019
    %v6284 = vunpack.c.h.b16 %v6019
    %v6285 = vunpack.c.l.b16 %v6020
    %v6286 = vunpack.c.h.b16 %v6020
    %v6287 = vunpack.c.l.b16 %v6021
    %v6288 = vunpack.c.h.b16 %v6021
    %v6289 = vunpack.c.l.b16 %v6022
    %v6290 = vunpack.c.h.b16 %v6022
    %v6291 = vpack.c.b16 %v6165, %v6163
    %v6292 = vpack.c.b16 %v6166, %v6164
    %v6293 = vpack.c.b16 %v6169, %v6167
    %v6294 = vpack.c.b16 %v6170, %v6168
    %v6295 = vpack.c.b16 %v6173, %v6171
    %v6296 = vpack.c.b16 %v6174, %v6172
    %v6297 = vpack.c.b16 %v6177, %v6175
    %v6298 = vpack.c.b16 %v6178, %v6176
    %v6299 = vpack.c.b16 %v6181, %v6179
    %v6300 = vpack.c.b16 %v6182, %v6180
    %v6301 = vpack.c.b16 %v6185, %v6183
    %v6302 = vpack.c.b16 %v6186, %v6184
    %v6303 = vpack.c.b16 %v6189, %v6187
    %v6304 = vpack.c.b16 %v6190, %v6188
    %v6305 = vpack.c.b16 %v6193, %v6191
    %v6306 = vpack.c.b16 %v6194, %v6192
    %v6307 = vpack.c.b16 %v6197, %v6195
    %v6308 = vpack.c.b16 %v6198, %v6196
    %v6309 = vpack.c.b16 %v6201, %v6199
    %v6310 = vpack.c.b16 %v6202, %v6200
    %v6311 = vpack.c.b16 %v6205, %v6203
    %v6312 = vpack.c.b16 %v6206, %v6204
    %v6313 = vpack.c.b16 %v6209, %v6207
    %v6314 = vpack.c.b16 %v6210, %v6208
    %v6315 = vpack.c.b16 %v6213, %v6211
    %v6316 = vpack.c.b16 %v6214, %v6212
    %v6317 = vpack.c.b16 %v6217, %v6215
    %v6318 = vpack.c.b16 %v6218, %v6216
    %v6319 = vpack.c.b16 %v6221, %v6219
    %v6320 = vpack.c.b16 %v6222, %v6220
    %v6321 = vpack.c.b16 %v6225, %v6223
    %v6322 = vpack.c.b16 %v6226, %v6224
    %v6323 = vpack.c.b16 %v6229, %v6227
    %v6324 = vpack.c.b16 %v6230, %v6228
    %v6325 = vpack.c.b16 %v6233, %v6231
    %v6326 = vpack.c.b16 %v6234, %v6232
    %v6327 = vpack.c.b16 %v6237, %v6235
    %v6328 = vpack.c.b16 %v6238, %v6236
    %v6329 = vpack.c.b16 %v6241, %v6239
    %v6330 = vpack.c.b16 %v6242, %v6240
    %v6331 = vpack.c.b16 %v6245, %v6243
    %v6332 = vpack.c.b16 %v6246, %v6244
    %v6333 = vpack.c.b16 %v6249, %v6247
    %v6334 = vpack.c.b16 %v6250, %v6248
    %v6335 = vpack.c.b16 %v6253, %v6251
    %v6336 = vpack.c.b16 %v6254, %v6252
    %v6337 = vpack.c.b16 %v6257, %v6255
    %v6338 = vpack.c.b16 %v6258, %v6256
    %v6339 = vpack.c.b16 %v6261, %v6259
    %v6340 = vpack.c.b16 %v6262, %v6260
    %v6341 = vpack.c.b16 %v6265, %v6263
    %v6342 = vpack.c.b16 %v6266, %v6264
    %v6343 = vpack.c.b16 %v6269, %v6267
    %v6344 = vpack.c.b16 %v6270, %v6268
    %v6345 = vpack.c.b16 %v6273, %v6271
    %v6346 = vpack.c.b16 %v6274, %v6272
    %v6347 = vpack.c.b16 %v6277, %v6275
    %v6348 = vpack.c.b16 %v6278, %v6276
    %v6349 = vpack.c.b16 %v6281, %v6279
    %v6350 = vpack.c.b16 %v6282, %v6280
    %v6351 = vpack.c.b16 %v6285, %v6283
    %v6352 = vpack.c.b16 %v6286, %v6284
    %v6353 = vpack.c.b16 %v6289, %v6287
    %v6354 = vpack.c.b16 %v6290, %v6288
    %6419 = vmatprep.subr.bf16.mxu0 %v6292
    %6420 = vmatpush1.bf16.msra.mxu0 %v6291
    %6421 = vmatprep.subr.bf16.mxu0 %v6294
    %6422 = vmatpush1.bf16.msra.mxu0 %v6293
    %6423 = vmatprep.subr.bf16.mxu0 %v6296
    %6424 = vmatpush1.bf16.msra.mxu0 %v6295
    %6425 = vmatprep.subr.bf16.mxu0 %v6298
    %6426 = vmatpush1.bf16.msra.mxu0 %v6297
    %6427 = vmatprep.subr.bf16.mxu0 %v6300
    %6428 = vmatpush1.bf16.msra.mxu0 %v6299
    %6429 = vmatprep.subr.bf16.mxu0 %v6302
    %6430 = vmatpush1.bf16.msra.mxu0 %v6301
    %6431 = vmatprep.subr.bf16.mxu0 %v6304
    %6432 = vmatpush1.bf16.msra.mxu0 %v6303
    %6433 = vmatprep.subr.bf16.mxu0 %v6306
    %6434 = vmatpush1.bf16.msra.mxu0 %v6305
    %6435 = vmatprep.subr.bf16.mxu0 %v6308
    %6436 = vmatpush1.bf16.msra.mxu0 %v6307
    %6437 = vmatprep.subr.bf16.mxu0 %v6310
    %6438 = vmatpush1.bf16.msra.mxu0 %v6309
    %6439 = vmatprep.subr.bf16.mxu0 %v6312
    %6440 = vmatpush1.bf16.msra.mxu0 %v6311
    %6441 = vmatprep.subr.bf16.mxu0 %v6314
    %6442 = vmatpush1.bf16.msra.mxu0 %v6313
    %6443 = vmatprep.subr.bf16.mxu0 %v6316
    %6444 = vmatpush1.bf16.msra.mxu0 %v6315
    %6445 = vmatprep.subr.bf16.mxu0 %v6318
    %6446 = vmatpush1.bf16.msra.mxu0 %v6317
    %6447 = vmatprep.subr.bf16.mxu0 %v6320
    %6448 = vmatpush1.bf16.msra.mxu0 %v6319
    %6449 = vmatprep.subr.bf16.mxu0 %v6322
    %6450 = vmatpush1.bf16.msra.mxu0 %v6321
    %6451 = vmatprep.mubr.bf16.mxu0 %v6024
    %6452 = vmatmul.mubr.bf16.gmra.mrb[0].mxu0 %v6023
    %v6453 = vpop.f32.mrb[0].mxu0
    %v6454 = vadd.f32 %v6092, %v6453
    %v6455 = vpop.f32.mrb[0].mxu0
    %v6456 = vadd.f32 %v6096, %v6455
    %v6457 = vpop.f32.mrb[0].mxu0
    %v6458 = vadd.f32 %v6092, %v6457
    %v6459 = vpop.f32.mrb[0].mxu0
    %v6460 = vadd.f32 %v6096, %v6459
    %6461 = vmatprep.mubr.bf16.mxu0 %v6028
    %6462 = vmatmul.mubr.bf16.gmra.mrb[0].mxu0 %v6027
    %v6463 = vpop.f32.mrb[0].mxu0
    %v6464 = vadd.f32 %v6092, %v6463
    %v6465 = vpop.f32.mrb[0].mxu0
    %v6466 = vadd.f32 %v6096, %v6465
    %v6467 = vpop.f32.mrb[0].mxu0
    %v6468 = vadd.f32 %v6092, %v6467
    %v6469 = vpop.f32.mrb[0].mxu0
    %v6470 = vadd.f32 %v6096, %v6469
    %6471 = vmatprep.mubr.bf16.mxu0 %v6032
    %6472 = vmatmul.mubr.bf16.gmra.mrb[0].mxu0 %v6031
    %v6473 = vpop.f32.mrb[0].mxu0
    %v6474 = vadd.f32 %v6092, %v6473
    %v6475 = vpop.f32.mrb[0].mxu0
    %v6476 = vadd.f32 %v6096, %v6475
    %v6477 = vpop.f32.mrb[0].mxu0
    %v6478 = vadd.f32 %v6092, %v6477
    %v6479 = vpop.f32.mrb[0].mxu0
    %v6480 = vadd.f32 %v6096, %v6479
    %6481 = vmatprep.mubr.bf16.mxu0 %v6036
    %6482 = vmatmul.mubr.bf16.gmra.mrb[0].mxu0 %v6035
    %v6483 = vpop.f32.mrb[0].mxu0
    %v6484 = vadd.f32 %v6092, %v6483
    %v6485 = vpop.f32.mrb[0].mxu0
    %v6486 = vadd.f32 %v6096, %v6485
    %v6487 = vpop.f32.mrb[0].mxu0
    %v6488 = vadd.f32 %v6092, %v6487
    %v6489 = vpop.f32.mrb[0].mxu0
    %v6490 = vadd.f32 %v6096, %v6489
    %6491 = vmatprep.mubr.bf16.mxu0 %v6040
    %6492 = vmatmul.mubr.bf16.gmra.mrb[0].mxu0 %v6039
    %v6493 = vpop.f32.mrb[0].mxu0
    %v6494 = vadd.f32 %v6092, %v6493
    %v6495 = vpop.f32.mrb[0].mxu0
    %v6496 = vadd.f32 %v6096, %v6495
    %v6497 = vpop.f32.mrb[0].mxu0
    %v6498 = vadd.f32 %v6092, %v6497
    %v6499 = vpop.f32.mrb[0].mxu0
    %v6500 = vadd.f32 %v6096, %v6499
    %6501 = vmatprep.mubr.bf16.mxu0 %v6044
    %6502 = vmatmul.mubr.bf16.gmra.mrb[0].mxu0 %v6043
    %v6503 = vpop.f32.mrb[0].mxu0
    %v6504 = vadd.f32 %v6092, %v6503
    %v6505 = vpop.f32.mrb[0].mxu0
    %v6506 = vadd.f32 %v6096, %v6505
    %v6507 = vpop.f32.mrb[0].mxu0
    %v6508 = vadd.f32 %v6092, %v6507
    %v6509 = vpop.f32.mrb[0].mxu0
    %v6510 = vadd.f32 %v6096, %v6509
    %6511 = vmatprep.mubr.bf16.mxu0 %v6048
    %6512 = vmatmul.mubr.bf16.gmra.mrb[0].mxu0 %v6047
    %v6513 = vpop.f32.mrb[0].mxu0
    %v6514 = vadd.f32 %v6092, %v6513
    %v6515 = vpop.f32.mrb[0].mxu0
    %v6516 = vadd.f32 %v6096, %v6515
    %v6517 = vpop.f32.mrb[0].mxu0
    %v6518 = vadd.f32 %v6092, %v6517
    %v6519 = vpop.f32.mrb[0].mxu0
    %v6520 = vadd.f32 %v6096, %v6519
    %6521 = vmatprep.mubr.bf16.mxu0 %v6052
    %6522 = vmatmul.mubr.bf16.gmra.mrb[0].mxu0 %v6051
    %v6523 = vpop.f32.mrb[0].mxu0
    %v6524 = vadd.f32 %v6092, %v6523
    %v6525 = vpop.f32.mrb[0].mxu0
    %v6526 = vadd.f32 %v6096, %v6525
    %v6527 = vpop.f32.mrb[0].mxu0
    %v6528 = vadd.f32 %v6092, %v6527
    %v6529 = vpop.f32.mrb[0].mxu0
    %v6530 = vadd.f32 %v6096, %v6529
    %6531 = vmatprep.mubr.bf16.mxu0 %v6056
    %6532 = vmatmul.mubr.bf16.gmra.mrb[0].mxu0 %v6055
    %v6533 = vpop.f32.mrb[0].mxu0
    %v6534 = vadd.f32 %v6092, %v6533
    %v6535 = vpop.f32.mrb[0].mxu0
    %v6536 = vadd.f32 %v6096, %v6535
    %v6537 = vpop.f32.mrb[0].mxu0
    %v6538 = vadd.f32 %v6092, %v6537
    %v6539 = vpop.f32.mrb[0].mxu0
    %v6540 = vadd.f32 %v6096, %v6539
    %6541 = vmatprep.mubr.bf16.mxu0 %v6060
    %6542 = vmatmul.mubr.bf16.gmra.mrb[0].mxu0 %v6059
    %v6543 = vpop.f32.mrb[0].mxu0
    %v6544 = vadd.f32 %v6092, %v6543
    %v6545 = vpop.f32.mrb[0].mxu0
    %v6546 = vadd.f32 %v6096, %v6545
    %v6547 = vpop.f32.mrb[0].mxu0
    %v6548 = vadd.f32 %v6092, %v6547
    %v6549 = vpop.f32.mrb[0].mxu0
    %v6550 = vadd.f32 %v6096, %v6549
    %6551 = vmatprep.mubr.bf16.mxu0 %v6064
    %6552 = vmatmul.mubr.bf16.gmra.mrb[0].mxu0 %v6063
    %v6553 = vpop.f32.mrb[0].mxu0
    %v6554 = vadd.f32 %v6092, %v6553
    %v6555 = vpop.f32.mrb[0].mxu0
    %v6556 = vadd.f32 %v6096, %v6555
    %v6557 = vpop.f32.mrb[0].mxu0
    %v6558 = vadd.f32 %v6092, %v6557
    %v6559 = vpop.f32.mrb[0].mxu0
    %v6560 = vadd.f32 %v6096, %v6559
    %6561 = vmatprep.mubr.bf16.mxu0 %v6068
    %6562 = vmatmul.mubr.bf16.gmra.mrb[0].mxu0 %v6067
    %v6563 = vpop.f32.mrb[0].mxu0
    %v6564 = vadd.f32 %v6092, %v6563
    %v6565 = vpop.f32.mrb[0].mxu0
    %v6566 = vadd.f32 %v6096, %v6565
    %v6567 = vpop.f32.mrb[0].mxu0
    %v6568 = vadd.f32 %v6092, %v6567
    %v6569 = vpop.f32.mrb[0].mxu0
    %v6570 = vadd.f32 %v6096, %v6569
    %6571 = vmatprep.mubr.bf16.mxu0 %v6072
    %6572 = vmatmul.mubr.bf16.gmra.mrb[0].mxu0 %v6071
    %v6573 = vpop.f32.mrb[0].mxu0
    %v6574 = vadd.f32 %v6092, %v6573
    %v6575 = vpop.f32.mrb[0].mxu0
    %v6576 = vadd.f32 %v6096, %v6575
    %v6577 = vpop.f32.mrb[0].mxu0
    %v6578 = vadd.f32 %v6092, %v6577
    %v6579 = vpop.f32.mrb[0].mxu0
    %v6580 = vadd.f32 %v6096, %v6579
    %6581 = vmatprep.mubr.bf16.mxu0 %v6076
    %6582 = vmatmul.mubr.bf16.gmra.mrb[0].mxu0 %v6075
    %v6583 = vpop.f32.mrb[0].mxu0
    %v6584 = vadd.f32 %v6092, %v6583
    %v6585 = vpop.f32.mrb[0].mxu0
    %v6586 = vadd.f32 %v6096, %v6585
    %v6587 = vpop.f32.mrb[0].mxu0
    %v6588 = vadd.f32 %v6092, %v6587
    %v6589 = vpop.f32.mrb[0].mxu0
    %v6590 = vadd.f32 %v6096, %v6589
    %6591 = vmatprep.mubr.bf16.mxu0 %v6080
    %6592 = vmatmul.mubr.bf16.gmra.mrb[0].mxu0 %v6079
    %v6593 = vpop.f32.mrb[0].mxu0
    %v6594 = vadd.f32 %v6092, %v6593
    %v6595 = vpop.f32.mrb[0].mxu0
    %v6596 = vadd.f32 %v6096, %v6595
    %v6597 = vpop.f32.mrb[0].mxu0
    %v6598 = vadd.f32 %v6092, %v6597
    %v6599 = vpop.f32.mrb[0].mxu0
    %v6600 = vadd.f32 %v6096, %v6599
    %6601 = vmatprep.mubr.bf16.mxu0 %v6084
    %6602 = vmatmul.mubr.bf16.gmra.mrb[0].mxu0 %v6083
    %v6603 = vpop.f32.mrb[0].mxu0
    %v6604 = vadd.f32 %v6092, %v6603
    %v6605 = vpop.f32.mrb[0].mxu0
    %v6606 = vadd.f32 %v6096, %v6605
    %v6607 = vpop.f32.mrb[0].mxu0
    %v6608 = vadd.f32 %v6092, %v6607
    %v6609 = vpop.f32.mrb[0].mxu0
    %v6610 = vadd.f32 %v6096, %v6609
    %6611 = vdwg.mxu0
    %6612 = vmatprep.subr.bf16.mxu0 %v6324
    %6613 = vmatpush1.bf16.msra.mxu0 %v6323
    %6614 = vmatprep.subr.bf16.mxu0 %v6326
    %6615 = vmatpush1.bf16.msra.mxu0 %v6325
    %6616 = vmatprep.subr.bf16.mxu0 %v6328
    %6617 = vmatpush1.bf16.msra.mxu0 %v6327
    %6618 = vmatprep.subr.bf16.mxu0 %v6330
    %6619 = vmatpush1.bf16.msra.mxu0 %v6329
    %6620 = vmatprep.subr.bf16.mxu0 %v6332
    %6621 = vmatpush1.bf16.msra.mxu0 %v6331
    %6622 = vmatprep.subr.bf16.mxu0 %v6334
    %6623 = vmatpush1.bf16.msra.mxu0 %v6333
    %6624 = vmatprep.subr.bf16.mxu0 %v6336
    %6625 = vmatpush1.bf16.msra.mxu0 %v6335
    %6626 = vmatprep.subr.bf16.mxu0 %v6338
    %6627 = vmatpush1.bf16.msra.mxu0 %v6337
    %6628 = vmatprep.subr.bf16.mxu0 %v6340
    %6629 = vmatpush1.bf16.msra.mxu0 %v6339
    %6630 = vmatprep.subr.bf16.mxu0 %v6342
    %6631 = vmatpush1.bf16.msra.mxu0 %v6341
    %6632 = vmatprep.subr.bf16.mxu0 %v6344
    %6633 = vmatpush1.bf16.msra.mxu0 %v6343
    %6634 = vmatprep.subr.bf16.mxu0 %v6346
    %6635 = vmatpush1.bf16.msra.mxu0 %v6345
    %6636 = vmatprep.subr.bf16.mxu0 %v6348
    %6637 = vmatpush1.bf16.msra.mxu0 %v6347
    %6638 = vmatprep.subr.bf16.mxu0 %v6350
    %6639 = vmatpush1.bf16.msra.mxu0 %v6349
    %6640 = vmatprep.subr.bf16.mxu0 %v6352
    %6641 = vmatpush1.bf16.msra.mxu0 %v6351
    %6642 = vmatprep.subr.bf16.mxu0 %v6354
    %6643 = vmatpush1.bf16.msra.mxu0 %v6353
    %6644 = vmatprep.mubr.bf16.mxu0 %v6026
    %6645 = vmatmul.mubr.bf16.gmra.mrb[0].mxu0 %v6025
    %v6646 = vpop.f32.mrb[0].mxu0
    %v6647 = vadd.f32 %v6454, %v6646
    %v6648 = vpop.f32.mrb[0].mxu0
    %v6649 = vadd.f32 %v6456, %v6648
    %v6650 = vpop.f32.mrb[0].mxu0
    %v6651 = vadd.f32 %v6458, %v6650
    %v6652 = vpop.f32.mrb[0].mxu0
    %v6653 = vadd.f32 %v6460, %v6652
    %6654 = vmatprep.mubr.bf16.mxu0 %v6030
    %6655 = vmatmul.mubr.bf16.gmra.mrb[0].mxu0 %v6029
    %v6656 = vpop.f32.mrb[0].mxu0
    %v6657 = vadd.f32 %v6464, %v6656
    %v6658 = vpop.f32.mrb[0].mxu0
    %v6659 = vadd.f32 %v6466, %v6658
    %v6660 = vpop.f32.mrb[0].mxu0
    %v6661 = vadd.f32 %v6468, %v6660
    %v6662 = vpop.f32.mrb[0].mxu0
    %v6663 = vadd.f32 %v6470, %v6662
    %6664 = vmatprep.mubr.bf16.mxu0 %v6034
    %6665 = vmatmul.mubr.bf16.gmra.mrb[0].mxu0 %v6033
    %v6666 = vpop.f32.mrb[0].mxu0
    %v6667 = vadd.f32 %v6474, %v6666
    %v6668 = vpop.f32.mrb[0].mxu0
    %v6669 = vadd.f32 %v6476, %v6668
    %v6670 = vpop.f32.mrb[0].mxu0
    %v6671 = vadd.f32 %v6478, %v6670
    %v6672 = vpop.f32.mrb[0].mxu0
    %v6673 = vadd.f32 %v6480, %v6672
    %6674 = vmatprep.mubr.bf16.mxu0 %v6038
    %6675 = vmatmul.mubr.bf16.gmra.mrb[0].mxu0 %v6037
    %v6676 = vpop.f32.mrb[0].mxu0
    %v6677 = vadd.f32 %v6484, %v6676
    %v6678 = vpop.f32.mrb[0].mxu0
    %v6679 = vadd.f32 %v6486, %v6678
    %v6680 = vpop.f32.mrb[0].mxu0
    %v6681 = vadd.f32 %v6488, %v6680
    %v6682 = vpop.f32.mrb[0].mxu0
    %v6683 = vadd.f32 %v6490, %v6682
    %6684 = vmatprep.mubr.bf16.mxu0 %v6042
    %6685 = vmatmul.mubr.bf16.gmra.mrb[0].mxu0 %v6041
    %v6686 = vpop.f32.mrb[0].mxu0
    %v6687 = vadd.f32 %v6494, %v6686
    %v6688 = vpop.f32.mrb[0].mxu0
    %v6689 = vadd.f32 %v6496, %v6688
    %v6690 = vpop.f32.mrb[0].mxu0
    %v6691 = vadd.f32 %v6498, %v6690
    %v6692 = vpop.f32.mrb[0].mxu0
    %v6693 = vadd.f32 %v6500, %v6692
    %6694 = vmatprep.mubr.bf16.mxu0 %v6046
    %6695 = vmatmul.mubr.bf16.gmra.mrb[0].mxu0 %v6045
    %v6696 = vpop.f32.mrb[0].mxu0
    %v6697 = vadd.f32 %v6504, %v6696
    %v6698 = vpop.f32.mrb[0].mxu0
    %v6699 = vadd.f32 %v6506, %v6698
    %v6700 = vpop.f32.mrb[0].mxu0
    %v6701 = vadd.f32 %v6508, %v6700
    %v6702 = vpop.f32.mrb[0].mxu0
    %v6703 = vadd.f32 %v6510, %v6702
    %6704 = vmatprep.mubr.bf16.mxu0 %v6050
    %6705 = vmatmul.mubr.bf16.gmra.mrb[0].mxu0 %v6049
    %v6706 = vpop.f32.mrb[0].mxu0
    %v6707 = vadd.f32 %v6514, %v6706
    %v6708 = vpop.f32.mrb[0].mxu0
    %v6709 = vadd.f32 %v6516, %v6708
    %v6710 = vpop.f32.mrb[0].mxu0
    %v6711 = vadd.f32 %v6518, %v6710
    %v6712 = vpop.f32.mrb[0].mxu0
    %v6713 = vadd.f32 %v6520, %v6712
    %6714 = vmatprep.mubr.bf16.mxu0 %v6054
    %6715 = vmatmul.mubr.bf16.gmra.mrb[0].mxu0 %v6053
    %v6716 = vpop.f32.mrb[0].mxu0
    %v6717 = vadd.f32 %v6524, %v6716
    %v6718 = vpop.f32.mrb[0].mxu0
    %v6719 = vadd.f32 %v6526, %v6718
    %v6720 = vpop.f32.mrb[0].mxu0
    %v6721 = vadd.f32 %v6528, %v6720
    %v6722 = vpop.f32.mrb[0].mxu0
    %v6723 = vadd.f32 %v6530, %v6722
    %6724 = vmatprep.mubr.bf16.mxu0 %v6058
    %6725 = vmatmul.mubr.bf16.gmra.mrb[0].mxu0 %v6057
    %v6726 = vpop.f32.mrb[0].mxu0
    %v6727 = vadd.f32 %v6534, %v6726
    %v6728 = vpop.f32.mrb[0].mxu0
    %v6729 = vadd.f32 %v6536, %v6728
    %v6730 = vpop.f32.mrb[0].mxu0
    %v6731 = vadd.f32 %v6538, %v6730
    %v6732 = vpop.f32.mrb[0].mxu0
    %v6733 = vadd.f32 %v6540, %v6732
    %6734 = vmatprep.mubr.bf16.mxu0 %v6062
    %6735 = vmatmul.mubr.bf16.gmra.mrb[0].mxu0 %v6061
    %v6736 = vpop.f32.mrb[0].mxu0
    %v6737 = vadd.f32 %v6544, %v6736
    %v6738 = vpop.f32.mrb[0].mxu0
    %v6739 = vadd.f32 %v6546, %v6738
    %v6740 = vpop.f32.mrb[0].mxu0
    %v6741 = vadd.f32 %v6548, %v6740
    %v6742 = vpop.f32.mrb[0].mxu0
    %v6743 = vadd.f32 %v6550, %v6742
    %6744 = vmatprep.mubr.bf16.mxu0 %v6066
    %6745 = vmatmul.mubr.bf16.gmra.mrb[0].mxu0 %v6065
    %v6746 = vpop.f32.mrb[0].mxu0
    %v6747 = vadd.f32 %v6554, %v6746
    %v6748 = vpop.f32.mrb[0].mxu0
    %v6749 = vadd.f32 %v6556, %v6748
    %v6750 = vpop.f32.mrb[0].mxu0
    %v6751 = vadd.f32 %v6558, %v6750
    %v6752 = vpop.f32.mrb[0].mxu0
    %v6753 = vadd.f32 %v6560, %v6752
    %6754 = vmatprep.mubr.bf16.mxu0 %v6070
    %6755 = vmatmul.mubr.bf16.gmra.mrb[0].mxu0 %v6069
    %v6756 = vpop.f32.mrb[0].mxu0
    %v6757 = vadd.f32 %v6564, %v6756
    %v6758 = vpop.f32.mrb[0].mxu0
    %v6759 = vadd.f32 %v6566, %v6758
    %v6760 = vpop.f32.mrb[0].mxu0
    %v6761 = vadd.f32 %v6568, %v6760
    %v6762 = vpop.f32.mrb[0].mxu0
    %v6763 = vadd.f32 %v6570, %v6762
    %6764 = vmatprep.mubr.bf16.mxu0 %v6074
    %6765 = vmatmul.mubr.bf16.gmra.mrb[0].mxu0 %v6073
    %v6766 = vpop.f32.mrb[0].mxu0
    %v6767 = vadd.f32 %v6574, %v6766
    %v6768 = vpop.f32.mrb[0].mxu0
    %v6769 = vadd.f32 %v6576, %v6768
    %v6770 = vpop.f32.mrb[0].mxu0
    %v6771 = vadd.f32 %v6578, %v6770
    %v6772 = vpop.f32.mrb[0].mxu0
    %v6773 = vadd.f32 %v6580, %v6772
    %6774 = vmatprep.mubr.bf16.mxu0 %v6078
    %6775 = vmatmul.mubr.bf16.gmra.mrb[0].mxu0 %v6077
    %v6776 = vpop.f32.mrb[0].mxu0
    %v6777 = vadd.f32 %v6584, %v6776
    %v6778 = vpop.f32.mrb[0].mxu0
    %v6779 = vadd.f32 %v6586, %v6778
    %v6780 = vpop.f32.mrb[0].mxu0
    %v6781 = vadd.f32 %v6588, %v6780
    %v6782 = vpop.f32.mrb[0].mxu0
    %v6783 = vadd.f32 %v6590, %v6782
    %6784 = vmatprep.mubr.bf16.mxu0 %v6082
    %6785 = vmatmul.mubr.bf16.gmra.mrb[0].mxu0 %v6081
    %v6786 = vpop.f32.mrb[0].mxu0
    %v6787 = vadd.f32 %v6594, %v6786
    %v6788 = vpop.f32.mrb[0].mxu0
    %v6789 = vadd.f32 %v6596, %v6788
    %v6790 = vpop.f32.mrb[0].mxu0
    %v6791 = vadd.f32 %v6598, %v6790
    %v6792 = vpop.f32.mrb[0].mxu0
    %v6793 = vadd.f32 %v6600, %v6792
    %6794 = vmatprep.mubr.bf16.mxu0 %v6086
    %6795 = vmatmul.mubr.bf16.gmra.mrb[0].mxu0 %v6085
    %v6796 = vpop.f32.mrb[0].mxu0
    %v6797 = vadd.f32 %v6604, %v6796
    %v6798 = vpop.f32.mrb[0].mxu0
    %v6799 = vadd.f32 %v6606, %v6798
    %v6800 = vpop.f32.mrb[0].mxu0
    %v6801 = vadd.f32 %v6608, %v6800
    %v6802 = vpop.f32.mrb[0].mxu0
    %v6803 = vadd.f32 %v6610, %v6802
    %6804 = vdwg.mxu0
    %v6805 = vmax.f32 %v6647, 0.0
    %v6806 = vmax.f32 %v6649, 0.0
    %v6807 = vmax.f32 %v6651, 0.0
    %v6808 = vmax.f32 %v6653, 0.0
    %v6809 = vmax.f32 %v6657, 0.0
    %v6810 = vmax.f32 %v6659, 0.0
    %v6811 = vmax.f32 %v6661, 0.0
    %v6812 = vmax.f32 %v6663, 0.0
    %v6813 = vmax.f32 %v6667, 0.0
    %v6814 = vmax.f32 %v6669, 0.0
    %v6815 = vmax.f32 %v6671, 0.0
    %v6816 = vmax.f32 %v6673, 0.0
    %v6817 = vmax.f32 %v6677, 0.0
    %v6818 = vmax.f32 %v6679, 0.0
    %v6819 = vmax.f32 %v6681, 0.0
    %v6820 = vmax.f32 %v6683, 0.0
    %v6821 = vmax.f32 %v6687, 0.0
    %v6822 = vmax.f32 %v6689, 0.0
    %v6823 = vmax.f32 %v6691, 0.0
    %v6824 = vmax.f32 %v6693, 0.0
    %v6825 = vmax.f32 %v6697, 0.0
    %v6826 = vmax.f32 %v6699, 0.0
    %v6827 = vmax.f32 %v6701, 0.0
    %v6828 = vmax.f32 %v6703, 0.0
    %v6829 = vmax.f32 %v6707, 0.0
    %v6830 = vmax.f32 %v6709, 0.0
    %v6831 = vmax.f32 %v6711, 0.0
    %v6832 = vmax.f32 %v6713, 0.0
    %v6833 = vmax.f32 %v6717, 0.0
    %v6834 = vmax.f32 %v6719, 0.0
    %v6835 = vmax.f32 %v6721, 0.0
    %v6836 = vmax.f32 %v6723, 0.0
    %v6837 = vmax.f32 %v6727, 0.0
    %v6838 = vmax.f32 %v6729, 0.0
    %v6839 = vmax.f32 %v6731, 0.0
    %v6840 = vmax.f32 %v6733, 0.0
    %v6841 = vmax.f32 %v6737, 0.0
    %v6842 = vmax.f32 %v6739, 0.0
    %v6843 = vmax.f32 %v6741, 0.0
    %v6844 = vmax.f32 %v6743, 0.0
    %v6845 = vmax.f32 %v6747, 0.0
    %v6846 = vmax.f32 %v6749, 0.0
    %v6847 = vmax.f32 %v6751, 0.0
    %v6848 = vmax.f32 %v6753, 0.0
    %v6849 = vmax.f32 %v6757, 0.0
    %v6850 = vmax.f32 %v6759, 0.0
    %v6851 = vmax.f32 %v6761, 0.0
    %v6852 = vmax.f32 %v6763, 0.0
    %v6853 = vmax.f32 %v6767, 0.0
    %v6854 = vmax.f32 %v6769, 0.0
    %v6855 = vmax.f32 %v6771, 0.0
    %v6856 = vmax.f32 %v6773, 0.0
    %v6857 = vmax.f32 %v6777, 0.0
    %v6858 = vmax.f32 %v6779, 0.0
    %v6859 = vmax.f32 %v6781, 0.0
    %v6860 = vmax.f32 %v6783, 0.0
    %v6861 = vmax.f32 %v6787, 0.0
    %v6862 = vmax.f32 %v6789, 0.0
    %v6863 = vmax.f32 %v6791, 0.0
    %v6864 = vmax.f32 %v6793, 0.0
    %v6865 = vmax.f32 %v6797, 0.0
    %v6866 = vmax.f32 %v6799, 0.0
    %v6867 = vmax.f32 %v6801, 0.0
    %v6868 = vmax.f32 %v6803, 0.0
    %v6869 = vld [vmem:[%s16] sm:$0xf]
    %v6870 = vld [vmem:[%s16 + $0x4] sm:$0xf]
    %v6871 = vld [vmem:[%s16 + $0x8] sm:$0xf]
    %v6872 = vld [vmem:[%s16 + $0xc] sm:$0xf]
    %v6873 = vld [vmem:[%s16 + $0x10] sm:$0xf]
    %v6874 = vld [vmem:[%s16 + $0x14] sm:$0xf]
    %v6875 = vld [vmem:[%s16 + $0x18] sm:$0xf]
    %v6876 = vld [vmem:[%s16 + $0x1c] sm:$0xf]
    %v6877 = vld [vmem:[%s16 + $0x20] sm:$0xf]
    %v6878 = vld [vmem:[%s16 + $0x24] sm:$0xf]
    %v6879 = vld [vmem:[%s16 + $0x28] sm:$0xf]
    %v6880 = vld [vmem:[%s16 + $0x2c] sm:$0xf]
    %v6881 = vld [vmem:[%s16 + $0x30] sm:$0xf]
    %v6882 = vld [vmem:[%s16 + $0x34] sm:$0xf]
    %v6883 = vld [vmem:[%s16 + $0x38] sm:$0xf]
    %v6884 = vld [vmem:[%s16 + $0x3c] sm:$0xf]
    %v6885 = vld [vmem:[%s16 + $0x40] sm:$0xf]
    %v6886 = vld [vmem:[%s16 + $0x44] sm:$0xf]
    %v6887 = vld [vmem:[%s16 + $0x48] sm:$0xf]
    %v6888 = vld [vmem:[%s16 + $0x4c] sm:$0xf]
    %v6889 = vld [vmem:[%s16 + $0x50] sm:$0xf]
    %v6890 = vld [vmem:[%s16 + $0x54] sm:$0xf]
    %v6891 = vld [vmem:[%s16 + $0x58] sm:$0xf]
    %v6892 = vld [vmem:[%s16 + $0x5c] sm:$0xf]
    %v6893 = vld [vmem:[%s16 + $0x60] sm:$0xf]
    %v6894 = vld [vmem:[%s16 + $0x64] sm:$0xf]
    %v6895 = vld [vmem:[%s16 + $0x68] sm:$0xf]
    %v6896 = vld [vmem:[%s16 + $0x6c] sm:$0xf]
    %v6897 = vld [vmem:[%s16 + $0x70] sm:$0xf]
    %v6898 = vld [vmem:[%s16 + $0x74] sm:$0xf]
    %v6899 = vld [vmem:[%s16 + $0x78] sm:$0xf]
    %v6900 = vld [vmem:[%s16 + $0x7c] sm:$0xf]
    %v6901 = vpack.c.bf16 %v6807, %v6805
    %v6902 = vpack.c.bf16 %v6808, %v6806
    %v6903 = vpack.c.bf16 %v6811, %v6809
    %v6904 = vpack.c.bf16 %v6812, %v6810
    %v6905 = vpack.c.bf16 %v6815, %v6813
    %v6906 = vpack.c.bf16 %v6816, %v6814
    %v6907 = vpack.c.bf16 %v6819, %v6817
    %v6908 = vpack.c.bf16 %v6820, %v6818
    %v6909 = vpack.c.bf16 %v6823, %v6821
    %v6910 = vpack.c.bf16 %v6824, %v6822
    %v6911 = vpack.c.bf16 %v6827, %v6825
    %v6912 = vpack.c.bf16 %v6828, %v6826
    %v6913 = vpack.c.bf16 %v6831, %v6829
    %v6914 = vpack.c.bf16 %v6832, %v6830
    %v6915 = vpack.c.bf16 %v6835, %v6833
    %v6916 = vpack.c.bf16 %v6836, %v6834
    %v6917 = vpack.c.bf16 %v6839, %v6837
    %v6918 = vpack.c.bf16 %v6840, %v6838
    %v6919 = vpack.c.bf16 %v6843, %v6841
    %v6920 = vpack.c.bf16 %v6844, %v6842
    %v6921 = vpack.c.bf16 %v6847, %v6845
    %v6922 = vpack.c.bf16 %v6848, %v6846
    %v6923 = vpack.c.bf16 %v6851, %v6849
    %v6924 = vpack.c.bf16 %v6852, %v6850
    %v6925 = vpack.c.bf16 %v6855, %v6853
    %v6926 = vpack.c.bf16 %v6856, %v6854
    %v6927 = vpack.c.bf16 %v6859, %v6857
    %v6928 = vpack.c.bf16 %v6860, %v6858
    %v6929 = vpack.c.bf16 %v6863, %v6861
    %v6930 = vpack.c.bf16 %v6864, %v6862
    %v6931 = vpack.c.bf16 %v6867, %v6865
    %v6932 = vpack.c.bf16 %v6868, %v6866
    %v6933 = vld [vmem:[#allocation18] sm:$0x1]
    %v6935 = vlaneseq
    %v6936 = vshrl.u32 %v6935, 7
    %v6937 = vsub.s32 0, %v6936
    %v6938 = vrot.slane %v6933, %v6937
    %v6972 = vunpack.c.l.b16 %v6869
    %v6973 = vunpack.c.l.b16 %v6870
    %v6974 = vunpack.c.l.b16 %v6871
    %v6975 = vunpack.c.l.b16 %v6872
    %v6976 = vunpack.c.l.b16 %v6873
    %v6977 = vunpack.c.l.b16 %v6874
    %v6978 = vunpack.c.l.b16 %v6875
    %v6979 = vunpack.c.l.b16 %v6876
    %v6980 = vunpack.c.l.b16 %v6877
    %v6981 = vunpack.c.l.b16 %v6878
    %v6982 = vunpack.c.l.b16 %v6879
    %v6983 = vunpack.c.l.b16 %v6880
    %v6984 = vunpack.c.l.b16 %v6881
    %v6985 = vunpack.c.l.b16 %v6882
    %v6986 = vunpack.c.l.b16 %v6883
    %v6987 = vunpack.c.l.b16 %v6884
    %v6988 = vunpack.c.l.b16 %v6885
    %v6989 = vunpack.c.l.b16 %v6886
    %v6990 = vunpack.c.l.b16 %v6887
    %v6991 = vunpack.c.l.b16 %v6888
    %v6992 = vunpack.c.l.b16 %v6889
    %v6993 = vunpack.c.l.b16 %v6890
    %v6994 = vunpack.c.l.b16 %v6891
    %v6995 = vunpack.c.l.b16 %v6892
    %v6996 = vunpack.c.l.b16 %v6893
    %v6997 = vunpack.c.l.b16 %v6894
    %v6998 = vunpack.c.l.b16 %v6895
    %v6999 = vunpack.c.l.b16 %v6896
    %v7000 = vunpack.c.l.b16 %v6897
    %v7001 = vunpack.c.l.b16 %v6898
    %v7002 = vunpack.c.l.b16 %v6899
    %v7003 = vunpack.c.l.b16 %v6900
    %v7004 = vpack.c.b16 %v6973, %v6972
    %v7005 = vpack.c.b16 %v6975, %v6974
    %v7006 = vpack.c.b16 %v6977, %v6976
    %v7007 = vpack.c.b16 %v6979, %v6978
    %v7008 = vpack.c.b16 %v6981, %v6980
    %v7009 = vpack.c.b16 %v6983, %v6982
    %v7010 = vpack.c.b16 %v6985, %v6984
    %v7011 = vpack.c.b16 %v6987, %v6986
    %v7012 = vpack.c.b16 %v6989, %v6988
    %v7013 = vpack.c.b16 %v6991, %v6990
    %v7014 = vpack.c.b16 %v6993, %v6992
    %v7015 = vpack.c.b16 %v6995, %v6994
    %v7016 = vpack.c.b16 %v6997, %v6996
    %v7017 = vpack.c.b16 %v6999, %v6998
    %v7018 = vpack.c.b16 %v7001, %v7000
    %v7019 = vpack.c.b16 %v7003, %v7002
    %7036 = vmatprep.subr.bf16.mxu0 0
    %7037 = vmatpush1.bf16.msra.mxu0 %v7004
    %7038 = vmatprep.subr.bf16.mxu0 0
    %7039 = vmatpush1.bf16.msra.mxu0 %v7005
    %7040 = vmatprep.subr.bf16.mxu0 0
    %7041 = vmatpush1.bf16.msra.mxu0 %v7006
    %7042 = vmatprep.subr.bf16.mxu0 0
    %7043 = vmatpush1.bf16.msra.mxu0 %v7007
    %7044 = vmatprep.subr.bf16.mxu0 0
    %7045 = vmatpush1.bf16.msra.mxu0 %v7008
    %7046 = vmatprep.subr.bf16.mxu0 0
    %7047 = vmatpush1.bf16.msra.mxu0 %v7009
    %7048 = vmatprep.subr.bf16.mxu0 0
    %7049 = vmatpush1.bf16.msra.mxu0 %v7010
    %7050 = vmatprep.subr.bf16.mxu0 0
    %7051 = vmatpush1.bf16.msra.mxu0 %v7011
    %7052 = vmatprep.subr.bf16.mxu0 0
    %7053 = vmatpush1.bf16.msra.mxu0 %v7012
    %7054 = vmatprep.subr.bf16.mxu0 0
    %7055 = vmatpush1.bf16.msra.mxu0 %v7013
    %7056 = vmatprep.subr.bf16.mxu0 0
    %7057 = vmatpush1.bf16.msra.mxu0 %v7014
    %7058 = vmatprep.subr.bf16.mxu0 0
    %7059 = vmatpush1.bf16.msra.mxu0 %v7015
    %7060 = vmatprep.subr.bf16.mxu0 0
    %7061 = vmatpush1.bf16.msra.mxu0 %v7016
    %7062 = vmatprep.subr.bf16.mxu0 0
    %7063 = vmatpush1.bf16.msra.mxu0 %v7017
    %7064 = vmatprep.subr.bf16.mxu0 0
    %7065 = vmatpush1.bf16.msra.mxu0 %v7018
    %7066 = vmatprep.subr.bf16.mxu0 0
    %7067 = vmatpush1.bf16.msra.mxu0 %v7019
    %7068 = vmatprep.mubr.bf16.mxu0 %v6902
    %7069 = vmatmul.mubr.bf16.gmra.mrb[0].mxu0 %v6901
    %v7070 = vpop.f32.mrb[0].mxu0
    %v7071 = vadd.f32 %v6938, %v7070
    %v7072 = vpop.f32.mrb[0].mxu0
    %v7073 = vpop.f32.mrb[0].mxu0
    %v7074 = vadd.f32 %v6938, %v7073
    %v7075 = vpop.f32.mrb[0].mxu0
    %7076 = vmatprep.mubr.bf16.mxu0 %v6904
    %7077 = vmatmul.mubr.bf16.gmra.mrb[0].mxu0 %v6903
    %v7078 = vpop.f32.mrb[0].mxu0
    %v7079 = vadd.f32 %v6938, %v7078
    %v7080 = vpop.f32.mrb[0].mxu0
    %v7081 = vpop.f32.mrb[0].mxu0
    %v7082 = vadd.f32 %v6938, %v7081
    %v7083 = vpop.f32.mrb[0].mxu0
    %7084 = vmatprep.mubr.bf16.mxu0 %v6906
    %7085 = vmatmul.mubr.bf16.gmra.mrb[0].mxu0 %v6905
    %v7086 = vpop.f32.mrb[0].mxu0
    %v7087 = vadd.f32 %v6938, %v7086
    %v7088 = vpop.f32.mrb[0].mxu0
    %v7089 = vpop.f32.mrb[0].mxu0
    %v7090 = vadd.f32 %v6938, %v7089
    %v7091 = vpop.f32.mrb[0].mxu0
    %7092 = vmatprep.mubr.bf16.mxu0 %v6908
    %7093 = vmatmul.mubr.bf16.gmra.mrb[0].mxu0 %v6907
    %v7094 = vpop.f32.mrb[0].mxu0
    %v7095 = vadd.f32 %v6938, %v7094
    %v7096 = vpop.f32.mrb[0].mxu0
    %v7097 = vpop.f32.mrb[0].mxu0
    %v7098 = vadd.f32 %v6938, %v7097
    %v7099 = vpop.f32.mrb[0].mxu0
    %7100 = vmatprep.mubr.bf16.mxu0 %v6910
    %7101 = vmatmul.mubr.bf16.gmra.mrb[0].mxu0 %v6909
    %v7102 = vpop.f32.mrb[0].mxu0
    %v7103 = vadd.f32 %v6938, %v7102
    %v7104 = vpop.f32.mrb[0].mxu0
    %v7105 = vpop.f32.mrb[0].mxu0
    %v7106 = vadd.f32 %v6938, %v7105
    %v7107 = vpop.f32.mrb[0].mxu0
    %7108 = vmatprep.mubr.bf16.mxu0 %v6912
    %7109 = vmatmul.mubr.bf16.gmra.mrb[0].mxu0 %v6911
    %v7110 = vpop.f32.mrb[0].mxu0
    %v7111 = vadd.f32 %v6938, %v7110
    %v7112 = vpop.f32.mrb[0].mxu0
    %v7113 = vpop.f32.mrb[0].mxu0
    %v7114 = vadd.f32 %v6938, %v7113
    %v7115 = vpop.f32.mrb[0].mxu0
    %7116 = vmatprep.mubr.bf16.mxu0 %v6914
    %7117 = vmatmul.mubr.bf16.gmra.mrb[0].mxu0 %v6913
    %v7118 = vpop.f32.mrb[0].mxu0
    %v7119 = vadd.f32 %v6938, %v7118
    %v7120 = vpop.f32.mrb[0].mxu0
    %v7121 = vpop.f32.mrb[0].mxu0
    %v7122 = vadd.f32 %v6938, %v7121
    %v7123 = vpop.f32.mrb[0].mxu0
    %7124 = vmatprep.mubr.bf16.mxu0 %v6916
    %7125 = vmatmul.mubr.bf16.gmra.mrb[0].mxu0 %v6915
    %v7126 = vpop.f32.mrb[0].mxu0
    %v7127 = vadd.f32 %v6938, %v7126
    %v7128 = vpop.f32.mrb[0].mxu0
    %v7129 = vpop.f32.mrb[0].mxu0
    %v7130 = vadd.f32 %v6938, %v7129
    %v7131 = vpop.f32.mrb[0].mxu0
    %7132 = vmatprep.mubr.bf16.mxu0 %v6918
    %7133 = vmatmul.mubr.bf16.gmra.mrb[0].mxu0 %v6917
    %v7134 = vpop.f32.mrb[0].mxu0
    %v7135 = vadd.f32 %v6938, %v7134
    %v7136 = vpop.f32.mrb[0].mxu0
    %v7137 = vpop.f32.mrb[0].mxu0
    %v7138 = vadd.f32 %v6938, %v7137
    %v7139 = vpop.f32.mrb[0].mxu0
    %7140 = vmatprep.mubr.bf16.mxu0 %v6920
    %7141 = vmatmul.mubr.bf16.gmra.mrb[0].mxu0 %v6919
    %v7142 = vpop.f32.mrb[0].mxu0
    %v7143 = vadd.f32 %v6938, %v7142
    %v7144 = vpop.f32.mrb[0].mxu0
    %v7145 = vpop.f32.mrb[0].mxu0
    %v7146 = vadd.f32 %v6938, %v7145
    %v7147 = vpop.f32.mrb[0].mxu0
    %7148 = vmatprep.mubr.bf16.mxu0 %v6922
    %7149 = vmatmul.mubr.bf16.gmra.mrb[0].mxu0 %v6921
    %v7150 = vpop.f32.mrb[0].mxu0
    %v7151 = vadd.f32 %v6938, %v7150
    %v7152 = vpop.f32.mrb[0].mxu0
    %v7153 = vpop.f32.mrb[0].mxu0
    %v7154 = vadd.f32 %v6938, %v7153
    %v7155 = vpop.f32.mrb[0].mxu0
    %7156 = vmatprep.mubr.bf16.mxu0 %v6924
    %7157 = vmatmul.mubr.bf16.gmra.mrb[0].mxu0 %v6923
    %v7158 = vpop.f32.mrb[0].mxu0
    %v7159 = vadd.f32 %v6938, %v7158
    %v7160 = vpop.f32.mrb[0].mxu0
    %v7161 = vpop.f32.mrb[0].mxu0
    %v7162 = vadd.f32 %v6938, %v7161
    %v7163 = vpop.f32.mrb[0].mxu0
    %7164 = vmatprep.mubr.bf16.mxu0 %v6926
    %7165 = vmatmul.mubr.bf16.gmra.mrb[0].mxu0 %v6925
    %v7166 = vpop.f32.mrb[0].mxu0
    %v7167 = vadd.f32 %v6938, %v7166
    %v7168 = vpop.f32.mrb[0].mxu0
    %v7169 = vpop.f32.mrb[0].mxu0
    %v7170 = vadd.f32 %v6938, %v7169
    %v7171 = vpop.f32.mrb[0].mxu0
    %7172 = vmatprep.mubr.bf16.mxu0 %v6928
    %7173 = vmatmul.mubr.bf16.gmra.mrb[0].mxu0 %v6927
    %v7174 = vpop.f32.mrb[0].mxu0
    %v7175 = vadd.f32 %v6938, %v7174
    %v7176 = vpop.f32.mrb[0].mxu0
    %v7177 = vpop.f32.mrb[0].mxu0
    %v7178 = vadd.f32 %v6938, %v7177
    %v7179 = vpop.f32.mrb[0].mxu0
    %7180 = vmatprep.mubr.bf16.mxu0 %v6930
    %7181 = vmatmul.mubr.bf16.gmra.mrb[0].mxu0 %v6929
    %v7182 = vpop.f32.mrb[0].mxu0
    %v7183 = vadd.f32 %v6938, %v7182
    %v7184 = vpop.f32.mrb[0].mxu0
    %v7185 = vpop.f32.mrb[0].mxu0
    %v7186 = vadd.f32 %v6938, %v7185
    %v7187 = vpop.f32.mrb[0].mxu0
    %7188 = vmatprep.mubr.bf16.mxu0 %v6932
    %7189 = vmatmul.mubr.bf16.gmra.mrb[0].mxu0 %v6931
    %v7190 = vpop.f32.mrb[0].mxu0
    %v7191 = vadd.f32 %v6938, %v7190
    %v7192 = vpop.f32.mrb[0].mxu0
    %v7193 = vpop.f32.mrb[0].mxu0
    %v7194 = vadd.f32 %v6938, %v7193
    %v7195 = vpop.f32.mrb[0].mxu0
    %7196 = vdwg.mxu0
    %v7197 = vmax.f32 %v7071, 0.0
    %v7198 = vmax.f32 %v7074, 0.0
    %v7199 = vmax.f32 %v7079, 0.0
    %v7200 = vmax.f32 %v7082, 0.0
    %v7201 = vmax.f32 %v7087, 0.0
    %v7202 = vmax.f32 %v7090, 0.0
    %v7203 = vmax.f32 %v7095, 0.0
    %v7204 = vmax.f32 %v7098, 0.0
    %v7205 = vmax.f32 %v7103, 0.0
    %v7206 = vmax.f32 %v7106, 0.0
    %v7207 = vmax.f32 %v7111, 0.0
    %v7208 = vmax.f32 %v7114, 0.0
    %v7209 = vmax.f32 %v7119, 0.0
    %v7210 = vmax.f32 %v7122, 0.0
    %v7211 = vmax.f32 %v7127, 0.0
    %v7212 = vmax.f32 %v7130, 0.0
    %v7213 = vmax.f32 %v7135, 0.0
    %v7214 = vmax.f32 %v7138, 0.0
    %v7215 = vmax.f32 %v7143, 0.0
    %v7216 = vmax.f32 %v7146, 0.0
    %v7217 = vmax.f32 %v7151, 0.0
    %v7218 = vmax.f32 %v7154, 0.0
    %v7219 = vmax.f32 %v7159, 0.0
    %v7220 = vmax.f32 %v7162, 0.0
    %v7221 = vmax.f32 %v7167, 0.0
    %v7222 = vmax.f32 %v7170, 0.0
    %v7223 = vmax.f32 %v7175, 0.0
    %v7224 = vmax.f32 %v7178, 0.0
    %v7225 = vmax.f32 %v7183, 0.0
    %v7226 = vmax.f32 %v7186, 0.0
    %v7227 = vmax.f32 %v7191, 0.0
    %v7228 = vmax.f32 %v7194, 0.0
    %v7229 = vld [vmem:[%s18] sm:$0xf]
    %v7230 = vld [vmem:[%s18 + $0x4] sm:$0xf]
    %v7231 = vld [vmem:[%s18 + $0x8] sm:$0xf]
    %v7232 = vld [vmem:[%s18 + $0xc] sm:$0xf]
    %v7233 = vld [vmem:[%s18 + $0x10] sm:$0xf]
    %v7234 = vld [vmem:[%s18 + $0x14] sm:$0xf]
    %v7235 = vld [vmem:[%s18 + $0x18] sm:$0xf]
    %v7236 = vld [vmem:[%s18 + $0x1c] sm:$0xf]
    %v7237 = vld [vmem:[%s18 + $0x20] sm:$0xf]
    %v7238 = vld [vmem:[%s18 + $0x24] sm:$0xf]
    %v7239 = vld [vmem:[%s18 + $0x28] sm:$0xf]
    %v7240 = vld [vmem:[%s18 + $0x2c] sm:$0xf]
    %v7241 = vld [vmem:[%s18 + $0x30] sm:$0xf]
    %v7242 = vld [vmem:[%s18 + $0x34] sm:$0xf]
    %v7243 = vld [vmem:[%s18 + $0x38] sm:$0xf]
    %v7244 = vld [vmem:[%s18 + $0x3c] sm:$0xf]
    %v7245 = vpack.c.bf16 %v7198, %v7197
    %v7246 = vpack.c.bf16 %v7200, %v7199
    %v7247 = vpack.c.bf16 %v7202, %v7201
    %v7248 = vpack.c.bf16 %v7204, %v7203
    %v7249 = vpack.c.bf16 %v7206, %v7205
    %v7250 = vpack.c.bf16 %v7208, %v7207
    %v7251 = vpack.c.bf16 %v7210, %v7209
    %v7252 = vpack.c.bf16 %v7212, %v7211
    %v7253 = vpack.c.bf16 %v7214, %v7213
    %v7254 = vpack.c.bf16 %v7216, %v7215
    %v7255 = vpack.c.bf16 %v7218, %v7217
    %v7256 = vpack.c.bf16 %v7220, %v7219
    %v7257 = vpack.c.bf16 %v7222, %v7221
    %v7258 = vpack.c.bf16 %v7224, %v7223
    %v7259 = vpack.c.bf16 %v7226, %v7225
    %v7260 = vpack.c.bf16 %v7228, %v7227
    %v7261 = vld [vmem:[#allocation19] sm:$0x1]
    %v7263 = vlaneseq
    %v7264 = vshrl.u32 %v7263, 7
    %v7265 = vsub.s32 0, %v7264
    %v7266 = vrot.slane %v7261, %v7265
    %v7284 = vunpack.c.l.b16 %v7229
    %v7285 = vunpack.c.l.b16 %v7230
    %v7286 = vunpack.c.l.b16 %v7231
    %v7287 = vunpack.c.l.b16 %v7232
    %v7288 = vunpack.c.l.b16 %v7233
    %v7289 = vunpack.c.l.b16 %v7234
    %v7290 = vunpack.c.l.b16 %v7235
    %v7291 = vunpack.c.l.b16 %v7236
    %v7292 = vunpack.c.l.b16 %v7237
    %v7293 = vunpack.c.l.b16 %v7238
    %v7294 = vunpack.c.l.b16 %v7239
    %v7295 = vunpack.c.l.b16 %v7240
    %v7296 = vunpack.c.l.b16 %v7241
    %v7297 = vunpack.c.l.b16 %v7242
    %v7298 = vunpack.c.l.b16 %v7243
    %v7299 = vunpack.c.l.b16 %v7244
    %v7300 = vpack.c.b16 %v7285, %v7284
    %v7301 = vpack.c.b16 %v7287, %v7286
    %v7302 = vpack.c.b16 %v7289, %v7288
    %v7303 = vpack.c.b16 %v7291, %v7290
    %v7304 = vpack.c.b16 %v7293, %v7292
    %v7305 = vpack.c.b16 %v7295, %v7294
    %v7306 = vpack.c.b16 %v7297, %v7296
    %v7307 = vpack.c.b16 %v7299, %v7298
    %7316 = vmatprep.subr.bf16.mxu0 0
    %7317 = vmatpush1.bf16.msra.mxu0 %v7300
    %7318 = vmatprep.subr.bf16.mxu0 0
    %7319 = vmatpush1.bf16.msra.mxu0 %v7301
    %7320 = vmatprep.subr.bf16.mxu0 0
    %7321 = vmatpush1.bf16.msra.mxu0 %v7302
    %7322 = vmatprep.subr.bf16.mxu0 0
    %7323 = vmatpush1.bf16.msra.mxu0 %v7303
    %7324 = vmatprep.subr.bf16.mxu0 0
    %7325 = vmatpush1.bf16.msra.mxu0 %v7304
    %7326 = vmatprep.subr.bf16.mxu0 0
    %7327 = vmatpush1.bf16.msra.mxu0 %v7305
    %7328 = vmatprep.subr.bf16.mxu0 0
    %7329 = vmatpush1.bf16.msra.mxu0 %v7306
    %7330 = vmatprep.subr.bf16.mxu0 0
    %7331 = vmatpush1.bf16.msra.mxu0 %v7307
    %7332 = vmatprep.subr.bf16.mxu0 0
    %7333 = vmatpush1.bf16.msra.mxu0 0
    %7334 = vmatprep.subr.bf16.mxu0 0
    %7335 = vmatpush1.bf16.msra.mxu0 0
    %7336 = vmatprep.subr.bf16.mxu0 0
    %7337 = vmatpush1.bf16.msra.mxu0 0
    %7338 = vmatprep.subr.bf16.mxu0 0
    %7339 = vmatpush1.bf16.msra.mxu0 0
    %7340 = vmatprep.subr.bf16.mxu0 0
    %7341 = vmatpush1.bf16.msra.mxu0 0
    %7342 = vmatprep.subr.bf16.mxu0 0
    %7343 = vmatpush1.bf16.msra.mxu0 0
    %7344 = vmatprep.subr.bf16.mxu0 0
    %7345 = vmatpush1.bf16.msra.mxu0 0
    %7346 = vmatprep.subr.bf16.mxu0 0
    %7347 = vmatpush1.bf16.msra.mxu0 0
    %7348 = vmatprep.mubr.bf16.mxu0 0
    %7349 = vmatmul.mubr.bf16.gmra.mrb[0].mxu0 %v7245
    %v7350 = vpop.f32.mrb[0].mxu0
    %v7351 = vadd.f32 %v7266, %v7350
    %v7352 = vpop.f32.mrb[0].mxu0
    %v7353 = vpop.f32.mrb[0].mxu0
    %v7354 = vadd.f32 %v7266, %v7353
    %v7355 = vpop.f32.mrb[0].mxu0
    %7356 = vmatprep.mubr.bf16.mxu0 0
    %7357 = vmatmul.mubr.bf16.gmra.mrb[0].mxu0 %v7246
    %v7358 = vpop.f32.mrb[0].mxu0
    %v7359 = vadd.f32 %v7266, %v7358
    %v7360 = vpop.f32.mrb[0].mxu0
    %v7361 = vpop.f32.mrb[0].mxu0
    %v7362 = vadd.f32 %v7266, %v7361
    %v7363 = vpop.f32.mrb[0].mxu0
    %7364 = vmatprep.mubr.bf16.mxu0 0
    %7365 = vmatmul.mubr.bf16.gmra.mrb[0].mxu0 %v7247
    %v7366 = vpop.f32.mrb[0].mxu0
    %v7367 = vadd.f32 %v7266, %v7366
    %v7368 = vpop.f32.mrb[0].mxu0
    %v7369 = vpop.f32.mrb[0].mxu0
    %v7370 = vadd.f32 %v7266, %v7369
    %v7371 = vpop.f32.mrb[0].mxu0
    %7372 = vmatprep.mubr.bf16.mxu0 0
    %7373 = vmatmul.mubr.bf16.gmra.mrb[0].mxu0 %v7248
    %v7374 = vpop.f32.mrb[0].mxu0
    %v7375 = vadd.f32 %v7266, %v7374
    %v7376 = vpop.f32.mrb[0].mxu0
    %v7377 = vpop.f32.mrb[0].mxu0
    %v7378 = vadd.f32 %v7266, %v7377
    %v7379 = vpop.f32.mrb[0].mxu0
    %7380 = vmatprep.mubr.bf16.mxu0 0
    %7381 = vmatmul.mubr.bf16.gmra.mrb[0].mxu0 %v7249
    %v7382 = vpop.f32.mrb[0].mxu0
    %v7383 = vadd.f32 %v7266, %v7382
    %v7384 = vpop.f32.mrb[0].mxu0
    %v7385 = vpop.f32.mrb[0].mxu0
    %v7386 = vadd.f32 %v7266, %v7385
    %v7387 = vpop.f32.mrb[0].mxu0
    %7388 = vmatprep.mubr.bf16.mxu0 0
    %7389 = vmatmul.mubr.bf16.gmra.mrb[0].mxu0 %v7250
    %v7390 = vpop.f32.mrb[0].mxu0
    %v7391 = vadd.f32 %v7266, %v7390
    %v7392 = vpop.f32.mrb[0].mxu0
    %v7393 = vpop.f32.mrb[0].mxu0
    %v7394 = vadd.f32 %v7266, %v7393
    %v7395 = vpop.f32.mrb[0].mxu0
    %7396 = vmatprep.mubr.bf16.mxu0 0
    %7397 = vmatmul.mubr.bf16.gmra.mrb[0].mxu0 %v7251
    %v7398 = vpop.f32.mrb[0].mxu0
    %v7399 = vadd.f32 %v7266, %v7398
    %v7400 = vpop.f32.mrb[0].mxu0
    %v7401 = vpop.f32.mrb[0].mxu0
    %v7402 = vadd.f32 %v7266, %v7401
    %v7403 = vpop.f32.mrb[0].mxu0
    %7404 = vmatprep.mubr.bf16.mxu0 0
    %7405 = vmatmul.mubr.bf16.gmra.mrb[0].mxu0 %v7252
    %v7406 = vpop.f32.mrb[0].mxu0
    %v7407 = vadd.f32 %v7266, %v7406
    %v7408 = vpop.f32.mrb[0].mxu0
    %v7409 = vpop.f32.mrb[0].mxu0
    %v7410 = vadd.f32 %v7266, %v7409
    %v7411 = vpop.f32.mrb[0].mxu0
    %7412 = vmatprep.mubr.bf16.mxu0 0
    %7413 = vmatmul.mubr.bf16.gmra.mrb[0].mxu0 %v7253
    %v7414 = vpop.f32.mrb[0].mxu0
    %v7415 = vadd.f32 %v7266, %v7414
    %v7416 = vpop.f32.mrb[0].mxu0
    %v7417 = vpop.f32.mrb[0].mxu0
    %v7418 = vadd.f32 %v7266, %v7417
    %v7419 = vpop.f32.mrb[0].mxu0
    %7420 = vmatprep.mubr.bf16.mxu0 0
    %7421 = vmatmul.mubr.bf16.gmra.mrb[0].mxu0 %v7254
    %v7422 = vpop.f32.mrb[0].mxu0
    %v7423 = vadd.f32 %v7266, %v7422
    %v7424 = vpop.f32.mrb[0].mxu0
    %v7425 = vpop.f32.mrb[0].mxu0
    %v7426 = vadd.f32 %v7266, %v7425
    %v7427 = vpop.f32.mrb[0].mxu0
    %7428 = vmatprep.mubr.bf16.mxu0 0
    %7429 = vmatmul.mubr.bf16.gmra.mrb[0].mxu0 %v7255
    %v7430 = vpop.f32.mrb[0].mxu0
    %v7431 = vadd.f32 %v7266, %v7430
    %v7432 = vpop.f32.mrb[0].mxu0
    %v7433 = vpop.f32.mrb[0].mxu0
    %v7434 = vadd.f32 %v7266, %v7433
    %v7435 = vpop.f32.mrb[0].mxu0
    %7436 = vmatprep.mubr.bf16.mxu0 0
    %7437 = vmatmul.mubr.bf16.gmra.mrb[0].mxu0 %v7256
    %v7438 = vpop.f32.mrb[0].mxu0
    %v7439 = vadd.f32 %v7266, %v7438
    %v7440 = vpop.f32.mrb[0].mxu0
    %v7441 = vpop.f32.mrb[0].mxu0
    %v7442 = vadd.f32 %v7266, %v7441
    %v7443 = vpop.f32.mrb[0].mxu0
    %7444 = vmatprep.mubr.bf16.mxu0 0
    %7445 = vmatmul.mubr.bf16.gmra.mrb[0].mxu0 %v7257
    %v7446 = vpop.f32.mrb[0].mxu0
    %v7447 = vadd.f32 %v7266, %v7446
    %v7448 = vpop.f32.mrb[0].mxu0
    %v7449 = vpop.f32.mrb[0].mxu0
    %v7450 = vadd.f32 %v7266, %v7449
    %v7451 = vpop.f32.mrb[0].mxu0
    %7452 = vmatprep.mubr.bf16.mxu0 0
    %7453 = vmatmul.mubr.bf16.gmra.mrb[0].mxu0 %v7258
    %v7454 = vpop.f32.mrb[0].mxu0
    %v7455 = vadd.f32 %v7266, %v7454
    %v7456 = vpop.f32.mrb[0].mxu0
    %v7457 = vpop.f32.mrb[0].mxu0
    %v7458 = vadd.f32 %v7266, %v7457
    %v7459 = vpop.f32.mrb[0].mxu0
    %7460 = vmatprep.mubr.bf16.mxu0 0
    %7461 = vmatmul.mubr.bf16.gmra.mrb[0].mxu0 %v7259
    %v7462 = vpop.f32.mrb[0].mxu0
    %v7463 = vadd.f32 %v7266, %v7462
    %v7464 = vpop.f32.mrb[0].mxu0
    %v7465 = vpop.f32.mrb[0].mxu0
    %v7466 = vadd.f32 %v7266, %v7465
    %v7467 = vpop.f32.mrb[0].mxu0
    %7468 = vmatprep.mubr.bf16.mxu0 0
    %7469 = vmatmul.mubr.bf16.gmra.mrb[0].mxu0 %v7260
    %v7470 = vpop.f32.mrb[0].mxu0
    %v7471 = vadd.f32 %v7266, %v7470
    %v7472 = vpop.f32.mrb[0].mxu0
    %v7473 = vpop.f32.mrb[0].mxu0
    %v7474 = vadd.f32 %v7266, %v7473
    %v7475 = vpop.f32.mrb[0].mxu0
    %7476 = vdwg.mxu0
    %7477 = vst [vmem:[%s20] sm:$0xff] %v7351
    %7478 = vst [vmem:[%s20 + $0x8] sm:$0xff] %v7354
    %7479 = vst [vmem:[%s20 + $0x10] sm:$0xff] %v7359
    %7480 = vst [vmem:[%s20 + $0x18] sm:$0xff] %v7362
    %7481 = vst [vmem:[%s20 + $0x20] sm:$0xff] %v7367
    %7482 = vst [vmem:[%s20 + $0x28] sm:$0xff] %v7370
    %7483 = vst [vmem:[%s20 + $0x30] sm:$0xff] %v7375
    %7484 = vst [vmem:[%s20 + $0x38] sm:$0xff] %v7378
    %7485 = vst [vmem:[%s20 + $0x40] sm:$0xff] %v7383
    %7486 = vst [vmem:[%s20 + $0x48] sm:$0xff] %v7386
    %7487 = vst [vmem:[%s20 + $0x50] sm:$0xff] %v7391
    %7488 = vst [vmem:[%s20 + $0x58] sm:$0xff] %v7394
    %7489 = vst [vmem:[%s20 + $0x60] sm:$0xff] %v7399
    %7490 = vst [vmem:[%s20 + $0x68] sm:$0xff] %v7402
    %7491 = vst [vmem:[%s20 + $0x70] sm:$0xff] %v7407
    %7492 = vst [vmem:[%s20 + $0x78] sm:$0xff] %v7410
    %7493 = vst [vmem:[%s20 + $0x80] sm:$0xff] %v7415
    %7494 = vst [vmem:[%s20 + $0x88] sm:$0xff] %v7418
    %7495 = vst [vmem:[%s20 + $0x90] sm:$0xff] %v7423
    %7496 = vst [vmem:[%s20 + $0x98] sm:$0xff] %v7426
    %7497 = vst [vmem:[%s20 + $0xa0] sm:$0xff] %v7431
    %7498 = vst [vmem:[%s20 + $0xa8] sm:$0xff] %v7434
    %7499 = vst [vmem:[%s20 + $0xb0] sm:$0xff] %v7439
    %7500 = vst [vmem:[%s20 + $0xb8] sm:$0xff] %v7442
    %7501 = vst [vmem:[%s20 + $0xc0] sm:$0xff] %v7447
    %7502 = vst [vmem:[%s20 + $0xc8] sm:$0xff] %v7450
    %7503 = vst [vmem:[%s20 + $0xd0] sm:$0xff] %v7455
    %7504 = vst [vmem:[%s20 + $0xd8] sm:$0xff] %v7458
    %7505 = vst [vmem:[%s20 + $0xe0] sm:$0xff] %v7463
    %7506 = vst [vmem:[%s20 + $0xe8] sm:$0xff] %v7466
    %7507 = vst [vmem:[%s20 + $0xf0] sm:$0xff] %v7471
    %7508 = vst [vmem:[%s20 + $0xf8] sm:$0xff] %v7474
    // Predicated region
    $region130: #{pointnet_seg_forward.1} parent=1 // pred_check
      _
    $region131: #{pointnet_seg_forward.1} parent=1 // pred_check_branch
      %7510 = sbr.rel (0) target = $region133
    $region132: #{pointnet_seg_forward.1} parent=1 // pred_region
      _
    $region133: #{pointnet_seg_forward.1} parent=1 // pred_fallthru
      _
    // Predicated region
    $region134: #{pointnet_seg_forward.1} parent=1 // pred_check
      _
    $region135: #{pointnet_seg_forward.1} parent=1 // pred_check_branch
      %7512 = sbr.rel (0) target = $region137
    $region136: #{pointnet_seg_forward.1} parent=1 // pred_region
      _
    $region137: #{pointnet_seg_forward.1} parent=1 // pred_fallthru
      _
    %7513 = vsyncpa [#allocation3], 1
    %7514 = vsyncpa [#allocation5], 1
    %7515 = vsyncpa [#allocation8], 1
    %7516 = vsyncpa [#allocation11], 1
    %7517 = vsyncpa [#allocation14], 1
    %7518 = vsyncpa [#allocation17], 1
    %7519 = vsyncpa [#allocation20], 1

</llo_original>
